<compile_context>
chip_gen: v7x
topology: tpu7x:2x2x1
jax: 0.10.0
libtpu: 0.0.40
codegen_flags: <defaults>
</compile_context>

<pallas_src>
import functools
import math

import jax
import jax.numpy as jnp
from jax import lax
from jax.experimental import pallas as pl
from jax.experimental.pallas import tpu as pltpu


# ----------------------------- tiling helpers -----------------------------

def _pick_tile(dim, target, bases=(128, 64, 32, 16, 8, 1)):
    """Largest tile <= target that divides `dim`, preferring coarse alignment.

    The bases list ends in 1, so for dim > target this always returns a proper
    divisor <= target (never the full dim) -- a bad factorization can degrade
    MXU utilization but can never blow the VMEM budget."""
    if dim <= target:
        return dim
    for base in bases:
        t = (target // base) * base
        while t >= base:
            if dim % t == 0:
                return t
            t -= base
    return dim


# 40 MiB: leaves headroom for Mosaic-internal scratch + double-buffered DMAs on
# v7x (64 MiB physical VMEM) and is comfortably below v5e/v6e's 128 MiB.
_VMEM_LIMIT = 40 * 1024 * 1024


# ----------------------------- Pallas kernels -----------------------------

def _project_in_kernel(x_ref, w1_ref, w2_ref, b1_ref, b2_ref,
                       o1_ref, o2_ref, acc1_ref, acc2_ref):
    """Tiled (M,K)@(K,N) matmul with two weight halves -> two outputs (x1, x2)."""
    @pl.when(pl.program_id(2) == 0)
    def _init():
        acc1_ref[...] = jnp.zeros_like(acc1_ref)
        acc2_ref[...] = jnp.zeros_like(acc2_ref)

    x = x_ref[...]
    acc1_ref[...] += jnp.dot(x, w1_ref[...], preferred_element_type=jnp.float32)
    acc2_ref[...] += jnp.dot(x, w2_ref[...], preferred_element_type=jnp.float32)

    @pl.when(pl.program_id(2) == pl.num_programs(2) - 1)
    def _store():
        o1_ref[...] = (acc1_ref[...] + b1_ref[...].astype(jnp.float32)).astype(o1_ref.dtype)
        o2_ref[...] = (acc2_ref[...] + b2_ref[...].astype(jnp.float32)).astype(o2_ref.dtype)


def _matmul_bias_kernel(x_ref, w_ref, b_ref, o_ref, acc_ref):
    """Tiled (M,K)@(K,N) + bias, f32 accumulator, bias fused into the epilogue."""
    @pl.when(pl.program_id(2) == 0)
    def _init():
        acc_ref[...] = jnp.zeros_like(acc_ref)

    acc_ref[...] += jnp.dot(x_ref[...], w_ref[...], preferred_element_type=jnp.float32)

    @pl.when(pl.program_id(2) == pl.num_programs(2) - 1)
    def _store():
        o_ref[...] = (acc_ref[...] + b_ref[...].astype(jnp.float32)).astype(o_ref.dtype)


def _dwconv_gelu_kernel(x1_ref, x1u_ref, x1d_ref, x2_ref, x2u_ref, x2d_ref,
                        w1_ref, w2_ref, b1_ref, b2_ref, o_ref,
                        p1_ref, p2_ref, *, TH, W, W_pad):
    """Depthwise 3x3 (padding=1) on both halves + exact-erf GELU gating, fused.

    Row-band tiled: each grid step processes TH output rows of one channel block.
    x*_ref  : (1, TH, W, Cblk) bf16 activation band (the two chunks)
    x*u_ref : (1, 1, W, Cblk)  row just above the band (clamped; masked at top)
    x*d_ref : (1, 1, W, Cblk)  row just below the band (clamped; masked at bottom)
    w*_ref  : (3, 3, Cblk) depthwise weights,   b*_ref : (1, Cblk) biases
    p*_ref  : (1, TH+2, W_pad, Cblk) bf16 VMEM scratch (halo-padded band)
    """
    r = pl.program_id(2)
    is_first = r == 0
    is_last = r == pl.num_programs(2) - 1
    cblk = o_ref.shape[-1]

    def fill(p_ref, x_ref, xu_ref, xd_ref):
        # interior: copied once (no full-slab zero-fill + overwrite)
        p_ref[:, 1:TH + 1, 1:W + 1, :] = x_ref[...]
        # top/bottom halo rows: neighbour rows, or zeros at the image border
        xu = xu_ref[...]
        xd = xd_ref[...]
        p_ref[:, 0:1, 1:W + 1, :] = jnp.where(is_first, jnp.zeros_like(xu), xu)
        p_ref[:, TH + 1:TH + 2, 1:W + 1, :] = jnp.where(is_last, jnp.zeros_like(xd), xd)
        # left/right halo columns (and the 8-sublane alignment tail): zero only these
        p_ref[:, :, 0:1, :] = jnp.zeros((1, TH + 2, 1, cblk), p_ref.dtype)
        p_ref[:, :, W + 1:W_pad, :] = jnp.zeros((1, TH + 2, W_pad - (W + 1), cblk), p_ref.dtype)

    fill(p1_ref, x1_ref, x1u_ref, x1d_ref)
    fill(p2_ref, x2_ref, x2u_ref, x2d_ref)

    w1 = w1_ref[...].astype(jnp.float32)
    w2 = w2_ref[...].astype(jnp.float32)

    acc1 = jnp.zeros(o_ref.shape, jnp.float32)
    acc2 = jnp.zeros(o_ref.shape, jnp.float32)
    # TODO(synk): on v6e/v7x the 9 tap multiplies could run packed-bf16 on the VPU
    # (f32 accumulate) to halve VALU pressure; kept f32 for v5e portability/accuracy.
    for di in range(3):
        for dj in range(3):
            w1t = w1[di:di + 1, dj:dj + 1, :]
            w2t = w2[di:di + 1, dj:dj + 1, :]
            acc1 = acc1 + p1_ref[:, di:di + TH, dj:dj + W, :].astype(jnp.float32) * w1t
            acc2 = acc2 + p2_ref[:, di:di + TH, dj:dj + W, :].astype(jnp.float32) * w2t

    acc1 = acc1 + b1_ref[...].astype(jnp.float32)
    acc2 = acc2 + b2_ref[...].astype(jnp.float32)

    # F.gelu default: exact (erf) GELU; math kept in f32 (v5e VPU/EUP have no bf16).
    g = 0.5 * acc1 * (1.0 + lax.erf(acc1 * (1.0 / math.sqrt(2.0))))
    o_ref[...] = (g * acc2).astype(o_ref.dtype)


# ----------------------------- pallas_call wrappers -----------------------------

def project_in(x2d, w1, w2, b1, b2, *, out_dtype=jnp.bfloat16,
               tm=256, tn=1024, tk=1024):
    """(M, K) @ (K, hidden) twice (shared LHS), bias fused. Returns (y1, y2).

    tn/tk targets are large so that for typical Restormer dims the weights are
    fully VMEM-resident and the activation matrix streams from HBM exactly once."""
    M, K = x2d.shape
    N = w1.shape[1]
    tm = _pick_tile(M, tm)
    tn = _pick_tile(N, tn)
    tk = _pick_tile(K, tk)
    if M // tm == 1 and N // tn == 1 and tm >= 256 and tm % 2 == 0:
        tm //= 2  # expose >=2 parallel programs so both v7x TensorCores are busy
    grid = (M // tm, N // tn, K // tk)

    out_blk = pl.BlockSpec((tm, tn), lambda i, j, k: (i, j))
    return pl.pallas_call(
        _project_in_kernel,
        out_shape=(jax.ShapeDtypeStruct((M, N), out_dtype),
                   jax.ShapeDtypeStruct((M, N), out_dtype)),
        grid_spec=pltpu.PrefetchScalarGridSpec(
            num_scalar_prefetch=0, grid=grid,
            in_specs=[pl.BlockSpec((tm, tk), lambda i, j, k: (i, k)),
                      pl.BlockSpec((tk, tn), lambda i, j, k: (k, j)),
                      pl.BlockSpec((tk, tn), lambda i, j, k: (k, j)),
                      pl.BlockSpec((1, tn), lambda i, j, k: (0, j)),
                      pl.BlockSpec((1, tn), lambda i, j, k: (0, j))],
            out_specs=[out_blk, out_blk],
            scratch_shapes=[pltpu.VMEM((tm, tn), jnp.float32),
                            pltpu.VMEM((tm, tn), jnp.float32)]),
        compiler_params=pltpu.CompilerParams(
            dimension_semantics=("parallel", "parallel", "arbitrary"),
            vmem_limit_bytes=_VMEM_LIMIT),
    )(x2d, w1, w2, b1, b2)


def matmul_bias(x2d, w, b, *, out_dtype=jnp.bfloat16, tm=256, tn=1024, tk=1024):
    M, K = x2d.shape
    N = w.shape[1]
    tm = _pick_tile(M, tm)
    tn = _pick_tile(N, tn)
    tk = _pick_tile(K, tk)
    if M // tm == 1 and N // tn == 1 and tm >= 256 and tm % 2 == 0:
        tm //= 2
    grid = (M // tm, N // tn, K // tk)

    return pl.pallas_call(
        _matmul_bias_kernel,
        out_shape=jax.ShapeDtypeStruct((M, N), out_dtype),
        grid_spec=pltpu.PrefetchScalarGridSpec(
            num_scalar_prefetch=0, grid=grid,
            in_specs=[pl.BlockSpec((tm, tk), lambda i, j, k: (i, k)),
                      pl.BlockSpec((tk, tn), lambda i, j, k: (k, j)),
                      pl.BlockSpec((1, tn), lambda i, j, k: (0, j))],
            out_specs=pl.BlockSpec((tm, tn), lambda i, j, k: (i, j)),
            scratch_shapes=[pltpu.VMEM((tm, tn), jnp.float32)]),
        compiler_params=pltpu.CompilerParams(
            dimension_semantics=("parallel", "parallel", "arbitrary"),
            vmem_limit_bytes=_VMEM_LIMIT),
    )(x2d, w, b)


def dwconv_gelu(y1, y2, dw_w1, dw_w2, dw_b1, dw_b2, *, out_dtype=jnp.bfloat16,
                c_target=128, band_bytes=2 * 1024 * 1024):
    """Fused depthwise-3x3 (pad=1) on both halves + gelu(x1)*x2.

    Tiled over (batch, channel blocks, row bands); the 1-row halo above/below each
    band is fetched via two extra 1-row BlockSpec inputs with clamped index maps
    and masked in-kernel at the image borders, so VMEM is bounded regardless of H."""
    B, H, W, Ch = y1.shape
    cblk = _pick_tile(Ch, c_target)

    # Row-band height: keep each bf16 activation band around `band_bytes`.
    th_target = max(1, band_bytes // max(1, W * cblk * 2))
    TH = _pick_tile(H, min(H, th_target), bases=(8, 4, 2, 1))
    nb = H // TH
    if B * (Ch // cblk) * nb == 1 and TH % 2 == 0 and TH >= 2:
        TH //= 2                       # give the second v7x TensorCore something to do
        nb = H // TH
    W_pad = ((W + 2 + 7) // 8) * 8     # 8-sublane aligned scratch width

    grid = (B, Ch // cblk, nb)

    cur_blk = pl.BlockSpec((1, TH, W, cblk), lambda b, c, r: (b, r, 0, c))
    up_blk = pl.BlockSpec((1, 1, W, cblk),
                          lambda b, c, r: (b, jnp.maximum(r * TH - 1, 0), 0, c))
    dn_blk = pl.BlockSpec((1, 1, W, cblk),
                          lambda b, c, r: (b, jnp.minimum((r + 1) * TH, H - 1), 0, c))
    wgt_blk = pl.BlockSpec((3, 3, cblk), lambda b, c, r: (0, 0, c))
    bia_blk = pl.BlockSpec((1, cblk), lambda b, c, r: (0, c))

    return pl.pallas_call(
        functools.partial(_dwconv_gelu_kernel, TH=TH, W=W, W_pad=W_pad),
        out_shape=jax.ShapeDtypeStruct((B, H, W, Ch), out_dtype),
        grid_spec=pltpu.PrefetchScalarGridSpec(
            num_scalar_prefetch=0, grid=grid,
            in_specs=[cur_blk, up_blk, dn_blk,
                      cur_blk, up_blk, dn_blk,
                      wgt_blk, wgt_blk, bia_blk, bia_blk],
            out_specs=cur_blk,
            scratch_shapes=[pltpu.VMEM((1, TH + 2, W_pad, cblk), y1.dtype),
                            pltpu.VMEM((1, TH + 2, W_pad, cblk), y2.dtype)]),
        compiler_params=pltpu.CompilerParams(
            dimension_semantics=("parallel", "parallel", "parallel"),
            vmem_limit_bytes=_VMEM_LIMIT),
    )(y1, y1, y1, y2, y2, y2, dw_w1, dw_w2, dw_b1, dw_b2)


# ----------------------------- model glue -----------------------------

def init_params(key, dim, ffn_expansion_factor, bias=True):
    hidden = int(dim * ffn_expansion_factor)
    ks = jax.random.split(key, 6)

    def rnd(k, shape, scale):
        return (scale * jax.random.normal(k, shape)).astype(jnp.float32)

    def maybe_bias(k, n, scale=0.02):
        return rnd(k, (n,), scale) if bias else jnp.zeros((n,), jnp.float32)

    # NOTE: loading real PyTorch weights requires permuting layouts:
    #   Conv2d 1x1 weight (out, in, 1, 1)        -> (in, out)
    #   depthwise weight  (2*hidden, 1, 3, 3)    -> (3, 3, 2*hidden)
    return dict(
        w_in=rnd(ks[0], (dim, 2 * hidden), 1.0 / math.sqrt(dim)),
        b_in=maybe_bias(ks[1], 2 * hidden),
        dw_w=rnd(ks[2], (3, 3, 2 * hidden), 1.0 / 3.0),
        dw_b=maybe_bias(ks[3], 2 * hidden),
        w_out=rnd(ks[4], (hidden, dim), 1.0 / math.sqrt(hidden)),
        b_out=maybe_bias(ks[5], dim),
    )


def feed_forward(x_nchw, params):
    B, C, H, W = x_nchw.shape
    hidden2 = params['w_in'].shape[1]
    hidden = hidden2 // 2
    M = B * H * W

    # NCHW -> NHWC -> (M, C); bf16 MXU operands, f32 accumulation inside the kernels.
    x2d = jnp.transpose(x_nchw, (0, 2, 3, 1)).reshape(M, C).astype(jnp.bfloat16)

    # project_in (1x1 conv); weight split so x1/x2 come out as separate lane-dense tensors.
    w_in = params['w_in'].astype(jnp.bfloat16)
    y1, y2 = project_in(
        x2d,
        w_in[:, :hidden], w_in[:, hidden:],
        params['b_in'][:hidden].reshape(1, hidden),
        params['b_in'][hidden:].reshape(1, hidden),
        out_dtype=jnp.bfloat16)
    y1 = y1.reshape(B, H, W, hidden)
    y2 = y2.reshape(B, H, W, hidden)

    # fused depthwise 3x3 (padding=1) + chunk + gelu(x1) * x2, row-band tiled
    g = dwconv_gelu(
        y1, y2,
        params['dw_w'][..., :hidden], params['dw_w'][..., hidden:],
        params['dw_b'][:hidden].reshape(1, hidden),
        params['dw_b'][hidden:].reshape(1, hidden),
        out_dtype=jnp.bfloat16)

    # project_out (1x1 conv) in bf16; single f32 cast after the final transpose.
    out = matmul_bias(
        g.reshape(M, hidden),
        params['w_out'].astype(jnp.bfloat16),
        params['b_out'].reshape(1, C),
        out_dtype=jnp.bfloat16)

    out = out.reshape(B, H, W, C).transpose(0, 3, 1, 2)   # NHWC -> NCHW in bf16
    return out.astype(jnp.float32)


if __name__ == "__main__":
    dim, ffn_expansion_factor = 16, 2.0       # hidden = 32
    B, H, W = 2, 16, 16

    key = jax.random.PRNGKey(0)
    kx, kp = jax.random.split(key)
    x = jax.random.normal(kx, (B, dim, H, W), dtype=jnp.float32)   # NCHW like PyTorch
    params = init_params(kp, dim, ffn_expansion_factor, bias=True)

    fwd = jax.jit(feed_forward)
    out = jax.block_until_ready(fwd(x, params))

    assert out.shape == (B, dim, H, W)
    assert bool(jnp.all(jnp.isfinite(out)))
    print("KERNEL_OK")
</pallas_src>

<mosaic_0001>
module attributes {stable_mosaic.version = 11 : i64} {
  func.func @_project_in_kernel(%arg0: i32, %arg1: i32, %arg2: i32, %arg3: memref<256x16xbf16, #tpu.memory_space<vmem>>, %arg4: memref<16x32xbf16, #tpu.memory_space<vmem>>, %arg5: memref<16x32xbf16, #tpu.memory_space<vmem>>, %arg6: memref<1x32xf32, #tpu.memory_space<vmem>>, %arg7: memref<1x32xf32, #tpu.memory_space<vmem>>, %arg8: memref<256x32xbf16, #tpu.memory_space<vmem>>, %arg9: memref<256x32xbf16, #tpu.memory_space<vmem>>, %arg10: memref<256x32xf32, #tpu.memory_space<vmem>>, %arg11: memref<256x32xf32, #tpu.memory_space<vmem>>) attributes {dimension_semantics = [#tpu.dimension_semantics<parallel>, #tpu.dimension_semantics<parallel>, #tpu.dimension_semantics<arbitrary>], iteration_bounds = array<i64: 2, 1, 1>, scalar_prefetch = 0 : i64, scratch_operands = 2 : i64, tpu.core_type = #tpu.core_type<tc>, window_params = [{transform_indices = @transform_0, window_bounds = array<i64: 256, 16>}, {transform_indices = @transform_1, window_bounds = array<i64: 16, 32>}, {transform_indices = @transform_2, window_bounds = array<i64: 16, 32>}, {transform_indices = @transform_3, window_bounds = array<i64: 1, 32>}, {transform_indices = @transform_4, window_bounds = array<i64: 1, 32>}, {transform_indices = @transform_5, window_bounds = array<i64: 256, 32>}, {transform_indices = @transform_6, window_bounds = array<i64: 256, 32>}]} {
    %c0_i32 = arith.constant 0 : i32
    %0 = arith.cmpi eq, %arg2, %c0_i32 : i32
    %1 = arith.extui %0 : i1 to i32
    %c0_i32_0 = arith.constant 0 : i32
    %2 = arith.cmpi ne, %1, %c0_i32_0 : i32
    scf.if %2 {
      %cst_17 = arith.constant 0.000000e+00 : f32
      %17 = vector.broadcast %cst_17 : f32 to vector<256x32xf32>
      %c0_18 = arith.constant 0 : index
      %c0_19 = arith.constant 0 : index
      %18 = vector.load %arg10[%c0_18, %c0_19] : memref<256x32xf32, #tpu.memory_space<vmem>>, vector<256x32xf32>
      tpu.vector_store %arg10[%c0_18, %c0_19], %17 {strides = array<i32>} : memref<256x32xf32, #tpu.memory_space<vmem>>, vector<256x32xf32>,
      %cst_20 = arith.constant 0.000000e+00 : f32
      %19 = vector.broadcast %cst_20 : f32 to vector<256x32xf32>
      %c0_21 = arith.constant 0 : index
      %c0_22 = arith.constant 0 : index
      %20 = vector.load %arg11[%c0_21, %c0_22] : memref<256x32xf32, #tpu.memory_space<vmem>>, vector<256x32xf32>
      tpu.vector_store %arg11[%c0_21, %c0_22], %19 {strides = array<i32>} : memref<256x32xf32, #tpu.memory_space<vmem>>, vector<256x32xf32>,
    } else {
    }
    %c0 = arith.constant 0 : index
    %c0_1 = arith.constant 0 : index
    %3 = vector.load %arg3[%c0, %c0_1] : memref<256x16xbf16, #tpu.memory_space<vmem>>, vector<256x16xbf16>
    %c0_2 = arith.constant 0 : index
    %c0_3 = arith.constant 0 : index
    %4 = vector.load %arg10[%c0_2, %c0_3] : memref<256x32xf32, #tpu.memory_space<vmem>>, vector<256x32xf32>
    %c0_4 = arith.constant 0 : index
    %c0_5 = arith.constant 0 : index
    %5 = vector.load %arg4[%c0_4, %c0_5] : memref<16x32xbf16, #tpu.memory_space<vmem>>, vector<16x32xbf16>
    %cst = arith.constant dense<0.000000e+00> : vector<256x32xf32>
    %6 = tpu.matmul %3, %5, %cst {dimension_numbers = #tpu.dot_dimension_numbers<[1], [0], [0], [1], [0, 0, 1, 1], [], []>} : vector<256x16xbf16>, vector<16x32xbf16>, vector<256x32xf32> -> vector<256x32xf32>
    %7 = arith.addf %4, %6 : vector<256x32xf32>
    %c0_6 = arith.constant 0 : index
    %c0_7 = arith.constant 0 : index
    %8 = vector.load %arg10[%c0_6, %c0_7] : memref<256x32xf32, #tpu.memory_space<vmem>>, vector<256x32xf32>
    tpu.vector_store %arg10[%c0_6, %c0_7], %7 {strides = array<i32>} : memref<256x32xf32, #tpu.memory_space<vmem>>, vector<256x32xf32>,
    %c0_8 = arith.constant 0 : index
    %c0_9 = arith.constant 0 : index
    %9 = vector.load %arg11[%c0_8, %c0_9] : memref<256x32xf32, #tpu.memory_space<vmem>>, vector<256x32xf32>
    %c0_10 = arith.constant 0 : index
    %c0_11 = arith.constant 0 : index
    %10 = vector.load %arg5[%c0_10, %c0_11] : memref<16x32xbf16, #tpu.memory_space<vmem>>, vector<16x32xbf16>
    %cst_12 = arith.constant dense<0.000000e+00> : vector<256x32xf32>
    %11 = tpu.matmul %3, %10, %cst_12 {dimension_numbers = #tpu.dot_dimension_numbers<[1], [0], [0], [1], [0, 0, 1, 1], [], []>} : vector<256x16xbf16>, vector<16x32xbf16>, vector<256x32xf32> -> vector<256x32xf32>
    %12 = arith.addf %9, %11 : vector<256x32xf32>
    %c0_13 = arith.constant 0 : index
    %c0_14 = arith.constant 0 : index
    %13 = vector.load %arg11[%c0_13, %c0_14] : memref<256x32xf32, #tpu.memory_space<vmem>>, vector<256x32xf32>
    tpu.vector_store %arg11[%c0_13, %c0_14], %12 {strides = array<i32>} : memref<256x32xf32, #tpu.memory_space<vmem>>, vector<256x32xf32>,
    %c0_i32_15 = arith.constant 0 : i32
    %14 = arith.cmpi eq, %arg2, %c0_i32_15 : i32
    %15 = arith.extui %14 : i1 to i32
    %c0_i32_16 = arith.constant 0 : i32
    %16 = arith.cmpi ne, %15, %c0_i32_16 : i32
    scf.if %16 {
      %c0_17 = arith.constant 0 : index
      %c0_18 = arith.constant 0 : index
      %17 = vector.load %arg10[%c0_17, %c0_18] : memref<256x32xf32, #tpu.memory_space<vmem>>, vector<256x32xf32>
      %c0_19 = arith.constant 0 : index
      %c0_20 = arith.constant 0 : index
      %18 = vector.load %arg6[%c0_19, %c0_20] : memref<1x32xf32, #tpu.memory_space<vmem>>, vector<1x32xf32>
      %19 = vector.broadcast %18 : vector<1x32xf32> to vector<256x32xf32>
      %20 = arith.addf %17, %19 : vector<256x32xf32>
      %21 = arith.truncf %20 : vector<256x32xf32> to vector<256x32xbf16>
      %c0_21 = arith.constant 0 : index
      %c0_22 = arith.constant 0 : index
      %22 = vector.load %arg8[%c0_21, %c0_22] : memref<256x32xbf16, #tpu.memory_space<vmem>>, vector<256x32xbf16>
      tpu.vector_store %arg8[%c0_21, %c0_22], %21 {strides = array<i32>} : memref<256x32xbf16, #tpu.memory_space<vmem>>, vector<256x32xbf16>,
      %c0_23 = arith.constant 0 : index
      %c0_24 = arith.constant 0 : index
      %23 = vector.load %arg11[%c0_23, %c0_24] : memref<256x32xf32, #tpu.memory_space<vmem>>, vector<256x32xf32>
      %c0_25 = arith.constant 0 : index
      %c0_26 = arith.constant 0 : index
      %24 = vector.load %arg7[%c0_25, %c0_26] : memref<1x32xf32, #tpu.memory_space<vmem>>, vector<1x32xf32>
      %25 = vector.broadcast %24 : vector<1x32xf32> to vector<256x32xf32>
      %26 = arith.addf %23, %25 : vector<256x32xf32>
      %27 = arith.truncf %26 : vector<256x32xf32> to vector<256x32xbf16>
      %c0_27 = arith.constant 0 : index
      %c0_28 = arith.constant 0 : index
      %28 = vector.load %arg9[%c0_27, %c0_28] : memref<256x32xbf16, #tpu.memory_space<vmem>>, vector<256x32xbf16>
      tpu.vector_store %arg9[%c0_27, %c0_28], %27 {strides = array<i32>} : memref<256x32xbf16, #tpu.memory_space<vmem>>, vector<256x32xbf16>,
    } else {
    }
    return
  }
  func.func @transform_0(%arg0: i32, %arg1: i32, %arg2: i32) -> (i32, i32) {
    %c0_i32 = arith.constant 0 : i32
    return %arg0, %arg2 : i32, i32
  }
  func.func @transform_1(%arg0: i32, %arg1: i32, %arg2: i32) -> (i32, i32) {
    %c0_i32 = arith.constant 0 : i32
    return %arg2, %arg1 : i32, i32
  }
  func.func @transform_2(%arg0: i32, %arg1: i32, %arg2: i32) -> (i32, i32) {
    %c0_i32 = arith.constant 0 : i32
    return %arg2, %arg1 : i32, i32
  }
  func.func @transform_3(%arg0: i32, %arg1: i32, %arg2: i32) -> (i32, i32) {
    %c0_i32 = arith.constant 0 : i32
    %c0_i32_0 = arith.constant 0 : i32
    return %c0_i32, %arg1 : i32, i32
  }
  func.func @transform_4(%arg0: i32, %arg1: i32, %arg2: i32) -> (i32, i32) {
    %c0_i32 = arith.constant 0 : i32
    %c0_i32_0 = arith.constant 0 : i32
    return %c0_i32, %arg1 : i32, i32
  }
  func.func @transform_5(%arg0: i32, %arg1: i32, %arg2: i32) -> (i32, i32) {
    %c0_i32 = arith.constant 0 : i32
    return %arg0, %arg1 : i32, i32
  }
  func.func @transform_6(%arg0: i32, %arg1: i32, %arg2: i32) -> (i32, i32) {
    %c0_i32 = arith.constant 0 : i32
    return %arg0, %arg1 : i32, i32
  }
}

module attributes {stable_mosaic.version = 11 : i64} {
  func.func @_matmul_bias_kernel(%arg0: i32, %arg1: i32, %arg2: i32, %arg3: memref<256x32xbf16, #tpu.memory_space<vmem>>, %arg4: memref<32x16xbf16, #tpu.memory_space<vmem>>, %arg5: memref<1x16xf32, #tpu.memory_space<vmem>>, %arg6: memref<256x16xbf16, #tpu.memory_space<vmem>>, %arg7: memref<256x16xf32, #tpu.memory_space<vmem>>) attributes {dimension_semantics = [#tpu.dimension_semantics<parallel>, #tpu.dimension_semantics<parallel>, #tpu.dimension_semantics<arbitrary>], iteration_bounds = array<i64: 2, 1, 1>, scalar_prefetch = 0 : i64, scratch_operands = 1 : i64, tpu.core_type = #tpu.core_type<tc>, window_params = [{transform_indices = @transform_0, window_bounds = array<i64: 256, 32>}, {transform_indices = @transform_1, window_bounds = array<i64: 32, 16>}, {transform_indices = @transform_2, window_bounds = array<i64: 1, 16>}, {transform_indices = @transform_3, window_bounds = array<i64: 256, 16>}]} {
    %c0_i32 = arith.constant 0 : i32
    %0 = arith.cmpi eq, %arg2, %c0_i32 : i32
    %1 = arith.extui %0 : i1 to i32
    %c0_i32_0 = arith.constant 0 : i32
    %2 = arith.cmpi ne, %1, %c0_i32_0 : i32
    scf.if %2 {
      %cst_10 = arith.constant 0.000000e+00 : f32
      %12 = vector.broadcast %cst_10 : f32 to vector<256x16xf32>
      %c0_11 = arith.constant 0 : index
      %c0_12 = arith.constant 0 : index
      %13 = vector.load %arg7[%c0_11, %c0_12] : memref<256x16xf32, #tpu.memory_space<vmem>>, vector<256x16xf32>
      tpu.vector_store %arg7[%c0_11, %c0_12], %12 {strides = array<i32>} : memref<256x16xf32, #tpu.memory_space<vmem>>, vector<256x16xf32>,
    } else {
    }
    %c0 = arith.constant 0 : index
    %c0_1 = arith.constant 0 : index
    %3 = vector.load %arg7[%c0, %c0_1] : memref<256x16xf32, #tpu.memory_space<vmem>>, vector<256x16xf32>
    %c0_2 = arith.constant 0 : index
    %c0_3 = arith.constant 0 : index
    %4 = vector.load %arg3[%c0_2, %c0_3] : memref<256x32xbf16, #tpu.memory_space<vmem>>, vector<256x32xbf16>
    %c0_4 = arith.constant 0 : index
    %c0_5 = arith.constant 0 : index
    %5 = vector.load %arg4[%c0_4, %c0_5] : memref<32x16xbf16, #tpu.memory_space<vmem>>, vector<32x16xbf16>
    %cst = arith.constant dense<0.000000e+00> : vector<256x16xf32>
    %6 = tpu.matmul %4, %5, %cst {dimension_numbers = #tpu.dot_dimension_numbers<[1], [0], [0], [1], [0, 0, 1, 1], [], []>} : vector<256x32xbf16>, vector<32x16xbf16>, vector<256x16xf32> -> vector<256x16xf32>
    %7 = arith.addf %3, %6 : vector<256x16xf32>
    %c0_6 = arith.constant 0 : index
    %c0_7 = arith.constant 0 : index
    %8 = vector.load %arg7[%c0_6, %c0_7] : memref<256x16xf32, #tpu.memory_space<vmem>>, vector<256x16xf32>
    tpu.vector_store %arg7[%c0_6, %c0_7], %7 {strides = array<i32>} : memref<256x16xf32, #tpu.memory_space<vmem>>, vector<256x16xf32>,
    %c0_i32_8 = arith.constant 0 : i32
    %9 = arith.cmpi eq, %arg2, %c0_i32_8 : i32
    %10 = arith.extui %9 : i1 to i32
    %c0_i32_9 = arith.constant 0 : i32
    %11 = arith.cmpi ne, %10, %c0_i32_9 : i32
    scf.if %11 {
      %c0_10 = arith.constant 0 : index
      %c0_11 = arith.constant 0 : index
      %12 = vector.load %arg7[%c0_10, %c0_11] : memref<256x16xf32, #tpu.memory_space<vmem>>, vector<256x16xf32>
      %c0_12 = arith.constant 0 : index
      %c0_13 = arith.constant 0 : index
      %13 = vector.load %arg5[%c0_12, %c0_13] : memref<1x16xf32, #tpu.memory_space<vmem>>, vector<1x16xf32>
      %14 = vector.broadcast %13 : vector<1x16xf32> to vector<256x16xf32>
      %15 = arith.addf %12, %14 : vector<256x16xf32>
      %16 = arith.truncf %15 : vector<256x16xf32> to vector<256x16xbf16>
      %c0_14 = arith.constant 0 : index
      %c0_15 = arith.constant 0 : index
      %17 = vector.load %arg6[%c0_14, %c0_15] : memref<256x16xbf16, #tpu.memory_space<vmem>>, vector<256x16xbf16>
      tpu.vector_store %arg6[%c0_14, %c0_15], %16 {strides = array<i32>} : memref<256x16xbf16, #tpu.memory_space<vmem>>, vector<256x16xbf16>,
    } else {
    }
    return
  }
  func.func @transform_0(%arg0: i32, %arg1: i32, %arg2: i32) -> (i32, i32) {
    %c0_i32 = arith.constant 0 : i32
    return %arg0, %arg2 : i32, i32
  }
  func.func @transform_1(%arg0: i32, %arg1: i32, %arg2: i32) -> (i32, i32) {
    %c0_i32 = arith.constant 0 : i32
    return %arg2, %arg1 : i32, i32
  }
  func.func @transform_2(%arg0: i32, %arg1: i32, %arg2: i32) -> (i32, i32) {
    %c0_i32 = arith.constant 0 : i32
    %c0_i32_0 = arith.constant 0 : i32
    return %c0_i32, %arg1 : i32, i32
  }
  func.func @transform_3(%arg0: i32, %arg1: i32, %arg2: i32) -> (i32, i32) {
    %c0_i32 = arith.constant 0 : i32
    return %arg0, %arg1 : i32, i32
  }
}

module attributes {stable_mosaic.version = 11 : i64} {
  func.func @_dwconv_gelu_kernel(%arg0: i32, %arg1: i32, %arg2: i32, %arg3: memref<1x16x16x32xbf16, #tpu.memory_space<vmem>>, %arg4: memref<1x1x16x32xbf16, #tpu.memory_space<vmem>>, %arg5: memref<1x1x16x32xbf16, #tpu.memory_space<vmem>>, %arg6: memref<1x16x16x32xbf16, #tpu.memory_space<vmem>>, %arg7: memref<1x1x16x32xbf16, #tpu.memory_space<vmem>>, %arg8: memref<1x1x16x32xbf16, #tpu.memory_space<vmem>>, %arg9: memref<3x3x32xf32, #tpu.memory_space<vmem>>, %arg10: memref<3x3x32xf32, #tpu.memory_space<vmem>>, %arg11: memref<1x32xf32, #tpu.memory_space<vmem>>, %arg12: memref<1x32xf32, #tpu.memory_space<vmem>>, %arg13: memref<1x16x16x32xbf16, #tpu.memory_space<vmem>>, %arg14: memref<1x18x24x32xbf16, #tpu.memory_space<vmem>>, %arg15: memref<1x18x24x32xbf16, #tpu.memory_space<vmem>>) attributes {dimension_semantics = [#tpu.dimension_semantics<parallel>, #tpu.dimension_semantics<parallel>, #tpu.dimension_semantics<parallel>], iteration_bounds = array<i64: 2, 1, 1>, scalar_prefetch = 0 : i64, scratch_operands = 2 : i64, tpu.core_type = #tpu.core_type<tc>, window_params = [{transform_indices = @transform_0, window_bounds = array<i64: 1, 16, 16, 32>}, {transform_indices = @transform_1, window_bounds = array<i64: 1, 1, 16, 32>}, {transform_indices = @transform_2, window_bounds = array<i64: 1, 1, 16, 32>}, {transform_indices = @transform_3, window_bounds = array<i64: 1, 16, 16, 32>}, {transform_indices = @transform_4, window_bounds = array<i64: 1, 1, 16, 32>}, {transform_indices = @transform_5, window_bounds = array<i64: 1, 1, 16, 32>}, {transform_indices = @transform_6, window_bounds = array<i64: 3, 3, 32>}, {transform_indices = @transform_7, window_bounds = array<i64: 3, 3, 32>}, {transform_indices = @transform_8, window_bounds = array<i64: 1, 32>}, {transform_indices = @transform_9, window_bounds = array<i64: 1, 32>}, {transform_indices = @transform_10, window_bounds = array<i64: 1, 16, 16, 32>}]} {
    %c0_i32 = arith.constant 0 : i32
    %0 = arith.cmpi eq, %arg2, %c0_i32 : i32
    %c0_i32_0 = arith.constant 0 : i32
    %1 = arith.cmpi eq, %arg2, %c0_i32_0 : i32
    %c0 = arith.constant 0 : index
    %c0_1 = arith.constant 0 : index
    %c0_2 = arith.constant 0 : index
    %c0_3 = arith.constant 0 : index
    %2 = vector.load %arg3[%c0, %c0_1, %c0_2, %c0_3] : memref<1x16x16x32xbf16, #tpu.memory_space<vmem>>, vector<1x16x16x32xbf16>
    %c0_4 = arith.constant 0 : index
    %c1 = arith.constant 1 : index
    %c1_5 = arith.constant 1 : index
    %c0_6 = arith.constant 0 : index
    %3 = vector.load %arg14[%c0_4, %c1, %c1_5, %c0_6] : memref<1x18x24x32xbf16, #tpu.memory_space<vmem>>, vector<1x16x16x32xbf16>
    tpu.vector_store %arg14[%c0_4, %c1, %c1_5, %c0_6], %2 {strides = array<i32>} : memref<1x18x24x32xbf16, #tpu.memory_space<vmem>>, vector<1x16x16x32xbf16>,
    %c0_7 = arith.constant 0 : index
    %c0_8 = arith.constant 0 : index
    %c0_9 = arith.constant 0 : index
    %c0_10 = arith.constant 0 : index
    %4 = vector.load %arg4[%c0_7, %c0_8, %c0_9, %c0_10] : memref<1x1x16x32xbf16, #tpu.memory_space<vmem>>, vector<1x1x16x32xbf16>
    %c0_11 = arith.constant 0 : index
    %c0_12 = arith.constant 0 : index
    %c0_13 = arith.constant 0 : index
    %c0_14 = arith.constant 0 : index
    %5 = vector.load %arg5[%c0_11, %c0_12, %c0_13, %c0_14] : memref<1x1x16x32xbf16, #tpu.memory_space<vmem>>, vector<1x1x16x32xbf16>
    %cst = arith.constant 0.000000e+00 : bf16
    %6 = vector.broadcast %cst : bf16 to vector<1x1x16x32xbf16>
    %7 = arith.select %0, %6, %4 : vector<1x1x16x32xbf16>
    %c0_15 = arith.constant 0 : index
    %c0_16 = arith.constant 0 : index
    %c1_17 = arith.constant 1 : index
    %c0_18 = arith.constant 0 : index
    %8 = vector.load %arg14[%c0_15, %c0_16, %c1_17, %c0_18] : memref<1x18x24x32xbf16, #tpu.memory_space<vmem>>, vector<1x1x16x32xbf16>
    tpu.vector_store %arg14[%c0_15, %c0_16, %c1_17, %c0_18], %7 {strides = array<i32>} : memref<1x18x24x32xbf16, #tpu.memory_space<vmem>>, vector<1x1x16x32xbf16>,
    %cst_19 = arith.constant 0.000000e+00 : bf16
    %9 = vector.broadcast %cst_19 : bf16 to vector<1x1x16x32xbf16>
    %10 = arith.select %1, %9, %5 : vector<1x1x16x32xbf16>
    %c0_20 = arith.constant 0 : index
    %c17 = arith.constant 17 : index
    %c1_21 = arith.constant 1 : index
    %c0_22 = arith.constant 0 : index
    %11 = vector.load %arg14[%c0_20, %c17, %c1_21, %c0_22] : memref<1x18x24x32xbf16, #tpu.memory_space<vmem>>, vector<1x1x16x32xbf16>
    tpu.vector_store %arg14[%c0_20, %c17, %c1_21, %c0_22], %10 {strides = array<i32>} : memref<1x18x24x32xbf16, #tpu.memory_space<vmem>>, vector<1x1x16x32xbf16>,
    %cst_23 = arith.constant 0.000000e+00 : bf16
    %12 = vector.broadcast %cst_23 : bf16 to vector<1x18x1x32xbf16>
    %c0_24 = arith.constant 0 : index
    %c0_25 = arith.constant 0 : index
    %c0_26 = arith.constant 0 : index
    %c0_27 = arith.constant 0 : index
    %13 = vector.load %arg14[%c0_24, %c0_25, %c0_26, %c0_27] : memref<1x18x24x32xbf16, #tpu.memory_space<vmem>>, vector<1x18x1x32xbf16>
    tpu.vector_store %arg14[%c0_24, %c0_25, %c0_26, %c0_27], %12 {strides = array<i32>} : memref<1x18x24x32xbf16, #tpu.memory_space<vmem>>, vector<1x18x1x32xbf16>,
    %cst_28 = arith.constant 0.000000e+00 : bf16
    %14 = vector.broadcast %cst_28 : bf16 to vector<1x18x7x32xbf16>
    %c0_29 = arith.constant 0 : index
    %c0_30 = arith.constant 0 : index
    %c17_31 = arith.constant 17 : index
    %c0_32 = arith.constant 0 : index
    %15 = vector.load %arg14[%c0_29, %c0_30, %c17_31, %c0_32] : memref<1x18x24x32xbf16, #tpu.memory_space<vmem>>, vector<1x18x7x32xbf16>
    tpu.vector_store %arg14[%c0_29, %c0_30, %c17_31, %c0_32], %14 {strides = array<i32>} : memref<1x18x24x32xbf16, #tpu.memory_space<vmem>>, vector<1x18x7x32xbf16>,
    %c0_33 = arith.constant 0 : index
    %c0_34 = arith.constant 0 : index
    %c0_35 = arith.constant 0 : index
    %c0_36 = arith.constant 0 : index
    %16 = vector.load %arg6[%c0_33, %c0_34, %c0_35, %c0_36] : memref<1x16x16x32xbf16, #tpu.memory_space<vmem>>, vector<1x16x16x32xbf16>
    %c0_37 = arith.constant 0 : index
    %c1_38 = arith.constant 1 : index
    %c1_39 = arith.constant 1 : index
    %c0_40 = arith.constant 0 : index
    %17 = vector.load %arg15[%c0_37, %c1_38, %c1_39, %c0_40] : memref<1x18x24x32xbf16, #tpu.memory_space<vmem>>, vector<1x16x16x32xbf16>
    tpu.vector_store %arg15[%c0_37, %c1_38, %c1_39, %c0_40], %16 {strides = array<i32>} : memref<1x18x24x32xbf16, #tpu.memory_space<vmem>>, vector<1x16x16x32xbf16>,
    %c0_41 = arith.constant 0 : index
    %c0_42 = arith.constant 0 : index
    %c0_43 = arith.constant 0 : index
    %c0_44 = arith.constant 0 : index
    %18 = vector.load %arg7[%c0_41, %c0_42, %c0_43, %c0_44] : memref<1x1x16x32xbf16, #tpu.memory_space<vmem>>, vector<1x1x16x32xbf16>
    %c0_45 = arith.constant 0 : index
    %c0_46 = arith.constant 0 : index
    %c0_47 = arith.constant 0 : index
    %c0_48 = arith.constant 0 : index
    %19 = vector.load %arg8[%c0_45, %c0_46, %c0_47, %c0_48] : memref<1x1x16x32xbf16, #tpu.memory_space<vmem>>, vector<1x1x16x32xbf16>
    %cst_49 = arith.constant 0.000000e+00 : bf16
    %20 = vector.broadcast %cst_49 : bf16 to vector<1x1x16x32xbf16>
    %21 = arith.select %0, %20, %18 : vector<1x1x16x32xbf16>
    %c0_50 = arith.constant 0 : index
    %c0_51 = arith.constant 0 : index
    %c1_52 = arith.constant 1 : index
    %c0_53 = arith.constant 0 : index
    %22 = vector.load %arg15[%c0_50, %c0_51, %c1_52, %c0_53] : memref<1x18x24x32xbf16, #tpu.memory_space<vmem>>, vector<1x1x16x32xbf16>
    tpu.vector_store %arg15[%c0_50, %c0_51, %c1_52, %c0_53], %21 {strides = array<i32>} : memref<1x18x24x32xbf16, #tpu.memory_space<vmem>>, vector<1x1x16x32xbf16>,
    %cst_54 = arith.constant 0.000000e+00 : bf16
    %23 = vector.broadcast %cst_54 : bf16 to vector<1x1x16x32xbf16>
    %24 = arith.select %1, %23, %19 : vector<1x1x16x32xbf16>
    %c0_55 = arith.constant 0 : index
    %c17_56 = arith.constant 17 : index
    %c1_57 = arith.constant 1 : index
    %c0_58 = arith.constant 0 : index
    %25 = vector.load %arg15[%c0_55, %c17_56, %c1_57, %c0_58] : memref<1x18x24x32xbf16, #tpu.memory_space<vmem>>, vector<1x1x16x32xbf16>
    tpu.vector_store %arg15[%c0_55, %c17_56, %c1_57, %c0_58], %24 {strides = array<i32>} : memref<1x18x24x32xbf16, #tpu.memory_space<vmem>>, vector<1x1x16x32xbf16>,
    %cst_59 = arith.constant 0.000000e+00 : bf16
    %26 = vector.broadcast %cst_59 : bf16 to vector<1x18x1x32xbf16>
    %c0_60 = arith.constant 0 : index
    %c0_61 = arith.constant 0 : index
    %c0_62 = arith.constant 0 : index
    %c0_63 = arith.constant 0 : index
    %27 = vector.load %arg15[%c0_60, %c0_61, %c0_62, %c0_63] : memref<1x18x24x32xbf16, #tpu.memory_space<vmem>>, vector<1x18x1x32xbf16>
    tpu.vector_store %arg15[%c0_60, %c0_61, %c0_62, %c0_63], %26 {strides = array<i32>} : memref<1x18x24x32xbf16, #tpu.memory_space<vmem>>, vector<1x18x1x32xbf16>,
    %cst_64 = arith.constant 0.000000e+00 : bf16
    %28 = vector.broadcast %cst_64 : bf16 to vector<1x18x7x32xbf16>
    %c0_65 = arith.constant 0 : index
    %c0_66 = arith.constant 0 : index
    %c17_67 = arith.constant 17 : index
    %c0_68 = arith.constant 0 : index
    %29 = vector.load %arg15[%c0_65, %c0_66, %c17_67, %c0_68] : memref<1x18x24x32xbf16, #tpu.memory_space<vmem>>, vector<1x18x7x32xbf16>
    tpu.vector_store %arg15[%c0_65, %c0_66, %c17_67, %c0_68], %28 {strides = array<i32>} : memref<1x18x24x32xbf16, #tpu.memory_space<vmem>>, vector<1x18x7x32xbf16>,
    %c0_69 = arith.constant 0 : index
    %c0_70 = arith.constant 0 : index
    %c0_71 = arith.constant 0 : index
    %30 = vector.load %arg9[%c0_69, %c0_70, %c0_71] : memref<3x3x32xf32, #tpu.memory_space<vmem>>, vector<3x3x32xf32>
    %c0_72 = arith.constant 0 : index
    %c0_73 = arith.constant 0 : index
    %c0_74 = arith.constant 0 : index
    %31 = vector.load %arg10[%c0_72, %c0_73, %c0_74] : memref<3x3x32xf32, #tpu.memory_space<vmem>>, vector<3x3x32xf32>
    %cst_75 = arith.constant 0.000000e+00 : f32
    %32 = vector.broadcast %cst_75 : f32 to vector<1x16x16x32xf32>
    %cst_76 = arith.constant 0.000000e+00 : f32
    %33 = vector.broadcast %cst_76 : f32 to vector<1x16x16x32xf32>
    %34 = vector.extract_strided_slice %30 {offsets = [0, 0, 0], sizes = [1, 1, 32], strides = [1, 1, 1]} : vector<3x3x32xf32> to vector<1x1x32xf32>
    %35 = vector.extract_strided_slice %31 {offsets = [0, 0, 0], sizes = [1, 1, 32], strides = [1, 1, 1]} : vector<3x3x32xf32> to vector<1x1x32xf32>
    %c0_77 = arith.constant 0 : index
    %c0_78 = arith.constant 0 : index
    %c0_79 = arith.constant 0 : index
    %c0_80 = arith.constant 0 : index
    %36 = vector.load %arg14[%c0_77, %c0_78, %c0_79, %c0_80] : memref<1x18x24x32xbf16, #tpu.memory_space<vmem>>, vector<1x16x16x32xbf16>
    %37 = arith.extf %36 : vector<1x16x16x32xbf16> to vector<1x16x16x32xf32>
    %38 = vector.shape_cast %34 : vector<1x1x32xf32> to vector<1x1x1x32xf32>
    %39 = vector.broadcast %38 : vector<1x1x1x32xf32> to vector<1x16x16x32xf32>
    %40 = arith.mulf %37, %39 : vector<1x16x16x32xf32>
    %41 = arith.addf %32, %40 : vector<1x16x16x32xf32>
    %c0_81 = arith.constant 0 : index
    %c0_82 = arith.constant 0 : index
    %c0_83 = arith.constant 0 : index
    %c0_84 = arith.constant 0 : index
    %42 = vector.load %arg15[%c0_81, %c0_82, %c0_83, %c0_84] : memref<1x18x24x32xbf16, #tpu.memory_space<vmem>>, vector<1x16x16x32xbf16>
    %43 = arith.extf %42 : vector<1x16x16x32xbf16> to vector<1x16x16x32xf32>
    %44 = vector.shape_cast %35 : vector<1x1x32xf32> to vector<1x1x1x32xf32>
    %45 = vector.broadcast %44 : vector<1x1x1x32xf32> to vector<1x16x16x32xf32>
    %46 = arith.mulf %43, %45 : vector<1x16x16x32xf32>
    %47 = arith.addf %33, %46 : vector<1x16x16x32xf32>
    %48 = vector.extract_strided_slice %30 {offsets = [0, 1, 0], sizes = [1, 1, 32], strides = [1, 1, 1]} : vector<3x3x32xf32> to vector<1x1x32xf32>
    %49 = vector.extract_strided_slice %31 {offsets = [0, 1, 0], sizes = [1, 1, 32], strides = [1, 1, 1]} : vector<3x3x32xf32> to vector<1x1x32xf32>
    %c0_85 = arith.constant 0 : index
    %c0_86 = arith.constant 0 : index
    %c1_87 = arith.constant 1 : index
    %c0_88 = arith.constant 0 : index
    %50 = vector.load %arg14[%c0_85, %c0_86, %c1_87, %c0_88] : memref<1x18x24x32xbf16, #tpu.memory_space<vmem>>, vector<1x16x16x32xbf16>
    %51 = arith.extf %50 : vector<1x16x16x32xbf16> to vector<1x16x16x32xf32>
    %52 = vector.shape_cast %48 : vector<1x1x32xf32> to vector<1x1x1x32xf32>
    %53 = vector.broadcast %52 : vector<1x1x1x32xf32> to vector<1x16x16x32xf32>
    %54 = arith.mulf %51, %53 : vector<1x16x16x32xf32>
    %55 = arith.addf %41, %54 : vector<1x16x16x32xf32>
    %c0_89 = arith.constant 0 : index
    %c0_90 = arith.constant 0 : index
    %c1_91 = arith.constant 1 : index
    %c0_92 = arith.constant 0 : index
    %56 = vector.load %arg15[%c0_89, %c0_90, %c1_91, %c0_92] : memref<1x18x24x32xbf16, #tpu.memory_space<vmem>>, vector<1x16x16x32xbf16>
    %57 = arith.extf %56 : vector<1x16x16x32xbf16> to vector<1x16x16x32xf32>
    %58 = vector.shape_cast %49 : vector<1x1x32xf32> to vector<1x1x1x32xf32>
    %59 = vector.broadcast %58 : vector<1x1x1x32xf32> to vector<1x16x16x32xf32>
    %60 = arith.mulf %57, %59 : vector<1x16x16x32xf32>
    %61 = arith.addf %47, %60 : vector<1x16x16x32xf32>
    %62 = vector.extract_strided_slice %30 {offsets = [0, 2, 0], sizes = [1, 1, 32], strides = [1, 1, 1]} : vector<3x3x32xf32> to vector<1x1x32xf32>
    %63 = vector.extract_strided_slice %31 {offsets = [0, 2, 0], sizes = [1, 1, 32], strides = [1, 1, 1]} : vector<3x3x32xf32> to vector<1x1x32xf32>
    %c0_93 = arith.constant 0 : index
    %c0_94 = arith.constant 0 : index
    %c2 = arith.constant 2 : index
    %c0_95 = arith.constant 0 : index
    %64 = vector.load %arg14[%c0_93, %c0_94, %c2, %c0_95] : memref<1x18x24x32xbf16, #tpu.memory_space<vmem>>, vector<1x16x16x32xbf16>
    %65 = arith.extf %64 : vector<1x16x16x32xbf16> to vector<1x16x16x32xf32>
    %66 = vector.shape_cast %62 : vector<1x1x32xf32> to vector<1x1x1x32xf32>
    %67 = vector.broadcast %66 : vector<1x1x1x32xf32> to vector<1x16x16x32xf32>
    %68 = arith.mulf %65, %67 : vector<1x16x16x32xf32>
    %69 = arith.addf %55, %68 : vector<1x16x16x32xf32>
    %c0_96 = arith.constant 0 : index
    %c0_97 = arith.constant 0 : index
    %c2_98 = arith.constant 2 : index
    %c0_99 = arith.constant 0 : index
    %70 = vector.load %arg15[%c0_96, %c0_97, %c2_98, %c0_99] : memref<1x18x24x32xbf16, #tpu.memory_space<vmem>>, vector<1x16x16x32xbf16>
    %71 = arith.extf %70 : vector<1x16x16x32xbf16> to vector<1x16x16x32xf32>
    %72 = vector.shape_cast %63 : vector<1x1x32xf32> to vector<1x1x1x32xf32>
    %73 = vector.broadcast %72 : vector<1x1x1x32xf32> to vector<1x16x16x32xf32>
    %74 = arith.mulf %71, %73 : vector<1x16x16x32xf32>
    %75 = arith.addf %61, %74 : vector<1x16x16x32xf32>
    %76 = vector.extract_strided_slice %30 {offsets = [1, 0, 0], sizes = [1, 1, 32], strides = [1, 1, 1]} : vector<3x3x32xf32> to vector<1x1x32xf32>
    %77 = vector.extract_strided_slice %31 {offsets = [1, 0, 0], sizes = [1, 1, 32], strides = [1, 1, 1]} : vector<3x3x32xf32> to vector<1x1x32xf32>
    %c0_100 = arith.constant 0 : index
    %c1_101 = arith.constant 1 : index
    %c0_102 = arith.constant 0 : index
    %c0_103 = arith.constant 0 : index
    %78 = vector.load %arg14[%c0_100, %c1_101, %c0_102, %c0_103] : memref<1x18x24x32xbf16, #tpu.memory_space<vmem>>, vector<1x16x16x32xbf16>
    %79 = arith.extf %78 : vector<1x16x16x32xbf16> to vector<1x16x16x32xf32>
    %80 = vector.shape_cast %76 : vector<1x1x32xf32> to vector<1x1x1x32xf32>
    %81 = vector.broadcast %80 : vector<1x1x1x32xf32> to vector<1x16x16x32xf32>
    %82 = arith.mulf %79, %81 : vector<1x16x16x32xf32>
    %83 = arith.addf %69, %82 : vector<1x16x16x32xf32>
    %c0_104 = arith.constant 0 : index
    %c1_105 = arith.constant 1 : index
    %c0_106 = arith.constant 0 : index
    %c0_107 = arith.constant 0 : index
    %84 = vector.load %arg15[%c0_104, %c1_105, %c0_106, %c0_107] : memref<1x18x24x32xbf16, #tpu.memory_space<vmem>>, vector<1x16x16x32xbf16>
    %85 = arith.extf %84 : vector<1x16x16x32xbf16> to vector<1x16x16x32xf32>
    %86 = vector.shape_cast %77 : vector<1x1x32xf32> to vector<1x1x1x32xf32>
    %87 = vector.broadcast %86 : vector<1x1x1x32xf32> to vector<1x16x16x32xf32>
    %88 = arith.mulf %85, %87 : vector<1x16x16x32xf32>
    %89 = arith.addf %75, %88 : vector<1x16x16x32xf32>
    %90 = vector.extract_strided_slice %30 {offsets = [1, 1, 0], sizes = [1, 1, 32], strides = [1, 1, 1]} : vector<3x3x32xf32> to vector<1x1x32xf32>
    %91 = vector.extract_strided_slice %31 {offsets = [1, 1, 0], sizes = [1, 1, 32], strides = [1, 1, 1]} : vector<3x3x32xf32> to vector<1x1x32xf32>
    %c0_108 = arith.constant 0 : index
    %c1_109 = arith.constant 1 : index
    %c1_110 = arith.constant 1 : index
    %c0_111 = arith.constant 0 : index
    %92 = vector.load %arg14[%c0_108, %c1_109, %c1_110, %c0_111] : memref<1x18x24x32xbf16, #tpu.memory_space<vmem>>, vector<1x16x16x32xbf16>
    %93 = arith.extf %92 : vector<1x16x16x32xbf16> to vector<1x16x16x32xf32>
    %94 = vector.shape_cast %90 : vector<1x1x32xf32> to vector<1x1x1x32xf32>
    %95 = vector.broadcast %94 : vector<1x1x1x32xf32> to vector<1x16x16x32xf32>
    %96 = arith.mulf %93, %95 : vector<1x16x16x32xf32>
    %97 = arith.addf %83, %96 : vector<1x16x16x32xf32>
    %c0_112 = arith.constant 0 : index
    %c1_113 = arith.constant 1 : index
    %c1_114 = arith.constant 1 : index
    %c0_115 = arith.constant 0 : index
    %98 = vector.load %arg15[%c0_112, %c1_113, %c1_114, %c0_115] : memref<1x18x24x32xbf16, #tpu.memory_space<vmem>>, vector<1x16x16x32xbf16>
    %99 = arith.extf %98 : vector<1x16x16x32xbf16> to vector<1x16x16x32xf32>
    %100 = vector.shape_cast %91 : vector<1x1x32xf32> to vector<1x1x1x32xf32>
    %101 = vector.broadcast %100 : vector<1x1x1x32xf32> to vector<1x16x16x32xf32>
    %102 = arith.mulf %99, %101 : vector<1x16x16x32xf32>
    %103 = arith.addf %89, %102 : vector<1x16x16x32xf32>
    %104 = vector.extract_strided_slice %30 {offsets = [1, 2, 0], sizes = [1, 1, 32], strides = [1, 1, 1]} : vector<3x3x32xf32> to vector<1x1x32xf32>
    %105 = vector.extract_strided_slice %31 {offsets = [1, 2, 0], sizes = [1, 1, 32], strides = [1, 1, 1]} : vector<3x3x32xf32> to vector<1x1x32xf32>
    %c0_116 = arith.constant 0 : index
    %c1_117 = arith.constant 1 : index
    %c2_118 = arith.constant 2 : index
    %c0_119 = arith.constant 0 : index
    %106 = vector.load %arg14[%c0_116, %c1_117, %c2_118, %c0_119] : memref<1x18x24x32xbf16, #tpu.memory_space<vmem>>, vector<1x16x16x32xbf16>
    %107 = arith.extf %106 : vector<1x16x16x32xbf16> to vector<1x16x16x32xf32>
    %108 = vector.shape_cast %104 : vector<1x1x32xf32> to vector<1x1x1x32xf32>
    %109 = vector.broadcast %108 : vector<1x1x1x32xf32> to vector<1x16x16x32xf32>
    %110 = arith.mulf %107, %109 : vector<1x16x16x32xf32>
    %111 = arith.addf %97, %110 : vector<1x16x16x32xf32>
    %c0_120 = arith.constant 0 : index
    %c1_121 = arith.constant 1 : index
    %c2_122 = arith.constant 2 : index
    %c0_123 = arith.constant 0 : index
    %112 = vector.load %arg15[%c0_120, %c1_121, %c2_122, %c0_123] : memref<1x18x24x32xbf16, #tpu.memory_space<vmem>>, vector<1x16x16x32xbf16>
    %113 = arith.extf %112 : vector<1x16x16x32xbf16> to vector<1x16x16x32xf32>
    %114 = vector.shape_cast %105 : vector<1x1x32xf32> to vector<1x1x1x32xf32>
    %115 = vector.broadcast %114 : vector<1x1x1x32xf32> to vector<1x16x16x32xf32>
    %116 = arith.mulf %113, %115 : vector<1x16x16x32xf32>
    %117 = arith.addf %103, %116 : vector<1x16x16x32xf32>
    %118 = vector.extract_strided_slice %30 {offsets = [2, 0, 0], sizes = [1, 1, 32], strides = [1, 1, 1]} : vector<3x3x32xf32> to vector<1x1x32xf32>
    %119 = vector.extract_strided_slice %31 {offsets = [2, 0, 0], sizes = [1, 1, 32], strides = [1, 1, 1]} : vector<3x3x32xf32> to vector<1x1x32xf32>
    %c0_124 = arith.constant 0 : index
    %c2_125 = arith.constant 2 : index
    %c0_126 = arith.constant 0 : index
    %c0_127 = arith.constant 0 : index
    %120 = vector.load %arg14[%c0_124, %c2_125, %c0_126, %c0_127] : memref<1x18x24x32xbf16, #tpu.memory_space<vmem>>, vector<1x16x16x32xbf16>
    %121 = arith.extf %120 : vector<1x16x16x32xbf16> to vector<1x16x16x32xf32>
    %122 = vector.shape_cast %118 : vector<1x1x32xf32> to vector<1x1x1x32xf32>
    %123 = vector.broadcast %122 : vector<1x1x1x32xf32> to vector<1x16x16x32xf32>
    %124 = arith.mulf %121, %123 : vector<1x16x16x32xf32>
    %125 = arith.addf %111, %124 : vector<1x16x16x32xf32>
    %c0_128 = arith.constant 0 : index
    %c2_129 = arith.constant 2 : index
    %c0_130 = arith.constant 0 : index
    %c0_131 = arith.constant 0 : index
    %126 = vector.load %arg15[%c0_128, %c2_129, %c0_130, %c0_131] : memref<1x18x24x32xbf16, #tpu.memory_space<vmem>>, vector<1x16x16x32xbf16>
    %127 = arith.extf %126 : vector<1x16x16x32xbf16> to vector<1x16x16x32xf32>
    %128 = vector.shape_cast %119 : vector<1x1x32xf32> to vector<1x1x1x32xf32>
    %129 = vector.broadcast %128 : vector<1x1x1x32xf32> to vector<1x16x16x32xf32>
    %130 = arith.mulf %127, %129 : vector<1x16x16x32xf32>
    %131 = arith.addf %117, %130 : vector<1x16x16x32xf32>
    %132 = vector.extract_strided_slice %30 {offsets = [2, 1, 0], sizes = [1, 1, 32], strides = [1, 1, 1]} : vector<3x3x32xf32> to vector<1x1x32xf32>
    %133 = vector.extract_strided_slice %31 {offsets = [2, 1, 0], sizes = [1, 1, 32], strides = [1, 1, 1]} : vector<3x3x32xf32> to vector<1x1x32xf32>
    %c0_132 = arith.constant 0 : index
    %c2_133 = arith.constant 2 : index
    %c1_134 = arith.constant 1 : index
    %c0_135 = arith.constant 0 : index
    %134 = vector.load %arg14[%c0_132, %c2_133, %c1_134, %c0_135] : memref<1x18x24x32xbf16, #tpu.memory_space<vmem>>, vector<1x16x16x32xbf16>
    %135 = arith.extf %134 : vector<1x16x16x32xbf16> to vector<1x16x16x32xf32>
    %136 = vector.shape_cast %132 : vector<1x1x32xf32> to vector<1x1x1x32xf32>
    %137 = vector.broadcast %136 : vector<1x1x1x32xf32> to vector<1x16x16x32xf32>
    %138 = arith.mulf %135, %137 : vector<1x16x16x32xf32>
    %139 = arith.addf %125, %138 : vector<1x16x16x32xf32>
    %c0_136 = arith.constant 0 : index
    %c2_137 = arith.constant 2 : index
    %c1_138 = arith.constant 1 : index
    %c0_139 = arith.constant 0 : index
    %140 = vector.load %arg15[%c0_136, %c2_137, %c1_138, %c0_139] : memref<1x18x24x32xbf16, #tpu.memory_space<vmem>>, vector<1x16x16x32xbf16>
    %141 = arith.extf %140 : vector<1x16x16x32xbf16> to vector<1x16x16x32xf32>
    %142 = vector.shape_cast %133 : vector<1x1x32xf32> to vector<1x1x1x32xf32>
    %143 = vector.broadcast %142 : vector<1x1x1x32xf32> to vector<1x16x16x32xf32>
    %144 = arith.mulf %141, %143 : vector<1x16x16x32xf32>
    %145 = arith.addf %131, %144 : vector<1x16x16x32xf32>
    %146 = vector.extract_strided_slice %30 {offsets = [2, 2, 0], sizes = [1, 1, 32], strides = [1, 1, 1]} : vector<3x3x32xf32> to vector<1x1x32xf32>
    %147 = vector.extract_strided_slice %31 {offsets = [2, 2, 0], sizes = [1, 1, 32], strides = [1, 1, 1]} : vector<3x3x32xf32> to vector<1x1x32xf32>
    %c0_140 = arith.constant 0 : index
    %c2_141 = arith.constant 2 : index
    %c2_142 = arith.constant 2 : index
    %c0_143 = arith.constant 0 : index
    %148 = vector.load %arg14[%c0_140, %c2_141, %c2_142, %c0_143] : memref<1x18x24x32xbf16, #tpu.memory_space<vmem>>, vector<1x16x16x32xbf16>
    %149 = arith.extf %148 : vector<1x16x16x32xbf16> to vector<1x16x16x32xf32>
    %150 = vector.shape_cast %146 : vector<1x1x32xf32> to vector<1x1x1x32xf32>
    %151 = vector.broadcast %150 : vector<1x1x1x32xf32> to vector<1x16x16x32xf32>
    %152 = arith.mulf %149, %151 : vector<1x16x16x32xf32>
    %153 = arith.addf %139, %152 : vector<1x16x16x32xf32>
    %c0_144 = arith.constant 0 : index
    %c2_145 = arith.constant 2 : index
    %c2_146 = arith.constant 2 : index
    %c0_147 = arith.constant 0 : index
    %154 = vector.load %arg15[%c0_144, %c2_145, %c2_146, %c0_147] : memref<1x18x24x32xbf16, #tpu.memory_space<vmem>>, vector<1x16x16x32xbf16>
    %155 = arith.extf %154 : vector<1x16x16x32xbf16> to vector<1x16x16x32xf32>
    %156 = vector.shape_cast %147 : vector<1x1x32xf32> to vector<1x1x1x32xf32>
    %157 = vector.broadcast %156 : vector<1x1x1x32xf32> to vector<1x16x16x32xf32>
    %158 = arith.mulf %155, %157 : vector<1x16x16x32xf32>
    %159 = arith.addf %145, %158 : vector<1x16x16x32xf32>
    %c0_148 = arith.constant 0 : index
    %c0_149 = arith.constant 0 : index
    %160 = vector.load %arg11[%c0_148, %c0_149] : memref<1x32xf32, #tpu.memory_space<vmem>>, vector<1x32xf32>
    %161 = vector.shape_cast %160 : vector<1x32xf32> to vector<1x1x1x32xf32>
    %162 = vector.broadcast %161 : vector<1x1x1x32xf32> to vector<1x16x16x32xf32>
    %163 = arith.addf %153, %162 : vector<1x16x16x32xf32>
    %c0_150 = arith.constant 0 : index
    %c0_151 = arith.constant 0 : index
    %164 = vector.load %arg12[%c0_150, %c0_151] : memref<1x32xf32, #tpu.memory_space<vmem>>, vector<1x32xf32>
    %165 = vector.shape_cast %164 : vector<1x32xf32> to vector<1x1x1x32xf32>
    %166 = vector.broadcast %165 : vector<1x1x1x32xf32> to vector<1x16x16x32xf32>
    %167 = arith.addf %159, %166 : vector<1x16x16x32xf32>
    %cst_152 = arith.constant 5.000000e-01 : f32
    %168 = vector.broadcast %cst_152 : f32 to vector<1x16x16x32xf32>
    %169 = arith.mulf %168, %163 : vector<1x16x16x32xf32>
    %cst_153 = arith.constant 0.707106769 : f32
    %170 = vector.broadcast %cst_153 : f32 to vector<1x16x16x32xf32>
    %171 = arith.mulf %163, %170 : vector<1x16x16x32xf32>
    %172 = math.erf %171 : vector<1x16x16x32xf32>
    %cst_154 = arith.constant 1.000000e+00 : f32
    %173 = vector.broadcast %cst_154 : f32 to vector<1x16x16x32xf32>
    %174 = arith.addf %173, %172 : vector<1x16x16x32xf32>
    %175 = arith.mulf %169, %174 : vector<1x16x16x32xf32>
    %176 = arith.mulf %175, %167 : vector<1x16x16x32xf32>
    %177 = arith.truncf %176 : vector<1x16x16x32xf32> to vector<1x16x16x32xbf16>
    %c0_155 = arith.constant 0 : index
    %c0_156 = arith.constant 0 : index
    %c0_157 = arith.constant 0 : index
    %c0_158 = arith.constant 0 : index
    %178 = vector.load %arg13[%c0_155, %c0_156, %c0_157, %c0_158] : memref<1x16x16x32xbf16, #tpu.memory_space<vmem>>, vector<1x16x16x32xbf16>
    tpu.vector_store %arg13[%c0_155, %c0_156, %c0_157, %c0_158], %177 {strides = array<i32>} : memref<1x16x16x32xbf16, #tpu.memory_space<vmem>>, vector<1x16x16x32xbf16>,
    return
  }
  func.func @transform_0(%arg0: i32, %arg1: i32, %arg2: i32) -> (i32, i32, i32, i32) {
    %c0_i32 = arith.constant 0 : i32
    %c0_i32_0 = arith.constant 0 : i32
    return %arg0, %arg2, %c0_i32, %arg1 : i32, i32, i32, i32
  }
  func.func @transform_1(%arg0: i32, %arg1: i32, %arg2: i32) -> (i32, i32, i32, i32) {
    %c16_i32 = arith.constant 16 : i32
    %0 = arith.muli %arg2, %c16_i32 : i32
    %c1_i32 = arith.constant 1 : i32
    %1 = arith.subi %0, %c1_i32 : i32
    %c0_i32 = arith.constant 0 : i32
    %2 = arith.maxsi %1, %c0_i32 : i32
    %c0_i32_0 = arith.constant 0 : i32
    %c0_i32_1 = arith.constant 0 : i32
    return %arg0, %2, %c0_i32_0, %arg1 : i32, i32, i32, i32
  }
  func.func @transform_2(%arg0: i32, %arg1: i32, %arg2: i32) -> (i32, i32, i32, i32) {
    %c1_i32 = arith.constant 1 : i32
    %0 = arith.addi %arg2, %c1_i32 : i32
    %c16_i32 = arith.constant 16 : i32
    %1 = arith.muli %0, %c16_i32 : i32
    %c15_i32 = arith.constant 15 : i32
    %2 = arith.minsi %1, %c15_i32 : i32
    %c0_i32 = arith.constant 0 : i32
    %c0_i32_0 = arith.constant 0 : i32
    return %arg0, %2, %c0_i32, %arg1 : i32, i32, i32, i32
  }
  func.func @transform_3(%arg0: i32, %arg1: i32, %arg2: i32) -> (i32, i32, i32, i32) {
    %c0_i32 = arith.constant 0 : i32
    %c0_i32_0 = arith.constant 0 : i32
    return %arg0, %arg2, %c0_i32, %arg1 : i32, i32, i32, i32
  }
  func.func @transform_4(%arg0: i32, %arg1: i32, %arg2: i32) -> (i32, i32, i32, i32) {
    %c16_i32 = arith.constant 16 : i32
    %0 = arith.muli %arg2, %c16_i32 : i32
    %c1_i32 = arith.constant 1 : i32
    %1 = arith.subi %0, %c1_i32 : i32
    %c0_i32 = arith.constant 0 : i32
    %2 = arith.maxsi %1, %c0_i32 : i32
    %c0_i32_0 = arith.constant 0 : i32
    %c0_i32_1 = arith.constant 0 : i32
    return %arg0, %2, %c0_i32_0, %arg1 : i32, i32, i32, i32
  }
  func.func @transform_5(%arg0: i32, %arg1: i32, %arg2: i32) -> (i32, i32, i32, i32) {
    %c1_i32 = arith.constant 1 : i32
    %0 = arith.addi %arg2, %c1_i32 : i32
    %c16_i32 = arith.constant 16 : i32
    %1 = arith.muli %0, %c16_i32 : i32
    %c15_i32 = arith.constant 15 : i32
    %2 = arith.minsi %1, %c15_i32 : i32
    %c0_i32 = arith.constant 0 : i32
    %c0_i32_0 = arith.constant 0 : i32
    return %arg0, %2, %c0_i32, %arg1 : i32, i32, i32, i32
  }
  func.func @transform_6(%arg0: i32, %arg1: i32, %arg2: i32) -> (i32, i32, i32) {
    %c0_i32 = arith.constant 0 : i32
    %c0_i32_0 = arith.constant 0 : i32
    %c0_i32_1 = arith.constant 0 : i32
    return %c0_i32, %c0_i32_0, %arg1 : i32, i32, i32
  }
  func.func @transform_7(%arg0: i32, %arg1: i32, %arg2: i32) -> (i32, i32, i32) {
    %c0_i32 = arith.constant 0 : i32
    %c0_i32_0 = arith.constant 0 : i32
    %c0_i32_1 = arith.constant 0 : i32
    return %c0_i32, %c0_i32_0, %arg1 : i32, i32, i32
  }
  func.func @transform_8(%arg0: i32, %arg1: i32, %arg2: i32) -> (i32, i32) {
    %c0_i32 = arith.constant 0 : i32
    %c0_i32_0 = arith.constant 0 : i32
    return %c0_i32, %arg1 : i32, i32
  }
  func.func @transform_9(%arg0: i32, %arg1: i32, %arg2: i32) -> (i32, i32) {
    %c0_i32 = arith.constant 0 : i32
    %c0_i32_0 = arith.constant 0 : i32
    return %c0_i32, %arg1 : i32, i32
  }
  func.func @transform_10(%arg0: i32, %arg1: i32, %arg2: i32) -> (i32, i32, i32, i32) {
    %c0_i32 = arith.constant 0 : i32
    %c0_i32_0 = arith.constant 0 : i32
    return %arg0, %arg2, %c0_i32, %arg1 : i32, i32, i32, i32
  }
}

</mosaic_0001>

<llo_original>
// kernel: feed_forward.5
$region0: #{feed_forward.5}
  #allocation0 [shape = 'u32[]', space=smem, size = 0x4, offset = 0x4, fixed_abs, tag = 'smem constant byte address 0x4 - core index']
  #allocation1 [shape = 'u32[144,128]{1,0:T(1,128)}', space=vmem, size = 0x12000, scoped, tag = 'internal scratch']
  #allocation2 [shape = 'f32[256,16]{1,0:T(8,128)}', space=vmem, size = 0x20000, scoped, tag = 'scratch operand']
  %s0 = inlined_call_operand.vmem [shape: bf16[512,32], index: 0, kind: input, shape index: {}]
  %s1 = inlined_call_operand.vmem [shape: bf16[32,16], index: 1, kind: input, shape index: {}]
  %s2 = inlined_call_operand.vmem [shape: f32[1,16], index: 2, kind: input, shape index: {}]
  %s3 = inlined_call_operand.vmem [shape: bf16[512,16], index: 3, kind: output, shape index: {}]
  %s4 = sld [smem:[#allocation0]]
  $region53: #{feed_forward.5} parent=0
    _
  %s6 = ssub.s32 1, %s4
  %s7 = scalar_select 0, %s6, %s4
  loop: start=0, step=1, limit=4
  $region2: #{feed_forward.5} parent=0 // loop_pre_header
    _
  $region3: #{feed_forward.5} parent=0 // loop_header
    %s9 = sphi 0, %s13
    %p10 = scmp.ge.s32.totalorder %s9, 4
    %s16 = sphi 0, %s35
    %s17 = sphi 0, %s31
    %s18 = sphi 0, %s27
    %s19 = sphi 0, %s16
    %s20 = sphi 0, %s17
    %s21 = sphi 0, %s18
    %s22 = sphi 0, %s19
    %s23 = sphi 0, %s20
    %s24 = sphi 0, %s21
    %s40 = sphi 0, %s42
    %s43 = sphi 0, %s40
    %s44 = sphi 0, %s43
    %s60 = sphi 0, %s44
    %s68 = sphi 0, %s70
    %s71 = sphi 0, %s68
    %s72 = sphi 0, %s71
    %s88 = sphi 0, %s72
    %s94 = sphi 0, %s96
    %s97 = sphi 0, %s94
    %s98 = sphi 0, %s97
    %s114 = sphi 0, %s98
    %s122 = sphi 0, %s124
    %s125 = sphi 0, %s122
    %s126 = sphi 0, %s125
    %s142 = sphi 0, %s126
  $region4: #{feed_forward.5} parent=0 // loop_header_branch
    %12 = sbr.rel (%p10) target = $region8
  $region5: #{feed_forward.5} parent=0 // loop_body
    %s14 = ssub.s32 %s9, 1
    %s15 = ssub.s32 %s9, 2
    %s25 = sadd.s32 1, %s18
    %p26 = scmp.ge.s32.totalorder %s25, 1
    %s27 = scalar_select %p26, 0, %s25
    %s28 = sadd.s32 1, %s17
    %s29 = scalar_select %p26, %s28, %s17
    %p30 = scmp.ge.s32.totalorder %s29, 1
    %s31 = scalar_select %p30, 0, %s29
    %s32 = sadd.s32 1, %s16
    %s33 = scalar_select %p30, %s32, %s16
    %p34 = scmp.ge.s32.totalorder %s33, 2
    %s35 = scalar_select %p34, 0, %s33
    %s36 = ssub.s32 %s16, %s35
    %s37 = ssub.s32 %s18, %s27
    %s38 = sor.u32 %s36, %s37
    %p39 = scmp.eq.s32.totalorder %s38, 0
    %s41 = sadd.s32 %s40, 1
    %s42 = scalar_select %p39, %s40, %s41
    %p45 = pneg %p39
    %p46 = scmp.eq.s32.totalorder %s9, 1
    %p47 = por %p45, %p46
    %p48 = scmp.ne.s32.totalorder %s40, %s43
    %p49 = scmp.eq.s32.totalorder %s9, 0
    %p50 = por %p48, %p49
    %p51 = scmp.ne.s32.totalorder %s40, %s43
    %p52 = scmp.eq.s32.totalorder %s14, 1
    %p53 = por %p51, %p52
    %p54 = scmp.ne.s32.totalorder %s43, %s44
    %p55 = scmp.eq.s32.totalorder %s14, 0
    %p56 = por %p54, %p55
    %p57 = scmp.ne.s32.totalorder %s43, %s44
    %p58 = scmp.eq.s32.totalorder %s15, 1
    %p59 = por %p57, %p58
    %p61 = scmp.ne.s32.totalorder %s44, %s60
    %p62 = scmp.eq.s32.totalorder %s15, 0
    %p63 = por %p61, %p62
    %s64 = ssub.s32 %s18, %s27
    %s65 = ssub.s32 %s17, %s31
    %s66 = sor.u32 %s64, %s65
    %p67 = scmp.eq.s32.totalorder %s66, 0
    %s69 = sadd.s32 %s68, 1
    %s70 = scalar_select %p67, %s68, %s69
    %p73 = pneg %p67
    %p74 = scmp.eq.s32.totalorder %s9, 1
    %p75 = por %p73, %p74
    %p76 = scmp.ne.s32.totalorder %s68, %s71
    %p77 = scmp.eq.s32.totalorder %s9, 0
    %p78 = por %p76, %p77
    %p79 = scmp.ne.s32.totalorder %s68, %s71
    %p80 = scmp.eq.s32.totalorder %s14, 1
    %p81 = por %p79, %p80
    %p82 = scmp.ne.s32.totalorder %s71, %s72
    %p83 = scmp.eq.s32.totalorder %s14, 0
    %p84 = por %p82, %p83
    %p85 = scmp.ne.s32.totalorder %s71, %s72
    %p86 = scmp.eq.s32.totalorder %s15, 1
    %p87 = por %p85, %p86
    %p89 = scmp.ne.s32.totalorder %s72, %s88
    %p90 = scmp.eq.s32.totalorder %s15, 0
    %p91 = por %p89, %p90
    %s92 = ssub.s32 %s17, %s31
    %p93 = scmp.eq.s32.totalorder %s92, 0
    %s95 = sadd.s32 %s94, 1
    %s96 = scalar_select %p93, %s94, %s95
    %p99 = pneg %p93
    %p100 = scmp.eq.s32.totalorder %s9, 1
    %p101 = por %p99, %p100
    %p102 = scmp.ne.s32.totalorder %s94, %s97
    %p103 = scmp.eq.s32.totalorder %s9, 0
    %p104 = por %p102, %p103
    %p105 = scmp.ne.s32.totalorder %s94, %s97
    %p106 = scmp.eq.s32.totalorder %s14, 1
    %p107 = por %p105, %p106
    %p108 = scmp.ne.s32.totalorder %s97, %s98
    %p109 = scmp.eq.s32.totalorder %s14, 0
    %p110 = por %p108, %p109
    %p111 = scmp.ne.s32.totalorder %s97, %s98
    %p112 = scmp.eq.s32.totalorder %s15, 1
    %p113 = por %p111, %p112
    %p115 = scmp.ne.s32.totalorder %s98, %s114
    %p116 = scmp.eq.s32.totalorder %s15, 0
    %p117 = por %p115, %p116
    %s118 = ssub.s32 %s16, %s35
    %s119 = ssub.s32 %s17, %s31
    %s120 = sor.u32 %s118, %s119
    %p121 = scmp.eq.s32.totalorder %s120, 0
    %s123 = sadd.s32 %s122, 1
    %s124 = scalar_select %p121, %s122, %s123
    %p127 = pneg %p121
    %p128 = scmp.eq.s32.totalorder %s9, 1
    %p129 = por %p127, %p128
    %p130 = scmp.ne.s32.totalorder %s122, %s125
    %p131 = scmp.eq.s32.totalorder %s9, 0
    %p132 = por %p130, %p131
    %p133 = scmp.ne.s32.totalorder %s122, %s125
    %p134 = scmp.eq.s32.totalorder %s14, 1
    %p135 = por %p133, %p134
    %p136 = scmp.ne.s32.totalorder %s125, %s126
    %p137 = scmp.eq.s32.totalorder %s14, 0
    %p138 = por %p136, %p137
    %p139 = scmp.ne.s32.totalorder %s125, %s126
    %p140 = scmp.eq.s32.totalorder %s15, 1
    %p141 = por %p139, %p140
    %p143 = scmp.ne.s32.totalorder %s126, %s142
    %p144 = scmp.eq.s32.totalorder %s15, 0
    %p145 = por %p143, %p144
    %p146 = scmp.le.s32.totalorder 1, %s9
    %p147 = scmp.lt.s32.totalorder %s9, 3
    %p148 = pnand %p146, %p147
    %p149 = pneg %p148
    // Predicated region
    $region9: #{feed_forward.5} parent=5 // pred_check
      _
    $region10: #{feed_forward.5} parent=5 // pred_check_branch
      %151 = sbr.rel (%p148) target = $region12
    $region11: #{feed_forward.5} parent=5 // pred_region
      %s152 = ssub.s32 %s9, 1
      // Predicated region
      $region13: #{feed_forward.5} parent=11 // pred_check
        %p153 = pneg %p84
      $region14: #{feed_forward.5} parent=11 // pred_check_branch
        %155 = sbr.rel (%p153) target = $region16
      $region15: #{feed_forward.5} parent=11 // pred_region
        %s156 = smul.u32 4, %s21
        %p157 = scmp.lt.s32.totalorder %s156, 3
        %s158 = scalar_select %p157, %s156, 3
        %p159 = scmp.lt.s32.totalorder %s20, 0
        %s160 = scalar_select %p159, %s20, 0
        %s161 = sadd.s32 %s160, %s158
        %s162 = smul.addr %s161, 4
        %s163 = scalar_lea.vmem %s1, %s162
        %s164 = smul.u32 4, %s21
      $region16: #{feed_forward.5} parent=11 // pred_fallthru
        _
      // Predicated region
      $region17: #{feed_forward.5} parent=11 // pred_check
        %p165 = pneg %p110
      $region18: #{feed_forward.5} parent=11 // pred_check_branch
        %167 = sbr.rel (%p165) target = $region20
      $region19: #{feed_forward.5} parent=11 // pred_region
        %p168 = scmp.lt.s32.totalorder %s20, 0
        %s169 = scalar_select %p168, %s20, 0
        %s170 = scalar_lea.vmem %s2, %s169
      $region20: #{feed_forward.5} parent=11 // pred_fallthru
        _
    $region12: #{feed_forward.5} parent=5 // pred_fallthru
      _
    %p171 = scmp.lt.s32.totalorder %s9, 2
    // Predicated region
    $region21: #{feed_forward.5} parent=5 // pred_check
      %p172 = pneg %p171
    $region22: #{feed_forward.5} parent=5 // pred_check_branch
      %174 = sbr.rel (%p172) target = $region24
    $region23: #{feed_forward.5} parent=5 // pred_region
      // Predicated region
      $region25: #{feed_forward.5} parent=23 // pred_check
        %p175 = pneg %p50
      $region26: #{feed_forward.5} parent=23 // pred_check_branch
        %177 = sbr.rel (%p175) target = $region28
      $region27: #{feed_forward.5} parent=23 // pred_region
        %s178 = smul.u32 32, %s16
        %p179 = scmp.lt.s32.totalorder %s178, 63
        %s180 = scalar_select %p179, %s178, 63
        %p181 = scmp.lt.s32.totalorder %s18, 0
        %s182 = scalar_select %p181, %s18, 0
        %s183 = sadd.s32 %s182, %s180
        %s184 = smul.addr %s183, 4
        %s185 = scalar_lea.vmem %s0, %s184
        %s186 = smul.u32 32, %s16
      $region28: #{feed_forward.5} parent=23 // pred_fallthru
        _
    $region24: #{feed_forward.5} parent=5 // pred_fallthru
      _
    %p187 = scmp.le.s32.totalorder 1, %s9
    %p188 = scmp.lt.s32.totalorder %s9, 3
    %p189 = pnand %p187, %p188
    %p190 = pneg %p189
    // Predicated region
    $region29: #{feed_forward.5} parent=5 // pred_check
      _
    $region30: #{feed_forward.5} parent=5 // pred_check_branch
      %192 = sbr.rel (%p189) target = $region32
    $region31: #{feed_forward.5} parent=5 // pred_region
      %s193 = ssub.s32 %s9, 1
      %s194 = smul.u32 32, %s19
      %p195 = scmp.lt.s32.totalorder %s194, 63
      %s196 = scalar_select %p195, %s194, 63
      %p197 = scmp.lt.s32.totalorder %s21, 0
      %s198 = scalar_select %p197, %s21, 0
      %s199 = sadd.s32 %s198, %s196
      %s200 = smul.addr %s199, 4
      %s201 = scalar_lea.vmem %s0, %s200
      %p202 = pneg %p56
      %p203 = pneg %p53
      %s204 = smul.u32 4, %s21
      %p205 = scmp.lt.s32.totalorder %s204, 3
      %s206 = scalar_select %p205, %s204, 3
      %p207 = scmp.lt.s32.totalorder %s20, 0
      %s208 = scalar_select %p207, %s20, 0
      %s209 = sadd.s32 %s208, %s206
      %s210 = smul.addr %s209, 4
      %s211 = scalar_lea.vmem %s1, %s210
      %p212 = pneg %p84
      %p213 = pneg %p81
      %p214 = scmp.lt.s32.totalorder %s20, 0
      %s215 = scalar_select %p214, %s20, 0
      %s216 = scalar_lea.vmem %s2, %s215
      %p217 = pneg %p110
      %p218 = pneg %p107
      %p219 = pneg %p138
      %p220 = pneg %p135
      %s221 = smul.u32 32, %s19
      %p222 = scmp.lt.s32.totalorder %s221, 63
      %s223 = scalar_select %p222, %s221, 63
      %p224 = scmp.lt.s32.totalorder %s20, 0
      %s225 = scalar_select %p224, %s20, 0
      %s226 = sadd.s32 %s225, %s223
      %s227 = smul.addr %s226, 4
      %s228 = scalar_lea.vmem %s3, %s227
      %s229 = smul.u32 32, %s19
      %p230 = scmp.lt.s32.totalorder %s229, 63
      %s231 = scalar_select %p230, %s229, 63
      %p232 = scmp.lt.s32.totalorder %s21, 0
      %s233 = scalar_select %p232, %s21, 0
      %s234 = sadd.s32 %s233, %s231
      %s235 = smul.addr %s234, 4
      %s236 = scalar_lea.vmem %s0, %s235
      %s237 = smul.u32 32, %s19
      %s238 = smul.u32 4, %s21
      %p239 = scmp.lt.s32.totalorder %s238, 3
      %s240 = scalar_select %p239, %s238, 3
      %p241 = scmp.lt.s32.totalorder %s20, 0
      %s242 = scalar_select %p241, %s20, 0
      %s243 = sadd.s32 %s242, %s240
      %s244 = smul.addr %s243, 4
      %s245 = scalar_lea.vmem %s1, %s244
      %s246 = smul.u32 4, %s21
      %p247 = scmp.lt.s32.totalorder %s20, 0
      %s248 = scalar_select %p247, %s20, 0
      %s249 = scalar_lea.vmem %s2, %s248
      %s250 = smul.u32 32, %s19
      %p251 = scmp.lt.s32.totalorder %s250, 63
      %s252 = scalar_select %p251, %s250, 63
      %p253 = scmp.lt.s32.totalorder %s20, 0
      %s254 = scalar_select %p253, %s20, 0
      %s255 = sadd.s32 %s254, %s252
      %s256 = smul.addr %s255, 4
      %s257 = scalar_lea.vmem %s3, %s256
      %s258 = smul.u32 32, %s19
      %p260 = scmp.eq.s32.totalorder %s21, 0
      // Predicated region
      $region33: #{feed_forward.5} parent=31 // pred_check
        %p261 = pneg %p260
      $region34: #{feed_forward.5} parent=31 // pred_check_branch
        %263 = sbr.rel (%p261) target = $region36
      $region35: #{feed_forward.5} parent=31 // pred_region
        %vm264 = vcmask 130048
        %265 = vst.msk [vmem:[#allocation2] sm:$0xff] %vm264, 0.0
        %266 = vst.msk [vmem:[#allocation2 + $0x8] sm:$0xff] %vm264, 0.0
        %267 = vst.msk [vmem:[#allocation2 + $0x10] sm:$0xff] %vm264, 0.0
        %268 = vst.msk [vmem:[#allocation2 + $0x18] sm:$0xff] %vm264, 0.0
        %269 = vst.msk [vmem:[#allocation2 + $0x20] sm:$0xff] %vm264, 0.0
        %270 = vst.msk [vmem:[#allocation2 + $0x28] sm:$0xff] %vm264, 0.0
        %271 = vst.msk [vmem:[#allocation2 + $0x30] sm:$0xff] %vm264, 0.0
        %272 = vst.msk [vmem:[#allocation2 + $0x38] sm:$0xff] %vm264, 0.0
        %273 = vst.msk [vmem:[#allocation2 + $0x40] sm:$0xff] %vm264, 0.0
        %274 = vst.msk [vmem:[#allocation2 + $0x48] sm:$0xff] %vm264, 0.0
        %275 = vst.msk [vmem:[#allocation2 + $0x50] sm:$0xff] %vm264, 0.0
        %276 = vst.msk [vmem:[#allocation2 + $0x58] sm:$0xff] %vm264, 0.0
        %277 = vst.msk [vmem:[#allocation2 + $0x60] sm:$0xff] %vm264, 0.0
        %278 = vst.msk [vmem:[#allocation2 + $0x68] sm:$0xff] %vm264, 0.0
        %279 = vst.msk [vmem:[#allocation2 + $0x70] sm:$0xff] %vm264, 0.0
        %280 = vst.msk [vmem:[#allocation2 + $0x78] sm:$0xff] %vm264, 0.0
        %281 = vst.msk [vmem:[#allocation2 + $0x80] sm:$0xff] %vm264, 0.0
        %282 = vst.msk [vmem:[#allocation2 + $0x88] sm:$0xff] %vm264, 0.0
        %283 = vst.msk [vmem:[#allocation2 + $0x90] sm:$0xff] %vm264, 0.0
        %284 = vst.msk [vmem:[#allocation2 + $0x98] sm:$0xff] %vm264, 0.0
        %285 = vst.msk [vmem:[#allocation2 + $0xa0] sm:$0xff] %vm264, 0.0
        %286 = vst.msk [vmem:[#allocation2 + $0xa8] sm:$0xff] %vm264, 0.0
        %287 = vst.msk [vmem:[#allocation2 + $0xb0] sm:$0xff] %vm264, 0.0
        %288 = vst.msk [vmem:[#allocation2 + $0xb8] sm:$0xff] %vm264, 0.0
        %289 = vst.msk [vmem:[#allocation2 + $0xc0] sm:$0xff] %vm264, 0.0
        %290 = vst.msk [vmem:[#allocation2 + $0xc8] sm:$0xff] %vm264, 0.0
        %291 = vst.msk [vmem:[#allocation2 + $0xd0] sm:$0xff] %vm264, 0.0
        %292 = vst.msk [vmem:[#allocation2 + $0xd8] sm:$0xff] %vm264, 0.0
        %293 = vst.msk [vmem:[#allocation2 + $0xe0] sm:$0xff] %vm264, 0.0
        %294 = vst.msk [vmem:[#allocation2 + $0xe8] sm:$0xff] %vm264, 0.0
        %295 = vst.msk [vmem:[#allocation2 + $0xf0] sm:$0xff] %vm264, 0.0
        %296 = vst.msk [vmem:[#allocation2 + $0xf8] sm:$0xff] %vm264, 0.0
      $region36: #{feed_forward.5} parent=31 // pred_fallthru
        _
      %v297 = vld [vmem:[#allocation2] sm:$0xff]
      %v298 = vld [vmem:[#allocation2 + $0x8] sm:$0xff]
      %v299 = vld [vmem:[#allocation2 + $0x10] sm:$0xff]
      %v300 = vld [vmem:[#allocation2 + $0x18] sm:$0xff]
      %v301 = vld [vmem:[#allocation2 + $0x20] sm:$0xff]
      %v302 = vld [vmem:[#allocation2 + $0x28] sm:$0xff]
      %v303 = vld [vmem:[#allocation2 + $0x30] sm:$0xff]
      %v304 = vld [vmem:[#allocation2 + $0x38] sm:$0xff]
      %v305 = vld [vmem:[#allocation2 + $0x40] sm:$0xff]
      %v306 = vld [vmem:[#allocation2 + $0x48] sm:$0xff]
      %v307 = vld [vmem:[#allocation2 + $0x50] sm:$0xff]
      %v308 = vld [vmem:[#allocation2 + $0x58] sm:$0xff]
      %v309 = vld [vmem:[#allocation2 + $0x60] sm:$0xff]
      %v310 = vld [vmem:[#allocation2 + $0x68] sm:$0xff]
      %v311 = vld [vmem:[#allocation2 + $0x70] sm:$0xff]
      %v312 = vld [vmem:[#allocation2 + $0x78] sm:$0xff]
      %v313 = vld [vmem:[#allocation2 + $0x80] sm:$0xff]
      %v314 = vld [vmem:[#allocation2 + $0x88] sm:$0xff]
      %v315 = vld [vmem:[#allocation2 + $0x90] sm:$0xff]
      %v316 = vld [vmem:[#allocation2 + $0x98] sm:$0xff]
      %v317 = vld [vmem:[#allocation2 + $0xa0] sm:$0xff]
      %v318 = vld [vmem:[#allocation2 + $0xa8] sm:$0xff]
      %v319 = vld [vmem:[#allocation2 + $0xb0] sm:$0xff]
      %v320 = vld [vmem:[#allocation2 + $0xb8] sm:$0xff]
      %v321 = vld [vmem:[#allocation2 + $0xc0] sm:$0xff]
      %v322 = vld [vmem:[#allocation2 + $0xc8] sm:$0xff]
      %v323 = vld [vmem:[#allocation2 + $0xd0] sm:$0xff]
      %v324 = vld [vmem:[#allocation2 + $0xd8] sm:$0xff]
      %v325 = vld [vmem:[#allocation2 + $0xe0] sm:$0xff]
      %v326 = vld [vmem:[#allocation2 + $0xe8] sm:$0xff]
      %v327 = vld [vmem:[#allocation2 + $0xf0] sm:$0xff]
      %v328 = vld [vmem:[#allocation2 + $0xf8] sm:$0xff]
      %v329 = vld [vmem:[%s236] sm:$0xf]
      %v330 = vld [vmem:[%s236 + $0x4] sm:$0xf]
      %v331 = vld [vmem:[%s236 + $0x8] sm:$0xf]
      %v332 = vld [vmem:[%s236 + $0xc] sm:$0xf]
      %v333 = vld [vmem:[%s236 + $0x10] sm:$0xf]
      %v334 = vld [vmem:[%s236 + $0x14] sm:$0xf]
      %v335 = vld [vmem:[%s236 + $0x18] sm:$0xf]
      %v336 = vld [vmem:[%s236 + $0x1c] sm:$0xf]
      %v337 = vld [vmem:[%s236 + $0x20] sm:$0xf]
      %v338 = vld [vmem:[%s236 + $0x24] sm:$0xf]
      %v339 = vld [vmem:[%s236 + $0x28] sm:$0xf]
      %v340 = vld [vmem:[%s236 + $0x2c] sm:$0xf]
      %v341 = vld [vmem:[%s236 + $0x30] sm:$0xf]
      %v342 = vld [vmem:[%s236 + $0x34] sm:$0xf]
      %v343 = vld [vmem:[%s236 + $0x38] sm:$0xf]
      %v344 = vld [vmem:[%s236 + $0x3c] sm:$0xf]
      %v345 = vld [vmem:[%s236 + $0x40] sm:$0xf]
      %v346 = vld [vmem:[%s236 + $0x44] sm:$0xf]
      %v347 = vld [vmem:[%s236 + $0x48] sm:$0xf]
      %v348 = vld [vmem:[%s236 + $0x4c] sm:$0xf]
      %v349 = vld [vmem:[%s236 + $0x50] sm:$0xf]
      %v350 = vld [vmem:[%s236 + $0x54] sm:$0xf]
      %v351 = vld [vmem:[%s236 + $0x58] sm:$0xf]
      %v352 = vld [vmem:[%s236 + $0x5c] sm:$0xf]
      %v353 = vld [vmem:[%s236 + $0x60] sm:$0xf]
      %v354 = vld [vmem:[%s236 + $0x64] sm:$0xf]
      %v355 = vld [vmem:[%s236 + $0x68] sm:$0xf]
      %v356 = vld [vmem:[%s236 + $0x6c] sm:$0xf]
      %v357 = vld [vmem:[%s236 + $0x70] sm:$0xf]
      %v358 = vld [vmem:[%s236 + $0x74] sm:$0xf]
      %v359 = vld [vmem:[%s236 + $0x78] sm:$0xf]
      %v360 = vld [vmem:[%s236 + $0x7c] sm:$0xf]
      %v361 = vld [vmem:[%s245] sm:$0xf]
      %v362 = vld [vmem:[%s245 + $0x4] sm:$0xf]
      %v363 = vld [vmem:[%s245 + $0x8] sm:$0xf]
      %v364 = vld [vmem:[%s245 + $0xc] sm:$0xf]
      %v397 = vunpack.c.l.b16 %v329
      %v398 = vunpack.c.l.b16 %v330
      %v399 = vunpack.c.l.b16 %v331
      %v400 = vunpack.c.l.b16 %v332
      %v401 = vunpack.c.l.b16 %v333
      %v402 = vunpack.c.l.b16 %v334
      %v403 = vunpack.c.l.b16 %v335
      %v404 = vunpack.c.l.b16 %v336
      %v405 = vunpack.c.l.b16 %v337
      %v406 = vunpack.c.l.b16 %v338
      %v407 = vunpack.c.l.b16 %v339
      %v408 = vunpack.c.l.b16 %v340
      %v409 = vunpack.c.l.b16 %v341
      %v410 = vunpack.c.l.b16 %v342
      %v411 = vunpack.c.l.b16 %v343
      %v412 = vunpack.c.l.b16 %v344
      %v413 = vunpack.c.l.b16 %v345
      %v414 = vunpack.c.l.b16 %v346
      %v415 = vunpack.c.l.b16 %v347
      %v416 = vunpack.c.l.b16 %v348
      %v417 = vunpack.c.l.b16 %v349
      %v418 = vunpack.c.l.b16 %v350
      %v419 = vunpack.c.l.b16 %v351
      %v420 = vunpack.c.l.b16 %v352
      %v421 = vunpack.c.l.b16 %v353
      %v422 = vunpack.c.l.b16 %v354
      %v423 = vunpack.c.l.b16 %v355
      %v424 = vunpack.c.l.b16 %v356
      %v425 = vunpack.c.l.b16 %v357
      %v426 = vunpack.c.l.b16 %v358
      %v427 = vunpack.c.l.b16 %v359
      %v428 = vunpack.c.l.b16 %v360
      %v429 = vpack.c.b16 %v398, %v397
      %v430 = vpack.c.b16 %v400, %v399
      %v431 = vpack.c.b16 %v402, %v401
      %v432 = vpack.c.b16 %v404, %v403
      %v433 = vpack.c.b16 %v406, %v405
      %v434 = vpack.c.b16 %v408, %v407
      %v435 = vpack.c.b16 %v410, %v409
      %v436 = vpack.c.b16 %v412, %v411
      %v437 = vpack.c.b16 %v414, %v413
      %v438 = vpack.c.b16 %v416, %v415
      %v439 = vpack.c.b16 %v418, %v417
      %v440 = vpack.c.b16 %v420, %v419
      %v441 = vpack.c.b16 %v422, %v421
      %v442 = vpack.c.b16 %v424, %v423
      %v443 = vpack.c.b16 %v426, %v425
      %v444 = vpack.c.b16 %v428, %v427
      %v449 = vunpack.c.l.b16 %v361
      %v450 = vunpack.c.l.b16 %v362
      %v451 = vunpack.c.l.b16 %v363
      %v452 = vunpack.c.l.b16 %v364
      %v453 = vpack.c.b16 %v450, %v449
      %v454 = vpack.c.b16 %v452, %v451
      %vm457 = vcmask 261120
      %v459 = vsel %vm457, %v429, 0
      %v462 = vsel %vm457, %v430, 0
      %v465 = vsel %vm457, %v431, 0
      %v468 = vsel %vm457, %v432, 0
      %v471 = vsel %vm457, %v433, 0
      %v474 = vsel %vm457, %v434, 0
      %v477 = vsel %vm457, %v435, 0
      %v480 = vsel %vm457, %v436, 0
      %v483 = vsel %vm457, %v437, 0
      %v486 = vsel %vm457, %v438, 0
      %v489 = vsel %vm457, %v439, 0
      %v492 = vsel %vm457, %v440, 0
      %v495 = vsel %vm457, %v441, 0
      %v498 = vsel %vm457, %v442, 0
      %v501 = vsel %vm457, %v443, 0
      %v504 = vsel %vm457, %v444, 0
      %506 = vmatprep.subr.bf16.mxu0 0
      %507 = vmatpush1.bf16.msra.mxu0 %v453
      %508 = vmatprep.subr.bf16.mxu0 0
      %509 = vmatpush1.bf16.msra.mxu0 %v454
      %510 = vmatprep.subr.bf16.mxu0 0
      %511 = vmatpush1.bf16.msra.mxu0 0
      %512 = vmatprep.subr.bf16.mxu0 0
      %513 = vmatpush1.bf16.msra.mxu0 0
      %514 = vmatprep.subr.bf16.mxu0 0
      %515 = vmatpush1.bf16.msra.mxu0 0
      %516 = vmatprep.subr.bf16.mxu0 0
      %517 = vmatpush1.bf16.msra.mxu0 0
      %518 = vmatprep.subr.bf16.mxu0 0
      %519 = vmatpush1.bf16.msra.mxu0 0
      %520 = vmatprep.subr.bf16.mxu0 0
      %521 = vmatpush1.bf16.msra.mxu0 0
      %522 = vmatprep.subr.bf16.mxu0 0
      %523 = vmatpush1.bf16.msra.mxu0 0
      %524 = vmatprep.subr.bf16.mxu0 0
      %525 = vmatpush1.bf16.msra.mxu0 0
      %526 = vmatprep.subr.bf16.mxu0 0
      %527 = vmatpush1.bf16.msra.mxu0 0
      %528 = vmatprep.subr.bf16.mxu0 0
      %529 = vmatpush1.bf16.msra.mxu0 0
      %530 = vmatprep.subr.bf16.mxu0 0
      %531 = vmatpush1.bf16.msra.mxu0 0
      %532 = vmatprep.subr.bf16.mxu0 0
      %533 = vmatpush1.bf16.msra.mxu0 0
      %534 = vmatprep.subr.bf16.mxu0 0
      %535 = vmatpush1.bf16.msra.mxu0 0
      %536 = vmatprep.subr.bf16.mxu0 0
      %537 = vmatpush1.bf16.msra.mxu0 0
      %538 = vmatprep.mubr.bf16.mxu0 0
      %539 = vmatmul.mubr.bf16.gmra.mrb[0].mxu0 %v459
      %v540 = vpop.f32.mrb[0].mxu0
      %v541 = vadd.f32 0.0, %v540
      %v542 = vpop.f32.mrb[0].mxu0
      %v543 = vpop.f32.mrb[0].mxu0
      %v544 = vadd.f32 0.0, %v543
      %v545 = vpop.f32.mrb[0].mxu0
      %546 = vmatprep.mubr.bf16.mxu0 0
      %547 = vmatmul.mubr.bf16.gmra.mrb[0].mxu0 %v462
      %v548 = vpop.f32.mrb[0].mxu0
      %v549 = vadd.f32 0.0, %v548
      %v550 = vpop.f32.mrb[0].mxu0
      %v551 = vpop.f32.mrb[0].mxu0
      %v552 = vadd.f32 0.0, %v551
      %v553 = vpop.f32.mrb[0].mxu0
      %554 = vmatprep.mubr.bf16.mxu0 0
      %555 = vmatmul.mubr.bf16.gmra.mrb[0].mxu0 %v465
      %v556 = vpop.f32.mrb[0].mxu0
      %v557 = vadd.f32 0.0, %v556
      %v558 = vpop.f32.mrb[0].mxu0
      %v559 = vpop.f32.mrb[0].mxu0
      %v560 = vadd.f32 0.0, %v559
      %v561 = vpop.f32.mrb[0].mxu0
      %562 = vmatprep.mubr.bf16.mxu0 0
      %563 = vmatmul.mubr.bf16.gmra.mrb[0].mxu0 %v468
      %v564 = vpop.f32.mrb[0].mxu0
      %v565 = vadd.f32 0.0, %v564
      %v566 = vpop.f32.mrb[0].mxu0
      %v567 = vpop.f32.mrb[0].mxu0
      %v568 = vadd.f32 0.0, %v567
      %v569 = vpop.f32.mrb[0].mxu0
      %570 = vmatprep.mubr.bf16.mxu0 0
      %571 = vmatmul.mubr.bf16.gmra.mrb[0].mxu0 %v471
      %v572 = vpop.f32.mrb[0].mxu0
      %v573 = vadd.f32 0.0, %v572
      %v574 = vpop.f32.mrb[0].mxu0
      %v575 = vpop.f32.mrb[0].mxu0
      %v576 = vadd.f32 0.0, %v575
      %v577 = vpop.f32.mrb[0].mxu0
      %578 = vmatprep.mubr.bf16.mxu0 0
      %579 = vmatmul.mubr.bf16.gmra.mrb[0].mxu0 %v474
      %v580 = vpop.f32.mrb[0].mxu0
      %v581 = vadd.f32 0.0, %v580
      %v582 = vpop.f32.mrb[0].mxu0
      %v583 = vpop.f32.mrb[0].mxu0
      %v584 = vadd.f32 0.0, %v583
      %v585 = vpop.f32.mrb[0].mxu0
      %586 = vmatprep.mubr.bf16.mxu0 0
      %587 = vmatmul.mubr.bf16.gmra.mrb[0].mxu0 %v477
      %v588 = vpop.f32.mrb[0].mxu0
      %v589 = vadd.f32 0.0, %v588
      %v590 = vpop.f32.mrb[0].mxu0
      %v591 = vpop.f32.mrb[0].mxu0
      %v592 = vadd.f32 0.0, %v591
      %v593 = vpop.f32.mrb[0].mxu0
      %594 = vmatprep.mubr.bf16.mxu0 0
      %595 = vmatmul.mubr.bf16.gmra.mrb[0].mxu0 %v480
      %v596 = vpop.f32.mrb[0].mxu0
      %v597 = vadd.f32 0.0, %v596
      %v598 = vpop.f32.mrb[0].mxu0
      %v599 = vpop.f32.mrb[0].mxu0
      %v600 = vadd.f32 0.0, %v599
      %v601 = vpop.f32.mrb[0].mxu0
      %602 = vmatprep.mubr.bf16.mxu0 0
      %603 = vmatmul.mubr.bf16.gmra.mrb[0].mxu0 %v483
      %v604 = vpop.f32.mrb[0].mxu0
      %v605 = vadd.f32 0.0, %v604
      %v606 = vpop.f32.mrb[0].mxu0
      %v607 = vpop.f32.mrb[0].mxu0
      %v608 = vadd.f32 0.0, %v607
      %v609 = vpop.f32.mrb[0].mxu0
      %610 = vmatprep.mubr.bf16.mxu0 0
      %611 = vmatmul.mubr.bf16.gmra.mrb[0].mxu0 %v486
      %v612 = vpop.f32.mrb[0].mxu0
      %v613 = vadd.f32 0.0, %v612
      %v614 = vpop.f32.mrb[0].mxu0
      %v615 = vpop.f32.mrb[0].mxu0
      %v616 = vadd.f32 0.0, %v615
      %v617 = vpop.f32.mrb[0].mxu0
      %618 = vmatprep.mubr.bf16.mxu0 0
      %619 = vmatmul.mubr.bf16.gmra.mrb[0].mxu0 %v489
      %v620 = vpop.f32.mrb[0].mxu0
      %v621 = vadd.f32 0.0, %v620
      %v622 = vpop.f32.mrb[0].mxu0
      %v623 = vpop.f32.mrb[0].mxu0
      %v624 = vadd.f32 0.0, %v623
      %v625 = vpop.f32.mrb[0].mxu0
      %626 = vmatprep.mubr.bf16.mxu0 0
      %627 = vmatmul.mubr.bf16.gmra.mrb[0].mxu0 %v492
      %v628 = vpop.f32.mrb[0].mxu0
      %v629 = vadd.f32 0.0, %v628
      %v630 = vpop.f32.mrb[0].mxu0
      %v631 = vpop.f32.mrb[0].mxu0
      %v632 = vadd.f32 0.0, %v631
      %v633 = vpop.f32.mrb[0].mxu0
      %634 = vmatprep.mubr.bf16.mxu0 0
      %635 = vmatmul.mubr.bf16.gmra.mrb[0].mxu0 %v495
      %v636 = vpop.f32.mrb[0].mxu0
      %v637 = vadd.f32 0.0, %v636
      %v638 = vpop.f32.mrb[0].mxu0
      %v639 = vpop.f32.mrb[0].mxu0
      %v640 = vadd.f32 0.0, %v639
      %v641 = vpop.f32.mrb[0].mxu0
      %642 = vmatprep.mubr.bf16.mxu0 0
      %643 = vmatmul.mubr.bf16.gmra.mrb[0].mxu0 %v498
      %v644 = vpop.f32.mrb[0].mxu0
      %v645 = vadd.f32 0.0, %v644
      %v646 = vpop.f32.mrb[0].mxu0
      %v647 = vpop.f32.mrb[0].mxu0
      %v648 = vadd.f32 0.0, %v647
      %v649 = vpop.f32.mrb[0].mxu0
      %650 = vmatprep.mubr.bf16.mxu0 0
      %651 = vmatmul.mubr.bf16.gmra.mrb[0].mxu0 %v501
      %v652 = vpop.f32.mrb[0].mxu0
      %v653 = vadd.f32 0.0, %v652
      %v654 = vpop.f32.mrb[0].mxu0
      %v655 = vpop.f32.mrb[0].mxu0
      %v656 = vadd.f32 0.0, %v655
      %v657 = vpop.f32.mrb[0].mxu0
      %658 = vmatprep.mubr.bf16.mxu0 0
      %659 = vmatmul.mubr.bf16.gmra.mrb[0].mxu0 %v504
      %v660 = vpop.f32.mrb[0].mxu0
      %v661 = vadd.f32 0.0, %v660
      %v662 = vpop.f32.mrb[0].mxu0
      %v663 = vpop.f32.mrb[0].mxu0
      %v664 = vadd.f32 0.0, %v663
      %v665 = vpop.f32.mrb[0].mxu0
      %666 = vdwg.mxu0
      %v667 = vadd.f32 %v297, %v541
      %v668 = vadd.f32 %v298, %v544
      %v669 = vadd.f32 %v299, %v549
      %v670 = vadd.f32 %v300, %v552
      %v671 = vadd.f32 %v301, %v557
      %v672 = vadd.f32 %v302, %v560
      %v673 = vadd.f32 %v303, %v565
      %v674 = vadd.f32 %v304, %v568
      %v675 = vadd.f32 %v305, %v573
      %v676 = vadd.f32 %v306, %v576
      %v677 = vadd.f32 %v307, %v581
      %v678 = vadd.f32 %v308, %v584
      %v679 = vadd.f32 %v309, %v589
      %v680 = vadd.f32 %v310, %v592
      %v681 = vadd.f32 %v311, %v597
      %v682 = vadd.f32 %v312, %v600
      %v683 = vadd.f32 %v313, %v605
      %v684 = vadd.f32 %v314, %v608
      %v685 = vadd.f32 %v315, %v613
      %v686 = vadd.f32 %v316, %v616
      %v687 = vadd.f32 %v317, %v621
      %v688 = vadd.f32 %v318, %v624
      %v689 = vadd.f32 %v319, %v629
      %v690 = vadd.f32 %v320, %v632
      %v691 = vadd.f32 %v321, %v637
      %v692 = vadd.f32 %v322, %v640
      %v693 = vadd.f32 %v323, %v645
      %v694 = vadd.f32 %v324, %v648
      %v695 = vadd.f32 %v325, %v653
      %v696 = vadd.f32 %v326, %v656
      %v697 = vadd.f32 %v327, %v661
      %v698 = vadd.f32 %v328, %v664
      %vm699 = vcmask 130048
      %700 = vst.msk [vmem:[#allocation2] sm:$0xff] %vm699, %v667
      %701 = vst.msk [vmem:[#allocation2 + $0x8] sm:$0xff] %vm699, %v668
      %702 = vst.msk [vmem:[#allocation2 + $0x10] sm:$0xff] %vm699, %v669
      %703 = vst.msk [vmem:[#allocation2 + $0x18] sm:$0xff] %vm699, %v670
      %704 = vst.msk [vmem:[#allocation2 + $0x20] sm:$0xff] %vm699, %v671
      %705 = vst.msk [vmem:[#allocation2 + $0x28] sm:$0xff] %vm699, %v672
      %706 = vst.msk [vmem:[#allocation2 + $0x30] sm:$0xff] %vm699, %v673
      %707 = vst.msk [vmem:[#allocation2 + $0x38] sm:$0xff] %vm699, %v674
      %708 = vst.msk [vmem:[#allocation2 + $0x40] sm:$0xff] %vm699, %v675
      %709 = vst.msk [vmem:[#allocation2 + $0x48] sm:$0xff] %vm699, %v676
      %710 = vst.msk [vmem:[#allocation2 + $0x50] sm:$0xff] %vm699, %v677
      %711 = vst.msk [vmem:[#allocation2 + $0x58] sm:$0xff] %vm699, %v678
      %712 = vst.msk [vmem:[#allocation2 + $0x60] sm:$0xff] %vm699, %v679
      %713 = vst.msk [vmem:[#allocation2 + $0x68] sm:$0xff] %vm699, %v680
      %714 = vst.msk [vmem:[#allocation2 + $0x70] sm:$0xff] %vm699, %v681
      %715 = vst.msk [vmem:[#allocation2 + $0x78] sm:$0xff] %vm699, %v682
      %716 = vst.msk [vmem:[#allocation2 + $0x80] sm:$0xff] %vm699, %v683
      %717 = vst.msk [vmem:[#allocation2 + $0x88] sm:$0xff] %vm699, %v684
      %718 = vst.msk [vmem:[#allocation2 + $0x90] sm:$0xff] %vm699, %v685
      %719 = vst.msk [vmem:[#allocation2 + $0x98] sm:$0xff] %vm699, %v686
      %720 = vst.msk [vmem:[#allocation2 + $0xa0] sm:$0xff] %vm699, %v687
      %721 = vst.msk [vmem:[#allocation2 + $0xa8] sm:$0xff] %vm699, %v688
      %722 = vst.msk [vmem:[#allocation2 + $0xb0] sm:$0xff] %vm699, %v689
      %723 = vst.msk [vmem:[#allocation2 + $0xb8] sm:$0xff] %vm699, %v690
      %724 = vst.msk [vmem:[#allocation2 + $0xc0] sm:$0xff] %vm699, %v691
      %725 = vst.msk [vmem:[#allocation2 + $0xc8] sm:$0xff] %vm699, %v692
      %726 = vst.msk [vmem:[#allocation2 + $0xd0] sm:$0xff] %vm699, %v693
      %727 = vst.msk [vmem:[#allocation2 + $0xd8] sm:$0xff] %vm699, %v694
      %728 = vst.msk [vmem:[#allocation2 + $0xe0] sm:$0xff] %vm699, %v695
      %729 = vst.msk [vmem:[#allocation2 + $0xe8] sm:$0xff] %vm699, %v696
      %730 = vst.msk [vmem:[#allocation2 + $0xf0] sm:$0xff] %vm699, %v697
      %731 = vst.msk [vmem:[#allocation2 + $0xf8] sm:$0xff] %vm699, %v698
      // Predicated region
      $region37: #{feed_forward.5} parent=31 // pred_check
        %p732 = pneg %p260
      $region38: #{feed_forward.5} parent=31 // pred_check_branch
        %734 = sbr.rel (%p732) target = $region40
      $region39: #{feed_forward.5} parent=31 // pred_region
        %v735 = vld [vmem:[#allocation2] sm:$0xff]
        %v736 = vld [vmem:[#allocation2 + $0x8] sm:$0xff]
        %v737 = vld [vmem:[#allocation2 + $0x10] sm:$0xff]
        %v738 = vld [vmem:[#allocation2 + $0x18] sm:$0xff]
        %v739 = vld [vmem:[#allocation2 + $0x20] sm:$0xff]
        %v740 = vld [vmem:[#allocation2 + $0x28] sm:$0xff]
        %v741 = vld [vmem:[#allocation2 + $0x30] sm:$0xff]
        %v742 = vld [vmem:[#allocation2 + $0x38] sm:$0xff]
        %v743 = vld [vmem:[#allocation2 + $0x40] sm:$0xff]
        %v744 = vld [vmem:[#allocation2 + $0x48] sm:$0xff]
        %v745 = vld [vmem:[#allocation2 + $0x50] sm:$0xff]
        %v746 = vld [vmem:[#allocation2 + $0x58] sm:$0xff]
        %v747 = vld [vmem:[#allocation2 + $0x60] sm:$0xff]
        %v748 = vld [vmem:[#allocation2 + $0x68] sm:$0xff]
        %v749 = vld [vmem:[#allocation2 + $0x70] sm:$0xff]
        %v750 = vld [vmem:[#allocation2 + $0x78] sm:$0xff]
        %v751 = vld [vmem:[#allocation2 + $0x80] sm:$0xff]
        %v752 = vld [vmem:[#allocation2 + $0x88] sm:$0xff]
        %v753 = vld [vmem:[#allocation2 + $0x90] sm:$0xff]
        %v754 = vld [vmem:[#allocation2 + $0x98] sm:$0xff]
        %v755 = vld [vmem:[#allocation2 + $0xa0] sm:$0xff]
        %v756 = vld [vmem:[#allocation2 + $0xa8] sm:$0xff]
        %v757 = vld [vmem:[#allocation2 + $0xb0] sm:$0xff]
        %v758 = vld [vmem:[#allocation2 + $0xb8] sm:$0xff]
        %v759 = vld [vmem:[#allocation2 + $0xc0] sm:$0xff]
        %v760 = vld [vmem:[#allocation2 + $0xc8] sm:$0xff]
        %v761 = vld [vmem:[#allocation2 + $0xd0] sm:$0xff]
        %v762 = vld [vmem:[#allocation2 + $0xd8] sm:$0xff]
        %v763 = vld [vmem:[#allocation2 + $0xe0] sm:$0xff]
        %v764 = vld [vmem:[#allocation2 + $0xe8] sm:$0xff]
        %v765 = vld [vmem:[#allocation2 + $0xf0] sm:$0xff]
        %v766 = vld [vmem:[#allocation2 + $0xf8] sm:$0xff]
        %v767 = vld [vmem:[%s249] sm:$0x1]
        %v769 = vlaneseq
        %v770 = vshrl.u32 %v769, 7
        %v771 = vsub.s32 0, %v770
        %v772 = vrot.slane %v767, %v771
        %v774 = vadd.f32 %v735, %v772
        %v775 = vadd.f32 %v736, %v772
        %v776 = vadd.f32 %v737, %v772
        %v777 = vadd.f32 %v738, %v772
        %v778 = vadd.f32 %v739, %v772
        %v779 = vadd.f32 %v740, %v772
        %v780 = vadd.f32 %v741, %v772
        %v781 = vadd.f32 %v742, %v772
        %v782 = vadd.f32 %v743, %v772
        %v783 = vadd.f32 %v744, %v772
        %v784 = vadd.f32 %v745, %v772
        %v785 = vadd.f32 %v746, %v772
        %v786 = vadd.f32 %v747, %v772
        %v787 = vadd.f32 %v748, %v772
        %v788 = vadd.f32 %v749, %v772
        %v789 = vadd.f32 %v750, %v772
        %v790 = vadd.f32 %v751, %v772
        %v791 = vadd.f32 %v752, %v772
        %v792 = vadd.f32 %v753, %v772
        %v793 = vadd.f32 %v754, %v772
        %v794 = vadd.f32 %v755, %v772
        %v795 = vadd.f32 %v756, %v772
        %v796 = vadd.f32 %v757, %v772
        %v797 = vadd.f32 %v758, %v772
        %v798 = vadd.f32 %v759, %v772
        %v799 = vadd.f32 %v760, %v772
        %v800 = vadd.f32 %v761, %v772
        %v801 = vadd.f32 %v762, %v772
        %v802 = vadd.f32 %v763, %v772
        %v803 = vadd.f32 %v764, %v772
        %v804 = vadd.f32 %v765, %v772
        %v805 = vadd.f32 %v766, %v772
        %v806 = vpack.c.bf16 %v775, %v774
        %v807 = vpack.c.bf16 %v777, %v776
        %v808 = vpack.c.bf16 %v779, %v778
        %v809 = vpack.c.bf16 %v781, %v780
        %v810 = vpack.c.bf16 %v783, %v782
        %v811 = vpack.c.bf16 %v785, %v784
        %v812 = vpack.c.bf16 %v787, %v786
        %v813 = vpack.c.bf16 %v789, %v788
        %v814 = vpack.c.bf16 %v791, %v790
        %v815 = vpack.c.bf16 %v793, %v792
        %v816 = vpack.c.bf16 %v795, %v794
        %v817 = vpack.c.bf16 %v797, %v796
        %v818 = vpack.c.bf16 %v799, %v798
        %v819 = vpack.c.bf16 %v801, %v800
        %v820 = vpack.c.bf16 %v803, %v802
        %v821 = vpack.c.bf16 %v805, %v804
        %v838 = vunpack.c.l.b16 %v806
        %v839 = vunpack.c.h.b16 %v806
        %v840 = vunpack.c.l.b16 %v807
        %v841 = vunpack.c.h.b16 %v807
        %v842 = vunpack.c.l.b16 %v808
        %v843 = vunpack.c.h.b16 %v808
        %v844 = vunpack.c.l.b16 %v809
        %v845 = vunpack.c.h.b16 %v809
        %v846 = vunpack.c.l.b16 %v810
        %v847 = vunpack.c.h.b16 %v810
        %v848 = vunpack.c.l.b16 %v811
        %v849 = vunpack.c.h.b16 %v811
        %v850 = vunpack.c.l.b16 %v812
        %v851 = vunpack.c.h.b16 %v812
        %v852 = vunpack.c.l.b16 %v813
        %v853 = vunpack.c.h.b16 %v813
        %v854 = vunpack.c.l.b16 %v814
        %v855 = vunpack.c.h.b16 %v814
        %v856 = vunpack.c.l.b16 %v815
        %v857 = vunpack.c.h.b16 %v815
        %v858 = vunpack.c.l.b16 %v816
        %v859 = vunpack.c.h.b16 %v816
        %v860 = vunpack.c.l.b16 %v817
        %v861 = vunpack.c.h.b16 %v817
        %v862 = vunpack.c.l.b16 %v818
        %v863 = vunpack.c.h.b16 %v818
        %v864 = vunpack.c.l.b16 %v819
        %v865 = vunpack.c.h.b16 %v819
        %v866 = vunpack.c.l.b16 %v820
        %v867 = vunpack.c.h.b16 %v820
        %v868 = vunpack.c.l.b16 %v821
        %v869 = vunpack.c.h.b16 %v821
        %v870 = vpack.c.b16 %v838, %v838
        %v871 = vpack.c.b16 %v839, %v839
        %v872 = vpack.c.b16 %v840, %v840
        %v873 = vpack.c.b16 %v841, %v841
        %v874 = vpack.c.b16 %v842, %v842
        %v875 = vpack.c.b16 %v843, %v843
        %v876 = vpack.c.b16 %v844, %v844
        %v877 = vpack.c.b16 %v845, %v845
        %v878 = vpack.c.b16 %v846, %v846
        %v879 = vpack.c.b16 %v847, %v847
        %v880 = vpack.c.b16 %v848, %v848
        %v881 = vpack.c.b16 %v849, %v849
        %v882 = vpack.c.b16 %v850, %v850
        %v883 = vpack.c.b16 %v851, %v851
        %v884 = vpack.c.b16 %v852, %v852
        %v885 = vpack.c.b16 %v853, %v853
        %v886 = vpack.c.b16 %v854, %v854
        %v887 = vpack.c.b16 %v855, %v855
        %v888 = vpack.c.b16 %v856, %v856
        %v889 = vpack.c.b16 %v857, %v857
        %v890 = vpack.c.b16 %v858, %v858
        %v891 = vpack.c.b16 %v859, %v859
        %v892 = vpack.c.b16 %v860, %v860
        %v893 = vpack.c.b16 %v861, %v861
        %v894 = vpack.c.b16 %v862, %v862
        %v895 = vpack.c.b16 %v863, %v863
        %v896 = vpack.c.b16 %v864, %v864
        %v897 = vpack.c.b16 %v865, %v865
        %v898 = vpack.c.b16 %v866, %v866
        %v899 = vpack.c.b16 %v867, %v867
        %v900 = vpack.c.b16 %v868, %v868
        %v901 = vpack.c.b16 %v869, %v869
        %vm934 = vcmask 125952
        %935 = vst.msk [vmem:[%s257] sm:$0xf] %vm934, %v870
        %936 = vst.msk [vmem:[%s257 + $0x4] sm:$0xf] %vm934, %v871
        %937 = vst.msk [vmem:[%s257 + $0x8] sm:$0xf] %vm934, %v872
        %938 = vst.msk [vmem:[%s257 + $0xc] sm:$0xf] %vm934, %v873
        %939 = vst.msk [vmem:[%s257 + $0x10] sm:$0xf] %vm934, %v874
        %940 = vst.msk [vmem:[%s257 + $0x14] sm:$0xf] %vm934, %v875
        %941 = vst.msk [vmem:[%s257 + $0x18] sm:$0xf] %vm934, %v876
        %942 = vst.msk [vmem:[%s257 + $0x1c] sm:$0xf] %vm934, %v877
        %943 = vst.msk [vmem:[%s257 + $0x20] sm:$0xf] %vm934, %v878
        %944 = vst.msk [vmem:[%s257 + $0x24] sm:$0xf] %vm934, %v879
        %945 = vst.msk [vmem:[%s257 + $0x28] sm:$0xf] %vm934, %v880
        %946 = vst.msk [vmem:[%s257 + $0x2c] sm:$0xf] %vm934, %v881
        %947 = vst.msk [vmem:[%s257 + $0x30] sm:$0xf] %vm934, %v882
        %948 = vst.msk [vmem:[%s257 + $0x34] sm:$0xf] %vm934, %v883
        %949 = vst.msk [vmem:[%s257 + $0x38] sm:$0xf] %vm934, %v884
        %950 = vst.msk [vmem:[%s257 + $0x3c] sm:$0xf] %vm934, %v885
        %951 = vst.msk [vmem:[%s257 + $0x40] sm:$0xf] %vm934, %v886
        %952 = vst.msk [vmem:[%s257 + $0x44] sm:$0xf] %vm934, %v887
        %953 = vst.msk [vmem:[%s257 + $0x48] sm:$0xf] %vm934, %v888
        %954 = vst.msk [vmem:[%s257 + $0x4c] sm:$0xf] %vm934, %v889
        %955 = vst.msk [vmem:[%s257 + $0x50] sm:$0xf] %vm934, %v890
        %956 = vst.msk [vmem:[%s257 + $0x54] sm:$0xf] %vm934, %v891
        %957 = vst.msk [vmem:[%s257 + $0x58] sm:$0xf] %vm934, %v892
        %958 = vst.msk [vmem:[%s257 + $0x5c] sm:$0xf] %vm934, %v893
        %959 = vst.msk [vmem:[%s257 + $0x60] sm:$0xf] %vm934, %v894
        %960 = vst.msk [vmem:[%s257 + $0x64] sm:$0xf] %vm934, %v895
        %961 = vst.msk [vmem:[%s257 + $0x68] sm:$0xf] %vm934, %v896
        %962 = vst.msk [vmem:[%s257 + $0x6c] sm:$0xf] %vm934, %v897
        %963 = vst.msk [vmem:[%s257 + $0x70] sm:$0xf] %vm934, %v898
        %964 = vst.msk [vmem:[%s257 + $0x74] sm:$0xf] %vm934, %v899
        %965 = vst.msk [vmem:[%s257 + $0x78] sm:$0xf] %vm934, %v900
        %966 = vst.msk [vmem:[%s257 + $0x7c] sm:$0xf] %vm934, %v901
      $region40: #{feed_forward.5} parent=31 // pred_fallthru
        _
      %s967 = smul.u32 32, %s19
      %p968 = scmp.lt.s32.totalorder %s967, 63
      %s969 = scalar_select %p968, %s967, 63
      %p970 = scmp.lt.s32.totalorder %s20, 0
      %s971 = scalar_select %p970, %s20, 0
      %s972 = sadd.s32 %s971, %s969
      %s973 = smul.addr %s972, 4
      %s974 = scalar_lea.vmem %s3, %s973
      // Predicated region
      $region41: #{feed_forward.5} parent=31 // pred_check
        %p975 = pneg %p135
      $region42: #{feed_forward.5} parent=31 // pred_check_branch
        %977 = sbr.rel (%p975) target = $region44
      $region43: #{feed_forward.5} parent=31 // pred_region
        %s978 = smul.u32 32, %s19
      $region44: #{feed_forward.5} parent=31 // pred_fallthru
        _
    $region32: #{feed_forward.5} parent=5 // pred_fallthru
      _
    %p979 = scmp.le.s32.totalorder 2, %s9
    // Predicated region
    $region45: #{feed_forward.5} parent=5 // pred_check
      %p980 = pneg %p979
    $region46: #{feed_forward.5} parent=5 // pred_check_branch
      %982 = sbr.rel (%p980) target = $region48
    $region47: #{feed_forward.5} parent=5 // pred_region
      %s983 = ssub.s32 %s9, 2
      // Predicated region
      $region49: #{feed_forward.5} parent=47 // pred_check
        %p984 = pneg %p141
      $region50: #{feed_forward.5} parent=47 // pred_check_branch
        %986 = sbr.rel (%p984) target = $region52
      $region51: #{feed_forward.5} parent=47 // pred_region
        %s987 = smul.u32 32, %s22
        %p988 = scmp.lt.s32.totalorder %s987, 63
        %s989 = scalar_select %p988, %s987, 63
        %p990 = scmp.lt.s32.totalorder %s23, 0
        %s991 = scalar_select %p990, %s23, 0
        %s992 = sadd.s32 %s991, %s989
        %s993 = smul.addr %s992, 4
        %s994 = scalar_lea.vmem %s3, %s993
      $region52: #{feed_forward.5} parent=47 // pred_fallthru
        _
    $region48: #{feed_forward.5} parent=5 // pred_fallthru
      _
  $region6: #{feed_forward.5} parent=0 // loop_footer
    %s13 = sadd.s32 1, %s9
  $region7: #{feed_forward.5} parent=0 // loop_footer_branch
    %8 = sbr.rel target = $region3
  $region8: #{feed_forward.5} parent=0 // loop_exit
    _

// kernel: feed_forward.3
$region0: #{feed_forward.3}
  #allocation0 [shape = 'u32[]', space=smem, size = 0x4, offset = 0x4, fixed_abs, tag = 'smem constant byte address 0x4 - core index']
  #allocation1 [shape = 'u32[144,128]{1,0:T(1,128)}', space=vmem, size = 0x12000, scoped, tag = 'internal scratch']
  #allocation2 [shape = 'f32[256,32]{1,0:T(8,128)}', space=vmem, size = 0x20000, scoped, tag = 'scratch operand']
  #allocation3 [shape = 'f32[256,32]{1,0:T(8,128)}', space=vmem, size = 0x20000, scoped, tag = 'scratch operand']
  %s0 = inlined_call_operand.vmem [shape: bf16[512,16], index: 0, kind: input, shape index: {}]
  %s1 = inlined_call_operand.vmem [shape: bf16[16,32], index: 1, kind: input, shape index: {}]
  %s2 = inlined_call_operand.vmem [shape: bf16[16,32], index: 2, kind: input, shape index: {}]
  %s3 = inlined_call_operand.vmem [shape: f32[1,32], index: 3, kind: input, shape index: {}]
  %s4 = inlined_call_operand.vmem [shape: f32[1,32], index: 4, kind: input, shape index: {}]
  %s5 = inlined_call_operand.vmem [shape: bf16[512,32], index: 5, kind: output, shape index: {0}]
  %s6 = inlined_call_operand.vmem [shape: bf16[512,32], index: 6, kind: output, shape index: {1}]
  %7 = xla_tuple %s5, %s6
  %s8 = sld [smem:[#allocation0]]
  $region69: #{feed_forward.3} parent=0
    _
  %s10 = ssub.s32 1, %s8
  %s11 = scalar_select 0, %s10, %s8
  loop: start=0, step=1, limit=4
  $region2: #{feed_forward.3} parent=0 // loop_pre_header
    _
  $region3: #{feed_forward.3} parent=0 // loop_header
    %s13 = sphi 0, %s17
    %p14 = scmp.ge.s32.totalorder %s13, 4
    %s20 = sphi 0, %s39
    %s21 = sphi 0, %s35
    %s22 = sphi 0, %s31
    %s23 = sphi 0, %s20
    %s24 = sphi 0, %s21
    %s25 = sphi 0, %s22
    %s26 = sphi 0, %s23
    %s27 = sphi 0, %s24
    %s28 = sphi 0, %s25
    %s44 = sphi 0, %s46
    %s47 = sphi 0, %s44
    %s48 = sphi 0, %s47
    %s64 = sphi 0, %s48
    %s72 = sphi 0, %s74
    %s75 = sphi 0, %s72
    %s76 = sphi 0, %s75
    %s92 = sphi 0, %s76
    %s100 = sphi 0, %s102
    %s103 = sphi 0, %s100
    %s104 = sphi 0, %s103
    %s120 = sphi 0, %s104
    %s126 = sphi 0, %s128
    %s129 = sphi 0, %s126
    %s130 = sphi 0, %s129
    %s146 = sphi 0, %s130
    %s152 = sphi 0, %s154
    %s155 = sphi 0, %s152
    %s156 = sphi 0, %s155
    %s172 = sphi 0, %s156
    %s180 = sphi 0, %s182
    %s183 = sphi 0, %s180
    %s184 = sphi 0, %s183
    %s200 = sphi 0, %s184
    %s208 = sphi 0, %s210
    %s211 = sphi 0, %s208
    %s212 = sphi 0, %s211
    %s228 = sphi 0, %s212
  $region4: #{feed_forward.3} parent=0 // loop_header_branch
    %16 = sbr.rel (%p14) target = $region8
  $region5: #{feed_forward.3} parent=0 // loop_body
    %s18 = ssub.s32 %s13, 1
    %s19 = ssub.s32 %s13, 2
    %s29 = sadd.s32 1, %s22
    %p30 = scmp.ge.s32.totalorder %s29, 1
    %s31 = scalar_select %p30, 0, %s29
    %s32 = sadd.s32 1, %s21
    %s33 = scalar_select %p30, %s32, %s21
    %p34 = scmp.ge.s32.totalorder %s33, 1
    %s35 = scalar_select %p34, 0, %s33
    %s36 = sadd.s32 1, %s20
    %s37 = scalar_select %p34, %s36, %s20
    %p38 = scmp.ge.s32.totalorder %s37, 2
    %s39 = scalar_select %p38, 0, %s37
    %s40 = ssub.s32 %s20, %s39
    %s41 = ssub.s32 %s22, %s31
    %s42 = sor.u32 %s40, %s41
    %p43 = scmp.eq.s32.totalorder %s42, 0
    %s45 = sadd.s32 %s44, 1
    %s46 = scalar_select %p43, %s44, %s45
    %p49 = pneg %p43
    %p50 = scmp.eq.s32.totalorder %s13, 1
    %p51 = por %p49, %p50
    %p52 = scmp.ne.s32.totalorder %s44, %s47
    %p53 = scmp.eq.s32.totalorder %s13, 0
    %p54 = por %p52, %p53
    %p55 = scmp.ne.s32.totalorder %s44, %s47
    %p56 = scmp.eq.s32.totalorder %s18, 1
    %p57 = por %p55, %p56
    %p58 = scmp.ne.s32.totalorder %s47, %s48
    %p59 = scmp.eq.s32.totalorder %s18, 0
    %p60 = por %p58, %p59
    %p61 = scmp.ne.s32.totalorder %s47, %s48
    %p62 = scmp.eq.s32.totalorder %s19, 1
    %p63 = por %p61, %p62
    %p65 = scmp.ne.s32.totalorder %s48, %s64
    %p66 = scmp.eq.s32.totalorder %s19, 0
    %p67 = por %p65, %p66
    %s68 = ssub.s32 %s22, %s31
    %s69 = ssub.s32 %s21, %s35
    %s70 = sor.u32 %s68, %s69
    %p71 = scmp.eq.s32.totalorder %s70, 0
    %s73 = sadd.s32 %s72, 1
    %s74 = scalar_select %p71, %s72, %s73
    %p77 = pneg %p71
    %p78 = scmp.eq.s32.totalorder %s13, 1
    %p79 = por %p77, %p78
    %p80 = scmp.ne.s32.totalorder %s72, %s75
    %p81 = scmp.eq.s32.totalorder %s13, 0
    %p82 = por %p80, %p81
    %p83 = scmp.ne.s32.totalorder %s72, %s75
    %p84 = scmp.eq.s32.totalorder %s18, 1
    %p85 = por %p83, %p84
    %p86 = scmp.ne.s32.totalorder %s75, %s76
    %p87 = scmp.eq.s32.totalorder %s18, 0
    %p88 = por %p86, %p87
    %p89 = scmp.ne.s32.totalorder %s75, %s76
    %p90 = scmp.eq.s32.totalorder %s19, 1
    %p91 = por %p89, %p90
    %p93 = scmp.ne.s32.totalorder %s76, %s92
    %p94 = scmp.eq.s32.totalorder %s19, 0
    %p95 = por %p93, %p94
    %s96 = ssub.s32 %s22, %s31
    %s97 = ssub.s32 %s21, %s35
    %s98 = sor.u32 %s96, %s97
    %p99 = scmp.eq.s32.totalorder %s98, 0
    %s101 = sadd.s32 %s100, 1
    %s102 = scalar_select %p99, %s100, %s101
    %p105 = pneg %p99
    %p106 = scmp.eq.s32.totalorder %s13, 1
    %p107 = por %p105, %p106
    %p108 = scmp.ne.s32.totalorder %s100, %s103
    %p109 = scmp.eq.s32.totalorder %s13, 0
    %p110 = por %p108, %p109
    %p111 = scmp.ne.s32.totalorder %s100, %s103
    %p112 = scmp.eq.s32.totalorder %s18, 1
    %p113 = por %p111, %p112
    %p114 = scmp.ne.s32.totalorder %s103, %s104
    %p115 = scmp.eq.s32.totalorder %s18, 0
    %p116 = por %p114, %p115
    %p117 = scmp.ne.s32.totalorder %s103, %s104
    %p118 = scmp.eq.s32.totalorder %s19, 1
    %p119 = por %p117, %p118
    %p121 = scmp.ne.s32.totalorder %s104, %s120
    %p122 = scmp.eq.s32.totalorder %s19, 0
    %p123 = por %p121, %p122
    %s124 = ssub.s32 %s21, %s35
    %p125 = scmp.eq.s32.totalorder %s124, 0
    %s127 = sadd.s32 %s126, 1
    %s128 = scalar_select %p125, %s126, %s127
    %p131 = pneg %p125
    %p132 = scmp.eq.s32.totalorder %s13, 1
    %p133 = por %p131, %p132
    %p134 = scmp.ne.s32.totalorder %s126, %s129
    %p135 = scmp.eq.s32.totalorder %s13, 0
    %p136 = por %p134, %p135
    %p137 = scmp.ne.s32.totalorder %s126, %s129
    %p138 = scmp.eq.s32.totalorder %s18, 1
    %p139 = por %p137, %p138
    %p140 = scmp.ne.s32.totalorder %s129, %s130
    %p141 = scmp.eq.s32.totalorder %s18, 0
    %p142 = por %p140, %p141
    %p143 = scmp.ne.s32.totalorder %s129, %s130
    %p144 = scmp.eq.s32.totalorder %s19, 1
    %p145 = por %p143, %p144
    %p147 = scmp.ne.s32.totalorder %s130, %s146
    %p148 = scmp.eq.s32.totalorder %s19, 0
    %p149 = por %p147, %p148
    %s150 = ssub.s32 %s21, %s35
    %p151 = scmp.eq.s32.totalorder %s150, 0
    %s153 = sadd.s32 %s152, 1
    %s154 = scalar_select %p151, %s152, %s153
    %p157 = pneg %p151
    %p158 = scmp.eq.s32.totalorder %s13, 1
    %p159 = por %p157, %p158
    %p160 = scmp.ne.s32.totalorder %s152, %s155
    %p161 = scmp.eq.s32.totalorder %s13, 0
    %p162 = por %p160, %p161
    %p163 = scmp.ne.s32.totalorder %s152, %s155
    %p164 = scmp.eq.s32.totalorder %s18, 1
    %p165 = por %p163, %p164
    %p166 = scmp.ne.s32.totalorder %s155, %s156
    %p167 = scmp.eq.s32.totalorder %s18, 0
    %p168 = por %p166, %p167
    %p169 = scmp.ne.s32.totalorder %s155, %s156
    %p170 = scmp.eq.s32.totalorder %s19, 1
    %p171 = por %p169, %p170
    %p173 = scmp.ne.s32.totalorder %s156, %s172
    %p174 = scmp.eq.s32.totalorder %s19, 0
    %p175 = por %p173, %p174
    %s176 = ssub.s32 %s20, %s39
    %s177 = ssub.s32 %s21, %s35
    %s178 = sor.u32 %s176, %s177
    %p179 = scmp.eq.s32.totalorder %s178, 0
    %s181 = sadd.s32 %s180, 1
    %s182 = scalar_select %p179, %s180, %s181
    %p185 = pneg %p179
    %p186 = scmp.eq.s32.totalorder %s13, 1
    %p187 = por %p185, %p186
    %p188 = scmp.ne.s32.totalorder %s180, %s183
    %p189 = scmp.eq.s32.totalorder %s13, 0
    %p190 = por %p188, %p189
    %p191 = scmp.ne.s32.totalorder %s180, %s183
    %p192 = scmp.eq.s32.totalorder %s18, 1
    %p193 = por %p191, %p192
    %p194 = scmp.ne.s32.totalorder %s183, %s184
    %p195 = scmp.eq.s32.totalorder %s18, 0
    %p196 = por %p194, %p195
    %p197 = scmp.ne.s32.totalorder %s183, %s184
    %p198 = scmp.eq.s32.totalorder %s19, 1
    %p199 = por %p197, %p198
    %p201 = scmp.ne.s32.totalorder %s184, %s200
    %p202 = scmp.eq.s32.totalorder %s19, 0
    %p203 = por %p201, %p202
    %s204 = ssub.s32 %s20, %s39
    %s205 = ssub.s32 %s21, %s35
    %s206 = sor.u32 %s204, %s205
    %p207 = scmp.eq.s32.totalorder %s206, 0
    %s209 = sadd.s32 %s208, 1
    %s210 = scalar_select %p207, %s208, %s209
    %p213 = pneg %p207
    %p214 = scmp.eq.s32.totalorder %s13, 1
    %p215 = por %p213, %p214
    %p216 = scmp.ne.s32.totalorder %s208, %s211
    %p217 = scmp.eq.s32.totalorder %s13, 0
    %p218 = por %p216, %p217
    %p219 = scmp.ne.s32.totalorder %s208, %s211
    %p220 = scmp.eq.s32.totalorder %s18, 1
    %p221 = por %p219, %p220
    %p222 = scmp.ne.s32.totalorder %s211, %s212
    %p223 = scmp.eq.s32.totalorder %s18, 0
    %p224 = por %p222, %p223
    %p225 = scmp.ne.s32.totalorder %s211, %s212
    %p226 = scmp.eq.s32.totalorder %s19, 1
    %p227 = por %p225, %p226
    %p229 = scmp.ne.s32.totalorder %s212, %s228
    %p230 = scmp.eq.s32.totalorder %s19, 0
    %p231 = por %p229, %p230
    %p232 = scmp.le.s32.totalorder 1, %s13
    %p233 = scmp.lt.s32.totalorder %s13, 3
    %p234 = pnand %p232, %p233
    %p235 = pneg %p234
    // Predicated region
    $region9: #{feed_forward.3} parent=5 // pred_check
      _
    $region10: #{feed_forward.3} parent=5 // pred_check_branch
      %237 = sbr.rel (%p234) target = $region12
    $region11: #{feed_forward.3} parent=5 // pred_region
      %s238 = ssub.s32 %s13, 1
      // Predicated region
      $region13: #{feed_forward.3} parent=11 // pred_check
        %p239 = pneg %p88
      $region14: #{feed_forward.3} parent=11 // pred_check_branch
        %241 = sbr.rel (%p239) target = $region16
      $region15: #{feed_forward.3} parent=11 // pred_region
        %s242 = smul.u32 2, %s25
        %p243 = scmp.lt.s32.totalorder %s242, 1
        %s244 = scalar_select %p243, %s242, 1
        %p245 = scmp.lt.s32.totalorder %s24, 0
        %s246 = scalar_select %p245, %s24, 0
        %s247 = sadd.s32 %s246, %s244
        %s248 = smul.addr %s247, 4
        %s249 = scalar_lea.vmem %s1, %s248
        %s250 = smul.u32 2, %s25
      $region16: #{feed_forward.3} parent=11 // pred_fallthru
        _
      // Predicated region
      $region17: #{feed_forward.3} parent=11 // pred_check
        %p251 = pneg %p116
      $region18: #{feed_forward.3} parent=11 // pred_check_branch
        %253 = sbr.rel (%p251) target = $region20
      $region19: #{feed_forward.3} parent=11 // pred_region
        %s254 = smul.u32 2, %s25
        %p255 = scmp.lt.s32.totalorder %s254, 1
        %s256 = scalar_select %p255, %s254, 1
        %p257 = scmp.lt.s32.totalorder %s24, 0
        %s258 = scalar_select %p257, %s24, 0
        %s259 = sadd.s32 %s258, %s256
        %s260 = smul.addr %s259, 4
        %s261 = scalar_lea.vmem %s2, %s260
        %s262 = smul.u32 2, %s25
      $region20: #{feed_forward.3} parent=11 // pred_fallthru
        _
      // Predicated region
      $region21: #{feed_forward.3} parent=11 // pred_check
        %p263 = pneg %p142
      $region22: #{feed_forward.3} parent=11 // pred_check_branch
        %265 = sbr.rel (%p263) target = $region24
      $region23: #{feed_forward.3} parent=11 // pred_region
        %p266 = scmp.lt.s32.totalorder %s24, 0
        %s267 = scalar_select %p266, %s24, 0
        %s268 = scalar_lea.vmem %s3, %s267
      $region24: #{feed_forward.3} parent=11 // pred_fallthru
        _
      // Predicated region
      $region25: #{feed_forward.3} parent=11 // pred_check
        %p269 = pneg %p168
      $region26: #{feed_forward.3} parent=11 // pred_check_branch
        %271 = sbr.rel (%p269) target = $region28
      $region27: #{feed_forward.3} parent=11 // pred_region
        %p272 = scmp.lt.s32.totalorder %s24, 0
        %s273 = scalar_select %p272, %s24, 0
        %s274 = scalar_lea.vmem %s4, %s273
      $region28: #{feed_forward.3} parent=11 // pred_fallthru
        _
    $region12: #{feed_forward.3} parent=5 // pred_fallthru
      _
    %p275 = scmp.lt.s32.totalorder %s13, 2
    // Predicated region
    $region29: #{feed_forward.3} parent=5 // pred_check
      %p276 = pneg %p275
    $region30: #{feed_forward.3} parent=5 // pred_check_branch
      %278 = sbr.rel (%p276) target = $region32
    $region31: #{feed_forward.3} parent=5 // pred_region
      // Predicated region
      $region33: #{feed_forward.3} parent=31 // pred_check
        %p279 = pneg %p54
      $region34: #{feed_forward.3} parent=31 // pred_check_branch
        %281 = sbr.rel (%p279) target = $region36
      $region35: #{feed_forward.3} parent=31 // pred_region
        %s282 = smul.u32 32, %s20
        %p283 = scmp.lt.s32.totalorder %s282, 63
        %s284 = scalar_select %p283, %s282, 63
        %p285 = scmp.lt.s32.totalorder %s22, 0
        %s286 = scalar_select %p285, %s22, 0
        %s287 = sadd.s32 %s286, %s284
        %s288 = smul.addr %s287, 4
        %s289 = scalar_lea.vmem %s0, %s288
        %s290 = smul.u32 32, %s20
      $region36: #{feed_forward.3} parent=31 // pred_fallthru
        _
    $region32: #{feed_forward.3} parent=5 // pred_fallthru
      _
    %p291 = scmp.le.s32.totalorder 1, %s13
    %p292 = scmp.lt.s32.totalorder %s13, 3
    %p293 = pnand %p291, %p292
    %p294 = pneg %p293
    // Predicated region
    $region37: #{feed_forward.3} parent=5 // pred_check
      _
    $region38: #{feed_forward.3} parent=5 // pred_check_branch
      %296 = sbr.rel (%p293) target = $region40
    $region39: #{feed_forward.3} parent=5 // pred_region
      %s297 = ssub.s32 %s13, 1
      %s298 = smul.u32 32, %s23
      %p299 = scmp.lt.s32.totalorder %s298, 63
      %s300 = scalar_select %p299, %s298, 63
      %p301 = scmp.lt.s32.totalorder %s25, 0
      %s302 = scalar_select %p301, %s25, 0
      %s303 = sadd.s32 %s302, %s300
      %s304 = smul.addr %s303, 4
      %s305 = scalar_lea.vmem %s0, %s304
      %p306 = pneg %p60
      %p307 = pneg %p57
      %s308 = smul.u32 2, %s25
      %p309 = scmp.lt.s32.totalorder %s308, 1
      %s310 = scalar_select %p309, %s308, 1
      %p311 = scmp.lt.s32.totalorder %s24, 0
      %s312 = scalar_select %p311, %s24, 0
      %s313 = sadd.s32 %s312, %s310
      %s314 = smul.addr %s313, 4
      %s315 = scalar_lea.vmem %s1, %s314
      %p316 = pneg %p88
      %p317 = pneg %p85
      %s318 = smul.u32 2, %s25
      %p319 = scmp.lt.s32.totalorder %s318, 1
      %s320 = scalar_select %p319, %s318, 1
      %p321 = scmp.lt.s32.totalorder %s24, 0
      %s322 = scalar_select %p321, %s24, 0
      %s323 = sadd.s32 %s322, %s320
      %s324 = smul.addr %s323, 4
      %s325 = scalar_lea.vmem %s2, %s324
      %p326 = pneg %p116
      %p327 = pneg %p113
      %p328 = scmp.lt.s32.totalorder %s24, 0
      %s329 = scalar_select %p328, %s24, 0
      %s330 = scalar_lea.vmem %s3, %s329
      %p331 = pneg %p142
      %p332 = pneg %p139
      %p333 = scmp.lt.s32.totalorder %s24, 0
      %s334 = scalar_select %p333, %s24, 0
      %s335 = scalar_lea.vmem %s4, %s334
      %p336 = pneg %p168
      %p337 = pneg %p165
      %p338 = pneg %p196
      %p339 = pneg %p193
      %s340 = smul.u32 32, %s23
      %p341 = scmp.lt.s32.totalorder %s340, 63
      %s342 = scalar_select %p341, %s340, 63
      %p343 = scmp.lt.s32.totalorder %s24, 0
      %s344 = scalar_select %p343, %s24, 0
      %s345 = sadd.s32 %s344, %s342
      %s346 = smul.addr %s345, 4
      %s347 = scalar_lea.vmem %s5, %s346
      %p348 = pneg %p224
      %p349 = pneg %p221
      %s350 = smul.u32 32, %s23
      %p351 = scmp.lt.s32.totalorder %s350, 63
      %s352 = scalar_select %p351, %s350, 63
      %p353 = scmp.lt.s32.totalorder %s24, 0
      %s354 = scalar_select %p353, %s24, 0
      %s355 = sadd.s32 %s354, %s352
      %s356 = smul.addr %s355, 4
      %s357 = scalar_lea.vmem %s6, %s356
      %s358 = smul.u32 32, %s23
      %p359 = scmp.lt.s32.totalorder %s358, 63
      %s360 = scalar_select %p359, %s358, 63
      %p361 = scmp.lt.s32.totalorder %s25, 0
      %s362 = scalar_select %p361, %s25, 0
      %s363 = sadd.s32 %s362, %s360
      %s364 = smul.addr %s363, 4
      %s365 = scalar_lea.vmem %s0, %s364
      %s366 = smul.u32 32, %s23
      %s367 = smul.u32 2, %s25
      %p368 = scmp.lt.s32.totalorder %s367, 1
      %s369 = scalar_select %p368, %s367, 1
      %p370 = scmp.lt.s32.totalorder %s24, 0
      %s371 = scalar_select %p370, %s24, 0
      %s372 = sadd.s32 %s371, %s369
      %s373 = smul.addr %s372, 4
      %s374 = scalar_lea.vmem %s1, %s373
      %s375 = smul.u32 2, %s25
      %s376 = smul.u32 2, %s25
      %p377 = scmp.lt.s32.totalorder %s376, 1
      %s378 = scalar_select %p377, %s376, 1
      %p379 = scmp.lt.s32.totalorder %s24, 0
      %s380 = scalar_select %p379, %s24, 0
      %s381 = sadd.s32 %s380, %s378
      %s382 = smul.addr %s381, 4
      %s383 = scalar_lea.vmem %s2, %s382
      %s384 = smul.u32 2, %s25
      %p385 = scmp.lt.s32.totalorder %s24, 0
      %s386 = scalar_select %p385, %s24, 0
      %s387 = scalar_lea.vmem %s3, %s386
      %p388 = scmp.lt.s32.totalorder %s24, 0
      %s389 = scalar_select %p388, %s24, 0
      %s390 = scalar_lea.vmem %s4, %s389
      %s391 = smul.u32 32, %s23
      %p392 = scmp.lt.s32.totalorder %s391, 63
      %s393 = scalar_select %p392, %s391, 63
      %p394 = scmp.lt.s32.totalorder %s24, 0
      %s395 = scalar_select %p394, %s24, 0
      %s396 = sadd.s32 %s395, %s393
      %s397 = smul.addr %s396, 4
      %s398 = scalar_lea.vmem %s5, %s397
      %s399 = smul.u32 32, %s23
      %s400 = smul.u32 32, %s23
      %p401 = scmp.lt.s32.totalorder %s400, 63
      %s402 = scalar_select %p401, %s400, 63
      %p403 = scmp.lt.s32.totalorder %s24, 0
      %s404 = scalar_select %p403, %s24, 0
      %s405 = sadd.s32 %s404, %s402
      %s406 = smul.addr %s405, 4
      %s407 = scalar_lea.vmem %s6, %s406
      %s408 = smul.u32 32, %s23
      %p410 = scmp.eq.s32.totalorder %s25, 0
      // Predicated region
      $region41: #{feed_forward.3} parent=39 // pred_check
        %p411 = pneg %p410
      $region42: #{feed_forward.3} parent=39 // pred_check_branch
        %413 = sbr.rel (%p411) target = $region44
      $region43: #{feed_forward.3} parent=39 // pred_region
        %vm414 = vcmask 261120
        %415 = vst.msk [vmem:[#allocation2] sm:$0xff] %vm414, 0.0
        %416 = vst.msk [vmem:[#allocation2 + $0x8] sm:$0xff] %vm414, 0.0
        %417 = vst.msk [vmem:[#allocation2 + $0x10] sm:$0xff] %vm414, 0.0
        %418 = vst.msk [vmem:[#allocation2 + $0x18] sm:$0xff] %vm414, 0.0
        %419 = vst.msk [vmem:[#allocation2 + $0x20] sm:$0xff] %vm414, 0.0
        %420 = vst.msk [vmem:[#allocation2 + $0x28] sm:$0xff] %vm414, 0.0
        %421 = vst.msk [vmem:[#allocation2 + $0x30] sm:$0xff] %vm414, 0.0
        %422 = vst.msk [vmem:[#allocation2 + $0x38] sm:$0xff] %vm414, 0.0
        %423 = vst.msk [vmem:[#allocation2 + $0x40] sm:$0xff] %vm414, 0.0
        %424 = vst.msk [vmem:[#allocation2 + $0x48] sm:$0xff] %vm414, 0.0
        %425 = vst.msk [vmem:[#allocation2 + $0x50] sm:$0xff] %vm414, 0.0
        %426 = vst.msk [vmem:[#allocation2 + $0x58] sm:$0xff] %vm414, 0.0
        %427 = vst.msk [vmem:[#allocation2 + $0x60] sm:$0xff] %vm414, 0.0
        %428 = vst.msk [vmem:[#allocation2 + $0x68] sm:$0xff] %vm414, 0.0
        %429 = vst.msk [vmem:[#allocation2 + $0x70] sm:$0xff] %vm414, 0.0
        %430 = vst.msk [vmem:[#allocation2 + $0x78] sm:$0xff] %vm414, 0.0
        %431 = vst.msk [vmem:[#allocation2 + $0x80] sm:$0xff] %vm414, 0.0
        %432 = vst.msk [vmem:[#allocation2 + $0x88] sm:$0xff] %vm414, 0.0
        %433 = vst.msk [vmem:[#allocation2 + $0x90] sm:$0xff] %vm414, 0.0
        %434 = vst.msk [vmem:[#allocation2 + $0x98] sm:$0xff] %vm414, 0.0
        %435 = vst.msk [vmem:[#allocation2 + $0xa0] sm:$0xff] %vm414, 0.0
        %436 = vst.msk [vmem:[#allocation2 + $0xa8] sm:$0xff] %vm414, 0.0
        %437 = vst.msk [vmem:[#allocation2 + $0xb0] sm:$0xff] %vm414, 0.0
        %438 = vst.msk [vmem:[#allocation2 + $0xb8] sm:$0xff] %vm414, 0.0
        %439 = vst.msk [vmem:[#allocation2 + $0xc0] sm:$0xff] %vm414, 0.0
        %440 = vst.msk [vmem:[#allocation2 + $0xc8] sm:$0xff] %vm414, 0.0
        %441 = vst.msk [vmem:[#allocation2 + $0xd0] sm:$0xff] %vm414, 0.0
        %442 = vst.msk [vmem:[#allocation2 + $0xd8] sm:$0xff] %vm414, 0.0
        %443 = vst.msk [vmem:[#allocation2 + $0xe0] sm:$0xff] %vm414, 0.0
        %444 = vst.msk [vmem:[#allocation2 + $0xe8] sm:$0xff] %vm414, 0.0
        %445 = vst.msk [vmem:[#allocation2 + $0xf0] sm:$0xff] %vm414, 0.0
        %446 = vst.msk [vmem:[#allocation2 + $0xf8] sm:$0xff] %vm414, 0.0
        %447 = vst.msk [vmem:[#allocation3] sm:$0xff] %vm414, 0.0
        %448 = vst.msk [vmem:[#allocation3 + $0x8] sm:$0xff] %vm414, 0.0
        %449 = vst.msk [vmem:[#allocation3 + $0x10] sm:$0xff] %vm414, 0.0
        %450 = vst.msk [vmem:[#allocation3 + $0x18] sm:$0xff] %vm414, 0.0
        %451 = vst.msk [vmem:[#allocation3 + $0x20] sm:$0xff] %vm414, 0.0
        %452 = vst.msk [vmem:[#allocation3 + $0x28] sm:$0xff] %vm414, 0.0
        %453 = vst.msk [vmem:[#allocation3 + $0x30] sm:$0xff] %vm414, 0.0
        %454 = vst.msk [vmem:[#allocation3 + $0x38] sm:$0xff] %vm414, 0.0
        %455 = vst.msk [vmem:[#allocation3 + $0x40] sm:$0xff] %vm414, 0.0
        %456 = vst.msk [vmem:[#allocation3 + $0x48] sm:$0xff] %vm414, 0.0
        %457 = vst.msk [vmem:[#allocation3 + $0x50] sm:$0xff] %vm414, 0.0
        %458 = vst.msk [vmem:[#allocation3 + $0x58] sm:$0xff] %vm414, 0.0
        %459 = vst.msk [vmem:[#allocation3 + $0x60] sm:$0xff] %vm414, 0.0
        %460 = vst.msk [vmem:[#allocation3 + $0x68] sm:$0xff] %vm414, 0.0
        %461 = vst.msk [vmem:[#allocation3 + $0x70] sm:$0xff] %vm414, 0.0
        %462 = vst.msk [vmem:[#allocation3 + $0x78] sm:$0xff] %vm414, 0.0
        %463 = vst.msk [vmem:[#allocation3 + $0x80] sm:$0xff] %vm414, 0.0
        %464 = vst.msk [vmem:[#allocation3 + $0x88] sm:$0xff] %vm414, 0.0
        %465 = vst.msk [vmem:[#allocation3 + $0x90] sm:$0xff] %vm414, 0.0
        %466 = vst.msk [vmem:[#allocation3 + $0x98] sm:$0xff] %vm414, 0.0
        %467 = vst.msk [vmem:[#allocation3 + $0xa0] sm:$0xff] %vm414, 0.0
        %468 = vst.msk [vmem:[#allocation3 + $0xa8] sm:$0xff] %vm414, 0.0
        %469 = vst.msk [vmem:[#allocation3 + $0xb0] sm:$0xff] %vm414, 0.0
        %470 = vst.msk [vmem:[#allocation3 + $0xb8] sm:$0xff] %vm414, 0.0
        %471 = vst.msk [vmem:[#allocation3 + $0xc0] sm:$0xff] %vm414, 0.0
        %472 = vst.msk [vmem:[#allocation3 + $0xc8] sm:$0xff] %vm414, 0.0
        %473 = vst.msk [vmem:[#allocation3 + $0xd0] sm:$0xff] %vm414, 0.0
        %474 = vst.msk [vmem:[#allocation3 + $0xd8] sm:$0xff] %vm414, 0.0
        %475 = vst.msk [vmem:[#allocation3 + $0xe0] sm:$0xff] %vm414, 0.0
        %476 = vst.msk [vmem:[#allocation3 + $0xe8] sm:$0xff] %vm414, 0.0
        %477 = vst.msk [vmem:[#allocation3 + $0xf0] sm:$0xff] %vm414, 0.0
        %478 = vst.msk [vmem:[#allocation3 + $0xf8] sm:$0xff] %vm414, 0.0
      $region44: #{feed_forward.3} parent=39 // pred_fallthru
        _
      %v479 = vld [vmem:[%s365] sm:$0xf]
      %v480 = vld [vmem:[%s365 + $0x4] sm:$0xf]
      %v481 = vld [vmem:[%s365 + $0x8] sm:$0xf]
      %v482 = vld [vmem:[%s365 + $0xc] sm:$0xf]
      %v483 = vld [vmem:[%s365 + $0x10] sm:$0xf]
      %v484 = vld [vmem:[%s365 + $0x14] sm:$0xf]
      %v485 = vld [vmem:[%s365 + $0x18] sm:$0xf]
      %v486 = vld [vmem:[%s365 + $0x1c] sm:$0xf]
      %v487 = vld [vmem:[%s365 + $0x20] sm:$0xf]
      %v488 = vld [vmem:[%s365 + $0x24] sm:$0xf]
      %v489 = vld [vmem:[%s365 + $0x28] sm:$0xf]
      %v490 = vld [vmem:[%s365 + $0x2c] sm:$0xf]
      %v491 = vld [vmem:[%s365 + $0x30] sm:$0xf]
      %v492 = vld [vmem:[%s365 + $0x34] sm:$0xf]
      %v493 = vld [vmem:[%s365 + $0x38] sm:$0xf]
      %v494 = vld [vmem:[%s365 + $0x3c] sm:$0xf]
      %v495 = vld [vmem:[%s365 + $0x40] sm:$0xf]
      %v496 = vld [vmem:[%s365 + $0x44] sm:$0xf]
      %v497 = vld [vmem:[%s365 + $0x48] sm:$0xf]
      %v498 = vld [vmem:[%s365 + $0x4c] sm:$0xf]
      %v499 = vld [vmem:[%s365 + $0x50] sm:$0xf]
      %v500 = vld [vmem:[%s365 + $0x54] sm:$0xf]
      %v501 = vld [vmem:[%s365 + $0x58] sm:$0xf]
      %v502 = vld [vmem:[%s365 + $0x5c] sm:$0xf]
      %v503 = vld [vmem:[%s365 + $0x60] sm:$0xf]
      %v504 = vld [vmem:[%s365 + $0x64] sm:$0xf]
      %v505 = vld [vmem:[%s365 + $0x68] sm:$0xf]
      %v506 = vld [vmem:[%s365 + $0x6c] sm:$0xf]
      %v507 = vld [vmem:[%s365 + $0x70] sm:$0xf]
      %v508 = vld [vmem:[%s365 + $0x74] sm:$0xf]
      %v509 = vld [vmem:[%s365 + $0x78] sm:$0xf]
      %v510 = vld [vmem:[%s365 + $0x7c] sm:$0xf]
      %v511 = vld [vmem:[#allocation2] sm:$0xff]
      %v512 = vld [vmem:[#allocation2 + $0x8] sm:$0xff]
      %v513 = vld [vmem:[#allocation2 + $0x10] sm:$0xff]
      %v514 = vld [vmem:[#allocation2 + $0x18] sm:$0xff]
      %v515 = vld [vmem:[#allocation2 + $0x20] sm:$0xff]
      %v516 = vld [vmem:[#allocation2 + $0x28] sm:$0xff]
      %v517 = vld [vmem:[#allocation2 + $0x30] sm:$0xff]
      %v518 = vld [vmem:[#allocation2 + $0x38] sm:$0xff]
      %v519 = vld [vmem:[#allocation2 + $0x40] sm:$0xff]
      %v520 = vld [vmem:[#allocation2 + $0x48] sm:$0xff]
      %v521 = vld [vmem:[#allocation2 + $0x50] sm:$0xff]
      %v522 = vld [vmem:[#allocation2 + $0x58] sm:$0xff]
      %v523 = vld [vmem:[#allocation2 + $0x60] sm:$0xff]
      %v524 = vld [vmem:[#allocation2 + $0x68] sm:$0xff]
      %v525 = vld [vmem:[#allocation2 + $0x70] sm:$0xff]
      %v526 = vld [vmem:[#allocation2 + $0x78] sm:$0xff]
      %v527 = vld [vmem:[#allocation2 + $0x80] sm:$0xff]
      %v528 = vld [vmem:[#allocation2 + $0x88] sm:$0xff]
      %v529 = vld [vmem:[#allocation2 + $0x90] sm:$0xff]
      %v530 = vld [vmem:[#allocation2 + $0x98] sm:$0xff]
      %v531 = vld [vmem:[#allocation2 + $0xa0] sm:$0xff]
      %v532 = vld [vmem:[#allocation2 + $0xa8] sm:$0xff]
      %v533 = vld [vmem:[#allocation2 + $0xb0] sm:$0xff]
      %v534 = vld [vmem:[#allocation2 + $0xb8] sm:$0xff]
      %v535 = vld [vmem:[#allocation2 + $0xc0] sm:$0xff]
      %v536 = vld [vmem:[#allocation2 + $0xc8] sm:$0xff]
      %v537 = vld [vmem:[#allocation2 + $0xd0] sm:$0xff]
      %v538 = vld [vmem:[#allocation2 + $0xd8] sm:$0xff]
      %v539 = vld [vmem:[#allocation2 + $0xe0] sm:$0xff]
      %v540 = vld [vmem:[#allocation2 + $0xe8] sm:$0xff]
      %v541 = vld [vmem:[#allocation2 + $0xf0] sm:$0xff]
      %v542 = vld [vmem:[#allocation2 + $0xf8] sm:$0xff]
      %v543 = vld [vmem:[%s374] sm:$0xf]
      %v544 = vld [vmem:[%s374 + $0x4] sm:$0xf]
      %v577 = vunpack.c.l.b16 %v479
      %v578 = vunpack.c.l.b16 %v480
      %v579 = vunpack.c.l.b16 %v481
      %v580 = vunpack.c.l.b16 %v482
      %v581 = vunpack.c.l.b16 %v483
      %v582 = vunpack.c.l.b16 %v484
      %v583 = vunpack.c.l.b16 %v485
      %v584 = vunpack.c.l.b16 %v486
      %v585 = vunpack.c.l.b16 %v487
      %v586 = vunpack.c.l.b16 %v488
      %v587 = vunpack.c.l.b16 %v489
      %v588 = vunpack.c.l.b16 %v490
      %v589 = vunpack.c.l.b16 %v491
      %v590 = vunpack.c.l.b16 %v492
      %v591 = vunpack.c.l.b16 %v493
      %v592 = vunpack.c.l.b16 %v494
      %v593 = vunpack.c.l.b16 %v495
      %v594 = vunpack.c.l.b16 %v496
      %v595 = vunpack.c.l.b16 %v497
      %v596 = vunpack.c.l.b16 %v498
      %v597 = vunpack.c.l.b16 %v499
      %v598 = vunpack.c.l.b16 %v500
      %v599 = vunpack.c.l.b16 %v501
      %v600 = vunpack.c.l.b16 %v502
      %v601 = vunpack.c.l.b16 %v503
      %v602 = vunpack.c.l.b16 %v504
      %v603 = vunpack.c.l.b16 %v505
      %v604 = vunpack.c.l.b16 %v506
      %v605 = vunpack.c.l.b16 %v507
      %v606 = vunpack.c.l.b16 %v508
      %v607 = vunpack.c.l.b16 %v509
      %v608 = vunpack.c.l.b16 %v510
      %v609 = vpack.c.b16 %v578, %v577
      %v610 = vpack.c.b16 %v580, %v579
      %v611 = vpack.c.b16 %v582, %v581
      %v612 = vpack.c.b16 %v584, %v583
      %v613 = vpack.c.b16 %v586, %v585
      %v614 = vpack.c.b16 %v588, %v587
      %v615 = vpack.c.b16 %v590, %v589
      %v616 = vpack.c.b16 %v592, %v591
      %v617 = vpack.c.b16 %v594, %v593
      %v618 = vpack.c.b16 %v596, %v595
      %v619 = vpack.c.b16 %v598, %v597
      %v620 = vpack.c.b16 %v600, %v599
      %v621 = vpack.c.b16 %v602, %v601
      %v622 = vpack.c.b16 %v604, %v603
      %v623 = vpack.c.b16 %v606, %v605
      %v624 = vpack.c.b16 %v608, %v607
      %v627 = vunpack.c.l.b16 %v543
      %v628 = vunpack.c.l.b16 %v544
      %v629 = vpack.c.b16 %v628, %v627
      %vm631 = vcmask 130048
      %v633 = vsel %vm631, %v609, 0
      %v636 = vsel %vm631, %v610, 0
      %v639 = vsel %vm631, %v611, 0
      %v642 = vsel %vm631, %v612, 0
      %v645 = vsel %vm631, %v613, 0
      %v648 = vsel %vm631, %v614, 0
      %v651 = vsel %vm631, %v615, 0
      %v654 = vsel %vm631, %v616, 0
      %v657 = vsel %vm631, %v617, 0
      %v660 = vsel %vm631, %v618, 0
      %v663 = vsel %vm631, %v619, 0
      %v666 = vsel %vm631, %v620, 0
      %v669 = vsel %vm631, %v621, 0
      %v672 = vsel %vm631, %v622, 0
      %v675 = vsel %vm631, %v623, 0
      %v678 = vsel %vm631, %v624, 0
      %680 = vmatprep.subr.bf16.mxu0 0
      %681 = vmatpush1.bf16.msra.mxu0 %v629
      %682 = vmatprep.subr.bf16.mxu0 0
      %683 = vmatpush1.bf16.msra.mxu0 0
      %684 = vmatprep.subr.bf16.mxu0 0
      %685 = vmatpush1.bf16.msra.mxu0 0
      %686 = vmatprep.subr.bf16.mxu0 0
      %687 = vmatpush1.bf16.msra.mxu0 0
      %688 = vmatprep.subr.bf16.mxu0 0
      %689 = vmatpush1.bf16.msra.mxu0 0
      %690 = vmatprep.subr.bf16.mxu0 0
      %691 = vmatpush1.bf16.msra.mxu0 0
      %692 = vmatprep.subr.bf16.mxu0 0
      %693 = vmatpush1.bf16.msra.mxu0 0
      %694 = vmatprep.subr.bf16.mxu0 0
      %695 = vmatpush1.bf16.msra.mxu0 0
      %696 = vmatprep.subr.bf16.mxu0 0
      %697 = vmatpush1.bf16.msra.mxu0 0
      %698 = vmatprep.subr.bf16.mxu0 0
      %699 = vmatpush1.bf16.msra.mxu0 0
      %700 = vmatprep.subr.bf16.mxu0 0
      %701 = vmatpush1.bf16.msra.mxu0 0
      %702 = vmatprep.subr.bf16.mxu0 0
      %703 = vmatpush1.bf16.msra.mxu0 0
      %704 = vmatprep.subr.bf16.mxu0 0
      %705 = vmatpush1.bf16.msra.mxu0 0
      %706 = vmatprep.subr.bf16.mxu0 0
      %707 = vmatpush1.bf16.msra.mxu0 0
      %708 = vmatprep.subr.bf16.mxu0 0
      %709 = vmatpush1.bf16.msra.mxu0 0
      %710 = vmatprep.subr.bf16.mxu0 0
      %711 = vmatpush1.bf16.msra.mxu0 0
      %712 = vmatprep.mubr.bf16.mxu0 0
      %713 = vmatmul.mubr.bf16.gmra.mrb[0].mxu0 %v633
      %v714 = vpop.f32.mrb[0].mxu0
      %v715 = vadd.f32 0.0, %v714
      %v716 = vpop.f32.mrb[0].mxu0
      %v717 = vpop.f32.mrb[0].mxu0
      %v718 = vadd.f32 0.0, %v717
      %v719 = vpop.f32.mrb[0].mxu0
      %720 = vmatprep.mubr.bf16.mxu0 0
      %721 = vmatmul.mubr.bf16.gmra.mrb[0].mxu0 %v636
      %v722 = vpop.f32.mrb[0].mxu0
      %v723 = vadd.f32 0.0, %v722
      %v724 = vpop.f32.mrb[0].mxu0
      %v725 = vpop.f32.mrb[0].mxu0
      %v726 = vadd.f32 0.0, %v725
      %v727 = vpop.f32.mrb[0].mxu0
      %728 = vmatprep.mubr.bf16.mxu0 0
      %729 = vmatmul.mubr.bf16.gmra.mrb[0].mxu0 %v639
      %v730 = vpop.f32.mrb[0].mxu0
      %v731 = vadd.f32 0.0, %v730
      %v732 = vpop.f32.mrb[0].mxu0
      %v733 = vpop.f32.mrb[0].mxu0
      %v734 = vadd.f32 0.0, %v733
      %v735 = vpop.f32.mrb[0].mxu0
      %736 = vmatprep.mubr.bf16.mxu0 0
      %737 = vmatmul.mubr.bf16.gmra.mrb[0].mxu0 %v642
      %v738 = vpop.f32.mrb[0].mxu0
      %v739 = vadd.f32 0.0, %v738
      %v740 = vpop.f32.mrb[0].mxu0
      %v741 = vpop.f32.mrb[0].mxu0
      %v742 = vadd.f32 0.0, %v741
      %v743 = vpop.f32.mrb[0].mxu0
      %744 = vmatprep.mubr.bf16.mxu0 0
      %745 = vmatmul.mubr.bf16.gmra.mrb[0].mxu0 %v645
      %v746 = vpop.f32.mrb[0].mxu0
      %v747 = vadd.f32 0.0, %v746
      %v748 = vpop.f32.mrb[0].mxu0
      %v749 = vpop.f32.mrb[0].mxu0
      %v750 = vadd.f32 0.0, %v749
      %v751 = vpop.f32.mrb[0].mxu0
      %752 = vmatprep.mubr.bf16.mxu0 0
      %753 = vmatmul.mubr.bf16.gmra.mrb[0].mxu0 %v648
      %v754 = vpop.f32.mrb[0].mxu0
      %v755 = vadd.f32 0.0, %v754
      %v756 = vpop.f32.mrb[0].mxu0
      %v757 = vpop.f32.mrb[0].mxu0
      %v758 = vadd.f32 0.0, %v757
      %v759 = vpop.f32.mrb[0].mxu0
      %760 = vmatprep.mubr.bf16.mxu0 0
      %761 = vmatmul.mubr.bf16.gmra.mrb[0].mxu0 %v651
      %v762 = vpop.f32.mrb[0].mxu0
      %v763 = vadd.f32 0.0, %v762
      %v764 = vpop.f32.mrb[0].mxu0
      %v765 = vpop.f32.mrb[0].mxu0
      %v766 = vadd.f32 0.0, %v765
      %v767 = vpop.f32.mrb[0].mxu0
      %768 = vmatprep.mubr.bf16.mxu0 0
      %769 = vmatmul.mubr.bf16.gmra.mrb[0].mxu0 %v654
      %v770 = vpop.f32.mrb[0].mxu0
      %v771 = vadd.f32 0.0, %v770
      %v772 = vpop.f32.mrb[0].mxu0
      %v773 = vpop.f32.mrb[0].mxu0
      %v774 = vadd.f32 0.0, %v773
      %v775 = vpop.f32.mrb[0].mxu0
      %776 = vmatprep.mubr.bf16.mxu0 0
      %777 = vmatmul.mubr.bf16.gmra.mrb[0].mxu0 %v657
      %v778 = vpop.f32.mrb[0].mxu0
      %v779 = vadd.f32 0.0, %v778
      %v780 = vpop.f32.mrb[0].mxu0
      %v781 = vpop.f32.mrb[0].mxu0
      %v782 = vadd.f32 0.0, %v781
      %v783 = vpop.f32.mrb[0].mxu0
      %784 = vmatprep.mubr.bf16.mxu0 0
      %785 = vmatmul.mubr.bf16.gmra.mrb[0].mxu0 %v660
      %v786 = vpop.f32.mrb[0].mxu0
      %v787 = vadd.f32 0.0, %v786
      %v788 = vpop.f32.mrb[0].mxu0
      %v789 = vpop.f32.mrb[0].mxu0
      %v790 = vadd.f32 0.0, %v789
      %v791 = vpop.f32.mrb[0].mxu0
      %792 = vmatprep.mubr.bf16.mxu0 0
      %793 = vmatmul.mubr.bf16.gmra.mrb[0].mxu0 %v663
      %v794 = vpop.f32.mrb[0].mxu0
      %v795 = vadd.f32 0.0, %v794
      %v796 = vpop.f32.mrb[0].mxu0
      %v797 = vpop.f32.mrb[0].mxu0
      %v798 = vadd.f32 0.0, %v797
      %v799 = vpop.f32.mrb[0].mxu0
      %800 = vmatprep.mubr.bf16.mxu0 0
      %801 = vmatmul.mubr.bf16.gmra.mrb[0].mxu0 %v666
      %v802 = vpop.f32.mrb[0].mxu0
      %v803 = vadd.f32 0.0, %v802
      %v804 = vpop.f32.mrb[0].mxu0
      %v805 = vpop.f32.mrb[0].mxu0
      %v806 = vadd.f32 0.0, %v805
      %v807 = vpop.f32.mrb[0].mxu0
      %808 = vmatprep.mubr.bf16.mxu0 0
      %809 = vmatmul.mubr.bf16.gmra.mrb[0].mxu0 %v669
      %v810 = vpop.f32.mrb[0].mxu0
      %v811 = vadd.f32 0.0, %v810
      %v812 = vpop.f32.mrb[0].mxu0
      %v813 = vpop.f32.mrb[0].mxu0
      %v814 = vadd.f32 0.0, %v813
      %v815 = vpop.f32.mrb[0].mxu0
      %816 = vmatprep.mubr.bf16.mxu0 0
      %817 = vmatmul.mubr.bf16.gmra.mrb[0].mxu0 %v672
      %v818 = vpop.f32.mrb[0].mxu0
      %v819 = vadd.f32 0.0, %v818
      %v820 = vpop.f32.mrb[0].mxu0
      %v821 = vpop.f32.mrb[0].mxu0
      %v822 = vadd.f32 0.0, %v821
      %v823 = vpop.f32.mrb[0].mxu0
      %824 = vmatprep.mubr.bf16.mxu0 0
      %825 = vmatmul.mubr.bf16.gmra.mrb[0].mxu0 %v675
      %v826 = vpop.f32.mrb[0].mxu0
      %v827 = vadd.f32 0.0, %v826
      %v828 = vpop.f32.mrb[0].mxu0
      %v829 = vpop.f32.mrb[0].mxu0
      %v830 = vadd.f32 0.0, %v829
      %v831 = vpop.f32.mrb[0].mxu0
      %832 = vmatprep.mubr.bf16.mxu0 0
      %833 = vmatmul.mubr.bf16.gmra.mrb[0].mxu0 %v678
      %v834 = vpop.f32.mrb[0].mxu0
      %v835 = vadd.f32 0.0, %v834
      %v836 = vpop.f32.mrb[0].mxu0
      %v837 = vpop.f32.mrb[0].mxu0
      %v838 = vadd.f32 0.0, %v837
      %v839 = vpop.f32.mrb[0].mxu0
      %840 = vdwg.mxu0
      %v841 = vadd.f32 %v511, %v715
      %v842 = vadd.f32 %v512, %v718
      %v843 = vadd.f32 %v513, %v723
      %v844 = vadd.f32 %v514, %v726
      %v845 = vadd.f32 %v515, %v731
      %v846 = vadd.f32 %v516, %v734
      %v847 = vadd.f32 %v517, %v739
      %v848 = vadd.f32 %v518, %v742
      %v849 = vadd.f32 %v519, %v747
      %v850 = vadd.f32 %v520, %v750
      %v851 = vadd.f32 %v521, %v755
      %v852 = vadd.f32 %v522, %v758
      %v853 = vadd.f32 %v523, %v763
      %v854 = vadd.f32 %v524, %v766
      %v855 = vadd.f32 %v525, %v771
      %v856 = vadd.f32 %v526, %v774
      %v857 = vadd.f32 %v527, %v779
      %v858 = vadd.f32 %v528, %v782
      %v859 = vadd.f32 %v529, %v787
      %v860 = vadd.f32 %v530, %v790
      %v861 = vadd.f32 %v531, %v795
      %v862 = vadd.f32 %v532, %v798
      %v863 = vadd.f32 %v533, %v803
      %v864 = vadd.f32 %v534, %v806
      %v865 = vadd.f32 %v535, %v811
      %v866 = vadd.f32 %v536, %v814
      %v867 = vadd.f32 %v537, %v819
      %v868 = vadd.f32 %v538, %v822
      %v869 = vadd.f32 %v539, %v827
      %v870 = vadd.f32 %v540, %v830
      %v871 = vadd.f32 %v541, %v835
      %v872 = vadd.f32 %v542, %v838
      %vm873 = vcmask 261120
      %874 = vst.msk [vmem:[#allocation2] sm:$0xff] %vm873, %v841
      %875 = vst.msk [vmem:[#allocation2 + $0x8] sm:$0xff] %vm873, %v842
      %876 = vst.msk [vmem:[#allocation2 + $0x10] sm:$0xff] %vm873, %v843
      %877 = vst.msk [vmem:[#allocation2 + $0x18] sm:$0xff] %vm873, %v844
      %878 = vst.msk [vmem:[#allocation2 + $0x20] sm:$0xff] %vm873, %v845
      %879 = vst.msk [vmem:[#allocation2 + $0x28] sm:$0xff] %vm873, %v846
      %880 = vst.msk [vmem:[#allocation2 + $0x30] sm:$0xff] %vm873, %v847
      %881 = vst.msk [vmem:[#allocation2 + $0x38] sm:$0xff] %vm873, %v848
      %882 = vst.msk [vmem:[#allocation2 + $0x40] sm:$0xff] %vm873, %v849
      %883 = vst.msk [vmem:[#allocation2 + $0x48] sm:$0xff] %vm873, %v850
      %884 = vst.msk [vmem:[#allocation2 + $0x50] sm:$0xff] %vm873, %v851
      %885 = vst.msk [vmem:[#allocation2 + $0x58] sm:$0xff] %vm873, %v852
      %886 = vst.msk [vmem:[#allocation2 + $0x60] sm:$0xff] %vm873, %v853
      %887 = vst.msk [vmem:[#allocation2 + $0x68] sm:$0xff] %vm873, %v854
      %888 = vst.msk [vmem:[#allocation2 + $0x70] sm:$0xff] %vm873, %v855
      %889 = vst.msk [vmem:[#allocation2 + $0x78] sm:$0xff] %vm873, %v856
      %890 = vst.msk [vmem:[#allocation2 + $0x80] sm:$0xff] %vm873, %v857
      %891 = vst.msk [vmem:[#allocation2 + $0x88] sm:$0xff] %vm873, %v858
      %892 = vst.msk [vmem:[#allocation2 + $0x90] sm:$0xff] %vm873, %v859
      %893 = vst.msk [vmem:[#allocation2 + $0x98] sm:$0xff] %vm873, %v860
      %894 = vst.msk [vmem:[#allocation2 + $0xa0] sm:$0xff] %vm873, %v861
      %895 = vst.msk [vmem:[#allocation2 + $0xa8] sm:$0xff] %vm873, %v862
      %896 = vst.msk [vmem:[#allocation2 + $0xb0] sm:$0xff] %vm873, %v863
      %897 = vst.msk [vmem:[#allocation2 + $0xb8] sm:$0xff] %vm873, %v864
      %898 = vst.msk [vmem:[#allocation2 + $0xc0] sm:$0xff] %vm873, %v865
      %899 = vst.msk [vmem:[#allocation2 + $0xc8] sm:$0xff] %vm873, %v866
      %900 = vst.msk [vmem:[#allocation2 + $0xd0] sm:$0xff] %vm873, %v867
      %901 = vst.msk [vmem:[#allocation2 + $0xd8] sm:$0xff] %vm873, %v868
      %902 = vst.msk [vmem:[#allocation2 + $0xe0] sm:$0xff] %vm873, %v869
      %903 = vst.msk [vmem:[#allocation2 + $0xe8] sm:$0xff] %vm873, %v870
      %904 = vst.msk [vmem:[#allocation2 + $0xf0] sm:$0xff] %vm873, %v871
      %905 = vst.msk [vmem:[#allocation2 + $0xf8] sm:$0xff] %vm873, %v872
      %v906 = vld [vmem:[#allocation3] sm:$0xff]
      %v907 = vld [vmem:[#allocation3 + $0x8] sm:$0xff]
      %v908 = vld [vmem:[#allocation3 + $0x10] sm:$0xff]
      %v909 = vld [vmem:[#allocation3 + $0x18] sm:$0xff]
      %v910 = vld [vmem:[#allocation3 + $0x20] sm:$0xff]
      %v911 = vld [vmem:[#allocation3 + $0x28] sm:$0xff]
      %v912 = vld [vmem:[#allocation3 + $0x30] sm:$0xff]
      %v913 = vld [vmem:[#allocation3 + $0x38] sm:$0xff]
      %v914 = vld [vmem:[#allocation3 + $0x40] sm:$0xff]
      %v915 = vld [vmem:[#allocation3 + $0x48] sm:$0xff]
      %v916 = vld [vmem:[#allocation3 + $0x50] sm:$0xff]
      %v917 = vld [vmem:[#allocation3 + $0x58] sm:$0xff]
      %v918 = vld [vmem:[#allocation3 + $0x60] sm:$0xff]
      %v919 = vld [vmem:[#allocation3 + $0x68] sm:$0xff]
      %v920 = vld [vmem:[#allocation3 + $0x70] sm:$0xff]
      %v921 = vld [vmem:[#allocation3 + $0x78] sm:$0xff]
      %v922 = vld [vmem:[#allocation3 + $0x80] sm:$0xff]
      %v923 = vld [vmem:[#allocation3 + $0x88] sm:$0xff]
      %v924 = vld [vmem:[#allocation3 + $0x90] sm:$0xff]
      %v925 = vld [vmem:[#allocation3 + $0x98] sm:$0xff]
      %v926 = vld [vmem:[#allocation3 + $0xa0] sm:$0xff]
      %v927 = vld [vmem:[#allocation3 + $0xa8] sm:$0xff]
      %v928 = vld [vmem:[#allocation3 + $0xb0] sm:$0xff]
      %v929 = vld [vmem:[#allocation3 + $0xb8] sm:$0xff]
      %v930 = vld [vmem:[#allocation3 + $0xc0] sm:$0xff]
      %v931 = vld [vmem:[#allocation3 + $0xc8] sm:$0xff]
      %v932 = vld [vmem:[#allocation3 + $0xd0] sm:$0xff]
      %v933 = vld [vmem:[#allocation3 + $0xd8] sm:$0xff]
      %v934 = vld [vmem:[#allocation3 + $0xe0] sm:$0xff]
      %v935 = vld [vmem:[#allocation3 + $0xe8] sm:$0xff]
      %v936 = vld [vmem:[#allocation3 + $0xf0] sm:$0xff]
      %v937 = vld [vmem:[#allocation3 + $0xf8] sm:$0xff]
      %v938 = vld [vmem:[%s383] sm:$0xf]
      %v939 = vld [vmem:[%s383 + $0x4] sm:$0xf]
      %v942 = vunpack.c.l.b16 %v938
      %v943 = vunpack.c.l.b16 %v939
      %v944 = vpack.c.b16 %v943, %v942
      %946 = vmatprep.subr.bf16.mxu0 0
      %947 = vmatpush1.bf16.msra.mxu0 %v944
      %948 = vmatprep.subr.bf16.mxu0 0
      %949 = vmatpush1.bf16.msra.mxu0 0
      %950 = vmatprep.subr.bf16.mxu0 0
      %951 = vmatpush1.bf16.msra.mxu0 0
      %952 = vmatprep.subr.bf16.mxu0 0
      %953 = vmatpush1.bf16.msra.mxu0 0
      %954 = vmatprep.subr.bf16.mxu0 0
      %955 = vmatpush1.bf16.msra.mxu0 0
      %956 = vmatprep.subr.bf16.mxu0 0
      %957 = vmatpush1.bf16.msra.mxu0 0
      %958 = vmatprep.subr.bf16.mxu0 0
      %959 = vmatpush1.bf16.msra.mxu0 0
      %960 = vmatprep.subr.bf16.mxu0 0
      %961 = vmatpush1.bf16.msra.mxu0 0
      %962 = vmatprep.subr.bf16.mxu0 0
      %963 = vmatpush1.bf16.msra.mxu0 0
      %964 = vmatprep.subr.bf16.mxu0 0
      %965 = vmatpush1.bf16.msra.mxu0 0
      %966 = vmatprep.subr.bf16.mxu0 0
      %967 = vmatpush1.bf16.msra.mxu0 0
      %968 = vmatprep.subr.bf16.mxu0 0
      %969 = vmatpush1.bf16.msra.mxu0 0
      %970 = vmatprep.subr.bf16.mxu0 0
      %971 = vmatpush1.bf16.msra.mxu0 0
      %972 = vmatprep.subr.bf16.mxu0 0
      %973 = vmatpush1.bf16.msra.mxu0 0
      %974 = vmatprep.subr.bf16.mxu0 0
      %975 = vmatpush1.bf16.msra.mxu0 0
      %976 = vmatprep.subr.bf16.mxu0 0
      %977 = vmatpush1.bf16.msra.mxu0 0
      %978 = vmatprep.mubr.bf16.mxu0 0
      %979 = vmatmul.mubr.bf16.gmra.mrb[0].mxu0 %v633
      %v980 = vpop.f32.mrb[0].mxu0
      %v981 = vadd.f32 0.0, %v980
      %v982 = vpop.f32.mrb[0].mxu0
      %v983 = vpop.f32.mrb[0].mxu0
      %v984 = vadd.f32 0.0, %v983
      %v985 = vpop.f32.mrb[0].mxu0
      %986 = vmatprep.mubr.bf16.mxu0 0
      %987 = vmatmul.mubr.bf16.gmra.mrb[0].mxu0 %v636
      %v988 = vpop.f32.mrb[0].mxu0
      %v989 = vadd.f32 0.0, %v988
      %v990 = vpop.f32.mrb[0].mxu0
      %v991 = vpop.f32.mrb[0].mxu0
      %v992 = vadd.f32 0.0, %v991
      %v993 = vpop.f32.mrb[0].mxu0
      %994 = vmatprep.mubr.bf16.mxu0 0
      %995 = vmatmul.mubr.bf16.gmra.mrb[0].mxu0 %v639
      %v996 = vpop.f32.mrb[0].mxu0
      %v997 = vadd.f32 0.0, %v996
      %v998 = vpop.f32.mrb[0].mxu0
      %v999 = vpop.f32.mrb[0].mxu0
      %v1000 = vadd.f32 0.0, %v999
      %v1001 = vpop.f32.mrb[0].mxu0
      %1002 = vmatprep.mubr.bf16.mxu0 0
      %1003 = vmatmul.mubr.bf16.gmra.mrb[0].mxu0 %v642
      %v1004 = vpop.f32.mrb[0].mxu0
      %v1005 = vadd.f32 0.0, %v1004
      %v1006 = vpop.f32.mrb[0].mxu0
      %v1007 = vpop.f32.mrb[0].mxu0
      %v1008 = vadd.f32 0.0, %v1007
      %v1009 = vpop.f32.mrb[0].mxu0
      %1010 = vmatprep.mubr.bf16.mxu0 0
      %1011 = vmatmul.mubr.bf16.gmra.mrb[0].mxu0 %v645
      %v1012 = vpop.f32.mrb[0].mxu0
      %v1013 = vadd.f32 0.0, %v1012
      %v1014 = vpop.f32.mrb[0].mxu0
      %v1015 = vpop.f32.mrb[0].mxu0
      %v1016 = vadd.f32 0.0, %v1015
      %v1017 = vpop.f32.mrb[0].mxu0
      %1018 = vmatprep.mubr.bf16.mxu0 0
      %1019 = vmatmul.mubr.bf16.gmra.mrb[0].mxu0 %v648
      %v1020 = vpop.f32.mrb[0].mxu0
      %v1021 = vadd.f32 0.0, %v1020
      %v1022 = vpop.f32.mrb[0].mxu0
      %v1023 = vpop.f32.mrb[0].mxu0
      %v1024 = vadd.f32 0.0, %v1023
      %v1025 = vpop.f32.mrb[0].mxu0
      %1026 = vmatprep.mubr.bf16.mxu0 0
      %1027 = vmatmul.mubr.bf16.gmra.mrb[0].mxu0 %v651
      %v1028 = vpop.f32.mrb[0].mxu0
      %v1029 = vadd.f32 0.0, %v1028
      %v1030 = vpop.f32.mrb[0].mxu0
      %v1031 = vpop.f32.mrb[0].mxu0
      %v1032 = vadd.f32 0.0, %v1031
      %v1033 = vpop.f32.mrb[0].mxu0
      %1034 = vmatprep.mubr.bf16.mxu0 0
      %1035 = vmatmul.mubr.bf16.gmra.mrb[0].mxu0 %v654
      %v1036 = vpop.f32.mrb[0].mxu0
      %v1037 = vadd.f32 0.0, %v1036
      %v1038 = vpop.f32.mrb[0].mxu0
      %v1039 = vpop.f32.mrb[0].mxu0
      %v1040 = vadd.f32 0.0, %v1039
      %v1041 = vpop.f32.mrb[0].mxu0
      %1042 = vmatprep.mubr.bf16.mxu0 0
      %1043 = vmatmul.mubr.bf16.gmra.mrb[0].mxu0 %v657
      %v1044 = vpop.f32.mrb[0].mxu0
      %v1045 = vadd.f32 0.0, %v1044
      %v1046 = vpop.f32.mrb[0].mxu0
      %v1047 = vpop.f32.mrb[0].mxu0
      %v1048 = vadd.f32 0.0, %v1047
      %v1049 = vpop.f32.mrb[0].mxu0
      %1050 = vmatprep.mubr.bf16.mxu0 0
      %1051 = vmatmul.mubr.bf16.gmra.mrb[0].mxu0 %v660
      %v1052 = vpop.f32.mrb[0].mxu0
      %v1053 = vadd.f32 0.0, %v1052
      %v1054 = vpop.f32.mrb[0].mxu0
      %v1055 = vpop.f32.mrb[0].mxu0
      %v1056 = vadd.f32 0.0, %v1055
      %v1057 = vpop.f32.mrb[0].mxu0
      %1058 = vmatprep.mubr.bf16.mxu0 0
      %1059 = vmatmul.mubr.bf16.gmra.mrb[0].mxu0 %v663
      %v1060 = vpop.f32.mrb[0].mxu0
      %v1061 = vadd.f32 0.0, %v1060
      %v1062 = vpop.f32.mrb[0].mxu0
      %v1063 = vpop.f32.mrb[0].mxu0
      %v1064 = vadd.f32 0.0, %v1063
      %v1065 = vpop.f32.mrb[0].mxu0
      %1066 = vmatprep.mubr.bf16.mxu0 0
      %1067 = vmatmul.mubr.bf16.gmra.mrb[0].mxu0 %v666
      %v1068 = vpop.f32.mrb[0].mxu0
      %v1069 = vadd.f32 0.0, %v1068
      %v1070 = vpop.f32.mrb[0].mxu0
      %v1071 = vpop.f32.mrb[0].mxu0
      %v1072 = vadd.f32 0.0, %v1071
      %v1073 = vpop.f32.mrb[0].mxu0
      %1074 = vmatprep.mubr.bf16.mxu0 0
      %1075 = vmatmul.mubr.bf16.gmra.mrb[0].mxu0 %v669
      %v1076 = vpop.f32.mrb[0].mxu0
      %v1077 = vadd.f32 0.0, %v1076
      %v1078 = vpop.f32.mrb[0].mxu0
      %v1079 = vpop.f32.mrb[0].mxu0
      %v1080 = vadd.f32 0.0, %v1079
      %v1081 = vpop.f32.mrb[0].mxu0
      %1082 = vmatprep.mubr.bf16.mxu0 0
      %1083 = vmatmul.mubr.bf16.gmra.mrb[0].mxu0 %v672
      %v1084 = vpop.f32.mrb[0].mxu0
      %v1085 = vadd.f32 0.0, %v1084
      %v1086 = vpop.f32.mrb[0].mxu0
      %v1087 = vpop.f32.mrb[0].mxu0
      %v1088 = vadd.f32 0.0, %v1087
      %v1089 = vpop.f32.mrb[0].mxu0
      %1090 = vmatprep.mubr.bf16.mxu0 0
      %1091 = vmatmul.mubr.bf16.gmra.mrb[0].mxu0 %v675
      %v1092 = vpop.f32.mrb[0].mxu0
      %v1093 = vadd.f32 0.0, %v1092
      %v1094 = vpop.f32.mrb[0].mxu0
      %v1095 = vpop.f32.mrb[0].mxu0
      %v1096 = vadd.f32 0.0, %v1095
      %v1097 = vpop.f32.mrb[0].mxu0
      %1098 = vmatprep.mubr.bf16.mxu0 0
      %1099 = vmatmul.mubr.bf16.gmra.mrb[0].mxu0 %v678
      %v1100 = vpop.f32.mrb[0].mxu0
      %v1101 = vadd.f32 0.0, %v1100
      %v1102 = vpop.f32.mrb[0].mxu0
      %v1103 = vpop.f32.mrb[0].mxu0
      %v1104 = vadd.f32 0.0, %v1103
      %v1105 = vpop.f32.mrb[0].mxu0
      %1106 = vdwg.mxu0
      %v1107 = vadd.f32 %v906, %v981
      %v1108 = vadd.f32 %v907, %v984
      %v1109 = vadd.f32 %v908, %v989
      %v1110 = vadd.f32 %v909, %v992
      %v1111 = vadd.f32 %v910, %v997
      %v1112 = vadd.f32 %v911, %v1000
      %v1113 = vadd.f32 %v912, %v1005
      %v1114 = vadd.f32 %v913, %v1008
      %v1115 = vadd.f32 %v914, %v1013
      %v1116 = vadd.f32 %v915, %v1016
      %v1117 = vadd.f32 %v916, %v1021
      %v1118 = vadd.f32 %v917, %v1024
      %v1119 = vadd.f32 %v918, %v1029
      %v1120 = vadd.f32 %v919, %v1032
      %v1121 = vadd.f32 %v920, %v1037
      %v1122 = vadd.f32 %v921, %v1040
      %v1123 = vadd.f32 %v922, %v1045
      %v1124 = vadd.f32 %v923, %v1048
      %v1125 = vadd.f32 %v924, %v1053
      %v1126 = vadd.f32 %v925, %v1056
      %v1127 = vadd.f32 %v926, %v1061
      %v1128 = vadd.f32 %v927, %v1064
      %v1129 = vadd.f32 %v928, %v1069
      %v1130 = vadd.f32 %v929, %v1072
      %v1131 = vadd.f32 %v930, %v1077
      %v1132 = vadd.f32 %v931, %v1080
      %v1133 = vadd.f32 %v932, %v1085
      %v1134 = vadd.f32 %v933, %v1088
      %v1135 = vadd.f32 %v934, %v1093
      %v1136 = vadd.f32 %v935, %v1096
      %v1137 = vadd.f32 %v936, %v1101
      %v1138 = vadd.f32 %v937, %v1104
      %1139 = vst.msk [vmem:[#allocation3] sm:$0xff] %vm873, %v1107
      %1140 = vst.msk [vmem:[#allocation3 + $0x8] sm:$0xff] %vm873, %v1108
      %1141 = vst.msk [vmem:[#allocation3 + $0x10] sm:$0xff] %vm873, %v1109
      %1142 = vst.msk [vmem:[#allocation3 + $0x18] sm:$0xff] %vm873, %v1110
      %1143 = vst.msk [vmem:[#allocation3 + $0x20] sm:$0xff] %vm873, %v1111
      %1144 = vst.msk [vmem:[#allocation3 + $0x28] sm:$0xff] %vm873, %v1112
      %1145 = vst.msk [vmem:[#allocation3 + $0x30] sm:$0xff] %vm873, %v1113
      %1146 = vst.msk [vmem:[#allocation3 + $0x38] sm:$0xff] %vm873, %v1114
      %1147 = vst.msk [vmem:[#allocation3 + $0x40] sm:$0xff] %vm873, %v1115
      %1148 = vst.msk [vmem:[#allocation3 + $0x48] sm:$0xff] %vm873, %v1116
      %1149 = vst.msk [vmem:[#allocation3 + $0x50] sm:$0xff] %vm873, %v1117
      %1150 = vst.msk [vmem:[#allocation3 + $0x58] sm:$0xff] %vm873, %v1118
      %1151 = vst.msk [vmem:[#allocation3 + $0x60] sm:$0xff] %vm873, %v1119
      %1152 = vst.msk [vmem:[#allocation3 + $0x68] sm:$0xff] %vm873, %v1120
      %1153 = vst.msk [vmem:[#allocation3 + $0x70] sm:$0xff] %vm873, %v1121
      %1154 = vst.msk [vmem:[#allocation3 + $0x78] sm:$0xff] %vm873, %v1122
      %1155 = vst.msk [vmem:[#allocation3 + $0x80] sm:$0xff] %vm873, %v1123
      %1156 = vst.msk [vmem:[#allocation3 + $0x88] sm:$0xff] %vm873, %v1124
      %1157 = vst.msk [vmem:[#allocation3 + $0x90] sm:$0xff] %vm873, %v1125
      %1158 = vst.msk [vmem:[#allocation3 + $0x98] sm:$0xff] %vm873, %v1126
      %1159 = vst.msk [vmem:[#allocation3 + $0xa0] sm:$0xff] %vm873, %v1127
      %1160 = vst.msk [vmem:[#allocation3 + $0xa8] sm:$0xff] %vm873, %v1128
      %1161 = vst.msk [vmem:[#allocation3 + $0xb0] sm:$0xff] %vm873, %v1129
      %1162 = vst.msk [vmem:[#allocation3 + $0xb8] sm:$0xff] %vm873, %v1130
      %1163 = vst.msk [vmem:[#allocation3 + $0xc0] sm:$0xff] %vm873, %v1131
      %1164 = vst.msk [vmem:[#allocation3 + $0xc8] sm:$0xff] %vm873, %v1132
      %1165 = vst.msk [vmem:[#allocation3 + $0xd0] sm:$0xff] %vm873, %v1133
      %1166 = vst.msk [vmem:[#allocation3 + $0xd8] sm:$0xff] %vm873, %v1134
      %1167 = vst.msk [vmem:[#allocation3 + $0xe0] sm:$0xff] %vm873, %v1135
      %1168 = vst.msk [vmem:[#allocation3 + $0xe8] sm:$0xff] %vm873, %v1136
      %1169 = vst.msk [vmem:[#allocation3 + $0xf0] sm:$0xff] %vm873, %v1137
      %1170 = vst.msk [vmem:[#allocation3 + $0xf8] sm:$0xff] %vm873, %v1138
      // Predicated region
      $region45: #{feed_forward.3} parent=39 // pred_check
        %p1171 = pneg %p410
      $region46: #{feed_forward.3} parent=39 // pred_check_branch
        %1173 = sbr.rel (%p1171) target = $region48
      $region47: #{feed_forward.3} parent=39 // pred_region
        %v1174 = vld [vmem:[#allocation2] sm:$0xff]
        %v1175 = vld [vmem:[#allocation2 + $0x8] sm:$0xff]
        %v1176 = vld [vmem:[#allocation2 + $0x10] sm:$0xff]
        %v1177 = vld [vmem:[#allocation2 + $0x18] sm:$0xff]
        %v1178 = vld [vmem:[#allocation2 + $0x20] sm:$0xff]
        %v1179 = vld [vmem:[#allocation2 + $0x28] sm:$0xff]
        %v1180 = vld [vmem:[#allocation2 + $0x30] sm:$0xff]
        %v1181 = vld [vmem:[#allocation2 + $0x38] sm:$0xff]
        %v1182 = vld [vmem:[#allocation2 + $0x40] sm:$0xff]
        %v1183 = vld [vmem:[#allocation2 + $0x48] sm:$0xff]
        %v1184 = vld [vmem:[#allocation2 + $0x50] sm:$0xff]
        %v1185 = vld [vmem:[#allocation2 + $0x58] sm:$0xff]
        %v1186 = vld [vmem:[#allocation2 + $0x60] sm:$0xff]
        %v1187 = vld [vmem:[#allocation2 + $0x68] sm:$0xff]
        %v1188 = vld [vmem:[#allocation2 + $0x70] sm:$0xff]
        %v1189 = vld [vmem:[#allocation2 + $0x78] sm:$0xff]
        %v1190 = vld [vmem:[#allocation2 + $0x80] sm:$0xff]
        %v1191 = vld [vmem:[#allocation2 + $0x88] sm:$0xff]
        %v1192 = vld [vmem:[#allocation2 + $0x90] sm:$0xff]
        %v1193 = vld [vmem:[#allocation2 + $0x98] sm:$0xff]
        %v1194 = vld [vmem:[#allocation2 + $0xa0] sm:$0xff]
        %v1195 = vld [vmem:[#allocation2 + $0xa8] sm:$0xff]
        %v1196 = vld [vmem:[#allocation2 + $0xb0] sm:$0xff]
        %v1197 = vld [vmem:[#allocation2 + $0xb8] sm:$0xff]
        %v1198 = vld [vmem:[#allocation2 + $0xc0] sm:$0xff]
        %v1199 = vld [vmem:[#allocation2 + $0xc8] sm:$0xff]
        %v1200 = vld [vmem:[#allocation2 + $0xd0] sm:$0xff]
        %v1201 = vld [vmem:[#allocation2 + $0xd8] sm:$0xff]
        %v1202 = vld [vmem:[#allocation2 + $0xe0] sm:$0xff]
        %v1203 = vld [vmem:[#allocation2 + $0xe8] sm:$0xff]
        %v1204 = vld [vmem:[#allocation2 + $0xf0] sm:$0xff]
        %v1205 = vld [vmem:[#allocation2 + $0xf8] sm:$0xff]
        %v1206 = vld [vmem:[%s387] sm:$0x1]
        %v1208 = vlaneseq
        %v1209 = vshrl.u32 %v1208, 7
        %v1210 = vsub.s32 0, %v1209
        %v1211 = vrot.slane %v1206, %v1210
        %v1213 = vadd.f32 %v1174, %v1211
        %v1214 = vadd.f32 %v1175, %v1211
        %v1215 = vadd.f32 %v1176, %v1211
        %v1216 = vadd.f32 %v1177, %v1211
        %v1217 = vadd.f32 %v1178, %v1211
        %v1218 = vadd.f32 %v1179, %v1211
        %v1219 = vadd.f32 %v1180, %v1211
        %v1220 = vadd.f32 %v1181, %v1211
        %v1221 = vadd.f32 %v1182, %v1211
        %v1222 = vadd.f32 %v1183, %v1211
        %v1223 = vadd.f32 %v1184, %v1211
        %v1224 = vadd.f32 %v1185, %v1211
        %v1225 = vadd.f32 %v1186, %v1211
        %v1226 = vadd.f32 %v1187, %v1211
        %v1227 = vadd.f32 %v1188, %v1211
        %v1228 = vadd.f32 %v1189, %v1211
        %v1229 = vadd.f32 %v1190, %v1211
        %v1230 = vadd.f32 %v1191, %v1211
        %v1231 = vadd.f32 %v1192, %v1211
        %v1232 = vadd.f32 %v1193, %v1211
        %v1233 = vadd.f32 %v1194, %v1211
        %v1234 = vadd.f32 %v1195, %v1211
        %v1235 = vadd.f32 %v1196, %v1211
        %v1236 = vadd.f32 %v1197, %v1211
        %v1237 = vadd.f32 %v1198, %v1211
        %v1238 = vadd.f32 %v1199, %v1211
        %v1239 = vadd.f32 %v1200, %v1211
        %v1240 = vadd.f32 %v1201, %v1211
        %v1241 = vadd.f32 %v1202, %v1211
        %v1242 = vadd.f32 %v1203, %v1211
        %v1243 = vadd.f32 %v1204, %v1211
        %v1244 = vadd.f32 %v1205, %v1211
        %v1245 = vpack.c.bf16 %v1214, %v1213
        %v1246 = vpack.c.bf16 %v1216, %v1215
        %v1247 = vpack.c.bf16 %v1218, %v1217
        %v1248 = vpack.c.bf16 %v1220, %v1219
        %v1249 = vpack.c.bf16 %v1222, %v1221
        %v1250 = vpack.c.bf16 %v1224, %v1223
        %v1251 = vpack.c.bf16 %v1226, %v1225
        %v1252 = vpack.c.bf16 %v1228, %v1227
        %v1253 = vpack.c.bf16 %v1230, %v1229
        %v1254 = vpack.c.bf16 %v1232, %v1231
        %v1255 = vpack.c.bf16 %v1234, %v1233
        %v1256 = vpack.c.bf16 %v1236, %v1235
        %v1257 = vpack.c.bf16 %v1238, %v1237
        %v1258 = vpack.c.bf16 %v1240, %v1239
        %v1259 = vpack.c.bf16 %v1242, %v1241
        %v1260 = vpack.c.bf16 %v1244, %v1243
        %v1277 = vunpack.c.l.b16 %v1245
        %v1278 = vunpack.c.h.b16 %v1245
        %v1279 = vunpack.c.l.b16 %v1246
        %v1280 = vunpack.c.h.b16 %v1246
        %v1281 = vunpack.c.l.b16 %v1247
        %v1282 = vunpack.c.h.b16 %v1247
        %v1283 = vunpack.c.l.b16 %v1248
        %v1284 = vunpack.c.h.b16 %v1248
        %v1285 = vunpack.c.l.b16 %v1249
        %v1286 = vunpack.c.h.b16 %v1249
        %v1287 = vunpack.c.l.b16 %v1250
        %v1288 = vunpack.c.h.b16 %v1250
        %v1289 = vunpack.c.l.b16 %v1251
        %v1290 = vunpack.c.h.b16 %v1251
        %v1291 = vunpack.c.l.b16 %v1252
        %v1292 = vunpack.c.h.b16 %v1252
        %v1293 = vunpack.c.l.b16 %v1253
        %v1294 = vunpack.c.h.b16 %v1253
        %v1295 = vunpack.c.l.b16 %v1254
        %v1296 = vunpack.c.h.b16 %v1254
        %v1297 = vunpack.c.l.b16 %v1255
        %v1298 = vunpack.c.h.b16 %v1255
        %v1299 = vunpack.c.l.b16 %v1256
        %v1300 = vunpack.c.h.b16 %v1256
        %v1301 = vunpack.c.l.b16 %v1257
        %v1302 = vunpack.c.h.b16 %v1257
        %v1303 = vunpack.c.l.b16 %v1258
        %v1304 = vunpack.c.h.b16 %v1258
        %v1305 = vunpack.c.l.b16 %v1259
        %v1306 = vunpack.c.h.b16 %v1259
        %v1307 = vunpack.c.l.b16 %v1260
        %v1308 = vunpack.c.h.b16 %v1260
        %v1309 = vpack.c.b16 %v1277, %v1277
        %v1310 = vpack.c.b16 %v1278, %v1278
        %v1311 = vpack.c.b16 %v1279, %v1279
        %v1312 = vpack.c.b16 %v1280, %v1280
        %v1313 = vpack.c.b16 %v1281, %v1281
        %v1314 = vpack.c.b16 %v1282, %v1282
        %v1315 = vpack.c.b16 %v1283, %v1283
        %v1316 = vpack.c.b16 %v1284, %v1284
        %v1317 = vpack.c.b16 %v1285, %v1285
        %v1318 = vpack.c.b16 %v1286, %v1286
        %v1319 = vpack.c.b16 %v1287, %v1287
        %v1320 = vpack.c.b16 %v1288, %v1288
        %v1321 = vpack.c.b16 %v1289, %v1289
        %v1322 = vpack.c.b16 %v1290, %v1290
        %v1323 = vpack.c.b16 %v1291, %v1291
        %v1324 = vpack.c.b16 %v1292, %v1292
        %v1325 = vpack.c.b16 %v1293, %v1293
        %v1326 = vpack.c.b16 %v1294, %v1294
        %v1327 = vpack.c.b16 %v1295, %v1295
        %v1328 = vpack.c.b16 %v1296, %v1296
        %v1329 = vpack.c.b16 %v1297, %v1297
        %v1330 = vpack.c.b16 %v1298, %v1298
        %v1331 = vpack.c.b16 %v1299, %v1299
        %v1332 = vpack.c.b16 %v1300, %v1300
        %v1333 = vpack.c.b16 %v1301, %v1301
        %v1334 = vpack.c.b16 %v1302, %v1302
        %v1335 = vpack.c.b16 %v1303, %v1303
        %v1336 = vpack.c.b16 %v1304, %v1304
        %v1337 = vpack.c.b16 %v1305, %v1305
        %v1338 = vpack.c.b16 %v1306, %v1306
        %v1339 = vpack.c.b16 %v1307, %v1307
        %v1340 = vpack.c.b16 %v1308, %v1308
        %vm1373 = vcmask 257024
        %1374 = vst.msk [vmem:[%s398] sm:$0xf] %vm1373, %v1309
        %1375 = vst.msk [vmem:[%s398 + $0x4] sm:$0xf] %vm1373, %v1310
        %1376 = vst.msk [vmem:[%s398 + $0x8] sm:$0xf] %vm1373, %v1311
        %1377 = vst.msk [vmem:[%s398 + $0xc] sm:$0xf] %vm1373, %v1312
        %1378 = vst.msk [vmem:[%s398 + $0x10] sm:$0xf] %vm1373, %v1313
        %1379 = vst.msk [vmem:[%s398 + $0x14] sm:$0xf] %vm1373, %v1314
        %1380 = vst.msk [vmem:[%s398 + $0x18] sm:$0xf] %vm1373, %v1315
        %1381 = vst.msk [vmem:[%s398 + $0x1c] sm:$0xf] %vm1373, %v1316
        %1382 = vst.msk [vmem:[%s398 + $0x20] sm:$0xf] %vm1373, %v1317
        %1383 = vst.msk [vmem:[%s398 + $0x24] sm:$0xf] %vm1373, %v1318
        %1384 = vst.msk [vmem:[%s398 + $0x28] sm:$0xf] %vm1373, %v1319
        %1385 = vst.msk [vmem:[%s398 + $0x2c] sm:$0xf] %vm1373, %v1320
        %1386 = vst.msk [vmem:[%s398 + $0x30] sm:$0xf] %vm1373, %v1321
        %1387 = vst.msk [vmem:[%s398 + $0x34] sm:$0xf] %vm1373, %v1322
        %1388 = vst.msk [vmem:[%s398 + $0x38] sm:$0xf] %vm1373, %v1323
        %1389 = vst.msk [vmem:[%s398 + $0x3c] sm:$0xf] %vm1373, %v1324
        %1390 = vst.msk [vmem:[%s398 + $0x40] sm:$0xf] %vm1373, %v1325
        %1391 = vst.msk [vmem:[%s398 + $0x44] sm:$0xf] %vm1373, %v1326
        %1392 = vst.msk [vmem:[%s398 + $0x48] sm:$0xf] %vm1373, %v1327
        %1393 = vst.msk [vmem:[%s398 + $0x4c] sm:$0xf] %vm1373, %v1328
        %1394 = vst.msk [vmem:[%s398 + $0x50] sm:$0xf] %vm1373, %v1329
        %1395 = vst.msk [vmem:[%s398 + $0x54] sm:$0xf] %vm1373, %v1330
        %1396 = vst.msk [vmem:[%s398 + $0x58] sm:$0xf] %vm1373, %v1331
        %1397 = vst.msk [vmem:[%s398 + $0x5c] sm:$0xf] %vm1373, %v1332
        %1398 = vst.msk [vmem:[%s398 + $0x60] sm:$0xf] %vm1373, %v1333
        %1399 = vst.msk [vmem:[%s398 + $0x64] sm:$0xf] %vm1373, %v1334
        %1400 = vst.msk [vmem:[%s398 + $0x68] sm:$0xf] %vm1373, %v1335
        %1401 = vst.msk [vmem:[%s398 + $0x6c] sm:$0xf] %vm1373, %v1336
        %1402 = vst.msk [vmem:[%s398 + $0x70] sm:$0xf] %vm1373, %v1337
        %1403 = vst.msk [vmem:[%s398 + $0x74] sm:$0xf] %vm1373, %v1338
        %1404 = vst.msk [vmem:[%s398 + $0x78] sm:$0xf] %vm1373, %v1339
        %1405 = vst.msk [vmem:[%s398 + $0x7c] sm:$0xf] %vm1373, %v1340
        %v1406 = vld [vmem:[#allocation3] sm:$0xff]
        %v1407 = vld [vmem:[#allocation3 + $0x8] sm:$0xff]
        %v1408 = vld [vmem:[#allocation3 + $0x10] sm:$0xff]
        %v1409 = vld [vmem:[#allocation3 + $0x18] sm:$0xff]
        %v1410 = vld [vmem:[#allocation3 + $0x20] sm:$0xff]
        %v1411 = vld [vmem:[#allocation3 + $0x28] sm:$0xff]
        %v1412 = vld [vmem:[#allocation3 + $0x30] sm:$0xff]
        %v1413 = vld [vmem:[#allocation3 + $0x38] sm:$0xff]
        %v1414 = vld [vmem:[#allocation3 + $0x40] sm:$0xff]
        %v1415 = vld [vmem:[#allocation3 + $0x48] sm:$0xff]
        %v1416 = vld [vmem:[#allocation3 + $0x50] sm:$0xff]
        %v1417 = vld [vmem:[#allocation3 + $0x58] sm:$0xff]
        %v1418 = vld [vmem:[#allocation3 + $0x60] sm:$0xff]
        %v1419 = vld [vmem:[#allocation3 + $0x68] sm:$0xff]
        %v1420 = vld [vmem:[#allocation3 + $0x70] sm:$0xff]
        %v1421 = vld [vmem:[#allocation3 + $0x78] sm:$0xff]
        %v1422 = vld [vmem:[#allocation3 + $0x80] sm:$0xff]
        %v1423 = vld [vmem:[#allocation3 + $0x88] sm:$0xff]
        %v1424 = vld [vmem:[#allocation3 + $0x90] sm:$0xff]
        %v1425 = vld [vmem:[#allocation3 + $0x98] sm:$0xff]
        %v1426 = vld [vmem:[#allocation3 + $0xa0] sm:$0xff]
        %v1427 = vld [vmem:[#allocation3 + $0xa8] sm:$0xff]
        %v1428 = vld [vmem:[#allocation3 + $0xb0] sm:$0xff]
        %v1429 = vld [vmem:[#allocation3 + $0xb8] sm:$0xff]
        %v1430 = vld [vmem:[#allocation3 + $0xc0] sm:$0xff]
        %v1431 = vld [vmem:[#allocation3 + $0xc8] sm:$0xff]
        %v1432 = vld [vmem:[#allocation3 + $0xd0] sm:$0xff]
        %v1433 = vld [vmem:[#allocation3 + $0xd8] sm:$0xff]
        %v1434 = vld [vmem:[#allocation3 + $0xe0] sm:$0xff]
        %v1435 = vld [vmem:[#allocation3 + $0xe8] sm:$0xff]
        %v1436 = vld [vmem:[#allocation3 + $0xf0] sm:$0xff]
        %v1437 = vld [vmem:[#allocation3 + $0xf8] sm:$0xff]
        %v1438 = vld [vmem:[%s390] sm:$0x1]
        %v1440 = vlaneseq
        %v1441 = vshrl.u32 %v1440, 7
        %v1442 = vsub.s32 0, %v1441
        %v1443 = vrot.slane %v1438, %v1442
        %v1445 = vadd.f32 %v1406, %v1443
        %v1446 = vadd.f32 %v1407, %v1443
        %v1447 = vadd.f32 %v1408, %v1443
        %v1448 = vadd.f32 %v1409, %v1443
        %v1449 = vadd.f32 %v1410, %v1443
        %v1450 = vadd.f32 %v1411, %v1443
        %v1451 = vadd.f32 %v1412, %v1443
        %v1452 = vadd.f32 %v1413, %v1443
        %v1453 = vadd.f32 %v1414, %v1443
        %v1454 = vadd.f32 %v1415, %v1443
        %v1455 = vadd.f32 %v1416, %v1443
        %v1456 = vadd.f32 %v1417, %v1443
        %v1457 = vadd.f32 %v1418, %v1443
        %v1458 = vadd.f32 %v1419, %v1443
        %v1459 = vadd.f32 %v1420, %v1443
        %v1460 = vadd.f32 %v1421, %v1443
        %v1461 = vadd.f32 %v1422, %v1443
        %v1462 = vadd.f32 %v1423, %v1443
        %v1463 = vadd.f32 %v1424, %v1443
        %v1464 = vadd.f32 %v1425, %v1443
        %v1465 = vadd.f32 %v1426, %v1443
        %v1466 = vadd.f32 %v1427, %v1443
        %v1467 = vadd.f32 %v1428, %v1443
        %v1468 = vadd.f32 %v1429, %v1443
        %v1469 = vadd.f32 %v1430, %v1443
        %v1470 = vadd.f32 %v1431, %v1443
        %v1471 = vadd.f32 %v1432, %v1443
        %v1472 = vadd.f32 %v1433, %v1443
        %v1473 = vadd.f32 %v1434, %v1443
        %v1474 = vadd.f32 %v1435, %v1443
        %v1475 = vadd.f32 %v1436, %v1443
        %v1476 = vadd.f32 %v1437, %v1443
        %v1477 = vpack.c.bf16 %v1446, %v1445
        %v1478 = vpack.c.bf16 %v1448, %v1447
        %v1479 = vpack.c.bf16 %v1450, %v1449
        %v1480 = vpack.c.bf16 %v1452, %v1451
        %v1481 = vpack.c.bf16 %v1454, %v1453
        %v1482 = vpack.c.bf16 %v1456, %v1455
        %v1483 = vpack.c.bf16 %v1458, %v1457
        %v1484 = vpack.c.bf16 %v1460, %v1459
        %v1485 = vpack.c.bf16 %v1462, %v1461
        %v1486 = vpack.c.bf16 %v1464, %v1463
        %v1487 = vpack.c.bf16 %v1466, %v1465
        %v1488 = vpack.c.bf16 %v1468, %v1467
        %v1489 = vpack.c.bf16 %v1470, %v1469
        %v1490 = vpack.c.bf16 %v1472, %v1471
        %v1491 = vpack.c.bf16 %v1474, %v1473
        %v1492 = vpack.c.bf16 %v1476, %v1475
        %v1509 = vunpack.c.l.b16 %v1477
        %v1510 = vunpack.c.h.b16 %v1477
        %v1511 = vunpack.c.l.b16 %v1478
        %v1512 = vunpack.c.h.b16 %v1478
        %v1513 = vunpack.c.l.b16 %v1479
        %v1514 = vunpack.c.h.b16 %v1479
        %v1515 = vunpack.c.l.b16 %v1480
        %v1516 = vunpack.c.h.b16 %v1480
        %v1517 = vunpack.c.l.b16 %v1481
        %v1518 = vunpack.c.h.b16 %v1481
        %v1519 = vunpack.c.l.b16 %v1482
        %v1520 = vunpack.c.h.b16 %v1482
        %v1521 = vunpack.c.l.b16 %v1483
        %v1522 = vunpack.c.h.b16 %v1483
        %v1523 = vunpack.c.l.b16 %v1484
        %v1524 = vunpack.c.h.b16 %v1484
        %v1525 = vunpack.c.l.b16 %v1485
        %v1526 = vunpack.c.h.b16 %v1485
        %v1527 = vunpack.c.l.b16 %v1486
        %v1528 = vunpack.c.h.b16 %v1486
        %v1529 = vunpack.c.l.b16 %v1487
        %v1530 = vunpack.c.h.b16 %v1487
        %v1531 = vunpack.c.l.b16 %v1488
        %v1532 = vunpack.c.h.b16 %v1488
        %v1533 = vunpack.c.l.b16 %v1489
        %v1534 = vunpack.c.h.b16 %v1489
        %v1535 = vunpack.c.l.b16 %v1490
        %v1536 = vunpack.c.h.b16 %v1490
        %v1537 = vunpack.c.l.b16 %v1491
        %v1538 = vunpack.c.h.b16 %v1491
        %v1539 = vunpack.c.l.b16 %v1492
        %v1540 = vunpack.c.h.b16 %v1492
        %v1541 = vpack.c.b16 %v1509, %v1509
        %v1542 = vpack.c.b16 %v1510, %v1510
        %v1543 = vpack.c.b16 %v1511, %v1511
        %v1544 = vpack.c.b16 %v1512, %v1512
        %v1545 = vpack.c.b16 %v1513, %v1513
        %v1546 = vpack.c.b16 %v1514, %v1514
        %v1547 = vpack.c.b16 %v1515, %v1515
        %v1548 = vpack.c.b16 %v1516, %v1516
        %v1549 = vpack.c.b16 %v1517, %v1517
        %v1550 = vpack.c.b16 %v1518, %v1518
        %v1551 = vpack.c.b16 %v1519, %v1519
        %v1552 = vpack.c.b16 %v1520, %v1520
        %v1553 = vpack.c.b16 %v1521, %v1521
        %v1554 = vpack.c.b16 %v1522, %v1522
        %v1555 = vpack.c.b16 %v1523, %v1523
        %v1556 = vpack.c.b16 %v1524, %v1524
        %v1557 = vpack.c.b16 %v1525, %v1525
        %v1558 = vpack.c.b16 %v1526, %v1526
        %v1559 = vpack.c.b16 %v1527, %v1527
        %v1560 = vpack.c.b16 %v1528, %v1528
        %v1561 = vpack.c.b16 %v1529, %v1529
        %v1562 = vpack.c.b16 %v1530, %v1530
        %v1563 = vpack.c.b16 %v1531, %v1531
        %v1564 = vpack.c.b16 %v1532, %v1532
        %v1565 = vpack.c.b16 %v1533, %v1533
        %v1566 = vpack.c.b16 %v1534, %v1534
        %v1567 = vpack.c.b16 %v1535, %v1535
        %v1568 = vpack.c.b16 %v1536, %v1536
        %v1569 = vpack.c.b16 %v1537, %v1537
        %v1570 = vpack.c.b16 %v1538, %v1538
        %v1571 = vpack.c.b16 %v1539, %v1539
        %v1572 = vpack.c.b16 %v1540, %v1540
        %1605 = vst.msk [vmem:[%s407] sm:$0xf] %vm1373, %v1541
        %1606 = vst.msk [vmem:[%s407 + $0x4] sm:$0xf] %vm1373, %v1542
        %1607 = vst.msk [vmem:[%s407 + $0x8] sm:$0xf] %vm1373, %v1543
        %1608 = vst.msk [vmem:[%s407 + $0xc] sm:$0xf] %vm1373, %v1544
        %1609 = vst.msk [vmem:[%s407 + $0x10] sm:$0xf] %vm1373, %v1545
        %1610 = vst.msk [vmem:[%s407 + $0x14] sm:$0xf] %vm1373, %v1546
        %1611 = vst.msk [vmem:[%s407 + $0x18] sm:$0xf] %vm1373, %v1547
        %1612 = vst.msk [vmem:[%s407 + $0x1c] sm:$0xf] %vm1373, %v1548
        %1613 = vst.msk [vmem:[%s407 + $0x20] sm:$0xf] %vm1373, %v1549
        %1614 = vst.msk [vmem:[%s407 + $0x24] sm:$0xf] %vm1373, %v1550
        %1615 = vst.msk [vmem:[%s407 + $0x28] sm:$0xf] %vm1373, %v1551
        %1616 = vst.msk [vmem:[%s407 + $0x2c] sm:$0xf] %vm1373, %v1552
        %1617 = vst.msk [vmem:[%s407 + $0x30] sm:$0xf] %vm1373, %v1553
        %1618 = vst.msk [vmem:[%s407 + $0x34] sm:$0xf] %vm1373, %v1554
        %1619 = vst.msk [vmem:[%s407 + $0x38] sm:$0xf] %vm1373, %v1555
        %1620 = vst.msk [vmem:[%s407 + $0x3c] sm:$0xf] %vm1373, %v1556
        %1621 = vst.msk [vmem:[%s407 + $0x40] sm:$0xf] %vm1373, %v1557
        %1622 = vst.msk [vmem:[%s407 + $0x44] sm:$0xf] %vm1373, %v1558
        %1623 = vst.msk [vmem:[%s407 + $0x48] sm:$0xf] %vm1373, %v1559
        %1624 = vst.msk [vmem:[%s407 + $0x4c] sm:$0xf] %vm1373, %v1560
        %1625 = vst.msk [vmem:[%s407 + $0x50] sm:$0xf] %vm1373, %v1561
        %1626 = vst.msk [vmem:[%s407 + $0x54] sm:$0xf] %vm1373, %v1562
        %1627 = vst.msk [vmem:[%s407 + $0x58] sm:$0xf] %vm1373, %v1563
        %1628 = vst.msk [vmem:[%s407 + $0x5c] sm:$0xf] %vm1373, %v1564
        %1629 = vst.msk [vmem:[%s407 + $0x60] sm:$0xf] %vm1373, %v1565
        %1630 = vst.msk [vmem:[%s407 + $0x64] sm:$0xf] %vm1373, %v1566
        %1631 = vst.msk [vmem:[%s407 + $0x68] sm:$0xf] %vm1373, %v1567
        %1632 = vst.msk [vmem:[%s407 + $0x6c] sm:$0xf] %vm1373, %v1568
        %1633 = vst.msk [vmem:[%s407 + $0x70] sm:$0xf] %vm1373, %v1569
        %1634 = vst.msk [vmem:[%s407 + $0x74] sm:$0xf] %vm1373, %v1570
        %1635 = vst.msk [vmem:[%s407 + $0x78] sm:$0xf] %vm1373, %v1571
        %1636 = vst.msk [vmem:[%s407 + $0x7c] sm:$0xf] %vm1373, %v1572
      $region48: #{feed_forward.3} parent=39 // pred_fallthru
        _
      %s1637 = smul.u32 32, %s23
      %p1638 = scmp.lt.s32.totalorder %s1637, 63
      %s1639 = scalar_select %p1638, %s1637, 63
      %p1640 = scmp.lt.s32.totalorder %s24, 0
      %s1641 = scalar_select %p1640, %s24, 0
      %s1642 = sadd.s32 %s1641, %s1639
      %s1643 = smul.addr %s1642, 4
      %s1644 = scalar_lea.vmem %s5, %s1643
      %s1645 = smul.u32 32, %s23
      %p1646 = scmp.lt.s32.totalorder %s1645, 63
      %s1647 = scalar_select %p1646, %s1645, 63
      %p1648 = scmp.lt.s32.totalorder %s24, 0
      %s1649 = scalar_select %p1648, %s24, 0
      %s1650 = sadd.s32 %s1649, %s1647
      %s1651 = smul.addr %s1650, 4
      %s1652 = scalar_lea.vmem %s6, %s1651
      // Predicated region
      $region49: #{feed_forward.3} parent=39 // pred_check
        %p1653 = pneg %p193
      $region50: #{feed_forward.3} parent=39 // pred_check_branch
        %1655 = sbr.rel (%p1653) target = $region52
      $region51: #{feed_forward.3} parent=39 // pred_region
        %s1656 = smul.u32 32, %s23
      $region52: #{feed_forward.3} parent=39 // pred_fallthru
        _
      // Predicated region
      $region53: #{feed_forward.3} parent=39 // pred_check
        %p1657 = pneg %p221
      $region54: #{feed_forward.3} parent=39 // pred_check_branch
        %1659 = sbr.rel (%p1657) target = $region56
      $region55: #{feed_forward.3} parent=39 // pred_region
        %s1660 = smul.u32 32, %s23
      $region56: #{feed_forward.3} parent=39 // pred_fallthru
        _
    $region40: #{feed_forward.3} parent=5 // pred_fallthru
      _
    %p1661 = scmp.le.s32.totalorder 2, %s13
    // Predicated region
    $region57: #{feed_forward.3} parent=5 // pred_check
      %p1662 = pneg %p1661
    $region58: #{feed_forward.3} parent=5 // pred_check_branch
      %1664 = sbr.rel (%p1662) target = $region60
    $region59: #{feed_forward.3} parent=5 // pred_region
      %s1665 = ssub.s32 %s13, 2
      // Predicated region
      $region61: #{feed_forward.3} parent=59 // pred_check
        %p1666 = pneg %p199
      $region62: #{feed_forward.3} parent=59 // pred_check_branch
        %1668 = sbr.rel (%p1666) target = $region64
      $region63: #{feed_forward.3} parent=59 // pred_region
        %s1669 = smul.u32 32, %s26
        %p1670 = scmp.lt.s32.totalorder %s1669, 63
        %s1671 = scalar_select %p1670, %s1669, 63
        %p1672 = scmp.lt.s32.totalorder %s27, 0
        %s1673 = scalar_select %p1672, %s27, 0
        %s1674 = sadd.s32 %s1673, %s1671
        %s1675 = smul.addr %s1674, 4
        %s1676 = scalar_lea.vmem %s5, %s1675
      $region64: #{feed_forward.3} parent=59 // pred_fallthru
        _
      // Predicated region
      $region65: #{feed_forward.3} parent=59 // pred_check
        %p1677 = pneg %p227
      $region66: #{feed_forward.3} parent=59 // pred_check_branch
        %1679 = sbr.rel (%p1677) target = $region68
      $region67: #{feed_forward.3} parent=59 // pred_region
        %s1680 = smul.u32 32, %s26
        %p1681 = scmp.lt.s32.totalorder %s1680, 63
        %s1682 = scalar_select %p1681, %s1680, 63
        %p1683 = scmp.lt.s32.totalorder %s27, 0
        %s1684 = scalar_select %p1683, %s27, 0
        %s1685 = sadd.s32 %s1684, %s1682
        %s1686 = smul.addr %s1685, 4
        %s1687 = scalar_lea.vmem %s6, %s1686
      $region68: #{feed_forward.3} parent=59 // pred_fallthru
        _
    $region60: #{feed_forward.3} parent=5 // pred_fallthru
      _
  $region6: #{feed_forward.3} parent=0 // loop_footer
    %s17 = sadd.s32 1, %s13
  $region7: #{feed_forward.3} parent=0 // loop_footer_branch
    %12 = sbr.rel target = $region3
  $region8: #{feed_forward.3} parent=0 // loop_exit
    _

// kernel: feed_forward.4
$region0: #{feed_forward.4}
  #allocation0 [shape = 'u32[]', space=smem, size = 0x4, offset = 0x4, fixed_abs, tag = 'smem constant byte address 0x4 - core index']
  #allocation1 [shape = 'u32[144,128]{1,0:T(1,128)}', space=vmem, size = 0x12000, scoped, tag = 'internal scratch']
  #allocation2 [shape = 'bf16[1,18,24,32]{3,2,1,0:T(8,128)(2,1)}', space=vmem, size = 0x1b000, scoped, tag = 'scratch operand']
  #allocation3 [shape = 'bf16[1,18,24,32]{3,2,1,0:T(8,128)(2,1)}', space=vmem, size = 0x1b000, scoped, tag = 'scratch operand']
  %s0 = inlined_call_operand.vmem [shape: bf16[2,16,16,32], index: 0, kind: input, shape index: {}, may-alias: {0,1,2}]
  %s1 = inlined_call_operand.vmem [shape: bf16[2,16,16,32], index: 1, kind: input, shape index: {}, may-alias: {0,1,2}]
  %s2 = inlined_call_operand.vmem [shape: bf16[2,16,16,32], index: 2, kind: input, shape index: {}, may-alias: {0,1,2}]
  %s3 = inlined_call_operand.vmem [shape: bf16[2,16,16,32], index: 3, kind: input, shape index: {}, may-alias: {3,4,5}]
  %s4 = inlined_call_operand.vmem [shape: bf16[2,16,16,32], index: 4, kind: input, shape index: {}, may-alias: {3,4,5}]
  %s5 = inlined_call_operand.vmem [shape: bf16[2,16,16,32], index: 5, kind: input, shape index: {}, may-alias: {3,4,5}]
  %s6 = inlined_call_operand.vmem [shape: f32[3,3,32], index: 6, kind: input, shape index: {}]
  %s7 = inlined_call_operand.vmem [shape: f32[3,3,32], index: 7, kind: input, shape index: {}]
  %s8 = inlined_call_operand.vmem [shape: f32[1,32], index: 8, kind: input, shape index: {}]
  %s9 = inlined_call_operand.vmem [shape: f32[1,32], index: 9, kind: input, shape index: {}]
  %s10 = inlined_call_operand.vmem [shape: bf16[2,16,16,32], index: 10, kind: output, shape index: {}]
  %s11 = sld [smem:[#allocation0]]
  $region73: #{feed_forward.4} parent=0
    _
  %s13 = ssub.s32 1, %s11
  %s14 = scalar_select 0, %s13, %s11
  loop: start=0, step=1, limit=4
  $region2: #{feed_forward.4} parent=0 // loop_pre_header
    _
  $region3: #{feed_forward.4} parent=0 // loop_header
    %s16 = sphi 0, %s20
    %p17 = scmp.ge.s32.totalorder %s16, 4
    %s23 = sphi 0, %s42
    %s24 = sphi 0, %s38
    %s25 = sphi 0, %s34
    %s26 = sphi 0, %s23
    %s27 = sphi 0, %s24
    %s28 = sphi 0, %s25
    %s29 = sphi 0, %s26
    %s30 = sphi 0, %s27
    %s31 = sphi 0, %s28
    %s49 = sphi 0, %s51
    %s52 = sphi 0, %s49
    %s53 = sphi 0, %s52
    %s69 = sphi 0, %s53
    %s87 = sphi 0, %s89
    %s90 = sphi 0, %s87
    %s91 = sphi 0, %s90
    %s107 = sphi 0, %s91
    %s125 = sphi 0, %s127
    %s128 = sphi 0, %s125
    %s129 = sphi 0, %s128
    %s145 = sphi 0, %s129
    %s155 = sphi 0, %s157
    %s158 = sphi 0, %s155
    %s159 = sphi 0, %s158
    %s175 = sphi 0, %s159
    %s193 = sphi 0, %s195
    %s196 = sphi 0, %s193
    %s197 = sphi 0, %s196
    %s213 = sphi 0, %s197
    %s231 = sphi 0, %s233
    %s234 = sphi 0, %s231
    %s235 = sphi 0, %s234
    %s251 = sphi 0, %s235
    %s257 = sphi 0, %s259
    %s260 = sphi 0, %s257
    %s261 = sphi 0, %s260
    %s277 = sphi 0, %s261
    %s283 = sphi 0, %s285
    %s286 = sphi 0, %s283
    %s287 = sphi 0, %s286
    %s303 = sphi 0, %s287
    %s309 = sphi 0, %s311
    %s312 = sphi 0, %s309
    %s313 = sphi 0, %s312
    %s329 = sphi 0, %s313
    %s335 = sphi 0, %s337
    %s338 = sphi 0, %s335
    %s339 = sphi 0, %s338
    %s355 = sphi 0, %s339
    %s365 = sphi 0, %s367
    %s368 = sphi 0, %s365
    %s369 = sphi 0, %s368
    %s385 = sphi 0, %s369
  $region4: #{feed_forward.4} parent=0 // loop_header_branch
    %19 = sbr.rel (%p17) target = $region8
  $region5: #{feed_forward.4} parent=0 // loop_body
    %s21 = ssub.s32 %s16, 1
    %s22 = ssub.s32 %s16, 2
    %s32 = sadd.s32 1, %s25
    %p33 = scmp.ge.s32.totalorder %s32, 1
    %s34 = scalar_select %p33, 0, %s32
    %s35 = sadd.s32 1, %s24
    %s36 = scalar_select %p33, %s35, %s24
    %p37 = scmp.ge.s32.totalorder %s36, 1
    %s38 = scalar_select %p37, 0, %s36
    %s39 = sadd.s32 1, %s23
    %s40 = scalar_select %p37, %s39, %s23
    %p41 = scmp.ge.s32.totalorder %s40, 2
    %s42 = scalar_select %p41, 0, %s40
    %s43 = ssub.s32 %s23, %s42
    %s44 = ssub.s32 %s25, %s34
    %s45 = sor.u32 %s43, %s44
    %s46 = ssub.s32 %s24, %s38
    %s47 = sor.u32 %s45, %s46
    %p48 = scmp.eq.s32.totalorder %s47, 0
    %s50 = sadd.s32 %s49, 1
    %s51 = scalar_select %p48, %s49, %s50
    %p54 = pneg %p48
    %p55 = scmp.eq.s32.totalorder %s16, 1
    %p56 = por %p54, %p55
    %p57 = scmp.ne.s32.totalorder %s49, %s52
    %p58 = scmp.eq.s32.totalorder %s16, 0
    %p59 = por %p57, %p58
    %p60 = scmp.ne.s32.totalorder %s49, %s52
    %p61 = scmp.eq.s32.totalorder %s21, 1
    %p62 = por %p60, %p61
    %p63 = scmp.ne.s32.totalorder %s52, %s53
    %p64 = scmp.eq.s32.totalorder %s21, 0
    %p65 = por %p63, %p64
    %p66 = scmp.ne.s32.totalorder %s52, %s53
    %p67 = scmp.eq.s32.totalorder %s22, 1
    %p68 = por %p66, %p67
    %p70 = scmp.ne.s32.totalorder %s53, %s69
    %p71 = scmp.eq.s32.totalorder %s22, 0
    %p72 = por %p70, %p71
    %s73 = smul.u32 %s25, 16
    %s74 = ssub.s32 %s73, 1
    %p75 = scmp.gt.s32.totalorder %s74, 0
    %s76 = scalar_select %p75, %s74, 0
    %s77 = smul.u32 %s34, 16
    %s78 = ssub.s32 %s77, 1
    %p79 = scmp.gt.s32.totalorder %s78, 0
    %s80 = scalar_select %p79, %s78, 0
    %s81 = ssub.s32 %s23, %s42
    %s82 = ssub.s32 %s76, %s80
    %s83 = sor.u32 %s81, %s82
    %s84 = ssub.s32 %s24, %s38
    %s85 = sor.u32 %s83, %s84
    %p86 = scmp.eq.s32.totalorder %s85, 0
    %s88 = sadd.s32 %s87, 1
    %s89 = scalar_select %p86, %s87, %s88
    %p92 = pneg %p86
    %p93 = scmp.eq.s32.totalorder %s16, 1
    %p94 = por %p92, %p93
    %p95 = scmp.ne.s32.totalorder %s87, %s90
    %p96 = scmp.eq.s32.totalorder %s16, 0
    %p97 = por %p95, %p96
    %p98 = scmp.ne.s32.totalorder %s87, %s90
    %p99 = scmp.eq.s32.totalorder %s21, 1
    %p100 = por %p98, %p99
    %p101 = scmp.ne.s32.totalorder %s90, %s91
    %p102 = scmp.eq.s32.totalorder %s21, 0
    %p103 = por %p101, %p102
    %p104 = scmp.ne.s32.totalorder %s90, %s91
    %p105 = scmp.eq.s32.totalorder %s22, 1
    %p106 = por %p104, %p105
    %p108 = scmp.ne.s32.totalorder %s91, %s107
    %p109 = scmp.eq.s32.totalorder %s22, 0
    %p110 = por %p108, %p109
    %s111 = sadd.s32 %s25, 1
    %s112 = smul.u32 %s111, 16
    %p113 = scmp.lt.s32.totalorder %s112, 15
    %s114 = scalar_select %p113, %s112, 15
    %s115 = sadd.s32 %s34, 1
    %s116 = smul.u32 %s115, 16
    %p117 = scmp.lt.s32.totalorder %s116, 15
    %s118 = scalar_select %p117, %s116, 15
    %s119 = ssub.s32 %s23, %s42
    %s120 = ssub.s32 %s114, %s118
    %s121 = sor.u32 %s119, %s120
    %s122 = ssub.s32 %s24, %s38
    %s123 = sor.u32 %s121, %s122
    %p124 = scmp.eq.s32.totalorder %s123, 0
    %s126 = sadd.s32 %s125, 1
    %s127 = scalar_select %p124, %s125, %s126
    %p130 = pneg %p124
    %p131 = scmp.eq.s32.totalorder %s16, 1
    %p132 = por %p130, %p131
    %p133 = scmp.ne.s32.totalorder %s125, %s128
    %p134 = scmp.eq.s32.totalorder %s16, 0
    %p135 = por %p133, %p134
    %p136 = scmp.ne.s32.totalorder %s125, %s128
    %p137 = scmp.eq.s32.totalorder %s21, 1
    %p138 = por %p136, %p137
    %p139 = scmp.ne.s32.totalorder %s128, %s129
    %p140 = scmp.eq.s32.totalorder %s21, 0
    %p141 = por %p139, %p140
    %p142 = scmp.ne.s32.totalorder %s128, %s129
    %p143 = scmp.eq.s32.totalorder %s22, 1
    %p144 = por %p142, %p143
    %p146 = scmp.ne.s32.totalorder %s129, %s145
    %p147 = scmp.eq.s32.totalorder %s22, 0
    %p148 = por %p146, %p147
    %s149 = ssub.s32 %s23, %s42
    %s150 = ssub.s32 %s25, %s34
    %s151 = sor.u32 %s149, %s150
    %s152 = ssub.s32 %s24, %s38
    %s153 = sor.u32 %s151, %s152
    %p154 = scmp.eq.s32.totalorder %s153, 0
    %s156 = sadd.s32 %s155, 1
    %s157 = scalar_select %p154, %s155, %s156
    %p160 = pneg %p154
    %p161 = scmp.eq.s32.totalorder %s16, 1
    %p162 = por %p160, %p161
    %p163 = scmp.ne.s32.totalorder %s155, %s158
    %p164 = scmp.eq.s32.totalorder %s16, 0
    %p165 = por %p163, %p164
    %p166 = scmp.ne.s32.totalorder %s155, %s158
    %p167 = scmp.eq.s32.totalorder %s21, 1
    %p168 = por %p166, %p167
    %p169 = scmp.ne.s32.totalorder %s158, %s159
    %p170 = scmp.eq.s32.totalorder %s21, 0
    %p171 = por %p169, %p170
    %p172 = scmp.ne.s32.totalorder %s158, %s159
    %p173 = scmp.eq.s32.totalorder %s22, 1
    %p174 = por %p172, %p173
    %p176 = scmp.ne.s32.totalorder %s159, %s175
    %p177 = scmp.eq.s32.totalorder %s22, 0
    %p178 = por %p176, %p177
    %s179 = smul.u32 %s25, 16
    %s180 = ssub.s32 %s179, 1
    %p181 = scmp.gt.s32.totalorder %s180, 0
    %s182 = scalar_select %p181, %s180, 0
    %s183 = smul.u32 %s34, 16
    %s184 = ssub.s32 %s183, 1
    %p185 = scmp.gt.s32.totalorder %s184, 0
    %s186 = scalar_select %p185, %s184, 0
    %s187 = ssub.s32 %s23, %s42
    %s188 = ssub.s32 %s182, %s186
    %s189 = sor.u32 %s187, %s188
    %s190 = ssub.s32 %s24, %s38
    %s191 = sor.u32 %s189, %s190
    %p192 = scmp.eq.s32.totalorder %s191, 0
    %s194 = sadd.s32 %s193, 1
    %s195 = scalar_select %p192, %s193, %s194
    %p198 = pneg %p192
    %p199 = scmp.eq.s32.totalorder %s16, 1
    %p200 = por %p198, %p199
    %p201 = scmp.ne.s32.totalorder %s193, %s196
    %p202 = scmp.eq.s32.totalorder %s16, 0
    %p203 = por %p201, %p202
    %p204 = scmp.ne.s32.totalorder %s193, %s196
    %p205 = scmp.eq.s32.totalorder %s21, 1
    %p206 = por %p204, %p205
    %p207 = scmp.ne.s32.totalorder %s196, %s197
    %p208 = scmp.eq.s32.totalorder %s21, 0
    %p209 = por %p207, %p208
    %p210 = scmp.ne.s32.totalorder %s196, %s197
    %p211 = scmp.eq.s32.totalorder %s22, 1
    %p212 = por %p210, %p211
    %p214 = scmp.ne.s32.totalorder %s197, %s213
    %p215 = scmp.eq.s32.totalorder %s22, 0
    %p216 = por %p214, %p215
    %s217 = sadd.s32 %s25, 1
    %s218 = smul.u32 %s217, 16
    %p219 = scmp.lt.s32.totalorder %s218, 15
    %s220 = scalar_select %p219, %s218, 15
    %s221 = sadd.s32 %s34, 1
    %s222 = smul.u32 %s221, 16
    %p223 = scmp.lt.s32.totalorder %s222, 15
    %s224 = scalar_select %p223, %s222, 15
    %s225 = ssub.s32 %s23, %s42
    %s226 = ssub.s32 %s220, %s224
    %s227 = sor.u32 %s225, %s226
    %s228 = ssub.s32 %s24, %s38
    %s229 = sor.u32 %s227, %s228
    %p230 = scmp.eq.s32.totalorder %s229, 0
    %s232 = sadd.s32 %s231, 1
    %s233 = scalar_select %p230, %s231, %s232
    %p236 = pneg %p230
    %p237 = scmp.eq.s32.totalorder %s16, 1
    %p238 = por %p236, %p237
    %p239 = scmp.ne.s32.totalorder %s231, %s234
    %p240 = scmp.eq.s32.totalorder %s16, 0
    %p241 = por %p239, %p240
    %p242 = scmp.ne.s32.totalorder %s231, %s234
    %p243 = scmp.eq.s32.totalorder %s21, 1
    %p244 = por %p242, %p243
    %p245 = scmp.ne.s32.totalorder %s234, %s235
    %p246 = scmp.eq.s32.totalorder %s21, 0
    %p247 = por %p245, %p246
    %p248 = scmp.ne.s32.totalorder %s234, %s235
    %p249 = scmp.eq.s32.totalorder %s22, 1
    %p250 = por %p248, %p249
    %p252 = scmp.ne.s32.totalorder %s235, %s251
    %p253 = scmp.eq.s32.totalorder %s22, 0
    %p254 = por %p252, %p253
    %s255 = ssub.s32 %s24, %s38
    %p256 = scmp.eq.s32.totalorder %s255, 0
    %s258 = sadd.s32 %s257, 1
    %s259 = scalar_select %p256, %s257, %s258
    %p262 = pneg %p256
    %p263 = scmp.eq.s32.totalorder %s16, 1
    %p264 = por %p262, %p263
    %p265 = scmp.ne.s32.totalorder %s257, %s260
    %p266 = scmp.eq.s32.totalorder %s16, 0
    %p267 = por %p265, %p266
    %p268 = scmp.ne.s32.totalorder %s257, %s260
    %p269 = scmp.eq.s32.totalorder %s21, 1
    %p270 = por %p268, %p269
    %p271 = scmp.ne.s32.totalorder %s260, %s261
    %p272 = scmp.eq.s32.totalorder %s21, 0
    %p273 = por %p271, %p272
    %p274 = scmp.ne.s32.totalorder %s260, %s261
    %p275 = scmp.eq.s32.totalorder %s22, 1
    %p276 = por %p274, %p275
    %p278 = scmp.ne.s32.totalorder %s261, %s277
    %p279 = scmp.eq.s32.totalorder %s22, 0
    %p280 = por %p278, %p279
    %s281 = ssub.s32 %s24, %s38
    %p282 = scmp.eq.s32.totalorder %s281, 0
    %s284 = sadd.s32 %s283, 1
    %s285 = scalar_select %p282, %s283, %s284
    %p288 = pneg %p282
    %p289 = scmp.eq.s32.totalorder %s16, 1
    %p290 = por %p288, %p289
    %p291 = scmp.ne.s32.totalorder %s283, %s286
    %p292 = scmp.eq.s32.totalorder %s16, 0
    %p293 = por %p291, %p292
    %p294 = scmp.ne.s32.totalorder %s283, %s286
    %p295 = scmp.eq.s32.totalorder %s21, 1
    %p296 = por %p294, %p295
    %p297 = scmp.ne.s32.totalorder %s286, %s287
    %p298 = scmp.eq.s32.totalorder %s21, 0
    %p299 = por %p297, %p298
    %p300 = scmp.ne.s32.totalorder %s286, %s287
    %p301 = scmp.eq.s32.totalorder %s22, 1
    %p302 = por %p300, %p301
    %p304 = scmp.ne.s32.totalorder %s287, %s303
    %p305 = scmp.eq.s32.totalorder %s22, 0
    %p306 = por %p304, %p305
    %s307 = ssub.s32 %s24, %s38
    %p308 = scmp.eq.s32.totalorder %s307, 0
    %s310 = sadd.s32 %s309, 1
    %s311 = scalar_select %p308, %s309, %s310
    %p314 = pneg %p308
    %p315 = scmp.eq.s32.totalorder %s16, 1
    %p316 = por %p314, %p315
    %p317 = scmp.ne.s32.totalorder %s309, %s312
    %p318 = scmp.eq.s32.totalorder %s16, 0
    %p319 = por %p317, %p318
    %p320 = scmp.ne.s32.totalorder %s309, %s312
    %p321 = scmp.eq.s32.totalorder %s21, 1
    %p322 = por %p320, %p321
    %p323 = scmp.ne.s32.totalorder %s312, %s313
    %p324 = scmp.eq.s32.totalorder %s21, 0
    %p325 = por %p323, %p324
    %p326 = scmp.ne.s32.totalorder %s312, %s313
    %p327 = scmp.eq.s32.totalorder %s22, 1
    %p328 = por %p326, %p327
    %p330 = scmp.ne.s32.totalorder %s313, %s329
    %p331 = scmp.eq.s32.totalorder %s22, 0
    %p332 = por %p330, %p331
    %s333 = ssub.s32 %s24, %s38
    %p334 = scmp.eq.s32.totalorder %s333, 0
    %s336 = sadd.s32 %s335, 1
    %s337 = scalar_select %p334, %s335, %s336
    %p340 = pneg %p334
    %p341 = scmp.eq.s32.totalorder %s16, 1
    %p342 = por %p340, %p341
    %p343 = scmp.ne.s32.totalorder %s335, %s338
    %p344 = scmp.eq.s32.totalorder %s16, 0
    %p345 = por %p343, %p344
    %p346 = scmp.ne.s32.totalorder %s335, %s338
    %p347 = scmp.eq.s32.totalorder %s21, 1
    %p348 = por %p346, %p347
    %p349 = scmp.ne.s32.totalorder %s338, %s339
    %p350 = scmp.eq.s32.totalorder %s21, 0
    %p351 = por %p349, %p350
    %p352 = scmp.ne.s32.totalorder %s338, %s339
    %p353 = scmp.eq.s32.totalorder %s22, 1
    %p354 = por %p352, %p353
    %p356 = scmp.ne.s32.totalorder %s339, %s355
    %p357 = scmp.eq.s32.totalorder %s22, 0
    %p358 = por %p356, %p357
    %s359 = ssub.s32 %s23, %s42
    %s360 = ssub.s32 %s25, %s34
    %s361 = sor.u32 %s359, %s360
    %s362 = ssub.s32 %s24, %s38
    %s363 = sor.u32 %s361, %s362
    %p364 = scmp.eq.s32.totalorder %s363, 0
    %s366 = sadd.s32 %s365, 1
    %s367 = scalar_select %p364, %s365, %s366
    %p370 = pneg %p364
    %p371 = scmp.eq.s32.totalorder %s16, 1
    %p372 = por %p370, %p371
    %p373 = scmp.ne.s32.totalorder %s365, %s368
    %p374 = scmp.eq.s32.totalorder %s16, 0
    %p375 = por %p373, %p374
    %p376 = scmp.ne.s32.totalorder %s365, %s368
    %p377 = scmp.eq.s32.totalorder %s21, 1
    %p378 = por %p376, %p377
    %p379 = scmp.ne.s32.totalorder %s368, %s369
    %p380 = scmp.eq.s32.totalorder %s21, 0
    %p381 = por %p379, %p380
    %p382 = scmp.ne.s32.totalorder %s368, %s369
    %p383 = scmp.eq.s32.totalorder %s22, 1
    %p384 = por %p382, %p383
    %p386 = scmp.ne.s32.totalorder %s369, %s385
    %p387 = scmp.eq.s32.totalorder %s22, 0
    %p388 = por %p386, %p387
    %p389 = scmp.le.s32.totalorder 1, %s16
    %p390 = scmp.lt.s32.totalorder %s16, 3
    %p391 = pnand %p389, %p390
    %p392 = pneg %p391
    // Predicated region
    $region9: #{feed_forward.4} parent=5 // pred_check
      _
    $region10: #{feed_forward.4} parent=5 // pred_check_branch
      %394 = sbr.rel (%p391) target = $region12
    $region11: #{feed_forward.4} parent=5 // pred_region
      %s395 = ssub.s32 %s16, 1
      // Predicated region
      $region13: #{feed_forward.4} parent=11 // pred_check
        %p396 = pneg %p273
      $region14: #{feed_forward.4} parent=11 // pred_check_branch
        %398 = sbr.rel (%p396) target = $region16
      $region15: #{feed_forward.4} parent=11 // pred_region
        %p399 = scmp.lt.s32.totalorder %s27, 0
        %s400 = scalar_select %p399, %s27, 0
        %s401 = smul.addr %s400, 4
        %s402 = scalar_lea.vmem %s6, %s401
      $region16: #{feed_forward.4} parent=11 // pred_fallthru
        _
      // Predicated region
      $region17: #{feed_forward.4} parent=11 // pred_check
        %p403 = pneg %p299
      $region18: #{feed_forward.4} parent=11 // pred_check_branch
        %405 = sbr.rel (%p403) target = $region20
      $region19: #{feed_forward.4} parent=11 // pred_region
        %p406 = scmp.lt.s32.totalorder %s27, 0
        %s407 = scalar_select %p406, %s27, 0
        %s408 = smul.addr %s407, 4
        %s409 = scalar_lea.vmem %s7, %s408
      $region20: #{feed_forward.4} parent=11 // pred_fallthru
        _
      // Predicated region
      $region21: #{feed_forward.4} parent=11 // pred_check
        %p410 = pneg %p325
      $region22: #{feed_forward.4} parent=11 // pred_check_branch
        %412 = sbr.rel (%p410) target = $region24
      $region23: #{feed_forward.4} parent=11 // pred_region
        %p413 = scmp.lt.s32.totalorder %s27, 0
        %s414 = scalar_select %p413, %s27, 0
        %s415 = scalar_lea.vmem %s8, %s414
      $region24: #{feed_forward.4} parent=11 // pred_fallthru
        _
      // Predicated region
      $region25: #{feed_forward.4} parent=11 // pred_check
        %p416 = pneg %p351
      $region26: #{feed_forward.4} parent=11 // pred_check_branch
        %418 = sbr.rel (%p416) target = $region28
      $region27: #{feed_forward.4} parent=11 // pred_region
        %p419 = scmp.lt.s32.totalorder %s27, 0
        %s420 = scalar_select %p419, %s27, 0
        %s421 = scalar_lea.vmem %s9, %s420
      $region28: #{feed_forward.4} parent=11 // pred_fallthru
        _
    $region12: #{feed_forward.4} parent=5 // pred_fallthru
      _
    %p422 = scmp.lt.s32.totalorder %s16, 2
    // Predicated region
    $region29: #{feed_forward.4} parent=5 // pred_check
      %p423 = pneg %p422
    $region30: #{feed_forward.4} parent=5 // pred_check_branch
      %425 = sbr.rel (%p423) target = $region32
    $region31: #{feed_forward.4} parent=5 // pred_region
      // Predicated region
      $region33: #{feed_forward.4} parent=31 // pred_check
        %p426 = pneg %p59
      $region34: #{feed_forward.4} parent=31 // pred_check_branch
        %428 = sbr.rel (%p426) target = $region36
      $region35: #{feed_forward.4} parent=31 // pred_region
        %s429 = smul.u32 16, %s25
        %p430 = scmp.lt.s32.totalorder %s23, 1
        %s431 = scalar_select %p430, %s23, 1
        %p432 = scmp.lt.s32.totalorder %s429, 15
        %s433 = scalar_select %p432, %s429, 15
        %p434 = scmp.lt.s32.totalorder %s24, 0
        %s435 = scalar_select %p434, %s24, 0
        %s436 = smul.addr %s433, 2
        %s437 = sadd.s32 %s435, %s436
        %s438 = smul.addr %s431, 32
        %s439 = sadd.s32 %s437, %s438
        %s440 = smul.addr %s439, 4
        %s441 = scalar_lea.vmem %s0, %s440
        %s442 = smul.u32 16, %s25
      $region36: #{feed_forward.4} parent=31 // pred_fallthru
        _
      // Predicated region
      $region37: #{feed_forward.4} parent=31 // pred_check
        %p443 = pneg %p97
      $region38: #{feed_forward.4} parent=31 // pred_check_branch
        %445 = sbr.rel (%p443) target = $region40
      $region39: #{feed_forward.4} parent=31 // pred_region
        %s446 = smul.u32 %s25, 16
        %s447 = ssub.s32 %s446, 1
        %p448 = scmp.gt.s32.totalorder %s447, 0
        %s449 = scalar_select %p448, %s447, 0
        %p450 = scmp.lt.s32.totalorder %s23, 1
        %s451 = scalar_select %p450, %s23, 1
        %p452 = scmp.lt.s32.totalorder %s449, 15
        %s453 = scalar_select %p452, %s449, 15
        %p454 = scmp.lt.s32.totalorder %s24, 0
        %s455 = scalar_select %p454, %s24, 0
        %s456 = smul.addr %s453, 2
        %s457 = sadd.s32 %s455, %s456
        %s458 = smul.addr %s451, 32
        %s459 = sadd.s32 %s457, %s458
        %s460 = smul.addr %s459, 4
        %s461 = scalar_lea.vmem %s1, %s460
        %s462 = smul.u32 %s25, 16
        %s463 = ssub.s32 %s462, 1
        %p464 = scmp.gt.s32.totalorder %s463, 0
        %s465 = scalar_select %p464, %s463, 0
      $region40: #{feed_forward.4} parent=31 // pred_fallthru
        _
      // Predicated region
      $region41: #{feed_forward.4} parent=31 // pred_check
        %p466 = pneg %p135
      $region42: #{feed_forward.4} parent=31 // pred_check_branch
        %468 = sbr.rel (%p466) target = $region44
      $region43: #{feed_forward.4} parent=31 // pred_region
        %s469 = sadd.s32 %s25, 1
        %s470 = smul.u32 %s469, 16
        %p471 = scmp.lt.s32.totalorder %s470, 15
        %s472 = scalar_select %p471, %s470, 15
        %p473 = scmp.lt.s32.totalorder %s23, 1
        %s474 = scalar_select %p473, %s23, 1
        %p475 = scmp.lt.s32.totalorder %s472, 15
        %s476 = scalar_select %p475, %s472, 15
        %p477 = scmp.lt.s32.totalorder %s24, 0
        %s478 = scalar_select %p477, %s24, 0
        %s479 = smul.addr %s476, 2
        %s480 = sadd.s32 %s478, %s479
        %s481 = smul.addr %s474, 32
        %s482 = sadd.s32 %s480, %s481
        %s483 = smul.addr %s482, 4
        %s484 = scalar_lea.vmem %s2, %s483
        %s485 = sadd.s32 %s25, 1
        %s486 = smul.u32 %s485, 16
        %p487 = scmp.lt.s32.totalorder %s486, 15
        %s488 = scalar_select %p487, %s486, 15
      $region44: #{feed_forward.4} parent=31 // pred_fallthru
        _
      // Predicated region
      $region45: #{feed_forward.4} parent=31 // pred_check
        %p489 = pneg %p165
      $region46: #{feed_forward.4} parent=31 // pred_check_branch
        %491 = sbr.rel (%p489) target = $region48
      $region47: #{feed_forward.4} parent=31 // pred_region
        %s492 = smul.u32 16, %s25
        %p493 = scmp.lt.s32.totalorder %s23, 1
        %s494 = scalar_select %p493, %s23, 1
        %p495 = scmp.lt.s32.totalorder %s492, 15
        %s496 = scalar_select %p495, %s492, 15
        %p497 = scmp.lt.s32.totalorder %s24, 0
        %s498 = scalar_select %p497, %s24, 0
        %s499 = smul.addr %s496, 2
        %s500 = sadd.s32 %s498, %s499
        %s501 = smul.addr %s494, 32
        %s502 = sadd.s32 %s500, %s501
        %s503 = smul.addr %s502, 4
        %s504 = scalar_lea.vmem %s3, %s503
        %s505 = smul.u32 16, %s25
      $region48: #{feed_forward.4} parent=31 // pred_fallthru
        _
      // Predicated region
      $region49: #{feed_forward.4} parent=31 // pred_check
        %p506 = pneg %p203
      $region50: #{feed_forward.4} parent=31 // pred_check_branch
        %508 = sbr.rel (%p506) target = $region52
      $region51: #{feed_forward.4} parent=31 // pred_region
        %s509 = smul.u32 %s25, 16
        %s510 = ssub.s32 %s509, 1
        %p511 = scmp.gt.s32.totalorder %s510, 0
        %s512 = scalar_select %p511, %s510, 0
        %p513 = scmp.lt.s32.totalorder %s23, 1
        %s514 = scalar_select %p513, %s23, 1
        %p515 = scmp.lt.s32.totalorder %s512, 15
        %s516 = scalar_select %p515, %s512, 15
        %p517 = scmp.lt.s32.totalorder %s24, 0
        %s518 = scalar_select %p517, %s24, 0
        %s519 = smul.addr %s516, 2
        %s520 = sadd.s32 %s518, %s519
        %s521 = smul.addr %s514, 32
        %s522 = sadd.s32 %s520, %s521
        %s523 = smul.addr %s522, 4
        %s524 = scalar_lea.vmem %s4, %s523
        %s525 = smul.u32 %s25, 16
        %s526 = ssub.s32 %s525, 1
        %p527 = scmp.gt.s32.totalorder %s526, 0
        %s528 = scalar_select %p527, %s526, 0
      $region52: #{feed_forward.4} parent=31 // pred_fallthru
        _
      // Predicated region
      $region53: #{feed_forward.4} parent=31 // pred_check
        %p529 = pneg %p241
      $region54: #{feed_forward.4} parent=31 // pred_check_branch
        %531 = sbr.rel (%p529) target = $region56
      $region55: #{feed_forward.4} parent=31 // pred_region
        %s532 = sadd.s32 %s25, 1
        %s533 = smul.u32 %s532, 16
        %p534 = scmp.lt.s32.totalorder %s533, 15
        %s535 = scalar_select %p534, %s533, 15
        %p536 = scmp.lt.s32.totalorder %s23, 1
        %s537 = scalar_select %p536, %s23, 1
        %p538 = scmp.lt.s32.totalorder %s535, 15
        %s539 = scalar_select %p538, %s535, 15
        %p540 = scmp.lt.s32.totalorder %s24, 0
        %s541 = scalar_select %p540, %s24, 0
        %s542 = smul.addr %s539, 2
        %s543 = sadd.s32 %s541, %s542
        %s544 = smul.addr %s537, 32
        %s545 = sadd.s32 %s543, %s544
        %s546 = smul.addr %s545, 4
        %s547 = scalar_lea.vmem %s5, %s546
        %s548 = sadd.s32 %s25, 1
        %s549 = smul.u32 %s548, 16
        %p550 = scmp.lt.s32.totalorder %s549, 15
        %s551 = scalar_select %p550, %s549, 15
      $region56: #{feed_forward.4} parent=31 // pred_fallthru
        _
    $region32: #{feed_forward.4} parent=5 // pred_fallthru
      _
    %p552 = scmp.le.s32.totalorder 1, %s16
    %p553 = scmp.lt.s32.totalorder %s16, 3
    %p554 = pnand %p552, %p553
    %p555 = pneg %p554
    // Predicated region
    $region57: #{feed_forward.4} parent=5 // pred_check
      _
    $region58: #{feed_forward.4} parent=5 // pred_check_branch
      %557 = sbr.rel (%p554) target = $region60
    $region59: #{feed_forward.4} parent=5 // pred_region
      %s558 = ssub.s32 %s16, 1
      %s559 = smul.u32 16, %s28
      %p560 = scmp.lt.s32.totalorder %s26, 1
      %s561 = scalar_select %p560, %s26, 1
      %p562 = scmp.lt.s32.totalorder %s559, 15
      %s563 = scalar_select %p562, %s559, 15
      %p564 = scmp.lt.s32.totalorder %s27, 0
      %s565 = scalar_select %p564, %s27, 0
      %s566 = smul.addr %s563, 2
      %s567 = sadd.s32 %s565, %s566
      %s568 = smul.addr %s561, 32
      %s569 = sadd.s32 %s567, %s568
      %s570 = smul.addr %s569, 4
      %s571 = scalar_lea.vmem %s0, %s570
      %p572 = pneg %p65
      %p573 = pneg %p62
      %s574 = smul.u32 %s28, 16
      %s575 = ssub.s32 %s574, 1
      %p576 = scmp.gt.s32.totalorder %s575, 0
      %s577 = scalar_select %p576, %s575, 0
      %p578 = scmp.lt.s32.totalorder %s26, 1
      %s579 = scalar_select %p578, %s26, 1
      %p580 = scmp.lt.s32.totalorder %s577, 15
      %s581 = scalar_select %p580, %s577, 15
      %p582 = scmp.lt.s32.totalorder %s27, 0
      %s583 = scalar_select %p582, %s27, 0
      %s584 = smul.addr %s581, 2
      %s585 = sadd.s32 %s583, %s584
      %s586 = smul.addr %s579, 32
      %s587 = sadd.s32 %s585, %s586
      %s588 = smul.addr %s587, 4
      %s589 = scalar_lea.vmem %s1, %s588
      %p590 = pneg %p103
      %p591 = pneg %p100
      %s592 = sadd.s32 %s28, 1
      %s593 = smul.u32 %s592, 16
      %p594 = scmp.lt.s32.totalorder %s593, 15
      %s595 = scalar_select %p594, %s593, 15
      %p596 = scmp.lt.s32.totalorder %s26, 1
      %s597 = scalar_select %p596, %s26, 1
      %p598 = scmp.lt.s32.totalorder %s595, 15
      %s599 = scalar_select %p598, %s595, 15
      %p600 = scmp.lt.s32.totalorder %s27, 0
      %s601 = scalar_select %p600, %s27, 0
      %s602 = smul.addr %s599, 2
      %s603 = sadd.s32 %s601, %s602
      %s604 = smul.addr %s597, 32
      %s605 = sadd.s32 %s603, %s604
      %s606 = smul.addr %s605, 4
      %s607 = scalar_lea.vmem %s2, %s606
      %p608 = pneg %p141
      %p609 = pneg %p138
      %s610 = smul.u32 16, %s28
      %p611 = scmp.lt.s32.totalorder %s26, 1
      %s612 = scalar_select %p611, %s26, 1
      %p613 = scmp.lt.s32.totalorder %s610, 15
      %s614 = scalar_select %p613, %s610, 15
      %p615 = scmp.lt.s32.totalorder %s27, 0
      %s616 = scalar_select %p615, %s27, 0
      %s617 = smul.addr %s614, 2
      %s618 = sadd.s32 %s616, %s617
      %s619 = smul.addr %s612, 32
      %s620 = sadd.s32 %s618, %s619
      %s621 = smul.addr %s620, 4
      %s622 = scalar_lea.vmem %s3, %s621
      %p623 = pneg %p171
      %p624 = pneg %p168
      %s625 = smul.u32 %s28, 16
      %s626 = ssub.s32 %s625, 1
      %p627 = scmp.gt.s32.totalorder %s626, 0
      %s628 = scalar_select %p627, %s626, 0
      %p629 = scmp.lt.s32.totalorder %s26, 1
      %s630 = scalar_select %p629, %s26, 1
      %p631 = scmp.lt.s32.totalorder %s628, 15
      %s632 = scalar_select %p631, %s628, 15
      %p633 = scmp.lt.s32.totalorder %s27, 0
      %s634 = scalar_select %p633, %s27, 0
      %s635 = smul.addr %s632, 2
      %s636 = sadd.s32 %s634, %s635
      %s637 = smul.addr %s630, 32
      %s638 = sadd.s32 %s636, %s637
      %s639 = smul.addr %s638, 4
      %s640 = scalar_lea.vmem %s4, %s639
      %p641 = pneg %p209
      %p642 = pneg %p206
      %s643 = sadd.s32 %s28, 1
      %s644 = smul.u32 %s643, 16
      %p645 = scmp.lt.s32.totalorder %s644, 15
      %s646 = scalar_select %p645, %s644, 15
      %p647 = scmp.lt.s32.totalorder %s26, 1
      %s648 = scalar_select %p647, %s26, 1
      %p649 = scmp.lt.s32.totalorder %s646, 15
      %s650 = scalar_select %p649, %s646, 15
      %p651 = scmp.lt.s32.totalorder %s27, 0
      %s652 = scalar_select %p651, %s27, 0
      %s653 = smul.addr %s650, 2
      %s654 = sadd.s32 %s652, %s653
      %s655 = smul.addr %s648, 32
      %s656 = sadd.s32 %s654, %s655
      %s657 = smul.addr %s656, 4
      %s658 = scalar_lea.vmem %s5, %s657
      %p659 = pneg %p247
      %p660 = pneg %p244
      %p661 = scmp.lt.s32.totalorder %s27, 0
      %s662 = scalar_select %p661, %s27, 0
      %s663 = smul.addr %s662, 4
      %s664 = scalar_lea.vmem %s6, %s663
      %p665 = pneg %p273
      %p666 = pneg %p270
      %p667 = scmp.lt.s32.totalorder %s27, 0
      %s668 = scalar_select %p667, %s27, 0
      %s669 = smul.addr %s668, 4
      %s670 = scalar_lea.vmem %s7, %s669
      %p671 = pneg %p299
      %p672 = pneg %p296
      %p673 = scmp.lt.s32.totalorder %s27, 0
      %s674 = scalar_select %p673, %s27, 0
      %s675 = scalar_lea.vmem %s8, %s674
      %p676 = pneg %p325
      %p677 = pneg %p322
      %p678 = scmp.lt.s32.totalorder %s27, 0
      %s679 = scalar_select %p678, %s27, 0
      %s680 = scalar_lea.vmem %s9, %s679
      %p681 = pneg %p351
      %p682 = pneg %p348
      %p683 = pneg %p381
      %p684 = pneg %p378
      %s685 = smul.u32 16, %s28
      %p686 = scmp.lt.s32.totalorder %s26, 1
      %s687 = scalar_select %p686, %s26, 1
      %p688 = scmp.lt.s32.totalorder %s685, 15
      %s689 = scalar_select %p688, %s685, 15
      %p690 = scmp.lt.s32.totalorder %s27, 0
      %s691 = scalar_select %p690, %s27, 0
      %s692 = smul.addr %s689, 2
      %s693 = sadd.s32 %s691, %s692
      %s694 = smul.addr %s687, 32
      %s695 = sadd.s32 %s693, %s694
      %s696 = smul.addr %s695, 4
      %s697 = scalar_lea.vmem %s10, %s696
      %s698 = smul.u32 16, %s28
      %p699 = scmp.lt.s32.totalorder %s26, 1
      %s700 = scalar_select %p699, %s26, 1
      %p701 = scmp.lt.s32.totalorder %s698, 15
      %s702 = scalar_select %p701, %s698, 15
      %p703 = scmp.lt.s32.totalorder %s27, 0
      %s704 = scalar_select %p703, %s27, 0
      %s705 = smul.addr %s702, 2
      %s706 = sadd.s32 %s704, %s705
      %s707 = smul.addr %s700, 32
      %s708 = sadd.s32 %s706, %s707
      %s709 = smul.addr %s708, 4
      %s710 = scalar_lea.vmem %s0, %s709
      %s711 = smul.u32 16, %s28
      %s712 = smul.u32 %s28, 16
      %s713 = ssub.s32 %s712, 1
      %p714 = scmp.gt.s32.totalorder %s713, 0
      %s715 = scalar_select %p714, %s713, 0
      %p716 = scmp.lt.s32.totalorder %s26, 1
      %s717 = scalar_select %p716, %s26, 1
      %p718 = scmp.lt.s32.totalorder %s715, 15
      %s719 = scalar_select %p718, %s715, 15
      %p720 = scmp.lt.s32.totalorder %s27, 0
      %s721 = scalar_select %p720, %s27, 0
      %s722 = smul.addr %s719, 2
      %s723 = sadd.s32 %s721, %s722
      %s724 = smul.addr %s717, 32
      %s725 = sadd.s32 %s723, %s724
      %s726 = smul.addr %s725, 4
      %s727 = scalar_lea.vmem %s1, %s726
      %s728 = smul.u32 %s28, 16
      %s729 = ssub.s32 %s728, 1
      %p730 = scmp.gt.s32.totalorder %s729, 0
      %s731 = scalar_select %p730, %s729, 0
      %s732 = sadd.s32 %s28, 1
      %s733 = smul.u32 %s732, 16
      %p734 = scmp.lt.s32.totalorder %s733, 15
      %s735 = scalar_select %p734, %s733, 15
      %p736 = scmp.lt.s32.totalorder %s26, 1
      %s737 = scalar_select %p736, %s26, 1
      %p738 = scmp.lt.s32.totalorder %s735, 15
      %s739 = scalar_select %p738, %s735, 15
      %p740 = scmp.lt.s32.totalorder %s27, 0
      %s741 = scalar_select %p740, %s27, 0
      %s742 = smul.addr %s739, 2
      %s743 = sadd.s32 %s741, %s742
      %s744 = smul.addr %s737, 32
      %s745 = sadd.s32 %s743, %s744
      %s746 = smul.addr %s745, 4
      %s747 = scalar_lea.vmem %s2, %s746
      %s748 = sadd.s32 %s28, 1
      %s749 = smul.u32 %s748, 16
      %p750 = scmp.lt.s32.totalorder %s749, 15
      %s751 = scalar_select %p750, %s749, 15
      %s752 = smul.u32 16, %s28
      %p753 = scmp.lt.s32.totalorder %s26, 1
      %s754 = scalar_select %p753, %s26, 1
      %p755 = scmp.lt.s32.totalorder %s752, 15
      %s756 = scalar_select %p755, %s752, 15
      %p757 = scmp.lt.s32.totalorder %s27, 0
      %s758 = scalar_select %p757, %s27, 0
      %s759 = smul.addr %s756, 2
      %s760 = sadd.s32 %s758, %s759
      %s761 = smul.addr %s754, 32
      %s762 = sadd.s32 %s760, %s761
      %s763 = smul.addr %s762, 4
      %s764 = scalar_lea.vmem %s3, %s763
      %s765 = smul.u32 16, %s28
      %s766 = smul.u32 %s28, 16
      %s767 = ssub.s32 %s766, 1
      %p768 = scmp.gt.s32.totalorder %s767, 0
      %s769 = scalar_select %p768, %s767, 0
      %p770 = scmp.lt.s32.totalorder %s26, 1
      %s771 = scalar_select %p770, %s26, 1
      %p772 = scmp.lt.s32.totalorder %s769, 15
      %s773 = scalar_select %p772, %s769, 15
      %p774 = scmp.lt.s32.totalorder %s27, 0
      %s775 = scalar_select %p774, %s27, 0
      %s776 = smul.addr %s773, 2
      %s777 = sadd.s32 %s775, %s776
      %s778 = smul.addr %s771, 32
      %s779 = sadd.s32 %s777, %s778
      %s780 = smul.addr %s779, 4
      %s781 = scalar_lea.vmem %s4, %s780
      %s782 = smul.u32 %s28, 16
      %s783 = ssub.s32 %s782, 1
      %p784 = scmp.gt.s32.totalorder %s783, 0
      %s785 = scalar_select %p784, %s783, 0
      %s786 = sadd.s32 %s28, 1
      %s787 = smul.u32 %s786, 16
      %p788 = scmp.lt.s32.totalorder %s787, 15
      %s789 = scalar_select %p788, %s787, 15
      %p790 = scmp.lt.s32.totalorder %s26, 1
      %s791 = scalar_select %p790, %s26, 1
      %p792 = scmp.lt.s32.totalorder %s789, 15
      %s793 = scalar_select %p792, %s789, 15
      %p794 = scmp.lt.s32.totalorder %s27, 0
      %s795 = scalar_select %p794, %s27, 0
      %s796 = smul.addr %s793, 2
      %s797 = sadd.s32 %s795, %s796
      %s798 = smul.addr %s791, 32
      %s799 = sadd.s32 %s797, %s798
      %s800 = smul.addr %s799, 4
      %s801 = scalar_lea.vmem %s5, %s800
      %s802 = sadd.s32 %s28, 1
      %s803 = smul.u32 %s802, 16
      %p804 = scmp.lt.s32.totalorder %s803, 15
      %s805 = scalar_select %p804, %s803, 15
      %p806 = scmp.lt.s32.totalorder %s27, 0
      %s807 = scalar_select %p806, %s27, 0
      %s808 = smul.addr %s807, 4
      %s809 = scalar_lea.vmem %s6, %s808
      %p810 = scmp.lt.s32.totalorder %s27, 0
      %s811 = scalar_select %p810, %s27, 0
      %s812 = smul.addr %s811, 4
      %s813 = scalar_lea.vmem %s7, %s812
      %p814 = scmp.lt.s32.totalorder %s27, 0
      %s815 = scalar_select %p814, %s27, 0
      %s816 = scalar_lea.vmem %s8, %s815
      %p817 = scmp.lt.s32.totalorder %s27, 0
      %s818 = scalar_select %p817, %s27, 0
      %s819 = scalar_lea.vmem %s9, %s818
      %s820 = smul.u32 16, %s28
      %p821 = scmp.lt.s32.totalorder %s26, 1
      %s822 = scalar_select %p821, %s26, 1
      %p823 = scmp.lt.s32.totalorder %s820, 15
      %s824 = scalar_select %p823, %s820, 15
      %p825 = scmp.lt.s32.totalorder %s27, 0
      %s826 = scalar_select %p825, %s27, 0
      %s827 = smul.addr %s824, 2
      %s828 = sadd.s32 %s826, %s827
      %s829 = smul.addr %s822, 32
      %s830 = sadd.s32 %s828, %s829
      %s831 = smul.addr %s830, 4
      %s832 = scalar_lea.vmem %s10, %s831
      %s833 = smul.u32 16, %s28
      %p835 = scmp.eq.s32.totalorder %s28, 0
      %v836 = vld [vmem:[%s710] sm:$0xf]
      %v837 = vld [vmem:[%s710 + $0x4] sm:$0xf]
      %v838 = vld [vmem:[%s710 + $0x8] sm:$0xf]
      %v839 = vld [vmem:[%s710 + $0xc] sm:$0xf]
      %v840 = vld [vmem:[%s710 + $0x10] sm:$0xf]
      %v841 = vld [vmem:[%s710 + $0x14] sm:$0xf]
      %v842 = vld [vmem:[%s710 + $0x18] sm:$0xf]
      %v843 = vld [vmem:[%s710 + $0x1c] sm:$0xf]
      %v844 = vld [vmem:[%s710 + $0x20] sm:$0xf]
      %v845 = vld [vmem:[%s710 + $0x24] sm:$0xf]
      %v846 = vld [vmem:[%s710 + $0x28] sm:$0xf]
      %v847 = vld [vmem:[%s710 + $0x2c] sm:$0xf]
      %v848 = vld [vmem:[%s710 + $0x30] sm:$0xf]
      %v849 = vld [vmem:[%s710 + $0x34] sm:$0xf]
      %v850 = vld [vmem:[%s710 + $0x38] sm:$0xf]
      %v851 = vld [vmem:[%s710 + $0x3c] sm:$0xf]
      %v852 = vld [vmem:[%s710 + $0x40] sm:$0xf]
      %v853 = vld [vmem:[%s710 + $0x44] sm:$0xf]
      %v854 = vld [vmem:[%s710 + $0x48] sm:$0xf]
      %v855 = vld [vmem:[%s710 + $0x4c] sm:$0xf]
      %v856 = vld [vmem:[%s710 + $0x50] sm:$0xf]
      %v857 = vld [vmem:[%s710 + $0x54] sm:$0xf]
      %v858 = vld [vmem:[%s710 + $0x58] sm:$0xf]
      %v859 = vld [vmem:[%s710 + $0x5c] sm:$0xf]
      %v860 = vld [vmem:[%s710 + $0x60] sm:$0xf]
      %v861 = vld [vmem:[%s710 + $0x64] sm:$0xf]
      %v862 = vld [vmem:[%s710 + $0x68] sm:$0xf]
      %v863 = vld [vmem:[%s710 + $0x6c] sm:$0xf]
      %v864 = vld [vmem:[%s710 + $0x70] sm:$0xf]
      %v865 = vld [vmem:[%s710 + $0x74] sm:$0xf]
      %v866 = vld [vmem:[%s710 + $0x78] sm:$0xf]
      %v867 = vld [vmem:[%s710 + $0x7c] sm:$0xf]
      %vm868 = vsmask.f32 256
      %vm869 = vsmask.f32 4368
      %vm870 = vmor %vm868, %vm869
      %v872 = vshrl.u32 %v836, 16
      %v874 = vrot.slane %v872, 7
      %v875 = vshll.u32 %v836, 16
      %v877 = vor.u32 %v874, %v875
      %v878 = vrot.slane %v874, 4
      %v880 = vshrl.u32 %v837, 16
      %v882 = vrot.slane %v880, 7
      %v883 = vshll.u32 %v837, 16
      %v885 = vor.u32 %v882, %v883
      %v886 = vsel %vm870, %v878, %v885
      %v887 = vrot.slane %v882, 4
      %v889 = vshrl.u32 %v838, 16
      %v891 = vrot.slane %v889, 7
      %v892 = vshll.u32 %v838, 16
      %v894 = vor.u32 %v891, %v892
      %v895 = vrot.slane %v891, 4
      %v897 = vshrl.u32 %v839, 16
      %v899 = vrot.slane %v897, 7
      %v900 = vshll.u32 %v839, 16
      %v902 = vor.u32 %v899, %v900
      %v903 = vsel %vm870, %v895, %v902
      %v904 = vrot.slane %v899, 4
      %v906 = vshrl.u32 %v840, 16
      %v908 = vrot.slane %v906, 7
      %v909 = vshll.u32 %v840, 16
      %v911 = vor.u32 %v908, %v909
      %v912 = vrot.slane %v908, 4
      %v914 = vshrl.u32 %v841, 16
      %v916 = vrot.slane %v914, 7
      %v917 = vshll.u32 %v841, 16
      %v919 = vor.u32 %v916, %v917
      %v920 = vsel %vm870, %v912, %v919
      %v921 = vrot.slane %v916, 4
      %v923 = vshrl.u32 %v842, 16
      %v925 = vrot.slane %v923, 7
      %v926 = vshll.u32 %v842, 16
      %v928 = vor.u32 %v925, %v926
      %v929 = vrot.slane %v925, 4
      %v931 = vshrl.u32 %v843, 16
      %v933 = vrot.slane %v931, 7
      %v934 = vshll.u32 %v843, 16
      %v936 = vor.u32 %v933, %v934
      %v937 = vsel %vm870, %v929, %v936
      %v938 = vrot.slane %v933, 4
      %v940 = vshrl.u32 %v844, 16
      %v942 = vrot.slane %v940, 7
      %v943 = vshll.u32 %v844, 16
      %v945 = vor.u32 %v942, %v943
      %v946 = vrot.slane %v942, 4
      %v948 = vshrl.u32 %v845, 16
      %v950 = vrot.slane %v948, 7
      %v951 = vshll.u32 %v845, 16
      %v953 = vor.u32 %v950, %v951
      %v954 = vsel %vm870, %v946, %v953
      %v955 = vrot.slane %v950, 4
      %v957 = vshrl.u32 %v846, 16
      %v959 = vrot.slane %v957, 7
      %v960 = vshll.u32 %v846, 16
      %v962 = vor.u32 %v959, %v960
      %v963 = vrot.slane %v959, 4
      %v965 = vshrl.u32 %v847, 16
      %v967 = vrot.slane %v965, 7
      %v968 = vshll.u32 %v847, 16
      %v970 = vor.u32 %v967, %v968
      %v971 = vsel %vm870, %v963, %v970
      %v972 = vrot.slane %v967, 4
      %v974 = vshrl.u32 %v848, 16
      %v976 = vrot.slane %v974, 7
      %v977 = vshll.u32 %v848, 16
      %v979 = vor.u32 %v976, %v977
      %v980 = vrot.slane %v976, 4
      %v982 = vshrl.u32 %v849, 16
      %v984 = vrot.slane %v982, 7
      %v985 = vshll.u32 %v849, 16
      %v987 = vor.u32 %v984, %v985
      %v988 = vsel %vm870, %v980, %v987
      %v989 = vrot.slane %v984, 4
      %v991 = vshrl.u32 %v850, 16
      %v993 = vrot.slane %v991, 7
      %v994 = vshll.u32 %v850, 16
      %v996 = vor.u32 %v993, %v994
      %v997 = vrot.slane %v993, 4
      %v999 = vshrl.u32 %v851, 16
      %v1001 = vrot.slane %v999, 7
      %v1002 = vshll.u32 %v851, 16
      %v1004 = vor.u32 %v1001, %v1002
      %v1005 = vsel %vm870, %v997, %v1004
      %v1006 = vrot.slane %v1001, 4
      %v1008 = vshrl.u32 %v852, 16
      %v1010 = vrot.slane %v1008, 7
      %v1011 = vshll.u32 %v852, 16
      %v1013 = vor.u32 %v1010, %v1011
      %v1014 = vrot.slane %v1010, 4
      %v1016 = vshrl.u32 %v853, 16
      %v1018 = vrot.slane %v1016, 7
      %v1019 = vshll.u32 %v853, 16
      %v1021 = vor.u32 %v1018, %v1019
      %v1022 = vsel %vm870, %v1014, %v1021
      %v1023 = vrot.slane %v1018, 4
      %v1025 = vshrl.u32 %v854, 16
      %v1027 = vrot.slane %v1025, 7
      %v1028 = vshll.u32 %v854, 16
      %v1030 = vor.u32 %v1027, %v1028
      %v1031 = vrot.slane %v1027, 4
      %v1033 = vshrl.u32 %v855, 16
      %v1035 = vrot.slane %v1033, 7
      %v1036 = vshll.u32 %v855, 16
      %v1038 = vor.u32 %v1035, %v1036
      %v1039 = vsel %vm870, %v1031, %v1038
      %v1040 = vrot.slane %v1035, 4
      %v1042 = vshrl.u32 %v856, 16
      %v1044 = vrot.slane %v1042, 7
      %v1045 = vshll.u32 %v856, 16
      %v1047 = vor.u32 %v1044, %v1045
      %v1048 = vrot.slane %v1044, 4
      %v1050 = vshrl.u32 %v857, 16
      %v1052 = vrot.slane %v1050, 7
      %v1053 = vshll.u32 %v857, 16
      %v1055 = vor.u32 %v1052, %v1053
      %v1056 = vsel %vm870, %v1048, %v1055
      %v1057 = vrot.slane %v1052, 4
      %v1059 = vshrl.u32 %v858, 16
      %v1061 = vrot.slane %v1059, 7
      %v1062 = vshll.u32 %v858, 16
      %v1064 = vor.u32 %v1061, %v1062
      %v1065 = vrot.slane %v1061, 4
      %v1067 = vshrl.u32 %v859, 16
      %v1069 = vrot.slane %v1067, 7
      %v1070 = vshll.u32 %v859, 16
      %v1072 = vor.u32 %v1069, %v1070
      %v1073 = vsel %vm870, %v1065, %v1072
      %v1074 = vrot.slane %v1069, 4
      %v1076 = vshrl.u32 %v860, 16
      %v1078 = vrot.slane %v1076, 7
      %v1079 = vshll.u32 %v860, 16
      %v1081 = vor.u32 %v1078, %v1079
      %v1082 = vrot.slane %v1078, 4
      %v1084 = vshrl.u32 %v861, 16
      %v1086 = vrot.slane %v1084, 7
      %v1087 = vshll.u32 %v861, 16
      %v1089 = vor.u32 %v1086, %v1087
      %v1090 = vsel %vm870, %v1082, %v1089
      %v1091 = vrot.slane %v1086, 4
      %v1093 = vshrl.u32 %v862, 16
      %v1095 = vrot.slane %v1093, 7
      %v1096 = vshll.u32 %v862, 16
      %v1098 = vor.u32 %v1095, %v1096
      %v1099 = vrot.slane %v1095, 4
      %v1101 = vshrl.u32 %v863, 16
      %v1103 = vrot.slane %v1101, 7
      %v1104 = vshll.u32 %v863, 16
      %v1106 = vor.u32 %v1103, %v1104
      %v1107 = vsel %vm870, %v1099, %v1106
      %v1108 = vrot.slane %v1103, 4
      %v1110 = vshrl.u32 %v864, 16
      %v1112 = vrot.slane %v1110, 7
      %v1113 = vshll.u32 %v864, 16
      %v1115 = vor.u32 %v1112, %v1113
      %v1116 = vrot.slane %v1112, 4
      %v1118 = vshrl.u32 %v865, 16
      %v1120 = vrot.slane %v1118, 7
      %v1121 = vshll.u32 %v865, 16
      %v1123 = vor.u32 %v1120, %v1121
      %v1124 = vsel %vm870, %v1116, %v1123
      %v1125 = vrot.slane %v1120, 4
      %v1127 = vshrl.u32 %v866, 16
      %v1129 = vrot.slane %v1127, 7
      %v1130 = vshll.u32 %v866, 16
      %v1132 = vor.u32 %v1129, %v1130
      %v1133 = vrot.slane %v1129, 4
      %v1135 = vshrl.u32 %v867, 16
      %v1137 = vrot.slane %v1135, 7
      %v1138 = vshll.u32 %v867, 16
      %v1140 = vor.u32 %v1137, %v1138
      %v1141 = vsel %vm870, %v1133, %v1140
      %v1142 = vrot.slane %v1137, 4
      %s1191 = scalar_lea.vmem [#allocation2], 12
      %vm1192 = vcmask 257024
      %vm1193 = vsmask.f32 7938
      %vm1194 = vmand %vm1192, %vm1193
      %v1195 = vld [vmem:[%s1191] sm:$0xf]
      %v1196 = vsel %vm1194, %v877, %v1195
      %1197 = vst [vmem:[%s1191] sm:$0xf] %v1196
      %vm1198 = vcmask 257024
      %1199 = vst.msk [vmem:[%s1191 + $0x4] sm:$0xf] %vm1198, %v886
      %vm1200 = vcmask 253952
      %vm1201 = vmand %vm1200, %vm868
      %v1202 = vld [vmem:[%s1191 + $0x8] sm:$0x1]
      %v1203 = vsel %vm1201, %v887, %v1202
      %1204 = vst [vmem:[%s1191 + $0x8] sm:$0x1] %v1203
      %v1205 = vld [vmem:[%s1191 + $0xc] sm:$0xf]
      %v1206 = vsel %vm1194, %v894, %v1205
      %1207 = vst [vmem:[%s1191 + $0xc] sm:$0xf] %v1206
      %1208 = vst.msk [vmem:[%s1191 + $0x10] sm:$0xf] %vm1198, %v903
      %v1209 = vld [vmem:[%s1191 + $0x14] sm:$0x1]
      %v1210 = vsel %vm1201, %v904, %v1209
      %1211 = vst [vmem:[%s1191 + $0x14] sm:$0x1] %v1210
      %v1212 = vld [vmem:[%s1191 + $0x18] sm:$0xf]
      %v1213 = vsel %vm1194, %v911, %v1212
      %1214 = vst [vmem:[%s1191 + $0x18] sm:$0xf] %v1213
      %1215 = vst.msk [vmem:[%s1191 + $0x1c] sm:$0xf] %vm1198, %v920
      %v1216 = vld [vmem:[%s1191 + $0x20] sm:$0x1]
      %v1217 = vsel %vm1201, %v921, %v1216
      %1218 = vst [vmem:[%s1191 + $0x20] sm:$0x1] %v1217
      %v1219 = vld [vmem:[%s1191 + $0x24] sm:$0xf]
      %v1220 = vsel %vm1194, %v928, %v1219
      %1221 = vst [vmem:[%s1191 + $0x24] sm:$0xf] %v1220
      %1222 = vst.msk [vmem:[%s1191 + $0x28] sm:$0xf] %vm1198, %v937
      %v1223 = vld [vmem:[%s1191 + $0x2c] sm:$0x1]
      %v1224 = vsel %vm1201, %v938, %v1223
      %1225 = vst [vmem:[%s1191 + $0x2c] sm:$0x1] %v1224
      %v1226 = vld [vmem:[%s1191 + $0x30] sm:$0xf]
      %v1227 = vsel %vm1194, %v945, %v1226
      %1228 = vst [vmem:[%s1191 + $0x30] sm:$0xf] %v1227
      %1229 = vst.msk [vmem:[%s1191 + $0x34] sm:$0xf] %vm1198, %v954
      %v1230 = vld [vmem:[%s1191 + $0x38] sm:$0x1]
      %v1231 = vsel %vm1201, %v955, %v1230
      %1232 = vst [vmem:[%s1191 + $0x38] sm:$0x1] %v1231
      %v1233 = vld [vmem:[%s1191 + $0x3c] sm:$0xf]
      %v1234 = vsel %vm1194, %v962, %v1233
      %1235 = vst [vmem:[%s1191 + $0x3c] sm:$0xf] %v1234
      %1236 = vst.msk [vmem:[%s1191 + $0x40] sm:$0xf] %vm1198, %v971
      %v1237 = vld [vmem:[%s1191 + $0x44] sm:$0x1]
      %v1238 = vsel %vm1201, %v972, %v1237
      %1239 = vst [vmem:[%s1191 + $0x44] sm:$0x1] %v1238
      %v1240 = vld [vmem:[%s1191 + $0x48] sm:$0xf]
      %v1241 = vsel %vm1194, %v979, %v1240
      %1242 = vst [vmem:[%s1191 + $0x48] sm:$0xf] %v1241
      %1243 = vst.msk [vmem:[%s1191 + $0x4c] sm:$0xf] %vm1198, %v988
      %v1244 = vld [vmem:[%s1191 + $0x50] sm:$0x1]
      %v1245 = vsel %vm1201, %v989, %v1244
      %1246 = vst [vmem:[%s1191 + $0x50] sm:$0x1] %v1245
      %v1247 = vld [vmem:[%s1191 + $0x54] sm:$0xf]
      %v1248 = vsel %vm1194, %v996, %v1247
      %1249 = vst [vmem:[%s1191 + $0x54] sm:$0xf] %v1248
      %1250 = vst.msk [vmem:[%s1191 + $0x58] sm:$0xf] %vm1198, %v1005
      %v1251 = vld [vmem:[%s1191 + $0x5c] sm:$0x1]
      %v1252 = vsel %vm1201, %v1006, %v1251
      %1253 = vst [vmem:[%s1191 + $0x5c] sm:$0x1] %v1252
      %v1254 = vld [vmem:[%s1191 + $0x60] sm:$0xf]
      %v1255 = vsel %vm1194, %v1013, %v1254
      %1256 = vst [vmem:[%s1191 + $0x60] sm:$0xf] %v1255
      %1257 = vst.msk [vmem:[%s1191 + $0x64] sm:$0xf] %vm1198, %v1022
      %v1258 = vld [vmem:[%s1191 + $0x68] sm:$0x1]
      %v1259 = vsel %vm1201, %v1023, %v1258
      %1260 = vst [vmem:[%s1191 + $0x68] sm:$0x1] %v1259
      %v1261 = vld [vmem:[%s1191 + $0x6c] sm:$0xf]
      %v1262 = vsel %vm1194, %v1030, %v1261
      %1263 = vst [vmem:[%s1191 + $0x6c] sm:$0xf] %v1262
      %1264 = vst.msk [vmem:[%s1191 + $0x70] sm:$0xf] %vm1198, %v1039
      %v1265 = vld [vmem:[%s1191 + $0x74] sm:$0x1]
      %v1266 = vsel %vm1201, %v1040, %v1265
      %1267 = vst [vmem:[%s1191 + $0x74] sm:$0x1] %v1266
      %v1268 = vld [vmem:[%s1191 + $0x78] sm:$0xf]
      %v1269 = vsel %vm1194, %v1047, %v1268
      %1270 = vst [vmem:[%s1191 + $0x78] sm:$0xf] %v1269
      %1271 = vst.msk [vmem:[%s1191 + $0x7c] sm:$0xf] %vm1198, %v1056
      %v1272 = vld [vmem:[%s1191 + $0x80] sm:$0x1]
      %v1273 = vsel %vm1201, %v1057, %v1272
      %1274 = vst [vmem:[%s1191 + $0x80] sm:$0x1] %v1273
      %v1275 = vld [vmem:[%s1191 + $0x84] sm:$0xf]
      %v1276 = vsel %vm1194, %v1064, %v1275
      %1277 = vst [vmem:[%s1191 + $0x84] sm:$0xf] %v1276
      %1278 = vst.msk [vmem:[%s1191 + $0x88] sm:$0xf] %vm1198, %v1073
      %v1279 = vld [vmem:[%s1191 + $0x8c] sm:$0x1]
      %v1280 = vsel %vm1201, %v1074, %v1279
      %1281 = vst [vmem:[%s1191 + $0x8c] sm:$0x1] %v1280
      %v1282 = vld [vmem:[%s1191 + $0x90] sm:$0xf]
      %v1283 = vsel %vm1194, %v1081, %v1282
      %1284 = vst [vmem:[%s1191 + $0x90] sm:$0xf] %v1283
      %1285 = vst.msk [vmem:[%s1191 + $0x94] sm:$0xf] %vm1198, %v1090
      %v1286 = vld [vmem:[%s1191 + $0x98] sm:$0x1]
      %v1287 = vsel %vm1201, %v1091, %v1286
      %1288 = vst [vmem:[%s1191 + $0x98] sm:$0x1] %v1287
      %v1289 = vld [vmem:[%s1191 + $0x9c] sm:$0xf]
      %v1290 = vsel %vm1194, %v1098, %v1289
      %1291 = vst [vmem:[%s1191 + $0x9c] sm:$0xf] %v1290
      %1292 = vst.msk [vmem:[%s1191 + $0xa0] sm:$0xf] %vm1198, %v1107
      %v1293 = vld [vmem:[%s1191 + $0xa4] sm:$0x1]
      %v1294 = vsel %vm1201, %v1108, %v1293
      %1295 = vst [vmem:[%s1191 + $0xa4] sm:$0x1] %v1294
      %v1296 = vld [vmem:[%s1191 + $0xa8] sm:$0xf]
      %v1297 = vsel %vm1194, %v1115, %v1296
      %1298 = vst [vmem:[%s1191 + $0xa8] sm:$0xf] %v1297
      %1299 = vst.msk [vmem:[%s1191 + $0xac] sm:$0xf] %vm1198, %v1124
      %v1300 = vld [vmem:[%s1191 + $0xb0] sm:$0x1]
      %v1301 = vsel %vm1201, %v1125, %v1300
      %1302 = vst [vmem:[%s1191 + $0xb0] sm:$0x1] %v1301
      %v1303 = vld [vmem:[%s1191 + $0xb4] sm:$0xf]
      %v1304 = vsel %vm1194, %v1132, %v1303
      %1305 = vst [vmem:[%s1191 + $0xb4] sm:$0xf] %v1304
      %1306 = vst.msk [vmem:[%s1191 + $0xb8] sm:$0xf] %vm1198, %v1141
      %v1307 = vld [vmem:[%s1191 + $0xbc] sm:$0x1]
      %v1308 = vsel %vm1201, %v1142, %v1307
      %1309 = vst [vmem:[%s1191 + $0xbc] sm:$0x1] %v1308
      %v1310 = vld [vmem:[%s727] sm:$0xf]
      %v1311 = vld [vmem:[%s727 + $0x4] sm:$0xf]
      %v1312 = vld [vmem:[%s747] sm:$0xf]
      %v1313 = vld [vmem:[%s747 + $0x4] sm:$0xf]
      %s1314 = scalar_select %p835, 1, 0
      %v1315 = vstv %s1314
      %vm1316 = vcmp.eq.s32.totalorder %v1315, 1
      %v1317 = vsel %vm1316, 0, %v1310
      %v1318 = vsel %vm1316, 0, %v1311
      %v1320 = vshrl.u32 %v1317, 16
      %v1322 = vrot.slane %v1320, 7
      %v1323 = vshll.u32 %v1317, 16
      %v1325 = vor.u32 %v1322, %v1323
      %v1326 = vrot.slane %v1322, 4
      %v1328 = vshrl.u32 %v1318, 16
      %v1330 = vrot.slane %v1328, 7
      %v1331 = vshll.u32 %v1318, 16
      %v1333 = vor.u32 %v1330, %v1331
      %v1334 = vsel %vm870, %v1326, %v1333
      %v1335 = vrot.slane %v1330, 4
      %v1339 = vld [vmem:[#allocation2] sm:$0xf]
      %v1340 = vsel %vm1194, %v1325, %v1339
      %1341 = vst [vmem:[#allocation2] sm:$0xf] %v1340
      %1342 = vst.msk [vmem:[#allocation2 + $0x4] sm:$0xf] %vm1198, %v1334
      %v1343 = vld [vmem:[#allocation2 + $0x8] sm:$0x1]
      %v1344 = vsel %vm1201, %v1335, %v1343
      %1345 = vst [vmem:[#allocation2 + $0x8] sm:$0x1] %v1344
      %v1346 = vsel %vm1316, 0, %v1312
      %v1347 = vsel %vm1316, 0, %v1313
      %v1349 = vshrl.u32 %v1346, 16
      %v1351 = vrot.slane %v1349, 7
      %v1352 = vshll.u32 %v1346, 16
      %v1354 = vor.u32 %v1351, %v1352
      %v1355 = vrot.slane %v1351, 4
      %v1357 = vshrl.u32 %v1347, 16
      %v1359 = vrot.slane %v1357, 7
      %v1360 = vshll.u32 %v1347, 16
      %v1362 = vor.u32 %v1359, %v1360
      %v1363 = vsel %vm870, %v1355, %v1362
      %v1364 = vrot.slane %v1359, 4
      %s1368 = scalar_lea.vmem [#allocation2], 204
      %v1369 = vld [vmem:[%s1368] sm:$0xf]
      %v1370 = vsel %vm1194, %v1354, %v1369
      %1371 = vst [vmem:[%s1368] sm:$0xf] %v1370
      %1372 = vst.msk [vmem:[%s1368 + $0x4] sm:$0xf] %vm1198, %v1363
      %v1373 = vld [vmem:[%s1368 + $0x8] sm:$0x1]
      %v1374 = vsel %vm1201, %v1364, %v1373
      %1375 = vst [vmem:[%s1368 + $0x8] sm:$0x1] %v1374
      %v1376 = vld [vmem:[#allocation2] sm:$0x1]
      %v1377 = vsel %vm1201, 0, %v1376
      %1378 = vst [vmem:[#allocation2] sm:$0x1] %v1377
      %v1379 = vld [vmem:[#allocation2 + $0xc] sm:$0x1]
      %v1380 = vsel %vm1201, 0, %v1379
      %1381 = vst [vmem:[#allocation2 + $0xc] sm:$0x1] %v1380
      %v1382 = vld [vmem:[#allocation2 + $0x18] sm:$0x1]
      %v1383 = vsel %vm1201, 0, %v1382
      %1384 = vst [vmem:[#allocation2 + $0x18] sm:$0x1] %v1383
      %v1385 = vld [vmem:[#allocation2 + $0x24] sm:$0x1]
      %v1386 = vsel %vm1201, 0, %v1385
      %1387 = vst [vmem:[#allocation2 + $0x24] sm:$0x1] %v1386
      %v1388 = vld [vmem:[#allocation2 + $0x30] sm:$0x1]
      %v1389 = vsel %vm1201, 0, %v1388
      %1390 = vst [vmem:[#allocation2 + $0x30] sm:$0x1] %v1389
      %v1391 = vld [vmem:[#allocation2 + $0x3c] sm:$0x1]
      %v1392 = vsel %vm1201, 0, %v1391
      %1393 = vst [vmem:[#allocation2 + $0x3c] sm:$0x1] %v1392
      %v1394 = vld [vmem:[#allocation2 + $0x48] sm:$0x1]
      %v1395 = vsel %vm1201, 0, %v1394
      %1396 = vst [vmem:[#allocation2 + $0x48] sm:$0x1] %v1395
      %v1397 = vld [vmem:[#allocation2 + $0x54] sm:$0x1]
      %v1398 = vsel %vm1201, 0, %v1397
      %1399 = vst [vmem:[#allocation2 + $0x54] sm:$0x1] %v1398
      %v1400 = vld [vmem:[#allocation2 + $0x60] sm:$0x1]
      %v1401 = vsel %vm1201, 0, %v1400
      %1402 = vst [vmem:[#allocation2 + $0x60] sm:$0x1] %v1401
      %v1403 = vld [vmem:[#allocation2 + $0x6c] sm:$0x1]
      %v1404 = vsel %vm1201, 0, %v1403
      %1405 = vst [vmem:[#allocation2 + $0x6c] sm:$0x1] %v1404
      %v1406 = vld [vmem:[#allocation2 + $0x78] sm:$0x1]
      %v1407 = vsel %vm1201, 0, %v1406
      %1408 = vst [vmem:[#allocation2 + $0x78] sm:$0x1] %v1407
      %v1409 = vld [vmem:[#allocation2 + $0x84] sm:$0x1]
      %v1410 = vsel %vm1201, 0, %v1409
      %1411 = vst [vmem:[#allocation2 + $0x84] sm:$0x1] %v1410
      %v1412 = vld [vmem:[#allocation2 + $0x90] sm:$0x1]
      %v1413 = vsel %vm1201, 0, %v1412
      %1414 = vst [vmem:[#allocation2 + $0x90] sm:$0x1] %v1413
      %v1415 = vld [vmem:[#allocation2 + $0x9c] sm:$0x1]
      %v1416 = vsel %vm1201, 0, %v1415
      %1417 = vst [vmem:[#allocation2 + $0x9c] sm:$0x1] %v1416
      %v1418 = vld [vmem:[#allocation2 + $0xa8] sm:$0x1]
      %v1419 = vsel %vm1201, 0, %v1418
      %1420 = vst [vmem:[#allocation2 + $0xa8] sm:$0x1] %v1419
      %v1421 = vld [vmem:[#allocation2 + $0xb4] sm:$0x1]
      %v1422 = vsel %vm1201, 0, %v1421
      %1423 = vst [vmem:[#allocation2 + $0xb4] sm:$0x1] %v1422
      %v1424 = vld [vmem:[#allocation2 + $0xc0] sm:$0x1]
      %v1425 = vsel %vm1201, 0, %v1424
      %1426 = vst [vmem:[#allocation2 + $0xc0] sm:$0x1] %v1425
      %v1427 = vld [vmem:[#allocation2 + $0xcc] sm:$0x1]
      %v1428 = vsel %vm1201, 0, %v1427
      %1429 = vst [vmem:[#allocation2 + $0xcc] sm:$0x1] %v1428
      %v1430 = vld [vmem:[#allocation2 + $0x8] sm:$0xf]
      %v1431 = vsel %vm1194, 0, %v1430
      %1432 = vst [vmem:[#allocation2 + $0x8] sm:$0xf] %v1431
      %v1433 = vld [vmem:[#allocation2 + $0x14] sm:$0xf]
      %v1434 = vsel %vm1194, 0, %v1433
      %1435 = vst [vmem:[#allocation2 + $0x14] sm:$0xf] %v1434
      %v1436 = vld [vmem:[#allocation2 + $0x20] sm:$0xf]
      %v1437 = vsel %vm1194, 0, %v1436
      %1438 = vst [vmem:[#allocation2 + $0x20] sm:$0xf] %v1437
      %v1439 = vld [vmem:[#allocation2 + $0x2c] sm:$0xf]
      %v1440 = vsel %vm1194, 0, %v1439
      %1441 = vst [vmem:[#allocation2 + $0x2c] sm:$0xf] %v1440
      %v1442 = vld [vmem:[#allocation2 + $0x38] sm:$0xf]
      %v1443 = vsel %vm1194, 0, %v1442
      %1444 = vst [vmem:[#allocation2 + $0x38] sm:$0xf] %v1443
      %v1445 = vld [vmem:[#allocation2 + $0x44] sm:$0xf]
      %v1446 = vsel %vm1194, 0, %v1445
      %1447 = vst [vmem:[#allocation2 + $0x44] sm:$0xf] %v1446
      %v1448 = vld [vmem:[#allocation2 + $0x50] sm:$0xf]
      %v1449 = vsel %vm1194, 0, %v1448
      %1450 = vst [vmem:[#allocation2 + $0x50] sm:$0xf] %v1449
      %v1451 = vld [vmem:[#allocation2 + $0x5c] sm:$0xf]
      %v1452 = vsel %vm1194, 0, %v1451
      %1453 = vst [vmem:[#allocation2 + $0x5c] sm:$0xf] %v1452
      %v1454 = vld [vmem:[#allocation2 + $0x68] sm:$0xf]
      %v1455 = vsel %vm1194, 0, %v1454
      %1456 = vst [vmem:[#allocation2 + $0x68] sm:$0xf] %v1455
      %v1457 = vld [vmem:[#allocation2 + $0x74] sm:$0xf]
      %v1458 = vsel %vm1194, 0, %v1457
      %1459 = vst [vmem:[#allocation2 + $0x74] sm:$0xf] %v1458
      %v1460 = vld [vmem:[#allocation2 + $0x80] sm:$0xf]
      %v1461 = vsel %vm1194, 0, %v1460
      %1462 = vst [vmem:[#allocation2 + $0x80] sm:$0xf] %v1461
      %v1463 = vld [vmem:[#allocation2 + $0x8c] sm:$0xf]
      %v1464 = vsel %vm1194, 0, %v1463
      %1465 = vst [vmem:[#allocation2 + $0x8c] sm:$0xf] %v1464
      %v1466 = vld [vmem:[#allocation2 + $0x98] sm:$0xf]
      %v1467 = vsel %vm1194, 0, %v1466
      %1468 = vst [vmem:[#allocation2 + $0x98] sm:$0xf] %v1467
      %v1469 = vld [vmem:[#allocation2 + $0xa4] sm:$0xf]
      %v1470 = vsel %vm1194, 0, %v1469
      %1471 = vst [vmem:[#allocation2 + $0xa4] sm:$0xf] %v1470
      %v1472 = vld [vmem:[#allocation2 + $0xb0] sm:$0xf]
      %v1473 = vsel %vm1194, 0, %v1472
      %1474 = vst [vmem:[#allocation2 + $0xb0] sm:$0xf] %v1473
      %v1475 = vld [vmem:[#allocation2 + $0xbc] sm:$0xf]
      %v1476 = vsel %vm1194, 0, %v1475
      %1477 = vst [vmem:[#allocation2 + $0xbc] sm:$0xf] %v1476
      %v1478 = vld [vmem:[#allocation2 + $0xc8] sm:$0xf]
      %v1479 = vsel %vm1194, 0, %v1478
      %1480 = vst [vmem:[#allocation2 + $0xc8] sm:$0xf] %v1479
      %v1481 = vld [vmem:[#allocation2 + $0xd4] sm:$0xf]
      %v1482 = vsel %vm1194, 0, %v1481
      %1483 = vst [vmem:[#allocation2 + $0xd4] sm:$0xf] %v1482
      %v1484 = vld [vmem:[%s764] sm:$0xf]
      %v1485 = vld [vmem:[%s764 + $0x4] sm:$0xf]
      %v1486 = vld [vmem:[%s764 + $0x8] sm:$0xf]
      %v1487 = vld [vmem:[%s764 + $0xc] sm:$0xf]
      %v1488 = vld [vmem:[%s764 + $0x10] sm:$0xf]
      %v1489 = vld [vmem:[%s764 + $0x14] sm:$0xf]
      %v1490 = vld [vmem:[%s764 + $0x18] sm:$0xf]
      %v1491 = vld [vmem:[%s764 + $0x1c] sm:$0xf]
      %v1492 = vld [vmem:[%s764 + $0x20] sm:$0xf]
      %v1493 = vld [vmem:[%s764 + $0x24] sm:$0xf]
      %v1494 = vld [vmem:[%s764 + $0x28] sm:$0xf]
      %v1495 = vld [vmem:[%s764 + $0x2c] sm:$0xf]
      %v1496 = vld [vmem:[%s764 + $0x30] sm:$0xf]
      %v1497 = vld [vmem:[%s764 + $0x34] sm:$0xf]
      %v1498 = vld [vmem:[%s764 + $0x38] sm:$0xf]
      %v1499 = vld [vmem:[%s764 + $0x3c] sm:$0xf]
      %v1500 = vld [vmem:[%s764 + $0x40] sm:$0xf]
      %v1501 = vld [vmem:[%s764 + $0x44] sm:$0xf]
      %v1502 = vld [vmem:[%s764 + $0x48] sm:$0xf]
      %v1503 = vld [vmem:[%s764 + $0x4c] sm:$0xf]
      %v1504 = vld [vmem:[%s764 + $0x50] sm:$0xf]
      %v1505 = vld [vmem:[%s764 + $0x54] sm:$0xf]
      %v1506 = vld [vmem:[%s764 + $0x58] sm:$0xf]
      %v1507 = vld [vmem:[%s764 + $0x5c] sm:$0xf]
      %v1508 = vld [vmem:[%s764 + $0x60] sm:$0xf]
      %v1509 = vld [vmem:[%s764 + $0x64] sm:$0xf]
      %v1510 = vld [vmem:[%s764 + $0x68] sm:$0xf]
      %v1511 = vld [vmem:[%s764 + $0x6c] sm:$0xf]
      %v1512 = vld [vmem:[%s764 + $0x70] sm:$0xf]
      %v1513 = vld [vmem:[%s764 + $0x74] sm:$0xf]
      %v1514 = vld [vmem:[%s764 + $0x78] sm:$0xf]
      %v1515 = vld [vmem:[%s764 + $0x7c] sm:$0xf]
      %v1517 = vshrl.u32 %v1484, 16
      %v1519 = vrot.slane %v1517, 7
      %v1520 = vshll.u32 %v1484, 16
      %v1522 = vor.u32 %v1519, %v1520
      %v1523 = vrot.slane %v1519, 4
      %v1525 = vshrl.u32 %v1485, 16
      %v1527 = vrot.slane %v1525, 7
      %v1528 = vshll.u32 %v1485, 16
      %v1530 = vor.u32 %v1527, %v1528
      %v1531 = vsel %vm870, %v1523, %v1530
      %v1532 = vrot.slane %v1527, 4
      %v1534 = vshrl.u32 %v1486, 16
      %v1536 = vrot.slane %v1534, 7
      %v1537 = vshll.u32 %v1486, 16
      %v1539 = vor.u32 %v1536, %v1537
      %v1540 = vrot.slane %v1536, 4
      %v1542 = vshrl.u32 %v1487, 16
      %v1544 = vrot.slane %v1542, 7
      %v1545 = vshll.u32 %v1487, 16
      %v1547 = vor.u32 %v1544, %v1545
      %v1548 = vsel %vm870, %v1540, %v1547
      %v1549 = vrot.slane %v1544, 4
      %v1551 = vshrl.u32 %v1488, 16
      %v1553 = vrot.slane %v1551, 7
      %v1554 = vshll.u32 %v1488, 16
      %v1556 = vor.u32 %v1553, %v1554
      %v1557 = vrot.slane %v1553, 4
      %v1559 = vshrl.u32 %v1489, 16
      %v1561 = vrot.slane %v1559, 7
      %v1562 = vshll.u32 %v1489, 16
      %v1564 = vor.u32 %v1561, %v1562
      %v1565 = vsel %vm870, %v1557, %v1564
      %v1566 = vrot.slane %v1561, 4
      %v1568 = vshrl.u32 %v1490, 16
      %v1570 = vrot.slane %v1568, 7
      %v1571 = vshll.u32 %v1490, 16
      %v1573 = vor.u32 %v1570, %v1571
      %v1574 = vrot.slane %v1570, 4
      %v1576 = vshrl.u32 %v1491, 16
      %v1578 = vrot.slane %v1576, 7
      %v1579 = vshll.u32 %v1491, 16
      %v1581 = vor.u32 %v1578, %v1579
      %v1582 = vsel %vm870, %v1574, %v1581
      %v1583 = vrot.slane %v1578, 4
      %v1585 = vshrl.u32 %v1492, 16
      %v1587 = vrot.slane %v1585, 7
      %v1588 = vshll.u32 %v1492, 16
      %v1590 = vor.u32 %v1587, %v1588
      %v1591 = vrot.slane %v1587, 4
      %v1593 = vshrl.u32 %v1493, 16
      %v1595 = vrot.slane %v1593, 7
      %v1596 = vshll.u32 %v1493, 16
      %v1598 = vor.u32 %v1595, %v1596
      %v1599 = vsel %vm870, %v1591, %v1598
      %v1600 = vrot.slane %v1595, 4
      %v1602 = vshrl.u32 %v1494, 16
      %v1604 = vrot.slane %v1602, 7
      %v1605 = vshll.u32 %v1494, 16
      %v1607 = vor.u32 %v1604, %v1605
      %v1608 = vrot.slane %v1604, 4
      %v1610 = vshrl.u32 %v1495, 16
      %v1612 = vrot.slane %v1610, 7
      %v1613 = vshll.u32 %v1495, 16
      %v1615 = vor.u32 %v1612, %v1613
      %v1616 = vsel %vm870, %v1608, %v1615
      %v1617 = vrot.slane %v1612, 4
      %v1619 = vshrl.u32 %v1496, 16
      %v1621 = vrot.slane %v1619, 7
      %v1622 = vshll.u32 %v1496, 16
      %v1624 = vor.u32 %v1621, %v1622
      %v1625 = vrot.slane %v1621, 4
      %v1627 = vshrl.u32 %v1497, 16
      %v1629 = vrot.slane %v1627, 7
      %v1630 = vshll.u32 %v1497, 16
      %v1632 = vor.u32 %v1629, %v1630
      %v1633 = vsel %vm870, %v1625, %v1632
      %v1634 = vrot.slane %v1629, 4
      %v1636 = vshrl.u32 %v1498, 16
      %v1638 = vrot.slane %v1636, 7
      %v1639 = vshll.u32 %v1498, 16
      %v1641 = vor.u32 %v1638, %v1639
      %v1642 = vrot.slane %v1638, 4
      %v1644 = vshrl.u32 %v1499, 16
      %v1646 = vrot.slane %v1644, 7
      %v1647 = vshll.u32 %v1499, 16
      %v1649 = vor.u32 %v1646, %v1647
      %v1650 = vsel %vm870, %v1642, %v1649
      %v1651 = vrot.slane %v1646, 4
      %v1653 = vshrl.u32 %v1500, 16
      %v1655 = vrot.slane %v1653, 7
      %v1656 = vshll.u32 %v1500, 16
      %v1658 = vor.u32 %v1655, %v1656
      %v1659 = vrot.slane %v1655, 4
      %v1661 = vshrl.u32 %v1501, 16
      %v1663 = vrot.slane %v1661, 7
      %v1664 = vshll.u32 %v1501, 16
      %v1666 = vor.u32 %v1663, %v1664
      %v1667 = vsel %vm870, %v1659, %v1666
      %v1668 = vrot.slane %v1663, 4
      %v1670 = vshrl.u32 %v1502, 16
      %v1672 = vrot.slane %v1670, 7
      %v1673 = vshll.u32 %v1502, 16
      %v1675 = vor.u32 %v1672, %v1673
      %v1676 = vrot.slane %v1672, 4
      %v1678 = vshrl.u32 %v1503, 16
      %v1680 = vrot.slane %v1678, 7
      %v1681 = vshll.u32 %v1503, 16
      %v1683 = vor.u32 %v1680, %v1681
      %v1684 = vsel %vm870, %v1676, %v1683
      %v1685 = vrot.slane %v1680, 4
      %v1687 = vshrl.u32 %v1504, 16
      %v1689 = vrot.slane %v1687, 7
      %v1690 = vshll.u32 %v1504, 16
      %v1692 = vor.u32 %v1689, %v1690
      %v1693 = vrot.slane %v1689, 4
      %v1695 = vshrl.u32 %v1505, 16
      %v1697 = vrot.slane %v1695, 7
      %v1698 = vshll.u32 %v1505, 16
      %v1700 = vor.u32 %v1697, %v1698
      %v1701 = vsel %vm870, %v1693, %v1700
      %v1702 = vrot.slane %v1697, 4
      %v1704 = vshrl.u32 %v1506, 16
      %v1706 = vrot.slane %v1704, 7
      %v1707 = vshll.u32 %v1506, 16
      %v1709 = vor.u32 %v1706, %v1707
      %v1710 = vrot.slane %v1706, 4
      %v1712 = vshrl.u32 %v1507, 16
      %v1714 = vrot.slane %v1712, 7
      %v1715 = vshll.u32 %v1507, 16
      %v1717 = vor.u32 %v1714, %v1715
      %v1718 = vsel %vm870, %v1710, %v1717
      %v1719 = vrot.slane %v1714, 4
      %v1721 = vshrl.u32 %v1508, 16
      %v1723 = vrot.slane %v1721, 7
      %v1724 = vshll.u32 %v1508, 16
      %v1726 = vor.u32 %v1723, %v1724
      %v1727 = vrot.slane %v1723, 4
      %v1729 = vshrl.u32 %v1509, 16
      %v1731 = vrot.slane %v1729, 7
      %v1732 = vshll.u32 %v1509, 16
      %v1734 = vor.u32 %v1731, %v1732
      %v1735 = vsel %vm870, %v1727, %v1734
      %v1736 = vrot.slane %v1731, 4
      %v1738 = vshrl.u32 %v1510, 16
      %v1740 = vrot.slane %v1738, 7
      %v1741 = vshll.u32 %v1510, 16
      %v1743 = vor.u32 %v1740, %v1741
      %v1744 = vrot.slane %v1740, 4
      %v1746 = vshrl.u32 %v1511, 16
      %v1748 = vrot.slane %v1746, 7
      %v1749 = vshll.u32 %v1511, 16
      %v1751 = vor.u32 %v1748, %v1749
      %v1752 = vsel %vm870, %v1744, %v1751
      %v1753 = vrot.slane %v1748, 4
      %v1755 = vshrl.u32 %v1512, 16
      %v1757 = vrot.slane %v1755, 7
      %v1758 = vshll.u32 %v1512, 16
      %v1760 = vor.u32 %v1757, %v1758
      %v1761 = vrot.slane %v1757, 4
      %v1763 = vshrl.u32 %v1513, 16
      %v1765 = vrot.slane %v1763, 7
      %v1766 = vshll.u32 %v1513, 16
      %v1768 = vor.u32 %v1765, %v1766
      %v1769 = vsel %vm870, %v1761, %v1768
      %v1770 = vrot.slane %v1765, 4
      %v1772 = vshrl.u32 %v1514, 16
      %v1774 = vrot.slane %v1772, 7
      %v1775 = vshll.u32 %v1514, 16
      %v1777 = vor.u32 %v1774, %v1775
      %v1778 = vrot.slane %v1774, 4
      %v1780 = vshrl.u32 %v1515, 16
      %v1782 = vrot.slane %v1780, 7
      %v1783 = vshll.u32 %v1515, 16
      %v1785 = vor.u32 %v1782, %v1783
      %v1786 = vsel %vm870, %v1778, %v1785
      %v1787 = vrot.slane %v1782, 4
      %s1836 = scalar_lea.vmem [#allocation3], 12
      %v1837 = vld [vmem:[%s1836] sm:$0xf]
      %v1838 = vsel %vm1194, %v1522, %v1837
      %1839 = vst [vmem:[%s1836] sm:$0xf] %v1838
      %1840 = vst.msk [vmem:[%s1836 + $0x4] sm:$0xf] %vm1198, %v1531
      %v1841 = vld [vmem:[%s1836 + $0x8] sm:$0x1]
      %v1842 = vsel %vm1201, %v1532, %v1841
      %1843 = vst [vmem:[%s1836 + $0x8] sm:$0x1] %v1842
      %v1844 = vld [vmem:[%s1836 + $0xc] sm:$0xf]
      %v1845 = vsel %vm1194, %v1539, %v1844
      %1846 = vst [vmem:[%s1836 + $0xc] sm:$0xf] %v1845
      %1847 = vst.msk [vmem:[%s1836 + $0x10] sm:$0xf] %vm1198, %v1548
      %v1848 = vld [vmem:[%s1836 + $0x14] sm:$0x1]
      %v1849 = vsel %vm1201, %v1549, %v1848
      %1850 = vst [vmem:[%s1836 + $0x14] sm:$0x1] %v1849
      %v1851 = vld [vmem:[%s1836 + $0x18] sm:$0xf]
      %v1852 = vsel %vm1194, %v1556, %v1851
      %1853 = vst [vmem:[%s1836 + $0x18] sm:$0xf] %v1852
      %1854 = vst.msk [vmem:[%s1836 + $0x1c] sm:$0xf] %vm1198, %v1565
      %v1855 = vld [vmem:[%s1836 + $0x20] sm:$0x1]
      %v1856 = vsel %vm1201, %v1566, %v1855
      %1857 = vst [vmem:[%s1836 + $0x20] sm:$0x1] %v1856
      %v1858 = vld [vmem:[%s1836 + $0x24] sm:$0xf]
      %v1859 = vsel %vm1194, %v1573, %v1858
      %1860 = vst [vmem:[%s1836 + $0x24] sm:$0xf] %v1859
      %1861 = vst.msk [vmem:[%s1836 + $0x28] sm:$0xf] %vm1198, %v1582
      %v1862 = vld [vmem:[%s1836 + $0x2c] sm:$0x1]
      %v1863 = vsel %vm1201, %v1583, %v1862
      %1864 = vst [vmem:[%s1836 + $0x2c] sm:$0x1] %v1863
      %v1865 = vld [vmem:[%s1836 + $0x30] sm:$0xf]
      %v1866 = vsel %vm1194, %v1590, %v1865
      %1867 = vst [vmem:[%s1836 + $0x30] sm:$0xf] %v1866
      %1868 = vst.msk [vmem:[%s1836 + $0x34] sm:$0xf] %vm1198, %v1599
      %v1869 = vld [vmem:[%s1836 + $0x38] sm:$0x1]
      %v1870 = vsel %vm1201, %v1600, %v1869
      %1871 = vst [vmem:[%s1836 + $0x38] sm:$0x1] %v1870
      %v1872 = vld [vmem:[%s1836 + $0x3c] sm:$0xf]
      %v1873 = vsel %vm1194, %v1607, %v1872
      %1874 = vst [vmem:[%s1836 + $0x3c] sm:$0xf] %v1873
      %1875 = vst.msk [vmem:[%s1836 + $0x40] sm:$0xf] %vm1198, %v1616
      %v1876 = vld [vmem:[%s1836 + $0x44] sm:$0x1]
      %v1877 = vsel %vm1201, %v1617, %v1876
      %1878 = vst [vmem:[%s1836 + $0x44] sm:$0x1] %v1877
      %v1879 = vld [vmem:[%s1836 + $0x48] sm:$0xf]
      %v1880 = vsel %vm1194, %v1624, %v1879
      %1881 = vst [vmem:[%s1836 + $0x48] sm:$0xf] %v1880
      %1882 = vst.msk [vmem:[%s1836 + $0x4c] sm:$0xf] %vm1198, %v1633
      %v1883 = vld [vmem:[%s1836 + $0x50] sm:$0x1]
      %v1884 = vsel %vm1201, %v1634, %v1883
      %1885 = vst [vmem:[%s1836 + $0x50] sm:$0x1] %v1884
      %v1886 = vld [vmem:[%s1836 + $0x54] sm:$0xf]
      %v1887 = vsel %vm1194, %v1641, %v1886
      %1888 = vst [vmem:[%s1836 + $0x54] sm:$0xf] %v1887
      %1889 = vst.msk [vmem:[%s1836 + $0x58] sm:$0xf] %vm1198, %v1650
      %v1890 = vld [vmem:[%s1836 + $0x5c] sm:$0x1]
      %v1891 = vsel %vm1201, %v1651, %v1890
      %1892 = vst [vmem:[%s1836 + $0x5c] sm:$0x1] %v1891
      %v1893 = vld [vmem:[%s1836 + $0x60] sm:$0xf]
      %v1894 = vsel %vm1194, %v1658, %v1893
      %1895 = vst [vmem:[%s1836 + $0x60] sm:$0xf] %v1894
      %1896 = vst.msk [vmem:[%s1836 + $0x64] sm:$0xf] %vm1198, %v1667
      %v1897 = vld [vmem:[%s1836 + $0x68] sm:$0x1]
      %v1898 = vsel %vm1201, %v1668, %v1897
      %1899 = vst [vmem:[%s1836 + $0x68] sm:$0x1] %v1898
      %v1900 = vld [vmem:[%s1836 + $0x6c] sm:$0xf]
      %v1901 = vsel %vm1194, %v1675, %v1900
      %1902 = vst [vmem:[%s1836 + $0x6c] sm:$0xf] %v1901
      %1903 = vst.msk [vmem:[%s1836 + $0x70] sm:$0xf] %vm1198, %v1684
      %v1904 = vld [vmem:[%s1836 + $0x74] sm:$0x1]
      %v1905 = vsel %vm1201, %v1685, %v1904
      %1906 = vst [vmem:[%s1836 + $0x74] sm:$0x1] %v1905
      %v1907 = vld [vmem:[%s1836 + $0x78] sm:$0xf]
      %v1908 = vsel %vm1194, %v1692, %v1907
      %1909 = vst [vmem:[%s1836 + $0x78] sm:$0xf] %v1908
      %1910 = vst.msk [vmem:[%s1836 + $0x7c] sm:$0xf] %vm1198, %v1701
      %v1911 = vld [vmem:[%s1836 + $0x80] sm:$0x1]
      %v1912 = vsel %vm1201, %v1702, %v1911
      %1913 = vst [vmem:[%s1836 + $0x80] sm:$0x1] %v1912
      %v1914 = vld [vmem:[%s1836 + $0x84] sm:$0xf]
      %v1915 = vsel %vm1194, %v1709, %v1914
      %1916 = vst [vmem:[%s1836 + $0x84] sm:$0xf] %v1915
      %1917 = vst.msk [vmem:[%s1836 + $0x88] sm:$0xf] %vm1198, %v1718
      %v1918 = vld [vmem:[%s1836 + $0x8c] sm:$0x1]
      %v1919 = vsel %vm1201, %v1719, %v1918
      %1920 = vst [vmem:[%s1836 + $0x8c] sm:$0x1] %v1919
      %v1921 = vld [vmem:[%s1836 + $0x90] sm:$0xf]
      %v1922 = vsel %vm1194, %v1726, %v1921
      %1923 = vst [vmem:[%s1836 + $0x90] sm:$0xf] %v1922
      %1924 = vst.msk [vmem:[%s1836 + $0x94] sm:$0xf] %vm1198, %v1735
      %v1925 = vld [vmem:[%s1836 + $0x98] sm:$0x1]
      %v1926 = vsel %vm1201, %v1736, %v1925
      %1927 = vst [vmem:[%s1836 + $0x98] sm:$0x1] %v1926
      %v1928 = vld [vmem:[%s1836 + $0x9c] sm:$0xf]
      %v1929 = vsel %vm1194, %v1743, %v1928
      %1930 = vst [vmem:[%s1836 + $0x9c] sm:$0xf] %v1929
      %1931 = vst.msk [vmem:[%s1836 + $0xa0] sm:$0xf] %vm1198, %v1752
      %v1932 = vld [vmem:[%s1836 + $0xa4] sm:$0x1]
      %v1933 = vsel %vm1201, %v1753, %v1932
      %1934 = vst [vmem:[%s1836 + $0xa4] sm:$0x1] %v1933
      %v1935 = vld [vmem:[%s1836 + $0xa8] sm:$0xf]
      %v1936 = vsel %vm1194, %v1760, %v1935
      %1937 = vst [vmem:[%s1836 + $0xa8] sm:$0xf] %v1936
      %1938 = vst.msk [vmem:[%s1836 + $0xac] sm:$0xf] %vm1198, %v1769
      %v1939 = vld [vmem:[%s1836 + $0xb0] sm:$0x1]
      %v1940 = vsel %vm1201, %v1770, %v1939
      %1941 = vst [vmem:[%s1836 + $0xb0] sm:$0x1] %v1940
      %v1942 = vld [vmem:[%s1836 + $0xb4] sm:$0xf]
      %v1943 = vsel %vm1194, %v1777, %v1942
      %1944 = vst [vmem:[%s1836 + $0xb4] sm:$0xf] %v1943
      %1945 = vst.msk [vmem:[%s1836 + $0xb8] sm:$0xf] %vm1198, %v1786
      %v1946 = vld [vmem:[%s1836 + $0xbc] sm:$0x1]
      %v1947 = vsel %vm1201, %v1787, %v1946
      %1948 = vst [vmem:[%s1836 + $0xbc] sm:$0x1] %v1947
      %v1949 = vld [vmem:[%s781] sm:$0xf]
      %v1950 = vld [vmem:[%s781 + $0x4] sm:$0xf]
      %v1951 = vld [vmem:[%s801] sm:$0xf]
      %v1952 = vld [vmem:[%s801 + $0x4] sm:$0xf]
      %v1953 = vsel %vm1316, 0, %v1949
      %v1954 = vsel %vm1316, 0, %v1950
      %v1956 = vshrl.u32 %v1953, 16
      %v1958 = vrot.slane %v1956, 7
      %v1959 = vshll.u32 %v1953, 16
      %v1961 = vor.u32 %v1958, %v1959
      %v1962 = vrot.slane %v1958, 4
      %v1964 = vshrl.u32 %v1954, 16
      %v1966 = vrot.slane %v1964, 7
      %v1967 = vshll.u32 %v1954, 16
      %v1969 = vor.u32 %v1966, %v1967
      %v1970 = vsel %vm870, %v1962, %v1969
      %v1971 = vrot.slane %v1966, 4
      %v1975 = vld [vmem:[#allocation3] sm:$0xf]
      %v1976 = vsel %vm1194, %v1961, %v1975
      %1977 = vst [vmem:[#allocation3] sm:$0xf] %v1976
      %1978 = vst.msk [vmem:[#allocation3 + $0x4] sm:$0xf] %vm1198, %v1970
      %v1979 = vld [vmem:[#allocation3 + $0x8] sm:$0x1]
      %v1980 = vsel %vm1201, %v1971, %v1979
      %1981 = vst [vmem:[#allocation3 + $0x8] sm:$0x1] %v1980
      %v1982 = vsel %vm1316, 0, %v1951
      %v1983 = vsel %vm1316, 0, %v1952
      %v1985 = vshrl.u32 %v1982, 16
      %v1987 = vrot.slane %v1985, 7
      %v1988 = vshll.u32 %v1982, 16
      %v1990 = vor.u32 %v1987, %v1988
      %v1991 = vrot.slane %v1987, 4
      %v1993 = vshrl.u32 %v1983, 16
      %v1995 = vrot.slane %v1993, 7
      %v1996 = vshll.u32 %v1983, 16
      %v1998 = vor.u32 %v1995, %v1996
      %v1999 = vsel %vm870, %v1991, %v1998
      %v2000 = vrot.slane %v1995, 4
      %s2004 = scalar_lea.vmem [#allocation3], 204
      %v2005 = vld [vmem:[%s2004] sm:$0xf]
      %v2006 = vsel %vm1194, %v1990, %v2005
      %2007 = vst [vmem:[%s2004] sm:$0xf] %v2006
      %2008 = vst.msk [vmem:[%s2004 + $0x4] sm:$0xf] %vm1198, %v1999
      %v2009 = vld [vmem:[%s2004 + $0x8] sm:$0x1]
      %v2010 = vsel %vm1201, %v2000, %v2009
      %2011 = vst [vmem:[%s2004 + $0x8] sm:$0x1] %v2010
      %v2012 = vld [vmem:[#allocation3] sm:$0x1]
      %v2013 = vsel %vm1201, 0, %v2012
      %2014 = vst [vmem:[#allocation3] sm:$0x1] %v2013
      %v2015 = vld [vmem:[#allocation3 + $0xc] sm:$0x1]
      %v2016 = vsel %vm1201, 0, %v2015
      %2017 = vst [vmem:[#allocation3 + $0xc] sm:$0x1] %v2016
      %v2018 = vld [vmem:[#allocation3 + $0x18] sm:$0x1]
      %v2019 = vsel %vm1201, 0, %v2018
      %2020 = vst [vmem:[#allocation3 + $0x18] sm:$0x1] %v2019
      %v2021 = vld [vmem:[#allocation3 + $0x24] sm:$0x1]
      %v2022 = vsel %vm1201, 0, %v2021
      %2023 = vst [vmem:[#allocation3 + $0x24] sm:$0x1] %v2022
      %v2024 = vld [vmem:[#allocation3 + $0x30] sm:$0x1]
      %v2025 = vsel %vm1201, 0, %v2024
      %2026 = vst [vmem:[#allocation3 + $0x30] sm:$0x1] %v2025
      %v2027 = vld [vmem:[#allocation3 + $0x3c] sm:$0x1]
      %v2028 = vsel %vm1201, 0, %v2027
      %2029 = vst [vmem:[#allocation3 + $0x3c] sm:$0x1] %v2028
      %v2030 = vld [vmem:[#allocation3 + $0x48] sm:$0x1]
      %v2031 = vsel %vm1201, 0, %v2030
      %2032 = vst [vmem:[#allocation3 + $0x48] sm:$0x1] %v2031
      %v2033 = vld [vmem:[#allocation3 + $0x54] sm:$0x1]
      %v2034 = vsel %vm1201, 0, %v2033
      %2035 = vst [vmem:[#allocation3 + $0x54] sm:$0x1] %v2034
      %v2036 = vld [vmem:[#allocation3 + $0x60] sm:$0x1]
      %v2037 = vsel %vm1201, 0, %v2036
      %2038 = vst [vmem:[#allocation3 + $0x60] sm:$0x1] %v2037
      %v2039 = vld [vmem:[#allocation3 + $0x6c] sm:$0x1]
      %v2040 = vsel %vm1201, 0, %v2039
      %2041 = vst [vmem:[#allocation3 + $0x6c] sm:$0x1] %v2040
      %v2042 = vld [vmem:[#allocation3 + $0x78] sm:$0x1]
      %v2043 = vsel %vm1201, 0, %v2042
      %2044 = vst [vmem:[#allocation3 + $0x78] sm:$0x1] %v2043
      %v2045 = vld [vmem:[#allocation3 + $0x84] sm:$0x1]
      %v2046 = vsel %vm1201, 0, %v2045
      %2047 = vst [vmem:[#allocation3 + $0x84] sm:$0x1] %v2046
      %v2048 = vld [vmem:[#allocation3 + $0x90] sm:$0x1]
      %v2049 = vsel %vm1201, 0, %v2048
      %2050 = vst [vmem:[#allocation3 + $0x90] sm:$0x1] %v2049
      %v2051 = vld [vmem:[#allocation3 + $0x9c] sm:$0x1]
      %v2052 = vsel %vm1201, 0, %v2051
      %2053 = vst [vmem:[#allocation3 + $0x9c] sm:$0x1] %v2052
      %v2054 = vld [vmem:[#allocation3 + $0xa8] sm:$0x1]
      %v2055 = vsel %vm1201, 0, %v2054
      %2056 = vst [vmem:[#allocation3 + $0xa8] sm:$0x1] %v2055
      %v2057 = vld [vmem:[#allocation3 + $0xb4] sm:$0x1]
      %v2058 = vsel %vm1201, 0, %v2057
      %2059 = vst [vmem:[#allocation3 + $0xb4] sm:$0x1] %v2058
      %v2060 = vld [vmem:[#allocation3 + $0xc0] sm:$0x1]
      %v2061 = vsel %vm1201, 0, %v2060
      %2062 = vst [vmem:[#allocation3 + $0xc0] sm:$0x1] %v2061
      %v2063 = vld [vmem:[#allocation3 + $0xcc] sm:$0x1]
      %v2064 = vsel %vm1201, 0, %v2063
      %2065 = vst [vmem:[#allocation3 + $0xcc] sm:$0x1] %v2064
      %v2066 = vld [vmem:[#allocation3 + $0x8] sm:$0xf]
      %v2067 = vsel %vm1194, 0, %v2066
      %2068 = vst [vmem:[#allocation3 + $0x8] sm:$0xf] %v2067
      %v2069 = vld [vmem:[#allocation3 + $0x14] sm:$0xf]
      %v2070 = vsel %vm1194, 0, %v2069
      %2071 = vst [vmem:[#allocation3 + $0x14] sm:$0xf] %v2070
      %v2072 = vld [vmem:[#allocation3 + $0x20] sm:$0xf]
      %v2073 = vsel %vm1194, 0, %v2072
      %2074 = vst [vmem:[#allocation3 + $0x20] sm:$0xf] %v2073
      %v2075 = vld [vmem:[#allocation3 + $0x2c] sm:$0xf]
      %v2076 = vsel %vm1194, 0, %v2075
      %2077 = vst [vmem:[#allocation3 + $0x2c] sm:$0xf] %v2076
      %v2078 = vld [vmem:[#allocation3 + $0x38] sm:$0xf]
      %v2079 = vsel %vm1194, 0, %v2078
      %2080 = vst [vmem:[#allocation3 + $0x38] sm:$0xf] %v2079
      %v2081 = vld [vmem:[#allocation3 + $0x44] sm:$0xf]
      %v2082 = vsel %vm1194, 0, %v2081
      %2083 = vst [vmem:[#allocation3 + $0x44] sm:$0xf] %v2082
      %v2084 = vld [vmem:[#allocation3 + $0x50] sm:$0xf]
      %v2085 = vsel %vm1194, 0, %v2084
      %2086 = vst [vmem:[#allocation3 + $0x50] sm:$0xf] %v2085
      %v2087 = vld [vmem:[#allocation3 + $0x5c] sm:$0xf]
      %v2088 = vsel %vm1194, 0, %v2087
      %2089 = vst [vmem:[#allocation3 + $0x5c] sm:$0xf] %v2088
      %v2090 = vld [vmem:[#allocation3 + $0x68] sm:$0xf]
      %v2091 = vsel %vm1194, 0, %v2090
      %2092 = vst [vmem:[#allocation3 + $0x68] sm:$0xf] %v2091
      %v2093 = vld [vmem:[#allocation3 + $0x74] sm:$0xf]
      %v2094 = vsel %vm1194, 0, %v2093
      %2095 = vst [vmem:[#allocation3 + $0x74] sm:$0xf] %v2094
      %v2096 = vld [vmem:[#allocation3 + $0x80] sm:$0xf]
      %v2097 = vsel %vm1194, 0, %v2096
      %2098 = vst [vmem:[#allocation3 + $0x80] sm:$0xf] %v2097
      %v2099 = vld [vmem:[#allocation3 + $0x8c] sm:$0xf]
      %v2100 = vsel %vm1194, 0, %v2099
      %2101 = vst [vmem:[#allocation3 + $0x8c] sm:$0xf] %v2100
      %v2102 = vld [vmem:[#allocation3 + $0x98] sm:$0xf]
      %v2103 = vsel %vm1194, 0, %v2102
      %2104 = vst [vmem:[#allocation3 + $0x98] sm:$0xf] %v2103
      %v2105 = vld [vmem:[#allocation3 + $0xa4] sm:$0xf]
      %v2106 = vsel %vm1194, 0, %v2105
      %2107 = vst [vmem:[#allocation3 + $0xa4] sm:$0xf] %v2106
      %v2108 = vld [vmem:[#allocation3 + $0xb0] sm:$0xf]
      %v2109 = vsel %vm1194, 0, %v2108
      %2110 = vst [vmem:[#allocation3 + $0xb0] sm:$0xf] %v2109
      %v2111 = vld [vmem:[#allocation3 + $0xbc] sm:$0xf]
      %v2112 = vsel %vm1194, 0, %v2111
      %2113 = vst [vmem:[#allocation3 + $0xbc] sm:$0xf] %v2112
      %v2114 = vld [vmem:[#allocation3 + $0xc8] sm:$0xf]
      %v2115 = vsel %vm1194, 0, %v2114
      %2116 = vst [vmem:[#allocation3 + $0xc8] sm:$0xf] %v2115
      %v2117 = vld [vmem:[#allocation3 + $0xd4] sm:$0xf]
      %v2118 = vsel %vm1194, 0, %v2117
      %2119 = vst [vmem:[#allocation3 + $0xd4] sm:$0xf] %v2118
      %v2120 = vld [vmem:[%s809] sm:$0x7]
      %v2121 = vld [vmem:[%s809 + $0x4] sm:$0x7]
      %v2122 = vld [vmem:[%s809 + $0x8] sm:$0x7]
      %v2123 = vld [vmem:[%s813] sm:$0x7]
      %v2124 = vld [vmem:[%s813 + $0x4] sm:$0x7]
      %v2125 = vld [vmem:[%s813 + $0x8] sm:$0x7]
      %v2126 = vld [vmem:[#allocation2] sm:$0xf]
      %v2127 = vld [vmem:[#allocation2 + $0x4] sm:$0xf]
      %v2128 = vld [vmem:[#allocation2 + $0xc] sm:$0xf]
      %v2129 = vld [vmem:[#allocation2 + $0x10] sm:$0xf]
      %v2130 = vld [vmem:[#allocation2 + $0x18] sm:$0xf]
      %v2131 = vld [vmem:[#allocation2 + $0x1c] sm:$0xf]
      %v2132 = vld [vmem:[#allocation2 + $0x24] sm:$0xf]
      %v2133 = vld [vmem:[#allocation2 + $0x28] sm:$0xf]
      %v2134 = vld [vmem:[#allocation2 + $0x30] sm:$0xf]
      %v2135 = vld [vmem:[#allocation2 + $0x34] sm:$0xf]
      %v2136 = vld [vmem:[#allocation2 + $0x3c] sm:$0xf]
      %v2137 = vld [vmem:[#allocation2 + $0x40] sm:$0xf]
      %v2138 = vld [vmem:[#allocation2 + $0x48] sm:$0xf]
      %v2139 = vld [vmem:[#allocation2 + $0x4c] sm:$0xf]
      %v2140 = vld [vmem:[#allocation2 + $0x54] sm:$0xf]
      %v2141 = vld [vmem:[#allocation2 + $0x58] sm:$0xf]
      %v2142 = vld [vmem:[#allocation2 + $0x60] sm:$0xf]
      %v2143 = vld [vmem:[#allocation2 + $0x64] sm:$0xf]
      %v2144 = vld [vmem:[#allocation2 + $0x6c] sm:$0xf]
      %v2145 = vld [vmem:[#allocation2 + $0x70] sm:$0xf]
      %v2146 = vld [vmem:[#allocation2 + $0x78] sm:$0xf]
      %v2147 = vld [vmem:[#allocation2 + $0x7c] sm:$0xf]
      %v2148 = vld [vmem:[#allocation2 + $0x84] sm:$0xf]
      %v2149 = vld [vmem:[#allocation2 + $0x88] sm:$0xf]
      %v2150 = vld [vmem:[#allocation2 + $0x90] sm:$0xf]
      %v2151 = vld [vmem:[#allocation2 + $0x94] sm:$0xf]
      %v2152 = vld [vmem:[#allocation2 + $0x9c] sm:$0xf]
      %v2153 = vld [vmem:[#allocation2 + $0xa0] sm:$0xf]
      %v2154 = vld [vmem:[#allocation2 + $0xa8] sm:$0xf]
      %v2155 = vld [vmem:[#allocation2 + $0xac] sm:$0xf]
      %v2156 = vld [vmem:[#allocation2 + $0xb4] sm:$0xf]
      %v2157 = vld [vmem:[#allocation2 + $0xb8] sm:$0xf]
      %v2158 = vunpack.c.l.bf16 %v2126
      %v2159 = vunpack.c.l.bf16 %v2127
      %v2160 = vunpack.c.l.bf16 %v2128
      %v2161 = vunpack.c.l.bf16 %v2129
      %v2162 = vunpack.c.l.bf16 %v2130
      %v2163 = vunpack.c.l.bf16 %v2131
      %v2164 = vunpack.c.l.bf16 %v2132
      %v2165 = vunpack.c.l.bf16 %v2133
      %v2166 = vunpack.c.l.bf16 %v2134
      %v2167 = vunpack.c.l.bf16 %v2135
      %v2168 = vunpack.c.l.bf16 %v2136
      %v2169 = vunpack.c.l.bf16 %v2137
      %v2170 = vunpack.c.l.bf16 %v2138
      %v2171 = vunpack.c.l.bf16 %v2139
      %v2172 = vunpack.c.l.bf16 %v2140
      %v2173 = vunpack.c.l.bf16 %v2141
      %v2174 = vunpack.c.l.bf16 %v2142
      %v2175 = vunpack.c.l.bf16 %v2143
      %v2176 = vunpack.c.l.bf16 %v2144
      %v2177 = vunpack.c.l.bf16 %v2145
      %v2178 = vunpack.c.l.bf16 %v2146
      %v2179 = vunpack.c.l.bf16 %v2147
      %v2180 = vunpack.c.l.bf16 %v2148
      %v2181 = vunpack.c.l.bf16 %v2149
      %v2182 = vunpack.c.l.bf16 %v2150
      %v2183 = vunpack.c.l.bf16 %v2151
      %v2184 = vunpack.c.l.bf16 %v2152
      %v2185 = vunpack.c.l.bf16 %v2153
      %v2186 = vunpack.c.l.bf16 %v2154
      %v2187 = vunpack.c.l.bf16 %v2155
      %v2188 = vunpack.c.l.bf16 %v2156
      %v2189 = vunpack.c.l.bf16 %v2157
      %v2190 = vlaneseq
      %v2191 = vshrl.u32 %v2190, 7
      %v2192 = vsub.s32 0, %v2191
      %v2193 = vrot.slane %v2120, %v2192
      %v2194 = vmul.f32 %v2158, %v2193
      %v2195 = vmul.f32 %v2159, %v2193
      %v2196 = vmul.f32 %v2160, %v2193
      %v2197 = vmul.f32 %v2161, %v2193
      %v2198 = vmul.f32 %v2162, %v2193
      %v2199 = vmul.f32 %v2163, %v2193
      %v2200 = vmul.f32 %v2164, %v2193
      %v2201 = vmul.f32 %v2165, %v2193
      %v2202 = vmul.f32 %v2166, %v2193
      %v2203 = vmul.f32 %v2167, %v2193
      %v2204 = vmul.f32 %v2168, %v2193
      %v2205 = vmul.f32 %v2169, %v2193
      %v2206 = vmul.f32 %v2170, %v2193
      %v2207 = vmul.f32 %v2171, %v2193
      %v2208 = vmul.f32 %v2172, %v2193
      %v2209 = vmul.f32 %v2173, %v2193
      %v2210 = vmul.f32 %v2174, %v2193
      %v2211 = vmul.f32 %v2175, %v2193
      %v2212 = vmul.f32 %v2176, %v2193
      %v2213 = vmul.f32 %v2177, %v2193
      %v2214 = vmul.f32 %v2178, %v2193
      %v2215 = vmul.f32 %v2179, %v2193
      %v2216 = vmul.f32 %v2180, %v2193
      %v2217 = vmul.f32 %v2181, %v2193
      %v2218 = vmul.f32 %v2182, %v2193
      %v2219 = vmul.f32 %v2183, %v2193
      %v2220 = vmul.f32 %v2184, %v2193
      %v2221 = vmul.f32 %v2185, %v2193
      %v2222 = vmul.f32 %v2186, %v2193
      %v2223 = vmul.f32 %v2187, %v2193
      %v2224 = vmul.f32 %v2188, %v2193
      %v2225 = vmul.f32 %v2189, %v2193
      %v2226 = vadd.f32 %v2194, 0.0
      %v2227 = vadd.f32 %v2195, 0.0
      %v2228 = vadd.f32 %v2196, 0.0
      %v2229 = vadd.f32 %v2197, 0.0
      %v2230 = vadd.f32 %v2198, 0.0
      %v2231 = vadd.f32 %v2199, 0.0
      %v2232 = vadd.f32 %v2200, 0.0
      %v2233 = vadd.f32 %v2201, 0.0
      %v2234 = vadd.f32 %v2202, 0.0
      %v2235 = vadd.f32 %v2203, 0.0
      %v2236 = vadd.f32 %v2204, 0.0
      %v2237 = vadd.f32 %v2205, 0.0
      %v2238 = vadd.f32 %v2206, 0.0
      %v2239 = vadd.f32 %v2207, 0.0
      %v2240 = vadd.f32 %v2208, 0.0
      %v2241 = vadd.f32 %v2209, 0.0
      %v2242 = vadd.f32 %v2210, 0.0
      %v2243 = vadd.f32 %v2211, 0.0
      %v2244 = vadd.f32 %v2212, 0.0
      %v2245 = vadd.f32 %v2213, 0.0
      %v2246 = vadd.f32 %v2214, 0.0
      %v2247 = vadd.f32 %v2215, 0.0
      %v2248 = vadd.f32 %v2216, 0.0
      %v2249 = vadd.f32 %v2217, 0.0
      %v2250 = vadd.f32 %v2218, 0.0
      %v2251 = vadd.f32 %v2219, 0.0
      %v2252 = vadd.f32 %v2220, 0.0
      %v2253 = vadd.f32 %v2221, 0.0
      %v2254 = vadd.f32 %v2222, 0.0
      %v2255 = vadd.f32 %v2223, 0.0
      %v2256 = vadd.f32 %v2224, 0.0
      %v2257 = vadd.f32 %v2225, 0.0
      %v2258 = vld [vmem:[#allocation3] sm:$0xf]
      %v2259 = vld [vmem:[#allocation3 + $0x4] sm:$0xf]
      %v2260 = vld [vmem:[#allocation3 + $0xc] sm:$0xf]
      %v2261 = vld [vmem:[#allocation3 + $0x10] sm:$0xf]
      %v2262 = vld [vmem:[#allocation3 + $0x18] sm:$0xf]
      %v2263 = vld [vmem:[#allocation3 + $0x1c] sm:$0xf]
      %v2264 = vld [vmem:[#allocation3 + $0x24] sm:$0xf]
      %v2265 = vld [vmem:[#allocation3 + $0x28] sm:$0xf]
      %v2266 = vld [vmem:[#allocation3 + $0x30] sm:$0xf]
      %v2267 = vld [vmem:[#allocation3 + $0x34] sm:$0xf]
      %v2268 = vld [vmem:[#allocation3 + $0x3c] sm:$0xf]
      %v2269 = vld [vmem:[#allocation3 + $0x40] sm:$0xf]
      %v2270 = vld [vmem:[#allocation3 + $0x48] sm:$0xf]
      %v2271 = vld [vmem:[#allocation3 + $0x4c] sm:$0xf]
      %v2272 = vld [vmem:[#allocation3 + $0x54] sm:$0xf]
      %v2273 = vld [vmem:[#allocation3 + $0x58] sm:$0xf]
      %v2274 = vld [vmem:[#allocation3 + $0x60] sm:$0xf]
      %v2275 = vld [vmem:[#allocation3 + $0x64] sm:$0xf]
      %v2276 = vld [vmem:[#allocation3 + $0x6c] sm:$0xf]
      %v2277 = vld [vmem:[#allocation3 + $0x70] sm:$0xf]
      %v2278 = vld [vmem:[#allocation3 + $0x78] sm:$0xf]
      %v2279 = vld [vmem:[#allocation3 + $0x7c] sm:$0xf]
      %v2280 = vld [vmem:[#allocation3 + $0x84] sm:$0xf]
      %v2281 = vld [vmem:[#allocation3 + $0x88] sm:$0xf]
      %v2282 = vld [vmem:[#allocation3 + $0x90] sm:$0xf]
      %v2283 = vld [vmem:[#allocation3 + $0x94] sm:$0xf]
      %v2284 = vld [vmem:[#allocation3 + $0x9c] sm:$0xf]
      %v2285 = vld [vmem:[#allocation3 + $0xa0] sm:$0xf]
      %v2286 = vld [vmem:[#allocation3 + $0xa8] sm:$0xf]
      %v2287 = vld [vmem:[#allocation3 + $0xac] sm:$0xf]
      %v2288 = vld [vmem:[#allocation3 + $0xb4] sm:$0xf]
      %v2289 = vld [vmem:[#allocation3 + $0xb8] sm:$0xf]
      %v2290 = vunpack.c.l.bf16 %v2258
      %v2291 = vunpack.c.l.bf16 %v2259
      %v2292 = vunpack.c.l.bf16 %v2260
      %v2293 = vunpack.c.l.bf16 %v2261
      %v2294 = vunpack.c.l.bf16 %v2262
      %v2295 = vunpack.c.l.bf16 %v2263
      %v2296 = vunpack.c.l.bf16 %v2264
      %v2297 = vunpack.c.l.bf16 %v2265
      %v2298 = vunpack.c.l.bf16 %v2266
      %v2299 = vunpack.c.l.bf16 %v2267
      %v2300 = vunpack.c.l.bf16 %v2268
      %v2301 = vunpack.c.l.bf16 %v2269
      %v2302 = vunpack.c.l.bf16 %v2270
      %v2303 = vunpack.c.l.bf16 %v2271
      %v2304 = vunpack.c.l.bf16 %v2272
      %v2305 = vunpack.c.l.bf16 %v2273
      %v2306 = vunpack.c.l.bf16 %v2274
      %v2307 = vunpack.c.l.bf16 %v2275
      %v2308 = vunpack.c.l.bf16 %v2276
      %v2309 = vunpack.c.l.bf16 %v2277
      %v2310 = vunpack.c.l.bf16 %v2278
      %v2311 = vunpack.c.l.bf16 %v2279
      %v2312 = vunpack.c.l.bf16 %v2280
      %v2313 = vunpack.c.l.bf16 %v2281
      %v2314 = vunpack.c.l.bf16 %v2282
      %v2315 = vunpack.c.l.bf16 %v2283
      %v2316 = vunpack.c.l.bf16 %v2284
      %v2317 = vunpack.c.l.bf16 %v2285
      %v2318 = vunpack.c.l.bf16 %v2286
      %v2319 = vunpack.c.l.bf16 %v2287
      %v2320 = vunpack.c.l.bf16 %v2288
      %v2321 = vunpack.c.l.bf16 %v2289
      %v2322 = vlaneseq
      %v2323 = vshrl.u32 %v2322, 7
      %v2324 = vsub.s32 0, %v2323
      %v2325 = vrot.slane %v2123, %v2324
      %v2326 = vmul.f32 %v2290, %v2325
      %v2327 = vmul.f32 %v2291, %v2325
      %v2328 = vmul.f32 %v2292, %v2325
      %v2329 = vmul.f32 %v2293, %v2325
      %v2330 = vmul.f32 %v2294, %v2325
      %v2331 = vmul.f32 %v2295, %v2325
      %v2332 = vmul.f32 %v2296, %v2325
      %v2333 = vmul.f32 %v2297, %v2325
      %v2334 = vmul.f32 %v2298, %v2325
      %v2335 = vmul.f32 %v2299, %v2325
      %v2336 = vmul.f32 %v2300, %v2325
      %v2337 = vmul.f32 %v2301, %v2325
      %v2338 = vmul.f32 %v2302, %v2325
      %v2339 = vmul.f32 %v2303, %v2325
      %v2340 = vmul.f32 %v2304, %v2325
      %v2341 = vmul.f32 %v2305, %v2325
      %v2342 = vmul.f32 %v2306, %v2325
      %v2343 = vmul.f32 %v2307, %v2325
      %v2344 = vmul.f32 %v2308, %v2325
      %v2345 = vmul.f32 %v2309, %v2325
      %v2346 = vmul.f32 %v2310, %v2325
      %v2347 = vmul.f32 %v2311, %v2325
      %v2348 = vmul.f32 %v2312, %v2325
      %v2349 = vmul.f32 %v2313, %v2325
      %v2350 = vmul.f32 %v2314, %v2325
      %v2351 = vmul.f32 %v2315, %v2325
      %v2352 = vmul.f32 %v2316, %v2325
      %v2353 = vmul.f32 %v2317, %v2325
      %v2354 = vmul.f32 %v2318, %v2325
      %v2355 = vmul.f32 %v2319, %v2325
      %v2356 = vmul.f32 %v2320, %v2325
      %v2357 = vmul.f32 %v2321, %v2325
      %v2358 = vadd.f32 %v2326, 0.0
      %v2359 = vadd.f32 %v2327, 0.0
      %v2360 = vadd.f32 %v2328, 0.0
      %v2361 = vadd.f32 %v2329, 0.0
      %v2362 = vadd.f32 %v2330, 0.0
      %v2363 = vadd.f32 %v2331, 0.0
      %v2364 = vadd.f32 %v2332, 0.0
      %v2365 = vadd.f32 %v2333, 0.0
      %v2366 = vadd.f32 %v2334, 0.0
      %v2367 = vadd.f32 %v2335, 0.0
      %v2368 = vadd.f32 %v2336, 0.0
      %v2369 = vadd.f32 %v2337, 0.0
      %v2370 = vadd.f32 %v2338, 0.0
      %v2371 = vadd.f32 %v2339, 0.0
      %v2372 = vadd.f32 %v2340, 0.0
      %v2373 = vadd.f32 %v2341, 0.0
      %v2374 = vadd.f32 %v2342, 0.0
      %v2375 = vadd.f32 %v2343, 0.0
      %v2376 = vadd.f32 %v2344, 0.0
      %v2377 = vadd.f32 %v2345, 0.0
      %v2378 = vadd.f32 %v2346, 0.0
      %v2379 = vadd.f32 %v2347, 0.0
      %v2380 = vadd.f32 %v2348, 0.0
      %v2381 = vadd.f32 %v2349, 0.0
      %v2382 = vadd.f32 %v2350, 0.0
      %v2383 = vadd.f32 %v2351, 0.0
      %v2384 = vadd.f32 %v2352, 0.0
      %v2385 = vadd.f32 %v2353, 0.0
      %v2386 = vadd.f32 %v2354, 0.0
      %v2387 = vadd.f32 %v2355, 0.0
      %v2388 = vadd.f32 %v2356, 0.0
      %v2389 = vadd.f32 %v2357, 0.0
      %v2390 = vld [vmem:[#allocation2 + $0x8] sm:$0x1]
      %v2391 = vld [vmem:[#allocation2 + $0x14] sm:$0x1]
      %v2392 = vld [vmem:[#allocation2 + $0x20] sm:$0x1]
      %v2393 = vld [vmem:[#allocation2 + $0x2c] sm:$0x1]
      %v2394 = vld [vmem:[#allocation2 + $0x38] sm:$0x1]
      %v2395 = vld [vmem:[#allocation2 + $0x44] sm:$0x1]
      %v2396 = vld [vmem:[#allocation2 + $0x50] sm:$0x1]
      %v2397 = vld [vmem:[#allocation2 + $0x5c] sm:$0x1]
      %v2398 = vld [vmem:[#allocation2 + $0x68] sm:$0x1]
      %v2399 = vld [vmem:[#allocation2 + $0x74] sm:$0x1]
      %v2400 = vld [vmem:[#allocation2 + $0x80] sm:$0x1]
      %v2401 = vld [vmem:[#allocation2 + $0x8c] sm:$0x1]
      %v2402 = vld [vmem:[#allocation2 + $0x98] sm:$0x1]
      %v2403 = vld [vmem:[#allocation2 + $0xa4] sm:$0x1]
      %v2404 = vld [vmem:[#allocation2 + $0xb0] sm:$0x1]
      %v2405 = vld [vmem:[#allocation2 + $0xbc] sm:$0x1]
      %v2406 = vunpack.c.l.bf16 %v2390
      %v2407 = vunpack.c.l.bf16 %v2391
      %v2408 = vunpack.c.l.bf16 %v2392
      %v2409 = vunpack.c.l.bf16 %v2393
      %v2410 = vunpack.c.l.bf16 %v2394
      %v2411 = vunpack.c.l.bf16 %v2395
      %v2412 = vunpack.c.l.bf16 %v2396
      %v2413 = vunpack.c.l.bf16 %v2397
      %v2414 = vunpack.c.l.bf16 %v2398
      %v2415 = vunpack.c.l.bf16 %v2399
      %v2416 = vunpack.c.l.bf16 %v2400
      %v2417 = vunpack.c.l.bf16 %v2401
      %v2418 = vunpack.c.l.bf16 %v2402
      %v2419 = vunpack.c.l.bf16 %v2403
      %v2420 = vunpack.c.l.bf16 %v2404
      %v2421 = vunpack.c.l.bf16 %v2405
      %v2422 = vlaneseq
      %v2423 = vshrl.u32 %v2422, 7
      %v2424 = vsub.s32 1, %v2423
      %v2425 = vrot.slane %v2120, %v2424
      %v2426 = vmul.f32 %v2158, %v2425
      %v2427 = vmul.f32 %v2159, %v2425
      %v2428 = vmul.f32 %v2406, %v2425
      %v2429 = vmul.f32 %v2160, %v2425
      %v2430 = vmul.f32 %v2161, %v2425
      %v2431 = vmul.f32 %v2407, %v2425
      %v2432 = vmul.f32 %v2162, %v2425
      %v2433 = vmul.f32 %v2163, %v2425
      %v2434 = vmul.f32 %v2408, %v2425
      %v2435 = vmul.f32 %v2164, %v2425
      %v2436 = vmul.f32 %v2165, %v2425
      %v2437 = vmul.f32 %v2409, %v2425
      %v2438 = vmul.f32 %v2166, %v2425
      %v2439 = vmul.f32 %v2167, %v2425
      %v2440 = vmul.f32 %v2410, %v2425
      %v2441 = vmul.f32 %v2168, %v2425
      %v2442 = vmul.f32 %v2169, %v2425
      %v2443 = vmul.f32 %v2411, %v2425
      %v2444 = vmul.f32 %v2170, %v2425
      %v2445 = vmul.f32 %v2171, %v2425
      %v2446 = vmul.f32 %v2412, %v2425
      %v2447 = vmul.f32 %v2172, %v2425
      %v2448 = vmul.f32 %v2173, %v2425
      %v2449 = vmul.f32 %v2413, %v2425
      %v2450 = vmul.f32 %v2174, %v2425
      %v2451 = vmul.f32 %v2175, %v2425
      %v2452 = vmul.f32 %v2414, %v2425
      %v2453 = vmul.f32 %v2176, %v2425
      %v2454 = vmul.f32 %v2177, %v2425
      %v2455 = vmul.f32 %v2415, %v2425
      %v2456 = vmul.f32 %v2178, %v2425
      %v2457 = vmul.f32 %v2179, %v2425
      %v2458 = vmul.f32 %v2416, %v2425
      %v2459 = vmul.f32 %v2180, %v2425
      %v2460 = vmul.f32 %v2181, %v2425
      %v2461 = vmul.f32 %v2417, %v2425
      %v2462 = vmul.f32 %v2182, %v2425
      %v2463 = vmul.f32 %v2183, %v2425
      %v2464 = vmul.f32 %v2418, %v2425
      %v2465 = vmul.f32 %v2184, %v2425
      %v2466 = vmul.f32 %v2185, %v2425
      %v2467 = vmul.f32 %v2419, %v2425
      %v2468 = vmul.f32 %v2186, %v2425
      %v2469 = vmul.f32 %v2187, %v2425
      %v2470 = vmul.f32 %v2420, %v2425
      %v2471 = vmul.f32 %v2188, %v2425
      %v2472 = vmul.f32 %v2189, %v2425
      %v2473 = vmul.f32 %v2421, %v2425
      %vm2522 = vcmask 1046528
      %v2523 = vrot.slane %v2426, 1
      %v2524 = vrot.slane %v2427, 1
      %v2525 = vsel %vm2522, %v2523, %v2524
      %v2526 = vrot.slane %v2428, 1
      %v2527 = vsel %vm2522, %v2524, %v2526
      %v2528 = vrot.slane %v2429, 1
      %v2529 = vrot.slane %v2430, 1
      %v2530 = vsel %vm2522, %v2528, %v2529
      %v2531 = vrot.slane %v2431, 1
      %v2532 = vsel %vm2522, %v2529, %v2531
      %v2533 = vrot.slane %v2432, 1
      %v2534 = vrot.slane %v2433, 1
      %v2535 = vsel %vm2522, %v2533, %v2534
      %v2536 = vrot.slane %v2434, 1
      %v2537 = vsel %vm2522, %v2534, %v2536
      %v2538 = vrot.slane %v2435, 1
      %v2539 = vrot.slane %v2436, 1
      %v2540 = vsel %vm2522, %v2538, %v2539
      %v2541 = vrot.slane %v2437, 1
      %v2542 = vsel %vm2522, %v2539, %v2541
      %v2543 = vrot.slane %v2438, 1
      %v2544 = vrot.slane %v2439, 1
      %v2545 = vsel %vm2522, %v2543, %v2544
      %v2546 = vrot.slane %v2440, 1
      %v2547 = vsel %vm2522, %v2544, %v2546
      %v2548 = vrot.slane %v2441, 1
      %v2549 = vrot.slane %v2442, 1
      %v2550 = vsel %vm2522, %v2548, %v2549
      %v2551 = vrot.slane %v2443, 1
      %v2552 = vsel %vm2522, %v2549, %v2551
      %v2553 = vrot.slane %v2444, 1
      %v2554 = vrot.slane %v2445, 1
      %v2555 = vsel %vm2522, %v2553, %v2554
      %v2556 = vrot.slane %v2446, 1
      %v2557 = vsel %vm2522, %v2554, %v2556
      %v2558 = vrot.slane %v2447, 1
      %v2559 = vrot.slane %v2448, 1
      %v2560 = vsel %vm2522, %v2558, %v2559
      %v2561 = vrot.slane %v2449, 1
      %v2562 = vsel %vm2522, %v2559, %v2561
      %v2563 = vrot.slane %v2450, 1
      %v2564 = vrot.slane %v2451, 1
      %v2565 = vsel %vm2522, %v2563, %v2564
      %v2566 = vrot.slane %v2452, 1
      %v2567 = vsel %vm2522, %v2564, %v2566
      %v2568 = vrot.slane %v2453, 1
      %v2569 = vrot.slane %v2454, 1
      %v2570 = vsel %vm2522, %v2568, %v2569
      %v2571 = vrot.slane %v2455, 1
      %v2572 = vsel %vm2522, %v2569, %v2571
      %v2573 = vrot.slane %v2456, 1
      %v2574 = vrot.slane %v2457, 1
      %v2575 = vsel %vm2522, %v2573, %v2574
      %v2576 = vrot.slane %v2458, 1
      %v2577 = vsel %vm2522, %v2574, %v2576
      %v2578 = vrot.slane %v2459, 1
      %v2579 = vrot.slane %v2460, 1
      %v2580 = vsel %vm2522, %v2578, %v2579
      %v2581 = vrot.slane %v2461, 1
      %v2582 = vsel %vm2522, %v2579, %v2581
      %v2583 = vrot.slane %v2462, 1
      %v2584 = vrot.slane %v2463, 1
      %v2585 = vsel %vm2522, %v2583, %v2584
      %v2586 = vrot.slane %v2464, 1
      %v2587 = vsel %vm2522, %v2584, %v2586
      %v2588 = vrot.slane %v2465, 1
      %v2589 = vrot.slane %v2466, 1
      %v2590 = vsel %vm2522, %v2588, %v2589
      %v2591 = vrot.slane %v2467, 1
      %v2592 = vsel %vm2522, %v2589, %v2591
      %v2593 = vrot.slane %v2468, 1
      %v2594 = vrot.slane %v2469, 1
      %v2595 = vsel %vm2522, %v2593, %v2594
      %v2596 = vrot.slane %v2470, 1
      %v2597 = vsel %vm2522, %v2594, %v2596
      %v2598 = vrot.slane %v2471, 1
      %v2599 = vrot.slane %v2472, 1
      %v2600 = vsel %vm2522, %v2598, %v2599
      %v2601 = vrot.slane %v2473, 1
      %v2602 = vsel %vm2522, %v2599, %v2601
      %v2635 = vadd.f32 %v2226, %v2525
      %v2636 = vadd.f32 %v2227, %v2527
      %v2637 = vadd.f32 %v2228, %v2530
      %v2638 = vadd.f32 %v2229, %v2532
      %v2639 = vadd.f32 %v2230, %v2535
      %v2640 = vadd.f32 %v2231, %v2537
      %v2641 = vadd.f32 %v2232, %v2540
      %v2642 = vadd.f32 %v2233, %v2542
      %v2643 = vadd.f32 %v2234, %v2545
      %v2644 = vadd.f32 %v2235, %v2547
      %v2645 = vadd.f32 %v2236, %v2550
      %v2646 = vadd.f32 %v2237, %v2552
      %v2647 = vadd.f32 %v2238, %v2555
      %v2648 = vadd.f32 %v2239, %v2557
      %v2649 = vadd.f32 %v2240, %v2560
      %v2650 = vadd.f32 %v2241, %v2562
      %v2651 = vadd.f32 %v2242, %v2565
      %v2652 = vadd.f32 %v2243, %v2567
      %v2653 = vadd.f32 %v2244, %v2570
      %v2654 = vadd.f32 %v2245, %v2572
      %v2655 = vadd.f32 %v2246, %v2575
      %v2656 = vadd.f32 %v2247, %v2577
      %v2657 = vadd.f32 %v2248, %v2580
      %v2658 = vadd.f32 %v2249, %v2582
      %v2659 = vadd.f32 %v2250, %v2585
      %v2660 = vadd.f32 %v2251, %v2587
      %v2661 = vadd.f32 %v2252, %v2590
      %v2662 = vadd.f32 %v2253, %v2592
      %v2663 = vadd.f32 %v2254, %v2595
      %v2664 = vadd.f32 %v2255, %v2597
      %v2665 = vadd.f32 %v2256, %v2600
      %v2666 = vadd.f32 %v2257, %v2602
      %v2667 = vld [vmem:[#allocation3 + $0x8] sm:$0x1]
      %v2668 = vld [vmem:[#allocation3 + $0x14] sm:$0x1]
      %v2669 = vld [vmem:[#allocation3 + $0x20] sm:$0x1]
      %v2670 = vld [vmem:[#allocation3 + $0x2c] sm:$0x1]
      %v2671 = vld [vmem:[#allocation3 + $0x38] sm:$0x1]
      %v2672 = vld [vmem:[#allocation3 + $0x44] sm:$0x1]
      %v2673 = vld [vmem:[#allocation3 + $0x50] sm:$0x1]
      %v2674 = vld [vmem:[#allocation3 + $0x5c] sm:$0x1]
      %v2675 = vld [vmem:[#allocation3 + $0x68] sm:$0x1]
      %v2676 = vld [vmem:[#allocation3 + $0x74] sm:$0x1]
      %v2677 = vld [vmem:[#allocation3 + $0x80] sm:$0x1]
      %v2678 = vld [vmem:[#allocation3 + $0x8c] sm:$0x1]
      %v2679 = vld [vmem:[#allocation3 + $0x98] sm:$0x1]
      %v2680 = vld [vmem:[#allocation3 + $0xa4] sm:$0x1]
      %v2681 = vld [vmem:[#allocation3 + $0xb0] sm:$0x1]
      %v2682 = vld [vmem:[#allocation3 + $0xbc] sm:$0x1]
      %v2683 = vunpack.c.l.bf16 %v2667
      %v2684 = vunpack.c.l.bf16 %v2668
      %v2685 = vunpack.c.l.bf16 %v2669
      %v2686 = vunpack.c.l.bf16 %v2670
      %v2687 = vunpack.c.l.bf16 %v2671
      %v2688 = vunpack.c.l.bf16 %v2672
      %v2689 = vunpack.c.l.bf16 %v2673
      %v2690 = vunpack.c.l.bf16 %v2674
      %v2691 = vunpack.c.l.bf16 %v2675
      %v2692 = vunpack.c.l.bf16 %v2676
      %v2693 = vunpack.c.l.bf16 %v2677
      %v2694 = vunpack.c.l.bf16 %v2678
      %v2695 = vunpack.c.l.bf16 %v2679
      %v2696 = vunpack.c.l.bf16 %v2680
      %v2697 = vunpack.c.l.bf16 %v2681
      %v2698 = vunpack.c.l.bf16 %v2682
      %v2699 = vlaneseq
      %v2700 = vshrl.u32 %v2699, 7
      %v2701 = vsub.s32 1, %v2700
      %v2702 = vrot.slane %v2123, %v2701
      %v2703 = vmul.f32 %v2290, %v2702
      %v2704 = vmul.f32 %v2291, %v2702
      %v2705 = vmul.f32 %v2683, %v2702
      %v2706 = vmul.f32 %v2292, %v2702
      %v2707 = vmul.f32 %v2293, %v2702
      %v2708 = vmul.f32 %v2684, %v2702
      %v2709 = vmul.f32 %v2294, %v2702
      %v2710 = vmul.f32 %v2295, %v2702
      %v2711 = vmul.f32 %v2685, %v2702
      %v2712 = vmul.f32 %v2296, %v2702
      %v2713 = vmul.f32 %v2297, %v2702
      %v2714 = vmul.f32 %v2686, %v2702
      %v2715 = vmul.f32 %v2298, %v2702
      %v2716 = vmul.f32 %v2299, %v2702
      %v2717 = vmul.f32 %v2687, %v2702
      %v2718 = vmul.f32 %v2300, %v2702
      %v2719 = vmul.f32 %v2301, %v2702
      %v2720 = vmul.f32 %v2688, %v2702
      %v2721 = vmul.f32 %v2302, %v2702
      %v2722 = vmul.f32 %v2303, %v2702
      %v2723 = vmul.f32 %v2689, %v2702
      %v2724 = vmul.f32 %v2304, %v2702
      %v2725 = vmul.f32 %v2305, %v2702
      %v2726 = vmul.f32 %v2690, %v2702
      %v2727 = vmul.f32 %v2306, %v2702
      %v2728 = vmul.f32 %v2307, %v2702
      %v2729 = vmul.f32 %v2691, %v2702
      %v2730 = vmul.f32 %v2308, %v2702
      %v2731 = vmul.f32 %v2309, %v2702
      %v2732 = vmul.f32 %v2692, %v2702
      %v2733 = vmul.f32 %v2310, %v2702
      %v2734 = vmul.f32 %v2311, %v2702
      %v2735 = vmul.f32 %v2693, %v2702
      %v2736 = vmul.f32 %v2312, %v2702
      %v2737 = vmul.f32 %v2313, %v2702
      %v2738 = vmul.f32 %v2694, %v2702
      %v2739 = vmul.f32 %v2314, %v2702
      %v2740 = vmul.f32 %v2315, %v2702
      %v2741 = vmul.f32 %v2695, %v2702
      %v2742 = vmul.f32 %v2316, %v2702
      %v2743 = vmul.f32 %v2317, %v2702
      %v2744 = vmul.f32 %v2696, %v2702
      %v2745 = vmul.f32 %v2318, %v2702
      %v2746 = vmul.f32 %v2319, %v2702
      %v2747 = vmul.f32 %v2697, %v2702
      %v2748 = vmul.f32 %v2320, %v2702
      %v2749 = vmul.f32 %v2321, %v2702
      %v2750 = vmul.f32 %v2698, %v2702
      %v2799 = vrot.slane %v2703, 1
      %v2800 = vrot.slane %v2704, 1
      %v2801 = vsel %vm2522, %v2799, %v2800
      %v2802 = vrot.slane %v2705, 1
      %v2803 = vsel %vm2522, %v2800, %v2802
      %v2804 = vrot.slane %v2706, 1
      %v2805 = vrot.slane %v2707, 1
      %v2806 = vsel %vm2522, %v2804, %v2805
      %v2807 = vrot.slane %v2708, 1
      %v2808 = vsel %vm2522, %v2805, %v2807
      %v2809 = vrot.slane %v2709, 1
      %v2810 = vrot.slane %v2710, 1
      %v2811 = vsel %vm2522, %v2809, %v2810
      %v2812 = vrot.slane %v2711, 1
      %v2813 = vsel %vm2522, %v2810, %v2812
      %v2814 = vrot.slane %v2712, 1
      %v2815 = vrot.slane %v2713, 1
      %v2816 = vsel %vm2522, %v2814, %v2815
      %v2817 = vrot.slane %v2714, 1
      %v2818 = vsel %vm2522, %v2815, %v2817
      %v2819 = vrot.slane %v2715, 1
      %v2820 = vrot.slane %v2716, 1
      %v2821 = vsel %vm2522, %v2819, %v2820
      %v2822 = vrot.slane %v2717, 1
      %v2823 = vsel %vm2522, %v2820, %v2822
      %v2824 = vrot.slane %v2718, 1
      %v2825 = vrot.slane %v2719, 1
      %v2826 = vsel %vm2522, %v2824, %v2825
      %v2827 = vrot.slane %v2720, 1
      %v2828 = vsel %vm2522, %v2825, %v2827
      %v2829 = vrot.slane %v2721, 1
      %v2830 = vrot.slane %v2722, 1
      %v2831 = vsel %vm2522, %v2829, %v2830
      %v2832 = vrot.slane %v2723, 1
      %v2833 = vsel %vm2522, %v2830, %v2832
      %v2834 = vrot.slane %v2724, 1
      %v2835 = vrot.slane %v2725, 1
      %v2836 = vsel %vm2522, %v2834, %v2835
      %v2837 = vrot.slane %v2726, 1
      %v2838 = vsel %vm2522, %v2835, %v2837
      %v2839 = vrot.slane %v2727, 1
      %v2840 = vrot.slane %v2728, 1
      %v2841 = vsel %vm2522, %v2839, %v2840
      %v2842 = vrot.slane %v2729, 1
      %v2843 = vsel %vm2522, %v2840, %v2842
      %v2844 = vrot.slane %v2730, 1
      %v2845 = vrot.slane %v2731, 1
      %v2846 = vsel %vm2522, %v2844, %v2845
      %v2847 = vrot.slane %v2732, 1
      %v2848 = vsel %vm2522, %v2845, %v2847
      %v2849 = vrot.slane %v2733, 1
      %v2850 = vrot.slane %v2734, 1
      %v2851 = vsel %vm2522, %v2849, %v2850
      %v2852 = vrot.slane %v2735, 1
      %v2853 = vsel %vm2522, %v2850, %v2852
      %v2854 = vrot.slane %v2736, 1
      %v2855 = vrot.slane %v2737, 1
      %v2856 = vsel %vm2522, %v2854, %v2855
      %v2857 = vrot.slane %v2738, 1
      %v2858 = vsel %vm2522, %v2855, %v2857
      %v2859 = vrot.slane %v2739, 1
      %v2860 = vrot.slane %v2740, 1
      %v2861 = vsel %vm2522, %v2859, %v2860
      %v2862 = vrot.slane %v2741, 1
      %v2863 = vsel %vm2522, %v2860, %v2862
      %v2864 = vrot.slane %v2742, 1
      %v2865 = vrot.slane %v2743, 1
      %v2866 = vsel %vm2522, %v2864, %v2865
      %v2867 = vrot.slane %v2744, 1
      %v2868 = vsel %vm2522, %v2865, %v2867
      %v2869 = vrot.slane %v2745, 1
      %v2870 = vrot.slane %v2746, 1
      %v2871 = vsel %vm2522, %v2869, %v2870
      %v2872 = vrot.slane %v2747, 1
      %v2873 = vsel %vm2522, %v2870, %v2872
      %v2874 = vrot.slane %v2748, 1
      %v2875 = vrot.slane %v2749, 1
      %v2876 = vsel %vm2522, %v2874, %v2875
      %v2877 = vrot.slane %v2750, 1
      %v2878 = vsel %vm2522, %v2875, %v2877
      %v2911 = vadd.f32 %v2358, %v2801
      %v2912 = vadd.f32 %v2359, %v2803
      %v2913 = vadd.f32 %v2360, %v2806
      %v2914 = vadd.f32 %v2361, %v2808
      %v2915 = vadd.f32 %v2362, %v2811
      %v2916 = vadd.f32 %v2363, %v2813
      %v2917 = vadd.f32 %v2364, %v2816
      %v2918 = vadd.f32 %v2365, %v2818
      %v2919 = vadd.f32 %v2366, %v2821
      %v2920 = vadd.f32 %v2367, %v2823
      %v2921 = vadd.f32 %v2368, %v2826
      %v2922 = vadd.f32 %v2369, %v2828
      %v2923 = vadd.f32 %v2370, %v2831
      %v2924 = vadd.f32 %v2371, %v2833
      %v2925 = vadd.f32 %v2372, %v2836
      %v2926 = vadd.f32 %v2373, %v2838
      %v2927 = vadd.f32 %v2374, %v2841
      %v2928 = vadd.f32 %v2375, %v2843
      %v2929 = vadd.f32 %v2376, %v2846
      %v2930 = vadd.f32 %v2377, %v2848
      %v2931 = vadd.f32 %v2378, %v2851
      %v2932 = vadd.f32 %v2379, %v2853
      %v2933 = vadd.f32 %v2380, %v2856
      %v2934 = vadd.f32 %v2381, %v2858
      %v2935 = vadd.f32 %v2382, %v2861
      %v2936 = vadd.f32 %v2383, %v2863
      %v2937 = vadd.f32 %v2384, %v2866
      %v2938 = vadd.f32 %v2385, %v2868
      %v2939 = vadd.f32 %v2386, %v2871
      %v2940 = vadd.f32 %v2387, %v2873
      %v2941 = vadd.f32 %v2388, %v2876
      %v2942 = vadd.f32 %v2389, %v2878
      %v2943 = vld [vmem:[#allocation2] sm:$0xe]
      %v2944 = vld [vmem:[#allocation2 + $0xc] sm:$0xe]
      %v2945 = vld [vmem:[#allocation2 + $0x18] sm:$0xe]
      %v2946 = vld [vmem:[#allocation2 + $0x24] sm:$0xe]
      %v2947 = vld [vmem:[#allocation2 + $0x30] sm:$0xe]
      %v2948 = vld [vmem:[#allocation2 + $0x3c] sm:$0xe]
      %v2949 = vld [vmem:[#allocation2 + $0x48] sm:$0xe]
      %v2950 = vld [vmem:[#allocation2 + $0x54] sm:$0xe]
      %v2951 = vld [vmem:[#allocation2 + $0x60] sm:$0xe]
      %v2952 = vld [vmem:[#allocation2 + $0x6c] sm:$0xe]
      %v2953 = vld [vmem:[#allocation2 + $0x78] sm:$0xe]
      %v2954 = vld [vmem:[#allocation2 + $0x84] sm:$0xe]
      %v2955 = vld [vmem:[#allocation2 + $0x90] sm:$0xe]
      %v2956 = vld [vmem:[#allocation2 + $0x9c] sm:$0xe]
      %v2957 = vld [vmem:[#allocation2 + $0xa8] sm:$0xe]
      %v2958 = vld [vmem:[#allocation2 + $0xb4] sm:$0xe]
      %v2959 = vunpack.c.l.bf16 %v2943
      %v2960 = vunpack.c.l.bf16 %v2944
      %v2961 = vunpack.c.l.bf16 %v2945
      %v2962 = vunpack.c.l.bf16 %v2946
      %v2963 = vunpack.c.l.bf16 %v2947
      %v2964 = vunpack.c.l.bf16 %v2948
      %v2965 = vunpack.c.l.bf16 %v2949
      %v2966 = vunpack.c.l.bf16 %v2950
      %v2967 = vunpack.c.l.bf16 %v2951
      %v2968 = vunpack.c.l.bf16 %v2952
      %v2969 = vunpack.c.l.bf16 %v2953
      %v2970 = vunpack.c.l.bf16 %v2954
      %v2971 = vunpack.c.l.bf16 %v2955
      %v2972 = vunpack.c.l.bf16 %v2956
      %v2973 = vunpack.c.l.bf16 %v2957
      %v2974 = vunpack.c.l.bf16 %v2958
      %v2975 = vlaneseq
      %v2976 = vshrl.u32 %v2975, 7
      %v2977 = vsub.s32 2, %v2976
      %v2978 = vrot.slane %v2120, %v2977
      %v2979 = vmul.f32 %v2959, %v2978
      %v2980 = vmul.f32 %v2159, %v2978
      %v2981 = vmul.f32 %v2406, %v2978
      %v2982 = vmul.f32 %v2960, %v2978
      %v2983 = vmul.f32 %v2161, %v2978
      %v2984 = vmul.f32 %v2407, %v2978
      %v2985 = vmul.f32 %v2961, %v2978
      %v2986 = vmul.f32 %v2163, %v2978
      %v2987 = vmul.f32 %v2408, %v2978
      %v2988 = vmul.f32 %v2962, %v2978
      %v2989 = vmul.f32 %v2165, %v2978
      %v2990 = vmul.f32 %v2409, %v2978
      %v2991 = vmul.f32 %v2963, %v2978
      %v2992 = vmul.f32 %v2167, %v2978
      %v2993 = vmul.f32 %v2410, %v2978
      %v2994 = vmul.f32 %v2964, %v2978
      %v2995 = vmul.f32 %v2169, %v2978
      %v2996 = vmul.f32 %v2411, %v2978
      %v2997 = vmul.f32 %v2965, %v2978
      %v2998 = vmul.f32 %v2171, %v2978
      %v2999 = vmul.f32 %v2412, %v2978
      %v3000 = vmul.f32 %v2966, %v2978
      %v3001 = vmul.f32 %v2173, %v2978
      %v3002 = vmul.f32 %v2413, %v2978
      %v3003 = vmul.f32 %v2967, %v2978
      %v3004 = vmul.f32 %v2175, %v2978
      %v3005 = vmul.f32 %v2414, %v2978
      %v3006 = vmul.f32 %v2968, %v2978
      %v3007 = vmul.f32 %v2177, %v2978
      %v3008 = vmul.f32 %v2415, %v2978
      %v3009 = vmul.f32 %v2969, %v2978
      %v3010 = vmul.f32 %v2179, %v2978
      %v3011 = vmul.f32 %v2416, %v2978
      %v3012 = vmul.f32 %v2970, %v2978
      %v3013 = vmul.f32 %v2181, %v2978
      %v3014 = vmul.f32 %v2417, %v2978
      %v3015 = vmul.f32 %v2971, %v2978
      %v3016 = vmul.f32 %v2183, %v2978
      %v3017 = vmul.f32 %v2418, %v2978
      %v3018 = vmul.f32 %v2972, %v2978
      %v3019 = vmul.f32 %v2185, %v2978
      %v3020 = vmul.f32 %v2419, %v2978
      %v3021 = vmul.f32 %v2973, %v2978
      %v3022 = vmul.f32 %v2187, %v2978
      %v3023 = vmul.f32 %v2420, %v2978
      %v3024 = vmul.f32 %v2974, %v2978
      %v3025 = vmul.f32 %v2189, %v2978
      %v3026 = vmul.f32 %v2421, %v2978
      %vm3075 = vcmask 1045504
      %v3076 = vrot.slane %v2979, 2
      %v3077 = vrot.slane %v2980, 2
      %v3078 = vsel %vm3075, %v3076, %v3077
      %v3079 = vrot.slane %v2981, 2
      %v3080 = vsel %vm3075, %v3077, %v3079
      %v3081 = vrot.slane %v2982, 2
      %v3082 = vrot.slane %v2983, 2
      %v3083 = vsel %vm3075, %v3081, %v3082
      %v3084 = vrot.slane %v2984, 2
      %v3085 = vsel %vm3075, %v3082, %v3084
      %v3086 = vrot.slane %v2985, 2
      %v3087 = vrot.slane %v2986, 2
      %v3088 = vsel %vm3075, %v3086, %v3087
      %v3089 = vrot.slane %v2987, 2
      %v3090 = vsel %vm3075, %v3087, %v3089
      %v3091 = vrot.slane %v2988, 2
      %v3092 = vrot.slane %v2989, 2
      %v3093 = vsel %vm3075, %v3091, %v3092
      %v3094 = vrot.slane %v2990, 2
      %v3095 = vsel %vm3075, %v3092, %v3094
      %v3096 = vrot.slane %v2991, 2
      %v3097 = vrot.slane %v2992, 2
      %v3098 = vsel %vm3075, %v3096, %v3097
      %v3099 = vrot.slane %v2993, 2
      %v3100 = vsel %vm3075, %v3097, %v3099
      %v3101 = vrot.slane %v2994, 2
      %v3102 = vrot.slane %v2995, 2
      %v3103 = vsel %vm3075, %v3101, %v3102
      %v3104 = vrot.slane %v2996, 2
      %v3105 = vsel %vm3075, %v3102, %v3104
      %v3106 = vrot.slane %v2997, 2
      %v3107 = vrot.slane %v2998, 2
      %v3108 = vsel %vm3075, %v3106, %v3107
      %v3109 = vrot.slane %v2999, 2
      %v3110 = vsel %vm3075, %v3107, %v3109
      %v3111 = vrot.slane %v3000, 2
      %v3112 = vrot.slane %v3001, 2
      %v3113 = vsel %vm3075, %v3111, %v3112
      %v3114 = vrot.slane %v3002, 2
      %v3115 = vsel %vm3075, %v3112, %v3114
      %v3116 = vrot.slane %v3003, 2
      %v3117 = vrot.slane %v3004, 2
      %v3118 = vsel %vm3075, %v3116, %v3117
      %v3119 = vrot.slane %v3005, 2
      %v3120 = vsel %vm3075, %v3117, %v3119
      %v3121 = vrot.slane %v3006, 2
      %v3122 = vrot.slane %v3007, 2
      %v3123 = vsel %vm3075, %v3121, %v3122
      %v3124 = vrot.slane %v3008, 2
      %v3125 = vsel %vm3075, %v3122, %v3124
      %v3126 = vrot.slane %v3009, 2
      %v3127 = vrot.slane %v3010, 2
      %v3128 = vsel %vm3075, %v3126, %v3127
      %v3129 = vrot.slane %v3011, 2
      %v3130 = vsel %vm3075, %v3127, %v3129
      %v3131 = vrot.slane %v3012, 2
      %v3132 = vrot.slane %v3013, 2
      %v3133 = vsel %vm3075, %v3131, %v3132
      %v3134 = vrot.slane %v3014, 2
      %v3135 = vsel %vm3075, %v3132, %v3134
      %v3136 = vrot.slane %v3015, 2
      %v3137 = vrot.slane %v3016, 2
      %v3138 = vsel %vm3075, %v3136, %v3137
      %v3139 = vrot.slane %v3017, 2
      %v3140 = vsel %vm3075, %v3137, %v3139
      %v3141 = vrot.slane %v3018, 2
      %v3142 = vrot.slane %v3019, 2
      %v3143 = vsel %vm3075, %v3141, %v3142
      %v3144 = vrot.slane %v3020, 2
      %v3145 = vsel %vm3075, %v3142, %v3144
      %v3146 = vrot.slane %v3021, 2
      %v3147 = vrot.slane %v3022, 2
      %v3148 = vsel %vm3075, %v3146, %v3147
      %v3149 = vrot.slane %v3023, 2
      %v3150 = vsel %vm3075, %v3147, %v3149
      %v3151 = vrot.slane %v3024, 2
      %v3152 = vrot.slane %v3025, 2
      %v3153 = vsel %vm3075, %v3151, %v3152
      %v3154 = vrot.slane %v3026, 2
      %v3155 = vsel %vm3075, %v3152, %v3154
      %v3188 = vadd.f32 %v2635, %v3078
      %v3189 = vadd.f32 %v2636, %v3080
      %v3190 = vadd.f32 %v2637, %v3083
      %v3191 = vadd.f32 %v2638, %v3085
      %v3192 = vadd.f32 %v2639, %v3088
      %v3193 = vadd.f32 %v2640, %v3090
      %v3194 = vadd.f32 %v2641, %v3093
      %v3195 = vadd.f32 %v2642, %v3095
      %v3196 = vadd.f32 %v2643, %v3098
      %v3197 = vadd.f32 %v2644, %v3100
      %v3198 = vadd.f32 %v2645, %v3103
      %v3199 = vadd.f32 %v2646, %v3105
      %v3200 = vadd.f32 %v2647, %v3108
      %v3201 = vadd.f32 %v2648, %v3110
      %v3202 = vadd.f32 %v2649, %v3113
      %v3203 = vadd.f32 %v2650, %v3115
      %v3204 = vadd.f32 %v2651, %v3118
      %v3205 = vadd.f32 %v2652, %v3120
      %v3206 = vadd.f32 %v2653, %v3123
      %v3207 = vadd.f32 %v2654, %v3125
      %v3208 = vadd.f32 %v2655, %v3128
      %v3209 = vadd.f32 %v2656, %v3130
      %v3210 = vadd.f32 %v2657, %v3133
      %v3211 = vadd.f32 %v2658, %v3135
      %v3212 = vadd.f32 %v2659, %v3138
      %v3213 = vadd.f32 %v2660, %v3140
      %v3214 = vadd.f32 %v2661, %v3143
      %v3215 = vadd.f32 %v2662, %v3145
      %v3216 = vadd.f32 %v2663, %v3148
      %v3217 = vadd.f32 %v2664, %v3150
      %v3218 = vadd.f32 %v2665, %v3153
      %v3219 = vadd.f32 %v2666, %v3155
      %v3220 = vld [vmem:[#allocation3] sm:$0xe]
      %v3221 = vld [vmem:[#allocation3 + $0xc] sm:$0xe]
      %v3222 = vld [vmem:[#allocation3 + $0x18] sm:$0xe]
      %v3223 = vld [vmem:[#allocation3 + $0x24] sm:$0xe]
      %v3224 = vld [vmem:[#allocation3 + $0x30] sm:$0xe]
      %v3225 = vld [vmem:[#allocation3 + $0x3c] sm:$0xe]
      %v3226 = vld [vmem:[#allocation3 + $0x48] sm:$0xe]
      %v3227 = vld [vmem:[#allocation3 + $0x54] sm:$0xe]
      %v3228 = vld [vmem:[#allocation3 + $0x60] sm:$0xe]
      %v3229 = vld [vmem:[#allocation3 + $0x6c] sm:$0xe]
      %v3230 = vld [vmem:[#allocation3 + $0x78] sm:$0xe]
      %v3231 = vld [vmem:[#allocation3 + $0x84] sm:$0xe]
      %v3232 = vld [vmem:[#allocation3 + $0x90] sm:$0xe]
      %v3233 = vld [vmem:[#allocation3 + $0x9c] sm:$0xe]
      %v3234 = vld [vmem:[#allocation3 + $0xa8] sm:$0xe]
      %v3235 = vld [vmem:[#allocation3 + $0xb4] sm:$0xe]
      %v3236 = vunpack.c.l.bf16 %v3220
      %v3237 = vunpack.c.l.bf16 %v3221
      %v3238 = vunpack.c.l.bf16 %v3222
      %v3239 = vunpack.c.l.bf16 %v3223
      %v3240 = vunpack.c.l.bf16 %v3224
      %v3241 = vunpack.c.l.bf16 %v3225
      %v3242 = vunpack.c.l.bf16 %v3226
      %v3243 = vunpack.c.l.bf16 %v3227
      %v3244 = vunpack.c.l.bf16 %v3228
      %v3245 = vunpack.c.l.bf16 %v3229
      %v3246 = vunpack.c.l.bf16 %v3230
      %v3247 = vunpack.c.l.bf16 %v3231
      %v3248 = vunpack.c.l.bf16 %v3232
      %v3249 = vunpack.c.l.bf16 %v3233
      %v3250 = vunpack.c.l.bf16 %v3234
      %v3251 = vunpack.c.l.bf16 %v3235
      %v3252 = vlaneseq
      %v3253 = vshrl.u32 %v3252, 7
      %v3254 = vsub.s32 2, %v3253
      %v3255 = vrot.slane %v2123, %v3254
      %v3256 = vmul.f32 %v3236, %v3255
      %v3257 = vmul.f32 %v2291, %v3255
      %v3258 = vmul.f32 %v2683, %v3255
      %v3259 = vmul.f32 %v3237, %v3255
      %v3260 = vmul.f32 %v2293, %v3255
      %v3261 = vmul.f32 %v2684, %v3255
      %v3262 = vmul.f32 %v3238, %v3255
      %v3263 = vmul.f32 %v2295, %v3255
      %v3264 = vmul.f32 %v2685, %v3255
      %v3265 = vmul.f32 %v3239, %v3255
      %v3266 = vmul.f32 %v2297, %v3255
      %v3267 = vmul.f32 %v2686, %v3255
      %v3268 = vmul.f32 %v3240, %v3255
      %v3269 = vmul.f32 %v2299, %v3255
      %v3270 = vmul.f32 %v2687, %v3255
      %v3271 = vmul.f32 %v3241, %v3255
      %v3272 = vmul.f32 %v2301, %v3255
      %v3273 = vmul.f32 %v2688, %v3255
      %v3274 = vmul.f32 %v3242, %v3255
      %v3275 = vmul.f32 %v2303, %v3255
      %v3276 = vmul.f32 %v2689, %v3255
      %v3277 = vmul.f32 %v3243, %v3255
      %v3278 = vmul.f32 %v2305, %v3255
      %v3279 = vmul.f32 %v2690, %v3255
      %v3280 = vmul.f32 %v3244, %v3255
      %v3281 = vmul.f32 %v2307, %v3255
      %v3282 = vmul.f32 %v2691, %v3255
      %v3283 = vmul.f32 %v3245, %v3255
      %v3284 = vmul.f32 %v2309, %v3255
      %v3285 = vmul.f32 %v2692, %v3255
      %v3286 = vmul.f32 %v3246, %v3255
      %v3287 = vmul.f32 %v2311, %v3255
      %v3288 = vmul.f32 %v2693, %v3255
      %v3289 = vmul.f32 %v3247, %v3255
      %v3290 = vmul.f32 %v2313, %v3255
      %v3291 = vmul.f32 %v2694, %v3255
      %v3292 = vmul.f32 %v3248, %v3255
      %v3293 = vmul.f32 %v2315, %v3255
      %v3294 = vmul.f32 %v2695, %v3255
      %v3295 = vmul.f32 %v3249, %v3255
      %v3296 = vmul.f32 %v2317, %v3255
      %v3297 = vmul.f32 %v2696, %v3255
      %v3298 = vmul.f32 %v3250, %v3255
      %v3299 = vmul.f32 %v2319, %v3255
      %v3300 = vmul.f32 %v2697, %v3255
      %v3301 = vmul.f32 %v3251, %v3255
      %v3302 = vmul.f32 %v2321, %v3255
      %v3303 = vmul.f32 %v2698, %v3255
      %v3352 = vrot.slane %v3256, 2
      %v3353 = vrot.slane %v3257, 2
      %v3354 = vsel %vm3075, %v3352, %v3353
      %v3355 = vrot.slane %v3258, 2
      %v3356 = vsel %vm3075, %v3353, %v3355
      %v3357 = vrot.slane %v3259, 2
      %v3358 = vrot.slane %v3260, 2
      %v3359 = vsel %vm3075, %v3357, %v3358
      %v3360 = vrot.slane %v3261, 2
      %v3361 = vsel %vm3075, %v3358, %v3360
      %v3362 = vrot.slane %v3262, 2
      %v3363 = vrot.slane %v3263, 2
      %v3364 = vsel %vm3075, %v3362, %v3363
      %v3365 = vrot.slane %v3264, 2
      %v3366 = vsel %vm3075, %v3363, %v3365
      %v3367 = vrot.slane %v3265, 2
      %v3368 = vrot.slane %v3266, 2
      %v3369 = vsel %vm3075, %v3367, %v3368
      %v3370 = vrot.slane %v3267, 2
      %v3371 = vsel %vm3075, %v3368, %v3370
      %v3372 = vrot.slane %v3268, 2
      %v3373 = vrot.slane %v3269, 2
      %v3374 = vsel %vm3075, %v3372, %v3373
      %v3375 = vrot.slane %v3270, 2
      %v3376 = vsel %vm3075, %v3373, %v3375
      %v3377 = vrot.slane %v3271, 2
      %v3378 = vrot.slane %v3272, 2
      %v3379 = vsel %vm3075, %v3377, %v3378
      %v3380 = vrot.slane %v3273, 2
      %v3381 = vsel %vm3075, %v3378, %v3380
      %v3382 = vrot.slane %v3274, 2
      %v3383 = vrot.slane %v3275, 2
      %v3384 = vsel %vm3075, %v3382, %v3383
      %v3385 = vrot.slane %v3276, 2
      %v3386 = vsel %vm3075, %v3383, %v3385
      %v3387 = vrot.slane %v3277, 2
      %v3388 = vrot.slane %v3278, 2
      %v3389 = vsel %vm3075, %v3387, %v3388
      %v3390 = vrot.slane %v3279, 2
      %v3391 = vsel %vm3075, %v3388, %v3390
      %v3392 = vrot.slane %v3280, 2
      %v3393 = vrot.slane %v3281, 2
      %v3394 = vsel %vm3075, %v3392, %v3393
      %v3395 = vrot.slane %v3282, 2
      %v3396 = vsel %vm3075, %v3393, %v3395
      %v3397 = vrot.slane %v3283, 2
      %v3398 = vrot.slane %v3284, 2
      %v3399 = vsel %vm3075, %v3397, %v3398
      %v3400 = vrot.slane %v3285, 2
      %v3401 = vsel %vm3075, %v3398, %v3400
      %v3402 = vrot.slane %v3286, 2
      %v3403 = vrot.slane %v3287, 2
      %v3404 = vsel %vm3075, %v3402, %v3403
      %v3405 = vrot.slane %v3288, 2
      %v3406 = vsel %vm3075, %v3403, %v3405
      %v3407 = vrot.slane %v3289, 2
      %v3408 = vrot.slane %v3290, 2
      %v3409 = vsel %vm3075, %v3407, %v3408
      %v3410 = vrot.slane %v3291, 2
      %v3411 = vsel %vm3075, %v3408, %v3410
      %v3412 = vrot.slane %v3292, 2
      %v3413 = vrot.slane %v3293, 2
      %v3414 = vsel %vm3075, %v3412, %v3413
      %v3415 = vrot.slane %v3294, 2
      %v3416 = vsel %vm3075, %v3413, %v3415
      %v3417 = vrot.slane %v3295, 2
      %v3418 = vrot.slane %v3296, 2
      %v3419 = vsel %vm3075, %v3417, %v3418
      %v3420 = vrot.slane %v3297, 2
      %v3421 = vsel %vm3075, %v3418, %v3420
      %v3422 = vrot.slane %v3298, 2
      %v3423 = vrot.slane %v3299, 2
      %v3424 = vsel %vm3075, %v3422, %v3423
      %v3425 = vrot.slane %v3300, 2
      %v3426 = vsel %vm3075, %v3423, %v3425
      %v3427 = vrot.slane %v3301, 2
      %v3428 = vrot.slane %v3302, 2
      %v3429 = vsel %vm3075, %v3427, %v3428
      %v3430 = vrot.slane %v3303, 2
      %v3431 = vsel %vm3075, %v3428, %v3430
      %v3464 = vadd.f32 %v2911, %v3354
      %v3465 = vadd.f32 %v2912, %v3356
      %v3466 = vadd.f32 %v2913, %v3359
      %v3467 = vadd.f32 %v2914, %v3361
      %v3468 = vadd.f32 %v2915, %v3364
      %v3469 = vadd.f32 %v2916, %v3366
      %v3470 = vadd.f32 %v2917, %v3369
      %v3471 = vadd.f32 %v2918, %v3371
      %v3472 = vadd.f32 %v2919, %v3374
      %v3473 = vadd.f32 %v2920, %v3376
      %v3474 = vadd.f32 %v2921, %v3379
      %v3475 = vadd.f32 %v2922, %v3381
      %v3476 = vadd.f32 %v2923, %v3384
      %v3477 = vadd.f32 %v2924, %v3386
      %v3478 = vadd.f32 %v2925, %v3389
      %v3479 = vadd.f32 %v2926, %v3391
      %v3480 = vadd.f32 %v2927, %v3394
      %v3481 = vadd.f32 %v2928, %v3396
      %v3482 = vadd.f32 %v2929, %v3399
      %v3483 = vadd.f32 %v2930, %v3401
      %v3484 = vadd.f32 %v2931, %v3404
      %v3485 = vadd.f32 %v2932, %v3406
      %v3486 = vadd.f32 %v2933, %v3409
      %v3487 = vadd.f32 %v2934, %v3411
      %v3488 = vadd.f32 %v2935, %v3414
      %v3489 = vadd.f32 %v2936, %v3416
      %v3490 = vadd.f32 %v2937, %v3419
      %v3491 = vadd.f32 %v2938, %v3421
      %v3492 = vadd.f32 %v2939, %v3424
      %v3493 = vadd.f32 %v2940, %v3426
      %v3494 = vadd.f32 %v2941, %v3429
      %v3495 = vadd.f32 %v2942, %v3431
      %v3496 = vld [vmem:[%s1191] sm:$0xf]
      %v3497 = vld [vmem:[%s1191 + $0x4] sm:$0xf]
      %v3498 = vld [vmem:[%s1191 + $0xc] sm:$0xf]
      %v3499 = vld [vmem:[%s1191 + $0x10] sm:$0xf]
      %v3500 = vld [vmem:[%s1191 + $0x18] sm:$0xf]
      %v3501 = vld [vmem:[%s1191 + $0x1c] sm:$0xf]
      %v3502 = vld [vmem:[%s1191 + $0x24] sm:$0xf]
      %v3503 = vld [vmem:[%s1191 + $0x28] sm:$0xf]
      %v3504 = vld [vmem:[%s1191 + $0x30] sm:$0xf]
      %v3505 = vld [vmem:[%s1191 + $0x34] sm:$0xf]
      %v3506 = vld [vmem:[%s1191 + $0x3c] sm:$0xf]
      %v3507 = vld [vmem:[%s1191 + $0x40] sm:$0xf]
      %v3508 = vld [vmem:[%s1191 + $0x48] sm:$0xf]
      %v3509 = vld [vmem:[%s1191 + $0x4c] sm:$0xf]
      %v3510 = vld [vmem:[%s1191 + $0x54] sm:$0xf]
      %v3511 = vld [vmem:[%s1191 + $0x58] sm:$0xf]
      %v3512 = vld [vmem:[%s1191 + $0x60] sm:$0xf]
      %v3513 = vld [vmem:[%s1191 + $0x64] sm:$0xf]
      %v3514 = vld [vmem:[%s1191 + $0x6c] sm:$0xf]
      %v3515 = vld [vmem:[%s1191 + $0x70] sm:$0xf]
      %v3516 = vld [vmem:[%s1191 + $0x78] sm:$0xf]
      %v3517 = vld [vmem:[%s1191 + $0x7c] sm:$0xf]
      %v3518 = vld [vmem:[%s1191 + $0x84] sm:$0xf]
      %v3519 = vld [vmem:[%s1191 + $0x88] sm:$0xf]
      %v3520 = vld [vmem:[%s1191 + $0x90] sm:$0xf]
      %v3521 = vld [vmem:[%s1191 + $0x94] sm:$0xf]
      %v3522 = vld [vmem:[%s1191 + $0x9c] sm:$0xf]
      %v3523 = vld [vmem:[%s1191 + $0xa0] sm:$0xf]
      %v3524 = vld [vmem:[%s1191 + $0xa8] sm:$0xf]
      %v3525 = vld [vmem:[%s1191 + $0xac] sm:$0xf]
      %v3526 = vld [vmem:[%s1191 + $0xb4] sm:$0xf]
      %v3527 = vld [vmem:[%s1191 + $0xb8] sm:$0xf]
      %v3528 = vunpack.c.l.bf16 %v3496
      %v3529 = vunpack.c.l.bf16 %v3497
      %v3530 = vunpack.c.l.bf16 %v3498
      %v3531 = vunpack.c.l.bf16 %v3499
      %v3532 = vunpack.c.l.bf16 %v3500
      %v3533 = vunpack.c.l.bf16 %v3501
      %v3534 = vunpack.c.l.bf16 %v3502
      %v3535 = vunpack.c.l.bf16 %v3503
      %v3536 = vunpack.c.l.bf16 %v3504
      %v3537 = vunpack.c.l.bf16 %v3505
      %v3538 = vunpack.c.l.bf16 %v3506
      %v3539 = vunpack.c.l.bf16 %v3507
      %v3540 = vunpack.c.l.bf16 %v3508
      %v3541 = vunpack.c.l.bf16 %v3509
      %v3542 = vunpack.c.l.bf16 %v3510
      %v3543 = vunpack.c.l.bf16 %v3511
      %v3544 = vunpack.c.l.bf16 %v3512
      %v3545 = vunpack.c.l.bf16 %v3513
      %v3546 = vunpack.c.l.bf16 %v3514
      %v3547 = vunpack.c.l.bf16 %v3515
      %v3548 = vunpack.c.l.bf16 %v3516
      %v3549 = vunpack.c.l.bf16 %v3517
      %v3550 = vunpack.c.l.bf16 %v3518
      %v3551 = vunpack.c.l.bf16 %v3519
      %v3552 = vunpack.c.l.bf16 %v3520
      %v3553 = vunpack.c.l.bf16 %v3521
      %v3554 = vunpack.c.l.bf16 %v3522
      %v3555 = vunpack.c.l.bf16 %v3523
      %v3556 = vunpack.c.l.bf16 %v3524
      %v3557 = vunpack.c.l.bf16 %v3525
      %v3558 = vunpack.c.l.bf16 %v3526
      %v3559 = vunpack.c.l.bf16 %v3527
      %v3560 = vlaneseq
      %v3561 = vshrl.u32 %v3560, 7
      %v3562 = vsub.s32 0, %v3561
      %v3563 = vrot.slane %v2121, %v3562
      %v3564 = vmul.f32 %v3528, %v3563
      %v3565 = vmul.f32 %v3529, %v3563
      %v3566 = vmul.f32 %v3530, %v3563
      %v3567 = vmul.f32 %v3531, %v3563
      %v3568 = vmul.f32 %v3532, %v3563
      %v3569 = vmul.f32 %v3533, %v3563
      %v3570 = vmul.f32 %v3534, %v3563
      %v3571 = vmul.f32 %v3535, %v3563
      %v3572 = vmul.f32 %v3536, %v3563
      %v3573 = vmul.f32 %v3537, %v3563
      %v3574 = vmul.f32 %v3538, %v3563
      %v3575 = vmul.f32 %v3539, %v3563
      %v3576 = vmul.f32 %v3540, %v3563
      %v3577 = vmul.f32 %v3541, %v3563
      %v3578 = vmul.f32 %v3542, %v3563
      %v3579 = vmul.f32 %v3543, %v3563
      %v3580 = vmul.f32 %v3544, %v3563
      %v3581 = vmul.f32 %v3545, %v3563
      %v3582 = vmul.f32 %v3546, %v3563
      %v3583 = vmul.f32 %v3547, %v3563
      %v3584 = vmul.f32 %v3548, %v3563
      %v3585 = vmul.f32 %v3549, %v3563
      %v3586 = vmul.f32 %v3550, %v3563
      %v3587 = vmul.f32 %v3551, %v3563
      %v3588 = vmul.f32 %v3552, %v3563
      %v3589 = vmul.f32 %v3553, %v3563
      %v3590 = vmul.f32 %v3554, %v3563
      %v3591 = vmul.f32 %v3555, %v3563
      %v3592 = vmul.f32 %v3556, %v3563
      %v3593 = vmul.f32 %v3557, %v3563
      %v3594 = vmul.f32 %v3558, %v3563
      %v3595 = vmul.f32 %v3559, %v3563
      %v3596 = vadd.f32 %v3188, %v3564
      %v3597 = vadd.f32 %v3189, %v3565
      %v3598 = vadd.f32 %v3190, %v3566
      %v3599 = vadd.f32 %v3191, %v3567
      %v3600 = vadd.f32 %v3192, %v3568
      %v3601 = vadd.f32 %v3193, %v3569
      %v3602 = vadd.f32 %v3194, %v3570
      %v3603 = vadd.f32 %v3195, %v3571
      %v3604 = vadd.f32 %v3196, %v3572
      %v3605 = vadd.f32 %v3197, %v3573
      %v3606 = vadd.f32 %v3198, %v3574
      %v3607 = vadd.f32 %v3199, %v3575
      %v3608 = vadd.f32 %v3200, %v3576
      %v3609 = vadd.f32 %v3201, %v3577
      %v3610 = vadd.f32 %v3202, %v3578
      %v3611 = vadd.f32 %v3203, %v3579
      %v3612 = vadd.f32 %v3204, %v3580
      %v3613 = vadd.f32 %v3205, %v3581
      %v3614 = vadd.f32 %v3206, %v3582
      %v3615 = vadd.f32 %v3207, %v3583
      %v3616 = vadd.f32 %v3208, %v3584
      %v3617 = vadd.f32 %v3209, %v3585
      %v3618 = vadd.f32 %v3210, %v3586
      %v3619 = vadd.f32 %v3211, %v3587
      %v3620 = vadd.f32 %v3212, %v3588
      %v3621 = vadd.f32 %v3213, %v3589
      %v3622 = vadd.f32 %v3214, %v3590
      %v3623 = vadd.f32 %v3215, %v3591
      %v3624 = vadd.f32 %v3216, %v3592
      %v3625 = vadd.f32 %v3217, %v3593
      %v3626 = vadd.f32 %v3218, %v3594
      %v3627 = vadd.f32 %v3219, %v3595
      %v3628 = vld [vmem:[%s1836] sm:$0xf]
      %v3629 = vld [vmem:[%s1836 + $0x4] sm:$0xf]
      %v3630 = vld [vmem:[%s1836 + $0xc] sm:$0xf]
      %v3631 = vld [vmem:[%s1836 + $0x10] sm:$0xf]
      %v3632 = vld [vmem:[%s1836 + $0x18] sm:$0xf]
      %v3633 = vld [vmem:[%s1836 + $0x1c] sm:$0xf]
      %v3634 = vld [vmem:[%s1836 + $0x24] sm:$0xf]
      %v3635 = vld [vmem:[%s1836 + $0x28] sm:$0xf]
      %v3636 = vld [vmem:[%s1836 + $0x30] sm:$0xf]
      %v3637 = vld [vmem:[%s1836 + $0x34] sm:$0xf]
      %v3638 = vld [vmem:[%s1836 + $0x3c] sm:$0xf]
      %v3639 = vld [vmem:[%s1836 + $0x40] sm:$0xf]
      %v3640 = vld [vmem:[%s1836 + $0x48] sm:$0xf]
      %v3641 = vld [vmem:[%s1836 + $0x4c] sm:$0xf]
      %v3642 = vld [vmem:[%s1836 + $0x54] sm:$0xf]
      %v3643 = vld [vmem:[%s1836 + $0x58] sm:$0xf]
      %v3644 = vld [vmem:[%s1836 + $0x60] sm:$0xf]
      %v3645 = vld [vmem:[%s1836 + $0x64] sm:$0xf]
      %v3646 = vld [vmem:[%s1836 + $0x6c] sm:$0xf]
      %v3647 = vld [vmem:[%s1836 + $0x70] sm:$0xf]
      %v3648 = vld [vmem:[%s1836 + $0x78] sm:$0xf]
      %v3649 = vld [vmem:[%s1836 + $0x7c] sm:$0xf]
      %v3650 = vld [vmem:[%s1836 + $0x84] sm:$0xf]
      %v3651 = vld [vmem:[%s1836 + $0x88] sm:$0xf]
      %v3652 = vld [vmem:[%s1836 + $0x90] sm:$0xf]
      %v3653 = vld [vmem:[%s1836 + $0x94] sm:$0xf]
      %v3654 = vld [vmem:[%s1836 + $0x9c] sm:$0xf]
      %v3655 = vld [vmem:[%s1836 + $0xa0] sm:$0xf]
      %v3656 = vld [vmem:[%s1836 + $0xa8] sm:$0xf]
      %v3657 = vld [vmem:[%s1836 + $0xac] sm:$0xf]
      %v3658 = vld [vmem:[%s1836 + $0xb4] sm:$0xf]
      %v3659 = vld [vmem:[%s1836 + $0xb8] sm:$0xf]
      %v3660 = vunpack.c.l.bf16 %v3628
      %v3661 = vunpack.c.l.bf16 %v3629
      %v3662 = vunpack.c.l.bf16 %v3630
      %v3663 = vunpack.c.l.bf16 %v3631
      %v3664 = vunpack.c.l.bf16 %v3632
      %v3665 = vunpack.c.l.bf16 %v3633
      %v3666 = vunpack.c.l.bf16 %v3634
      %v3667 = vunpack.c.l.bf16 %v3635
      %v3668 = vunpack.c.l.bf16 %v3636
      %v3669 = vunpack.c.l.bf16 %v3637
      %v3670 = vunpack.c.l.bf16 %v3638
      %v3671 = vunpack.c.l.bf16 %v3639
      %v3672 = vunpack.c.l.bf16 %v3640
      %v3673 = vunpack.c.l.bf16 %v3641
      %v3674 = vunpack.c.l.bf16 %v3642
      %v3675 = vunpack.c.l.bf16 %v3643
      %v3676 = vunpack.c.l.bf16 %v3644
      %v3677 = vunpack.c.l.bf16 %v3645
      %v3678 = vunpack.c.l.bf16 %v3646
      %v3679 = vunpack.c.l.bf16 %v3647
      %v3680 = vunpack.c.l.bf16 %v3648
      %v3681 = vunpack.c.l.bf16 %v3649
      %v3682 = vunpack.c.l.bf16 %v3650
      %v3683 = vunpack.c.l.bf16 %v3651
      %v3684 = vunpack.c.l.bf16 %v3652
      %v3685 = vunpack.c.l.bf16 %v3653
      %v3686 = vunpack.c.l.bf16 %v3654
      %v3687 = vunpack.c.l.bf16 %v3655
      %v3688 = vunpack.c.l.bf16 %v3656
      %v3689 = vunpack.c.l.bf16 %v3657
      %v3690 = vunpack.c.l.bf16 %v3658
      %v3691 = vunpack.c.l.bf16 %v3659
      %v3692 = vlaneseq
      %v3693 = vshrl.u32 %v3692, 7
      %v3694 = vsub.s32 0, %v3693
      %v3695 = vrot.slane %v2124, %v3694
      %v3696 = vmul.f32 %v3660, %v3695
      %v3697 = vmul.f32 %v3661, %v3695
      %v3698 = vmul.f32 %v3662, %v3695
      %v3699 = vmul.f32 %v3663, %v3695
      %v3700 = vmul.f32 %v3664, %v3695
      %v3701 = vmul.f32 %v3665, %v3695
      %v3702 = vmul.f32 %v3666, %v3695
      %v3703 = vmul.f32 %v3667, %v3695
      %v3704 = vmul.f32 %v3668, %v3695
      %v3705 = vmul.f32 %v3669, %v3695
      %v3706 = vmul.f32 %v3670, %v3695
      %v3707 = vmul.f32 %v3671, %v3695
      %v3708 = vmul.f32 %v3672, %v3695
      %v3709 = vmul.f32 %v3673, %v3695
      %v3710 = vmul.f32 %v3674, %v3695
      %v3711 = vmul.f32 %v3675, %v3695
      %v3712 = vmul.f32 %v3676, %v3695
      %v3713 = vmul.f32 %v3677, %v3695
      %v3714 = vmul.f32 %v3678, %v3695
      %v3715 = vmul.f32 %v3679, %v3695
      %v3716 = vmul.f32 %v3680, %v3695
      %v3717 = vmul.f32 %v3681, %v3695
      %v3718 = vmul.f32 %v3682, %v3695
      %v3719 = vmul.f32 %v3683, %v3695
      %v3720 = vmul.f32 %v3684, %v3695
      %v3721 = vmul.f32 %v3685, %v3695
      %v3722 = vmul.f32 %v3686, %v3695
      %v3723 = vmul.f32 %v3687, %v3695
      %v3724 = vmul.f32 %v3688, %v3695
      %v3725 = vmul.f32 %v3689, %v3695
      %v3726 = vmul.f32 %v3690, %v3695
      %v3727 = vmul.f32 %v3691, %v3695
      %v3728 = vadd.f32 %v3464, %v3696
      %v3729 = vadd.f32 %v3465, %v3697
      %v3730 = vadd.f32 %v3466, %v3698
      %v3731 = vadd.f32 %v3467, %v3699
      %v3732 = vadd.f32 %v3468, %v3700
      %v3733 = vadd.f32 %v3469, %v3701
      %v3734 = vadd.f32 %v3470, %v3702
      %v3735 = vadd.f32 %v3471, %v3703
      %v3736 = vadd.f32 %v3472, %v3704
      %v3737 = vadd.f32 %v3473, %v3705
      %v3738 = vadd.f32 %v3474, %v3706
      %v3739 = vadd.f32 %v3475, %v3707
      %v3740 = vadd.f32 %v3476, %v3708
      %v3741 = vadd.f32 %v3477, %v3709
      %v3742 = vadd.f32 %v3478, %v3710
      %v3743 = vadd.f32 %v3479, %v3711
      %v3744 = vadd.f32 %v3480, %v3712
      %v3745 = vadd.f32 %v3481, %v3713
      %v3746 = vadd.f32 %v3482, %v3714
      %v3747 = vadd.f32 %v3483, %v3715
      %v3748 = vadd.f32 %v3484, %v3716
      %v3749 = vadd.f32 %v3485, %v3717
      %v3750 = vadd.f32 %v3486, %v3718
      %v3751 = vadd.f32 %v3487, %v3719
      %v3752 = vadd.f32 %v3488, %v3720
      %v3753 = vadd.f32 %v3489, %v3721
      %v3754 = vadd.f32 %v3490, %v3722
      %v3755 = vadd.f32 %v3491, %v3723
      %v3756 = vadd.f32 %v3492, %v3724
      %v3757 = vadd.f32 %v3493, %v3725
      %v3758 = vadd.f32 %v3494, %v3726
      %v3759 = vadd.f32 %v3495, %v3727
      %v3760 = vld [vmem:[%s1191 + $0x8] sm:$0x1]
      %v3761 = vld [vmem:[%s1191 + $0x14] sm:$0x1]
      %v3762 = vld [vmem:[%s1191 + $0x20] sm:$0x1]
      %v3763 = vld [vmem:[%s1191 + $0x2c] sm:$0x1]
      %v3764 = vld [vmem:[%s1191 + $0x38] sm:$0x1]
      %v3765 = vld [vmem:[%s1191 + $0x44] sm:$0x1]
      %v3766 = vld [vmem:[%s1191 + $0x50] sm:$0x1]
      %v3767 = vld [vmem:[%s1191 + $0x5c] sm:$0x1]
      %v3768 = vld [vmem:[%s1191 + $0x68] sm:$0x1]
      %v3769 = vld [vmem:[%s1191 + $0x74] sm:$0x1]
      %v3770 = vld [vmem:[%s1191 + $0x80] sm:$0x1]
      %v3771 = vld [vmem:[%s1191 + $0x8c] sm:$0x1]
      %v3772 = vld [vmem:[%s1191 + $0x98] sm:$0x1]
      %v3773 = vld [vmem:[%s1191 + $0xa4] sm:$0x1]
      %v3774 = vld [vmem:[%s1191 + $0xb0] sm:$0x1]
      %v3775 = vld [vmem:[%s1191 + $0xbc] sm:$0x1]
      %v3776 = vunpack.c.l.bf16 %v3760
      %v3777 = vunpack.c.l.bf16 %v3761
      %v3778 = vunpack.c.l.bf16 %v3762
      %v3779 = vunpack.c.l.bf16 %v3763
      %v3780 = vunpack.c.l.bf16 %v3764
      %v3781 = vunpack.c.l.bf16 %v3765
      %v3782 = vunpack.c.l.bf16 %v3766
      %v3783 = vunpack.c.l.bf16 %v3767
      %v3784 = vunpack.c.l.bf16 %v3768
      %v3785 = vunpack.c.l.bf16 %v3769
      %v3786 = vunpack.c.l.bf16 %v3770
      %v3787 = vunpack.c.l.bf16 %v3771
      %v3788 = vunpack.c.l.bf16 %v3772
      %v3789 = vunpack.c.l.bf16 %v3773
      %v3790 = vunpack.c.l.bf16 %v3774
      %v3791 = vunpack.c.l.bf16 %v3775
      %v3792 = vlaneseq
      %v3793 = vshrl.u32 %v3792, 7
      %v3794 = vsub.s32 1, %v3793
      %v3795 = vrot.slane %v2121, %v3794
      %v3796 = vmul.f32 %v3528, %v3795
      %v3797 = vmul.f32 %v3529, %v3795
      %v3798 = vmul.f32 %v3776, %v3795
      %v3799 = vmul.f32 %v3530, %v3795
      %v3800 = vmul.f32 %v3531, %v3795
      %v3801 = vmul.f32 %v3777, %v3795
      %v3802 = vmul.f32 %v3532, %v3795
      %v3803 = vmul.f32 %v3533, %v3795
      %v3804 = vmul.f32 %v3778, %v3795
      %v3805 = vmul.f32 %v3534, %v3795
      %v3806 = vmul.f32 %v3535, %v3795
      %v3807 = vmul.f32 %v3779, %v3795
      %v3808 = vmul.f32 %v3536, %v3795
      %v3809 = vmul.f32 %v3537, %v3795
      %v3810 = vmul.f32 %v3780, %v3795
      %v3811 = vmul.f32 %v3538, %v3795
      %v3812 = vmul.f32 %v3539, %v3795
      %v3813 = vmul.f32 %v3781, %v3795
      %v3814 = vmul.f32 %v3540, %v3795
      %v3815 = vmul.f32 %v3541, %v3795
      %v3816 = vmul.f32 %v3782, %v3795
      %v3817 = vmul.f32 %v3542, %v3795
      %v3818 = vmul.f32 %v3543, %v3795
      %v3819 = vmul.f32 %v3783, %v3795
      %v3820 = vmul.f32 %v3544, %v3795
      %v3821 = vmul.f32 %v3545, %v3795
      %v3822 = vmul.f32 %v3784, %v3795
      %v3823 = vmul.f32 %v3546, %v3795
      %v3824 = vmul.f32 %v3547, %v3795
      %v3825 = vmul.f32 %v3785, %v3795
      %v3826 = vmul.f32 %v3548, %v3795
      %v3827 = vmul.f32 %v3549, %v3795
      %v3828 = vmul.f32 %v3786, %v3795
      %v3829 = vmul.f32 %v3550, %v3795
      %v3830 = vmul.f32 %v3551, %v3795
      %v3831 = vmul.f32 %v3787, %v3795
      %v3832 = vmul.f32 %v3552, %v3795
      %v3833 = vmul.f32 %v3553, %v3795
      %v3834 = vmul.f32 %v3788, %v3795
      %v3835 = vmul.f32 %v3554, %v3795
      %v3836 = vmul.f32 %v3555, %v3795
      %v3837 = vmul.f32 %v3789, %v3795
      %v3838 = vmul.f32 %v3556, %v3795
      %v3839 = vmul.f32 %v3557, %v3795
      %v3840 = vmul.f32 %v3790, %v3795
      %v3841 = vmul.f32 %v3558, %v3795
      %v3842 = vmul.f32 %v3559, %v3795
      %v3843 = vmul.f32 %v3791, %v3795
      %v3892 = vrot.slane %v3796, 1
      %v3893 = vrot.slane %v3797, 1
      %v3894 = vsel %vm2522, %v3892, %v3893
      %v3895 = vrot.slane %v3798, 1
      %v3896 = vsel %vm2522, %v3893, %v3895
      %v3897 = vrot.slane %v3799, 1
      %v3898 = vrot.slane %v3800, 1
      %v3899 = vsel %vm2522, %v3897, %v3898
      %v3900 = vrot.slane %v3801, 1
      %v3901 = vsel %vm2522, %v3898, %v3900
      %v3902 = vrot.slane %v3802, 1
      %v3903 = vrot.slane %v3803, 1
      %v3904 = vsel %vm2522, %v3902, %v3903
      %v3905 = vrot.slane %v3804, 1
      %v3906 = vsel %vm2522, %v3903, %v3905
      %v3907 = vrot.slane %v3805, 1
      %v3908 = vrot.slane %v3806, 1
      %v3909 = vsel %vm2522, %v3907, %v3908
      %v3910 = vrot.slane %v3807, 1
      %v3911 = vsel %vm2522, %v3908, %v3910
      %v3912 = vrot.slane %v3808, 1
      %v3913 = vrot.slane %v3809, 1
      %v3914 = vsel %vm2522, %v3912, %v3913
      %v3915 = vrot.slane %v3810, 1
      %v3916 = vsel %vm2522, %v3913, %v3915
      %v3917 = vrot.slane %v3811, 1
      %v3918 = vrot.slane %v3812, 1
      %v3919 = vsel %vm2522, %v3917, %v3918
      %v3920 = vrot.slane %v3813, 1
      %v3921 = vsel %vm2522, %v3918, %v3920
      %v3922 = vrot.slane %v3814, 1
      %v3923 = vrot.slane %v3815, 1
      %v3924 = vsel %vm2522, %v3922, %v3923
      %v3925 = vrot.slane %v3816, 1
      %v3926 = vsel %vm2522, %v3923, %v3925
      %v3927 = vrot.slane %v3817, 1
      %v3928 = vrot.slane %v3818, 1
      %v3929 = vsel %vm2522, %v3927, %v3928
      %v3930 = vrot.slane %v3819, 1
      %v3931 = vsel %vm2522, %v3928, %v3930
      %v3932 = vrot.slane %v3820, 1
      %v3933 = vrot.slane %v3821, 1
      %v3934 = vsel %vm2522, %v3932, %v3933
      %v3935 = vrot.slane %v3822, 1
      %v3936 = vsel %vm2522, %v3933, %v3935
      %v3937 = vrot.slane %v3823, 1
      %v3938 = vrot.slane %v3824, 1
      %v3939 = vsel %vm2522, %v3937, %v3938
      %v3940 = vrot.slane %v3825, 1
      %v3941 = vsel %vm2522, %v3938, %v3940
      %v3942 = vrot.slane %v3826, 1
      %v3943 = vrot.slane %v3827, 1
      %v3944 = vsel %vm2522, %v3942, %v3943
      %v3945 = vrot.slane %v3828, 1
      %v3946 = vsel %vm2522, %v3943, %v3945
      %v3947 = vrot.slane %v3829, 1
      %v3948 = vrot.slane %v3830, 1
      %v3949 = vsel %vm2522, %v3947, %v3948
      %v3950 = vrot.slane %v3831, 1
      %v3951 = vsel %vm2522, %v3948, %v3950
      %v3952 = vrot.slane %v3832, 1
      %v3953 = vrot.slane %v3833, 1
      %v3954 = vsel %vm2522, %v3952, %v3953
      %v3955 = vrot.slane %v3834, 1
      %v3956 = vsel %vm2522, %v3953, %v3955
      %v3957 = vrot.slane %v3835, 1
      %v3958 = vrot.slane %v3836, 1
      %v3959 = vsel %vm2522, %v3957, %v3958
      %v3960 = vrot.slane %v3837, 1
      %v3961 = vsel %vm2522, %v3958, %v3960
      %v3962 = vrot.slane %v3838, 1
      %v3963 = vrot.slane %v3839, 1
      %v3964 = vsel %vm2522, %v3962, %v3963
      %v3965 = vrot.slane %v3840, 1
      %v3966 = vsel %vm2522, %v3963, %v3965
      %v3967 = vrot.slane %v3841, 1
      %v3968 = vrot.slane %v3842, 1
      %v3969 = vsel %vm2522, %v3967, %v3968
      %v3970 = vrot.slane %v3843, 1
      %v3971 = vsel %vm2522, %v3968, %v3970
      %v4004 = vadd.f32 %v3596, %v3894
      %v4005 = vadd.f32 %v3597, %v3896
      %v4006 = vadd.f32 %v3598, %v3899
      %v4007 = vadd.f32 %v3599, %v3901
      %v4008 = vadd.f32 %v3600, %v3904
      %v4009 = vadd.f32 %v3601, %v3906
      %v4010 = vadd.f32 %v3602, %v3909
      %v4011 = vadd.f32 %v3603, %v3911
      %v4012 = vadd.f32 %v3604, %v3914
      %v4013 = vadd.f32 %v3605, %v3916
      %v4014 = vadd.f32 %v3606, %v3919
      %v4015 = vadd.f32 %v3607, %v3921
      %v4016 = vadd.f32 %v3608, %v3924
      %v4017 = vadd.f32 %v3609, %v3926
      %v4018 = vadd.f32 %v3610, %v3929
      %v4019 = vadd.f32 %v3611, %v3931
      %v4020 = vadd.f32 %v3612, %v3934
      %v4021 = vadd.f32 %v3613, %v3936
      %v4022 = vadd.f32 %v3614, %v3939
      %v4023 = vadd.f32 %v3615, %v3941
      %v4024 = vadd.f32 %v3616, %v3944
      %v4025 = vadd.f32 %v3617, %v3946
      %v4026 = vadd.f32 %v3618, %v3949
      %v4027 = vadd.f32 %v3619, %v3951
      %v4028 = vadd.f32 %v3620, %v3954
      %v4029 = vadd.f32 %v3621, %v3956
      %v4030 = vadd.f32 %v3622, %v3959
      %v4031 = vadd.f32 %v3623, %v3961
      %v4032 = vadd.f32 %v3624, %v3964
      %v4033 = vadd.f32 %v3625, %v3966
      %v4034 = vadd.f32 %v3626, %v3969
      %v4035 = vadd.f32 %v3627, %v3971
      %v4036 = vld [vmem:[%s1836 + $0x8] sm:$0x1]
      %v4037 = vld [vmem:[%s1836 + $0x14] sm:$0x1]
      %v4038 = vld [vmem:[%s1836 + $0x20] sm:$0x1]
      %v4039 = vld [vmem:[%s1836 + $0x2c] sm:$0x1]
      %v4040 = vld [vmem:[%s1836 + $0x38] sm:$0x1]
      %v4041 = vld [vmem:[%s1836 + $0x44] sm:$0x1]
      %v4042 = vld [vmem:[%s1836 + $0x50] sm:$0x1]
      %v4043 = vld [vmem:[%s1836 + $0x5c] sm:$0x1]
      %v4044 = vld [vmem:[%s1836 + $0x68] sm:$0x1]
      %v4045 = vld [vmem:[%s1836 + $0x74] sm:$0x1]
      %v4046 = vld [vmem:[%s1836 + $0x80] sm:$0x1]
      %v4047 = vld [vmem:[%s1836 + $0x8c] sm:$0x1]
      %v4048 = vld [vmem:[%s1836 + $0x98] sm:$0x1]
      %v4049 = vld [vmem:[%s1836 + $0xa4] sm:$0x1]
      %v4050 = vld [vmem:[%s1836 + $0xb0] sm:$0x1]
      %v4051 = vld [vmem:[%s1836 + $0xbc] sm:$0x1]
      %v4052 = vunpack.c.l.bf16 %v4036
      %v4053 = vunpack.c.l.bf16 %v4037
      %v4054 = vunpack.c.l.bf16 %v4038
      %v4055 = vunpack.c.l.bf16 %v4039
      %v4056 = vunpack.c.l.bf16 %v4040
      %v4057 = vunpack.c.l.bf16 %v4041
      %v4058 = vunpack.c.l.bf16 %v4042
      %v4059 = vunpack.c.l.bf16 %v4043
      %v4060 = vunpack.c.l.bf16 %v4044
      %v4061 = vunpack.c.l.bf16 %v4045
      %v4062 = vunpack.c.l.bf16 %v4046
      %v4063 = vunpack.c.l.bf16 %v4047
      %v4064 = vunpack.c.l.bf16 %v4048
      %v4065 = vunpack.c.l.bf16 %v4049
      %v4066 = vunpack.c.l.bf16 %v4050
      %v4067 = vunpack.c.l.bf16 %v4051
      %v4068 = vlaneseq
      %v4069 = vshrl.u32 %v4068, 7
      %v4070 = vsub.s32 1, %v4069
      %v4071 = vrot.slane %v2124, %v4070
      %v4072 = vmul.f32 %v3660, %v4071
      %v4073 = vmul.f32 %v3661, %v4071
      %v4074 = vmul.f32 %v4052, %v4071
      %v4075 = vmul.f32 %v3662, %v4071
      %v4076 = vmul.f32 %v3663, %v4071
      %v4077 = vmul.f32 %v4053, %v4071
      %v4078 = vmul.f32 %v3664, %v4071
      %v4079 = vmul.f32 %v3665, %v4071
      %v4080 = vmul.f32 %v4054, %v4071
      %v4081 = vmul.f32 %v3666, %v4071
      %v4082 = vmul.f32 %v3667, %v4071
      %v4083 = vmul.f32 %v4055, %v4071
      %v4084 = vmul.f32 %v3668, %v4071
      %v4085 = vmul.f32 %v3669, %v4071
      %v4086 = vmul.f32 %v4056, %v4071
      %v4087 = vmul.f32 %v3670, %v4071
      %v4088 = vmul.f32 %v3671, %v4071
      %v4089 = vmul.f32 %v4057, %v4071
      %v4090 = vmul.f32 %v3672, %v4071
      %v4091 = vmul.f32 %v3673, %v4071
      %v4092 = vmul.f32 %v4058, %v4071
      %v4093 = vmul.f32 %v3674, %v4071
      %v4094 = vmul.f32 %v3675, %v4071
      %v4095 = vmul.f32 %v4059, %v4071
      %v4096 = vmul.f32 %v3676, %v4071
      %v4097 = vmul.f32 %v3677, %v4071
      %v4098 = vmul.f32 %v4060, %v4071
      %v4099 = vmul.f32 %v3678, %v4071
      %v4100 = vmul.f32 %v3679, %v4071
      %v4101 = vmul.f32 %v4061, %v4071
      %v4102 = vmul.f32 %v3680, %v4071
      %v4103 = vmul.f32 %v3681, %v4071
      %v4104 = vmul.f32 %v4062, %v4071
      %v4105 = vmul.f32 %v3682, %v4071
      %v4106 = vmul.f32 %v3683, %v4071
      %v4107 = vmul.f32 %v4063, %v4071
      %v4108 = vmul.f32 %v3684, %v4071
      %v4109 = vmul.f32 %v3685, %v4071
      %v4110 = vmul.f32 %v4064, %v4071
      %v4111 = vmul.f32 %v3686, %v4071
      %v4112 = vmul.f32 %v3687, %v4071
      %v4113 = vmul.f32 %v4065, %v4071
      %v4114 = vmul.f32 %v3688, %v4071
      %v4115 = vmul.f32 %v3689, %v4071
      %v4116 = vmul.f32 %v4066, %v4071
      %v4117 = vmul.f32 %v3690, %v4071
      %v4118 = vmul.f32 %v3691, %v4071
      %v4119 = vmul.f32 %v4067, %v4071
      %v4168 = vrot.slane %v4072, 1
      %v4169 = vrot.slane %v4073, 1
      %v4170 = vsel %vm2522, %v4168, %v4169
      %v4171 = vrot.slane %v4074, 1
      %v4172 = vsel %vm2522, %v4169, %v4171
      %v4173 = vrot.slane %v4075, 1
      %v4174 = vrot.slane %v4076, 1
      %v4175 = vsel %vm2522, %v4173, %v4174
      %v4176 = vrot.slane %v4077, 1
      %v4177 = vsel %vm2522, %v4174, %v4176
      %v4178 = vrot.slane %v4078, 1
      %v4179 = vrot.slane %v4079, 1
      %v4180 = vsel %vm2522, %v4178, %v4179
      %v4181 = vrot.slane %v4080, 1
      %v4182 = vsel %vm2522, %v4179, %v4181
      %v4183 = vrot.slane %v4081, 1
      %v4184 = vrot.slane %v4082, 1
      %v4185 = vsel %vm2522, %v4183, %v4184
      %v4186 = vrot.slane %v4083, 1
      %v4187 = vsel %vm2522, %v4184, %v4186
      %v4188 = vrot.slane %v4084, 1
      %v4189 = vrot.slane %v4085, 1
      %v4190 = vsel %vm2522, %v4188, %v4189
      %v4191 = vrot.slane %v4086, 1
      %v4192 = vsel %vm2522, %v4189, %v4191
      %v4193 = vrot.slane %v4087, 1
      %v4194 = vrot.slane %v4088, 1
      %v4195 = vsel %vm2522, %v4193, %v4194
      %v4196 = vrot.slane %v4089, 1
      %v4197 = vsel %vm2522, %v4194, %v4196
      %v4198 = vrot.slane %v4090, 1
      %v4199 = vrot.slane %v4091, 1
      %v4200 = vsel %vm2522, %v4198, %v4199
      %v4201 = vrot.slane %v4092, 1
      %v4202 = vsel %vm2522, %v4199, %v4201
      %v4203 = vrot.slane %v4093, 1
      %v4204 = vrot.slane %v4094, 1
      %v4205 = vsel %vm2522, %v4203, %v4204
      %v4206 = vrot.slane %v4095, 1
      %v4207 = vsel %vm2522, %v4204, %v4206
      %v4208 = vrot.slane %v4096, 1
      %v4209 = vrot.slane %v4097, 1
      %v4210 = vsel %vm2522, %v4208, %v4209
      %v4211 = vrot.slane %v4098, 1
      %v4212 = vsel %vm2522, %v4209, %v4211
      %v4213 = vrot.slane %v4099, 1
      %v4214 = vrot.slane %v4100, 1
      %v4215 = vsel %vm2522, %v4213, %v4214
      %v4216 = vrot.slane %v4101, 1
      %v4217 = vsel %vm2522, %v4214, %v4216
      %v4218 = vrot.slane %v4102, 1
      %v4219 = vrot.slane %v4103, 1
      %v4220 = vsel %vm2522, %v4218, %v4219
      %v4221 = vrot.slane %v4104, 1
      %v4222 = vsel %vm2522, %v4219, %v4221
      %v4223 = vrot.slane %v4105, 1
      %v4224 = vrot.slane %v4106, 1
      %v4225 = vsel %vm2522, %v4223, %v4224
      %v4226 = vrot.slane %v4107, 1
      %v4227 = vsel %vm2522, %v4224, %v4226
      %v4228 = vrot.slane %v4108, 1
      %v4229 = vrot.slane %v4109, 1
      %v4230 = vsel %vm2522, %v4228, %v4229
      %v4231 = vrot.slane %v4110, 1
      %v4232 = vsel %vm2522, %v4229, %v4231
      %v4233 = vrot.slane %v4111, 1
      %v4234 = vrot.slane %v4112, 1
      %v4235 = vsel %vm2522, %v4233, %v4234
      %v4236 = vrot.slane %v4113, 1
      %v4237 = vsel %vm2522, %v4234, %v4236
      %v4238 = vrot.slane %v4114, 1
      %v4239 = vrot.slane %v4115, 1
      %v4240 = vsel %vm2522, %v4238, %v4239
      %v4241 = vrot.slane %v4116, 1
      %v4242 = vsel %vm2522, %v4239, %v4241
      %v4243 = vrot.slane %v4117, 1
      %v4244 = vrot.slane %v4118, 1
      %v4245 = vsel %vm2522, %v4243, %v4244
      %v4246 = vrot.slane %v4119, 1
      %v4247 = vsel %vm2522, %v4244, %v4246
      %v4280 = vadd.f32 %v3728, %v4170
      %v4281 = vadd.f32 %v3729, %v4172
      %v4282 = vadd.f32 %v3730, %v4175
      %v4283 = vadd.f32 %v3731, %v4177
      %v4284 = vadd.f32 %v3732, %v4180
      %v4285 = vadd.f32 %v3733, %v4182
      %v4286 = vadd.f32 %v3734, %v4185
      %v4287 = vadd.f32 %v3735, %v4187
      %v4288 = vadd.f32 %v3736, %v4190
      %v4289 = vadd.f32 %v3737, %v4192
      %v4290 = vadd.f32 %v3738, %v4195
      %v4291 = vadd.f32 %v3739, %v4197
      %v4292 = vadd.f32 %v3740, %v4200
      %v4293 = vadd.f32 %v3741, %v4202
      %v4294 = vadd.f32 %v3742, %v4205
      %v4295 = vadd.f32 %v3743, %v4207
      %v4296 = vadd.f32 %v3744, %v4210
      %v4297 = vadd.f32 %v3745, %v4212
      %v4298 = vadd.f32 %v3746, %v4215
      %v4299 = vadd.f32 %v3747, %v4217
      %v4300 = vadd.f32 %v3748, %v4220
      %v4301 = vadd.f32 %v3749, %v4222
      %v4302 = vadd.f32 %v3750, %v4225
      %v4303 = vadd.f32 %v3751, %v4227
      %v4304 = vadd.f32 %v3752, %v4230
      %v4305 = vadd.f32 %v3753, %v4232
      %v4306 = vadd.f32 %v3754, %v4235
      %v4307 = vadd.f32 %v3755, %v4237
      %v4308 = vadd.f32 %v3756, %v4240
      %v4309 = vadd.f32 %v3757, %v4242
      %v4310 = vadd.f32 %v3758, %v4245
      %v4311 = vadd.f32 %v3759, %v4247
      %v4312 = vld [vmem:[%s1191] sm:$0xe]
      %v4313 = vld [vmem:[%s1191 + $0xc] sm:$0xe]
      %v4314 = vld [vmem:[%s1191 + $0x18] sm:$0xe]
      %v4315 = vld [vmem:[%s1191 + $0x24] sm:$0xe]
      %v4316 = vld [vmem:[%s1191 + $0x30] sm:$0xe]
      %v4317 = vld [vmem:[%s1191 + $0x3c] sm:$0xe]
      %v4318 = vld [vmem:[%s1191 + $0x48] sm:$0xe]
      %v4319 = vld [vmem:[%s1191 + $0x54] sm:$0xe]
      %v4320 = vld [vmem:[%s1191 + $0x60] sm:$0xe]
      %v4321 = vld [vmem:[%s1191 + $0x6c] sm:$0xe]
      %v4322 = vld [vmem:[%s1191 + $0x78] sm:$0xe]
      %v4323 = vld [vmem:[%s1191 + $0x84] sm:$0xe]
      %v4324 = vld [vmem:[%s1191 + $0x90] sm:$0xe]
      %v4325 = vld [vmem:[%s1191 + $0x9c] sm:$0xe]
      %v4326 = vld [vmem:[%s1191 + $0xa8] sm:$0xe]
      %v4327 = vld [vmem:[%s1191 + $0xb4] sm:$0xe]
      %v4328 = vunpack.c.l.bf16 %v4312
      %v4329 = vunpack.c.l.bf16 %v4313
      %v4330 = vunpack.c.l.bf16 %v4314
      %v4331 = vunpack.c.l.bf16 %v4315
      %v4332 = vunpack.c.l.bf16 %v4316
      %v4333 = vunpack.c.l.bf16 %v4317
      %v4334 = vunpack.c.l.bf16 %v4318
      %v4335 = vunpack.c.l.bf16 %v4319
      %v4336 = vunpack.c.l.bf16 %v4320
      %v4337 = vunpack.c.l.bf16 %v4321
      %v4338 = vunpack.c.l.bf16 %v4322
      %v4339 = vunpack.c.l.bf16 %v4323
      %v4340 = vunpack.c.l.bf16 %v4324
      %v4341 = vunpack.c.l.bf16 %v4325
      %v4342 = vunpack.c.l.bf16 %v4326
      %v4343 = vunpack.c.l.bf16 %v4327
      %v4344 = vlaneseq
      %v4345 = vshrl.u32 %v4344, 7
      %v4346 = vsub.s32 2, %v4345
      %v4347 = vrot.slane %v2121, %v4346
      %v4348 = vmul.f32 %v4328, %v4347
      %v4349 = vmul.f32 %v3529, %v4347
      %v4350 = vmul.f32 %v3776, %v4347
      %v4351 = vmul.f32 %v4329, %v4347
      %v4352 = vmul.f32 %v3531, %v4347
      %v4353 = vmul.f32 %v3777, %v4347
      %v4354 = vmul.f32 %v4330, %v4347
      %v4355 = vmul.f32 %v3533, %v4347
      %v4356 = vmul.f32 %v3778, %v4347
      %v4357 = vmul.f32 %v4331, %v4347
      %v4358 = vmul.f32 %v3535, %v4347
      %v4359 = vmul.f32 %v3779, %v4347
      %v4360 = vmul.f32 %v4332, %v4347
      %v4361 = vmul.f32 %v3537, %v4347
      %v4362 = vmul.f32 %v3780, %v4347
      %v4363 = vmul.f32 %v4333, %v4347
      %v4364 = vmul.f32 %v3539, %v4347
      %v4365 = vmul.f32 %v3781, %v4347
      %v4366 = vmul.f32 %v4334, %v4347
      %v4367 = vmul.f32 %v3541, %v4347
      %v4368 = vmul.f32 %v3782, %v4347
      %v4369 = vmul.f32 %v4335, %v4347
      %v4370 = vmul.f32 %v3543, %v4347
      %v4371 = vmul.f32 %v3783, %v4347
      %v4372 = vmul.f32 %v4336, %v4347
      %v4373 = vmul.f32 %v3545, %v4347
      %v4374 = vmul.f32 %v3784, %v4347
      %v4375 = vmul.f32 %v4337, %v4347
      %v4376 = vmul.f32 %v3547, %v4347
      %v4377 = vmul.f32 %v3785, %v4347
      %v4378 = vmul.f32 %v4338, %v4347
      %v4379 = vmul.f32 %v3549, %v4347
      %v4380 = vmul.f32 %v3786, %v4347
      %v4381 = vmul.f32 %v4339, %v4347
      %v4382 = vmul.f32 %v3551, %v4347
      %v4383 = vmul.f32 %v3787, %v4347
      %v4384 = vmul.f32 %v4340, %v4347
      %v4385 = vmul.f32 %v3553, %v4347
      %v4386 = vmul.f32 %v3788, %v4347
      %v4387 = vmul.f32 %v4341, %v4347
      %v4388 = vmul.f32 %v3555, %v4347
      %v4389 = vmul.f32 %v3789, %v4347
      %v4390 = vmul.f32 %v4342, %v4347
      %v4391 = vmul.f32 %v3557, %v4347
      %v4392 = vmul.f32 %v3790, %v4347
      %v4393 = vmul.f32 %v4343, %v4347
      %v4394 = vmul.f32 %v3559, %v4347
      %v4395 = vmul.f32 %v3791, %v4347
      %v4444 = vrot.slane %v4348, 2
      %v4445 = vrot.slane %v4349, 2
      %v4446 = vsel %vm3075, %v4444, %v4445
      %v4447 = vrot.slane %v4350, 2
      %v4448 = vsel %vm3075, %v4445, %v4447
      %v4449 = vrot.slane %v4351, 2
      %v4450 = vrot.slane %v4352, 2
      %v4451 = vsel %vm3075, %v4449, %v4450
      %v4452 = vrot.slane %v4353, 2
      %v4453 = vsel %vm3075, %v4450, %v4452
      %v4454 = vrot.slane %v4354, 2
      %v4455 = vrot.slane %v4355, 2
      %v4456 = vsel %vm3075, %v4454, %v4455
      %v4457 = vrot.slane %v4356, 2
      %v4458 = vsel %vm3075, %v4455, %v4457
      %v4459 = vrot.slane %v4357, 2
      %v4460 = vrot.slane %v4358, 2
      %v4461 = vsel %vm3075, %v4459, %v4460
      %v4462 = vrot.slane %v4359, 2
      %v4463 = vsel %vm3075, %v4460, %v4462
      %v4464 = vrot.slane %v4360, 2
      %v4465 = vrot.slane %v4361, 2
      %v4466 = vsel %vm3075, %v4464, %v4465
      %v4467 = vrot.slane %v4362, 2
      %v4468 = vsel %vm3075, %v4465, %v4467
      %v4469 = vrot.slane %v4363, 2
      %v4470 = vrot.slane %v4364, 2
      %v4471 = vsel %vm3075, %v4469, %v4470
      %v4472 = vrot.slane %v4365, 2
      %v4473 = vsel %vm3075, %v4470, %v4472
      %v4474 = vrot.slane %v4366, 2
      %v4475 = vrot.slane %v4367, 2
      %v4476 = vsel %vm3075, %v4474, %v4475
      %v4477 = vrot.slane %v4368, 2
      %v4478 = vsel %vm3075, %v4475, %v4477
      %v4479 = vrot.slane %v4369, 2
      %v4480 = vrot.slane %v4370, 2
      %v4481 = vsel %vm3075, %v4479, %v4480
      %v4482 = vrot.slane %v4371, 2
      %v4483 = vsel %vm3075, %v4480, %v4482
      %v4484 = vrot.slane %v4372, 2
      %v4485 = vrot.slane %v4373, 2
      %v4486 = vsel %vm3075, %v4484, %v4485
      %v4487 = vrot.slane %v4374, 2
      %v4488 = vsel %vm3075, %v4485, %v4487
      %v4489 = vrot.slane %v4375, 2
      %v4490 = vrot.slane %v4376, 2
      %v4491 = vsel %vm3075, %v4489, %v4490
      %v4492 = vrot.slane %v4377, 2
      %v4493 = vsel %vm3075, %v4490, %v4492
      %v4494 = vrot.slane %v4378, 2
      %v4495 = vrot.slane %v4379, 2
      %v4496 = vsel %vm3075, %v4494, %v4495
      %v4497 = vrot.slane %v4380, 2
      %v4498 = vsel %vm3075, %v4495, %v4497
      %v4499 = vrot.slane %v4381, 2
      %v4500 = vrot.slane %v4382, 2
      %v4501 = vsel %vm3075, %v4499, %v4500
      %v4502 = vrot.slane %v4383, 2
      %v4503 = vsel %vm3075, %v4500, %v4502
      %v4504 = vrot.slane %v4384, 2
      %v4505 = vrot.slane %v4385, 2
      %v4506 = vsel %vm3075, %v4504, %v4505
      %v4507 = vrot.slane %v4386, 2
      %v4508 = vsel %vm3075, %v4505, %v4507
      %v4509 = vrot.slane %v4387, 2
      %v4510 = vrot.slane %v4388, 2
      %v4511 = vsel %vm3075, %v4509, %v4510
      %v4512 = vrot.slane %v4389, 2
      %v4513 = vsel %vm3075, %v4510, %v4512
      %v4514 = vrot.slane %v4390, 2
      %v4515 = vrot.slane %v4391, 2
      %v4516 = vsel %vm3075, %v4514, %v4515
      %v4517 = vrot.slane %v4392, 2
      %v4518 = vsel %vm3075, %v4515, %v4517
      %v4519 = vrot.slane %v4393, 2
      %v4520 = vrot.slane %v4394, 2
      %v4521 = vsel %vm3075, %v4519, %v4520
      %v4522 = vrot.slane %v4395, 2
      %v4523 = vsel %vm3075, %v4520, %v4522
      %v4556 = vadd.f32 %v4004, %v4446
      %v4557 = vadd.f32 %v4005, %v4448
      %v4558 = vadd.f32 %v4006, %v4451
      %v4559 = vadd.f32 %v4007, %v4453
      %v4560 = vadd.f32 %v4008, %v4456
      %v4561 = vadd.f32 %v4009, %v4458
      %v4562 = vadd.f32 %v4010, %v4461
      %v4563 = vadd.f32 %v4011, %v4463
      %v4564 = vadd.f32 %v4012, %v4466
      %v4565 = vadd.f32 %v4013, %v4468
      %v4566 = vadd.f32 %v4014, %v4471
      %v4567 = vadd.f32 %v4015, %v4473
      %v4568 = vadd.f32 %v4016, %v4476
      %v4569 = vadd.f32 %v4017, %v4478
      %v4570 = vadd.f32 %v4018, %v4481
      %v4571 = vadd.f32 %v4019, %v4483
      %v4572 = vadd.f32 %v4020, %v4486
      %v4573 = vadd.f32 %v4021, %v4488
      %v4574 = vadd.f32 %v4022, %v4491
      %v4575 = vadd.f32 %v4023, %v4493
      %v4576 = vadd.f32 %v4024, %v4496
      %v4577 = vadd.f32 %v4025, %v4498
      %v4578 = vadd.f32 %v4026, %v4501
      %v4579 = vadd.f32 %v4027, %v4503
      %v4580 = vadd.f32 %v4028, %v4506
      %v4581 = vadd.f32 %v4029, %v4508
      %v4582 = vadd.f32 %v4030, %v4511
      %v4583 = vadd.f32 %v4031, %v4513
      %v4584 = vadd.f32 %v4032, %v4516
      %v4585 = vadd.f32 %v4033, %v4518
      %v4586 = vadd.f32 %v4034, %v4521
      %v4587 = vadd.f32 %v4035, %v4523
      %v4588 = vld [vmem:[%s1836] sm:$0xe]
      %v4589 = vld [vmem:[%s1836 + $0xc] sm:$0xe]
      %v4590 = vld [vmem:[%s1836 + $0x18] sm:$0xe]
      %v4591 = vld [vmem:[%s1836 + $0x24] sm:$0xe]
      %v4592 = vld [vmem:[%s1836 + $0x30] sm:$0xe]
      %v4593 = vld [vmem:[%s1836 + $0x3c] sm:$0xe]
      %v4594 = vld [vmem:[%s1836 + $0x48] sm:$0xe]
      %v4595 = vld [vmem:[%s1836 + $0x54] sm:$0xe]
      %v4596 = vld [vmem:[%s1836 + $0x60] sm:$0xe]
      %v4597 = vld [vmem:[%s1836 + $0x6c] sm:$0xe]
      %v4598 = vld [vmem:[%s1836 + $0x78] sm:$0xe]
      %v4599 = vld [vmem:[%s1836 + $0x84] sm:$0xe]
      %v4600 = vld [vmem:[%s1836 + $0x90] sm:$0xe]
      %v4601 = vld [vmem:[%s1836 + $0x9c] sm:$0xe]
      %v4602 = vld [vmem:[%s1836 + $0xa8] sm:$0xe]
      %v4603 = vld [vmem:[%s1836 + $0xb4] sm:$0xe]
      %v4604 = vunpack.c.l.bf16 %v4588
      %v4605 = vunpack.c.l.bf16 %v4589
      %v4606 = vunpack.c.l.bf16 %v4590
      %v4607 = vunpack.c.l.bf16 %v4591
      %v4608 = vunpack.c.l.bf16 %v4592
      %v4609 = vunpack.c.l.bf16 %v4593
      %v4610 = vunpack.c.l.bf16 %v4594
      %v4611 = vunpack.c.l.bf16 %v4595
      %v4612 = vunpack.c.l.bf16 %v4596
      %v4613 = vunpack.c.l.bf16 %v4597
      %v4614 = vunpack.c.l.bf16 %v4598
      %v4615 = vunpack.c.l.bf16 %v4599
      %v4616 = vunpack.c.l.bf16 %v4600
      %v4617 = vunpack.c.l.bf16 %v4601
      %v4618 = vunpack.c.l.bf16 %v4602
      %v4619 = vunpack.c.l.bf16 %v4603
      %v4620 = vlaneseq
      %v4621 = vshrl.u32 %v4620, 7
      %v4622 = vsub.s32 2, %v4621
      %v4623 = vrot.slane %v2124, %v4622
      %v4624 = vmul.f32 %v4604, %v4623
      %v4625 = vmul.f32 %v3661, %v4623
      %v4626 = vmul.f32 %v4052, %v4623
      %v4627 = vmul.f32 %v4605, %v4623
      %v4628 = vmul.f32 %v3663, %v4623
      %v4629 = vmul.f32 %v4053, %v4623
      %v4630 = vmul.f32 %v4606, %v4623
      %v4631 = vmul.f32 %v3665, %v4623
      %v4632 = vmul.f32 %v4054, %v4623
      %v4633 = vmul.f32 %v4607, %v4623
      %v4634 = vmul.f32 %v3667, %v4623
      %v4635 = vmul.f32 %v4055, %v4623
      %v4636 = vmul.f32 %v4608, %v4623
      %v4637 = vmul.f32 %v3669, %v4623
      %v4638 = vmul.f32 %v4056, %v4623
      %v4639 = vmul.f32 %v4609, %v4623
      %v4640 = vmul.f32 %v3671, %v4623
      %v4641 = vmul.f32 %v4057, %v4623
      %v4642 = vmul.f32 %v4610, %v4623
      %v4643 = vmul.f32 %v3673, %v4623
      %v4644 = vmul.f32 %v4058, %v4623
      %v4645 = vmul.f32 %v4611, %v4623
      %v4646 = vmul.f32 %v3675, %v4623
      %v4647 = vmul.f32 %v4059, %v4623
      %v4648 = vmul.f32 %v4612, %v4623
      %v4649 = vmul.f32 %v3677, %v4623
      %v4650 = vmul.f32 %v4060, %v4623
      %v4651 = vmul.f32 %v4613, %v4623
      %v4652 = vmul.f32 %v3679, %v4623
      %v4653 = vmul.f32 %v4061, %v4623
      %v4654 = vmul.f32 %v4614, %v4623
      %v4655 = vmul.f32 %v3681, %v4623
      %v4656 = vmul.f32 %v4062, %v4623
      %v4657 = vmul.f32 %v4615, %v4623
      %v4658 = vmul.f32 %v3683, %v4623
      %v4659 = vmul.f32 %v4063, %v4623
      %v4660 = vmul.f32 %v4616, %v4623
      %v4661 = vmul.f32 %v3685, %v4623
      %v4662 = vmul.f32 %v4064, %v4623
      %v4663 = vmul.f32 %v4617, %v4623
      %v4664 = vmul.f32 %v3687, %v4623
      %v4665 = vmul.f32 %v4065, %v4623
      %v4666 = vmul.f32 %v4618, %v4623
      %v4667 = vmul.f32 %v3689, %v4623
      %v4668 = vmul.f32 %v4066, %v4623
      %v4669 = vmul.f32 %v4619, %v4623
      %v4670 = vmul.f32 %v3691, %v4623
      %v4671 = vmul.f32 %v4067, %v4623
      %v4720 = vrot.slane %v4624, 2
      %v4721 = vrot.slane %v4625, 2
      %v4722 = vsel %vm3075, %v4720, %v4721
      %v4723 = vrot.slane %v4626, 2
      %v4724 = vsel %vm3075, %v4721, %v4723
      %v4725 = vrot.slane %v4627, 2
      %v4726 = vrot.slane %v4628, 2
      %v4727 = vsel %vm3075, %v4725, %v4726
      %v4728 = vrot.slane %v4629, 2
      %v4729 = vsel %vm3075, %v4726, %v4728
      %v4730 = vrot.slane %v4630, 2
      %v4731 = vrot.slane %v4631, 2
      %v4732 = vsel %vm3075, %v4730, %v4731
      %v4733 = vrot.slane %v4632, 2
      %v4734 = vsel %vm3075, %v4731, %v4733
      %v4735 = vrot.slane %v4633, 2
      %v4736 = vrot.slane %v4634, 2
      %v4737 = vsel %vm3075, %v4735, %v4736
      %v4738 = vrot.slane %v4635, 2
      %v4739 = vsel %vm3075, %v4736, %v4738
      %v4740 = vrot.slane %v4636, 2
      %v4741 = vrot.slane %v4637, 2
      %v4742 = vsel %vm3075, %v4740, %v4741
      %v4743 = vrot.slane %v4638, 2
      %v4744 = vsel %vm3075, %v4741, %v4743
      %v4745 = vrot.slane %v4639, 2
      %v4746 = vrot.slane %v4640, 2
      %v4747 = vsel %vm3075, %v4745, %v4746
      %v4748 = vrot.slane %v4641, 2
      %v4749 = vsel %vm3075, %v4746, %v4748
      %v4750 = vrot.slane %v4642, 2
      %v4751 = vrot.slane %v4643, 2
      %v4752 = vsel %vm3075, %v4750, %v4751
      %v4753 = vrot.slane %v4644, 2
      %v4754 = vsel %vm3075, %v4751, %v4753
      %v4755 = vrot.slane %v4645, 2
      %v4756 = vrot.slane %v4646, 2
      %v4757 = vsel %vm3075, %v4755, %v4756
      %v4758 = vrot.slane %v4647, 2
      %v4759 = vsel %vm3075, %v4756, %v4758
      %v4760 = vrot.slane %v4648, 2
      %v4761 = vrot.slane %v4649, 2
      %v4762 = vsel %vm3075, %v4760, %v4761
      %v4763 = vrot.slane %v4650, 2
      %v4764 = vsel %vm3075, %v4761, %v4763
      %v4765 = vrot.slane %v4651, 2
      %v4766 = vrot.slane %v4652, 2
      %v4767 = vsel %vm3075, %v4765, %v4766
      %v4768 = vrot.slane %v4653, 2
      %v4769 = vsel %vm3075, %v4766, %v4768
      %v4770 = vrot.slane %v4654, 2
      %v4771 = vrot.slane %v4655, 2
      %v4772 = vsel %vm3075, %v4770, %v4771
      %v4773 = vrot.slane %v4656, 2
      %v4774 = vsel %vm3075, %v4771, %v4773
      %v4775 = vrot.slane %v4657, 2
      %v4776 = vrot.slane %v4658, 2
      %v4777 = vsel %vm3075, %v4775, %v4776
      %v4778 = vrot.slane %v4659, 2
      %v4779 = vsel %vm3075, %v4776, %v4778
      %v4780 = vrot.slane %v4660, 2
      %v4781 = vrot.slane %v4661, 2
      %v4782 = vsel %vm3075, %v4780, %v4781
      %v4783 = vrot.slane %v4662, 2
      %v4784 = vsel %vm3075, %v4781, %v4783
      %v4785 = vrot.slane %v4663, 2
      %v4786 = vrot.slane %v4664, 2
      %v4787 = vsel %vm3075, %v4785, %v4786
      %v4788 = vrot.slane %v4665, 2
      %v4789 = vsel %vm3075, %v4786, %v4788
      %v4790 = vrot.slane %v4666, 2
      %v4791 = vrot.slane %v4667, 2
      %v4792 = vsel %vm3075, %v4790, %v4791
      %v4793 = vrot.slane %v4668, 2
      %v4794 = vsel %vm3075, %v4791, %v4793
      %v4795 = vrot.slane %v4669, 2
      %v4796 = vrot.slane %v4670, 2
      %v4797 = vsel %vm3075, %v4795, %v4796
      %v4798 = vrot.slane %v4671, 2
      %v4799 = vsel %vm3075, %v4796, %v4798
      %v4832 = vadd.f32 %v4280, %v4722
      %v4833 = vadd.f32 %v4281, %v4724
      %v4834 = vadd.f32 %v4282, %v4727
      %v4835 = vadd.f32 %v4283, %v4729
      %v4836 = vadd.f32 %v4284, %v4732
      %v4837 = vadd.f32 %v4285, %v4734
      %v4838 = vadd.f32 %v4286, %v4737
      %v4839 = vadd.f32 %v4287, %v4739
      %v4840 = vadd.f32 %v4288, %v4742
      %v4841 = vadd.f32 %v4289, %v4744
      %v4842 = vadd.f32 %v4290, %v4747
      %v4843 = vadd.f32 %v4291, %v4749
      %v4844 = vadd.f32 %v4292, %v4752
      %v4845 = vadd.f32 %v4293, %v4754
      %v4846 = vadd.f32 %v4294, %v4757
      %v4847 = vadd.f32 %v4295, %v4759
      %v4848 = vadd.f32 %v4296, %v4762
      %v4849 = vadd.f32 %v4297, %v4764
      %v4850 = vadd.f32 %v4298, %v4767
      %v4851 = vadd.f32 %v4299, %v4769
      %v4852 = vadd.f32 %v4300, %v4772
      %v4853 = vadd.f32 %v4301, %v4774
      %v4854 = vadd.f32 %v4302, %v4777
      %v4855 = vadd.f32 %v4303, %v4779
      %v4856 = vadd.f32 %v4304, %v4782
      %v4857 = vadd.f32 %v4305, %v4784
      %v4858 = vadd.f32 %v4306, %v4787
      %v4859 = vadd.f32 %v4307, %v4789
      %v4860 = vadd.f32 %v4308, %v4792
      %v4861 = vadd.f32 %v4309, %v4794
      %v4862 = vadd.f32 %v4310, %v4797
      %v4863 = vadd.f32 %v4311, %v4799
      %s4864 = scalar_lea.vmem [#allocation2], 24
      %v4865 = vld [vmem:[%s4864] sm:$0xf]
      %v4866 = vld [vmem:[%s4864 + $0x4] sm:$0xf]
      %v4867 = vld [vmem:[%s4864 + $0xc] sm:$0xf]
      %v4868 = vld [vmem:[%s4864 + $0x10] sm:$0xf]
      %v4869 = vld [vmem:[%s4864 + $0x18] sm:$0xf]
      %v4870 = vld [vmem:[%s4864 + $0x1c] sm:$0xf]
      %v4871 = vld [vmem:[%s4864 + $0x24] sm:$0xf]
      %v4872 = vld [vmem:[%s4864 + $0x28] sm:$0xf]
      %v4873 = vld [vmem:[%s4864 + $0x30] sm:$0xf]
      %v4874 = vld [vmem:[%s4864 + $0x34] sm:$0xf]
      %v4875 = vld [vmem:[%s4864 + $0x3c] sm:$0xf]
      %v4876 = vld [vmem:[%s4864 + $0x40] sm:$0xf]
      %v4877 = vld [vmem:[%s4864 + $0x48] sm:$0xf]
      %v4878 = vld [vmem:[%s4864 + $0x4c] sm:$0xf]
      %v4879 = vld [vmem:[%s4864 + $0x54] sm:$0xf]
      %v4880 = vld [vmem:[%s4864 + $0x58] sm:$0xf]
      %v4881 = vld [vmem:[%s4864 + $0x60] sm:$0xf]
      %v4882 = vld [vmem:[%s4864 + $0x64] sm:$0xf]
      %v4883 = vld [vmem:[%s4864 + $0x6c] sm:$0xf]
      %v4884 = vld [vmem:[%s4864 + $0x70] sm:$0xf]
      %v4885 = vld [vmem:[%s4864 + $0x78] sm:$0xf]
      %v4886 = vld [vmem:[%s4864 + $0x7c] sm:$0xf]
      %v4887 = vld [vmem:[%s4864 + $0x84] sm:$0xf]
      %v4888 = vld [vmem:[%s4864 + $0x88] sm:$0xf]
      %v4889 = vld [vmem:[%s4864 + $0x90] sm:$0xf]
      %v4890 = vld [vmem:[%s4864 + $0x94] sm:$0xf]
      %v4891 = vld [vmem:[%s4864 + $0x9c] sm:$0xf]
      %v4892 = vld [vmem:[%s4864 + $0xa0] sm:$0xf]
      %v4893 = vld [vmem:[%s4864 + $0xa8] sm:$0xf]
      %v4894 = vld [vmem:[%s4864 + $0xac] sm:$0xf]
      %v4895 = vld [vmem:[%s4864 + $0xb4] sm:$0xf]
      %v4896 = vld [vmem:[%s4864 + $0xb8] sm:$0xf]
      %v4897 = vunpack.c.l.bf16 %v4865
      %v4898 = vunpack.c.l.bf16 %v4866
      %v4899 = vunpack.c.l.bf16 %v4867
      %v4900 = vunpack.c.l.bf16 %v4868
      %v4901 = vunpack.c.l.bf16 %v4869
      %v4902 = vunpack.c.l.bf16 %v4870
      %v4903 = vunpack.c.l.bf16 %v4871
      %v4904 = vunpack.c.l.bf16 %v4872
      %v4905 = vunpack.c.l.bf16 %v4873
      %v4906 = vunpack.c.l.bf16 %v4874
      %v4907 = vunpack.c.l.bf16 %v4875
      %v4908 = vunpack.c.l.bf16 %v4876
      %v4909 = vunpack.c.l.bf16 %v4877
      %v4910 = vunpack.c.l.bf16 %v4878
      %v4911 = vunpack.c.l.bf16 %v4879
      %v4912 = vunpack.c.l.bf16 %v4880
      %v4913 = vunpack.c.l.bf16 %v4881
      %v4914 = vunpack.c.l.bf16 %v4882
      %v4915 = vunpack.c.l.bf16 %v4883
      %v4916 = vunpack.c.l.bf16 %v4884
      %v4917 = vunpack.c.l.bf16 %v4885
      %v4918 = vunpack.c.l.bf16 %v4886
      %v4919 = vunpack.c.l.bf16 %v4887
      %v4920 = vunpack.c.l.bf16 %v4888
      %v4921 = vunpack.c.l.bf16 %v4889
      %v4922 = vunpack.c.l.bf16 %v4890
      %v4923 = vunpack.c.l.bf16 %v4891
      %v4924 = vunpack.c.l.bf16 %v4892
      %v4925 = vunpack.c.l.bf16 %v4893
      %v4926 = vunpack.c.l.bf16 %v4894
      %v4927 = vunpack.c.l.bf16 %v4895
      %v4928 = vunpack.c.l.bf16 %v4896
      %v4929 = vlaneseq
      %v4930 = vshrl.u32 %v4929, 7
      %v4931 = vsub.s32 0, %v4930
      %v4932 = vrot.slane %v2122, %v4931
      %v4933 = vmul.f32 %v4897, %v4932
      %v4934 = vmul.f32 %v4898, %v4932
      %v4935 = vmul.f32 %v4899, %v4932
      %v4936 = vmul.f32 %v4900, %v4932
      %v4937 = vmul.f32 %v4901, %v4932
      %v4938 = vmul.f32 %v4902, %v4932
      %v4939 = vmul.f32 %v4903, %v4932
      %v4940 = vmul.f32 %v4904, %v4932
      %v4941 = vmul.f32 %v4905, %v4932
      %v4942 = vmul.f32 %v4906, %v4932
      %v4943 = vmul.f32 %v4907, %v4932
      %v4944 = vmul.f32 %v4908, %v4932
      %v4945 = vmul.f32 %v4909, %v4932
      %v4946 = vmul.f32 %v4910, %v4932
      %v4947 = vmul.f32 %v4911, %v4932
      %v4948 = vmul.f32 %v4912, %v4932
      %v4949 = vmul.f32 %v4913, %v4932
      %v4950 = vmul.f32 %v4914, %v4932
      %v4951 = vmul.f32 %v4915, %v4932
      %v4952 = vmul.f32 %v4916, %v4932
      %v4953 = vmul.f32 %v4917, %v4932
      %v4954 = vmul.f32 %v4918, %v4932
      %v4955 = vmul.f32 %v4919, %v4932
      %v4956 = vmul.f32 %v4920, %v4932
      %v4957 = vmul.f32 %v4921, %v4932
      %v4958 = vmul.f32 %v4922, %v4932
      %v4959 = vmul.f32 %v4923, %v4932
      %v4960 = vmul.f32 %v4924, %v4932
      %v4961 = vmul.f32 %v4925, %v4932
      %v4962 = vmul.f32 %v4926, %v4932
      %v4963 = vmul.f32 %v4927, %v4932
      %v4964 = vmul.f32 %v4928, %v4932
      %v4965 = vadd.f32 %v4556, %v4933
      %v4966 = vadd.f32 %v4557, %v4934
      %v4967 = vadd.f32 %v4558, %v4935
      %v4968 = vadd.f32 %v4559, %v4936
      %v4969 = vadd.f32 %v4560, %v4937
      %v4970 = vadd.f32 %v4561, %v4938
      %v4971 = vadd.f32 %v4562, %v4939
      %v4972 = vadd.f32 %v4563, %v4940
      %v4973 = vadd.f32 %v4564, %v4941
      %v4974 = vadd.f32 %v4565, %v4942
      %v4975 = vadd.f32 %v4566, %v4943
      %v4976 = vadd.f32 %v4567, %v4944
      %v4977 = vadd.f32 %v4568, %v4945
      %v4978 = vadd.f32 %v4569, %v4946
      %v4979 = vadd.f32 %v4570, %v4947
      %v4980 = vadd.f32 %v4571, %v4948
      %v4981 = vadd.f32 %v4572, %v4949
      %v4982 = vadd.f32 %v4573, %v4950
      %v4983 = vadd.f32 %v4574, %v4951
      %v4984 = vadd.f32 %v4575, %v4952
      %v4985 = vadd.f32 %v4576, %v4953
      %v4986 = vadd.f32 %v4577, %v4954
      %v4987 = vadd.f32 %v4578, %v4955
      %v4988 = vadd.f32 %v4579, %v4956
      %v4989 = vadd.f32 %v4580, %v4957
      %v4990 = vadd.f32 %v4581, %v4958
      %v4991 = vadd.f32 %v4582, %v4959
      %v4992 = vadd.f32 %v4583, %v4960
      %v4993 = vadd.f32 %v4584, %v4961
      %v4994 = vadd.f32 %v4585, %v4962
      %v4995 = vadd.f32 %v4586, %v4963
      %v4996 = vadd.f32 %v4587, %v4964
      %s4997 = scalar_lea.vmem [#allocation3], 24
      %v4998 = vld [vmem:[%s4997] sm:$0xf]
      %v4999 = vld [vmem:[%s4997 + $0x4] sm:$0xf]
      %v5000 = vld [vmem:[%s4997 + $0xc] sm:$0xf]
      %v5001 = vld [vmem:[%s4997 + $0x10] sm:$0xf]
      %v5002 = vld [vmem:[%s4997 + $0x18] sm:$0xf]
      %v5003 = vld [vmem:[%s4997 + $0x1c] sm:$0xf]
      %v5004 = vld [vmem:[%s4997 + $0x24] sm:$0xf]
      %v5005 = vld [vmem:[%s4997 + $0x28] sm:$0xf]
      %v5006 = vld [vmem:[%s4997 + $0x30] sm:$0xf]
      %v5007 = vld [vmem:[%s4997 + $0x34] sm:$0xf]
      %v5008 = vld [vmem:[%s4997 + $0x3c] sm:$0xf]
      %v5009 = vld [vmem:[%s4997 + $0x40] sm:$0xf]
      %v5010 = vld [vmem:[%s4997 + $0x48] sm:$0xf]
      %v5011 = vld [vmem:[%s4997 + $0x4c] sm:$0xf]
      %v5012 = vld [vmem:[%s4997 + $0x54] sm:$0xf]
      %v5013 = vld [vmem:[%s4997 + $0x58] sm:$0xf]
      %v5014 = vld [vmem:[%s4997 + $0x60] sm:$0xf]
      %v5015 = vld [vmem:[%s4997 + $0x64] sm:$0xf]
      %v5016 = vld [vmem:[%s4997 + $0x6c] sm:$0xf]
      %v5017 = vld [vmem:[%s4997 + $0x70] sm:$0xf]
      %v5018 = vld [vmem:[%s4997 + $0x78] sm:$0xf]
      %v5019 = vld [vmem:[%s4997 + $0x7c] sm:$0xf]
      %v5020 = vld [vmem:[%s4997 + $0x84] sm:$0xf]
      %v5021 = vld [vmem:[%s4997 + $0x88] sm:$0xf]
      %v5022 = vld [vmem:[%s4997 + $0x90] sm:$0xf]
      %v5023 = vld [vmem:[%s4997 + $0x94] sm:$0xf]
      %v5024 = vld [vmem:[%s4997 + $0x9c] sm:$0xf]
      %v5025 = vld [vmem:[%s4997 + $0xa0] sm:$0xf]
      %v5026 = vld [vmem:[%s4997 + $0xa8] sm:$0xf]
      %v5027 = vld [vmem:[%s4997 + $0xac] sm:$0xf]
      %v5028 = vld [vmem:[%s4997 + $0xb4] sm:$0xf]
      %v5029 = vld [vmem:[%s4997 + $0xb8] sm:$0xf]
      %v5030 = vunpack.c.l.bf16 %v4998
      %v5031 = vunpack.c.l.bf16 %v4999
      %v5032 = vunpack.c.l.bf16 %v5000
      %v5033 = vunpack.c.l.bf16 %v5001
      %v5034 = vunpack.c.l.bf16 %v5002
      %v5035 = vunpack.c.l.bf16 %v5003
      %v5036 = vunpack.c.l.bf16 %v5004
      %v5037 = vunpack.c.l.bf16 %v5005
      %v5038 = vunpack.c.l.bf16 %v5006
      %v5039 = vunpack.c.l.bf16 %v5007
      %v5040 = vunpack.c.l.bf16 %v5008
      %v5041 = vunpack.c.l.bf16 %v5009
      %v5042 = vunpack.c.l.bf16 %v5010
      %v5043 = vunpack.c.l.bf16 %v5011
      %v5044 = vunpack.c.l.bf16 %v5012
      %v5045 = vunpack.c.l.bf16 %v5013
      %v5046 = vunpack.c.l.bf16 %v5014
      %v5047 = vunpack.c.l.bf16 %v5015
      %v5048 = vunpack.c.l.bf16 %v5016
      %v5049 = vunpack.c.l.bf16 %v5017
      %v5050 = vunpack.c.l.bf16 %v5018
      %v5051 = vunpack.c.l.bf16 %v5019
      %v5052 = vunpack.c.l.bf16 %v5020
      %v5053 = vunpack.c.l.bf16 %v5021
      %v5054 = vunpack.c.l.bf16 %v5022
      %v5055 = vunpack.c.l.bf16 %v5023
      %v5056 = vunpack.c.l.bf16 %v5024
      %v5057 = vunpack.c.l.bf16 %v5025
      %v5058 = vunpack.c.l.bf16 %v5026
      %v5059 = vunpack.c.l.bf16 %v5027
      %v5060 = vunpack.c.l.bf16 %v5028
      %v5061 = vunpack.c.l.bf16 %v5029
      %v5062 = vlaneseq
      %v5063 = vshrl.u32 %v5062, 7
      %v5064 = vsub.s32 0, %v5063
      %v5065 = vrot.slane %v2125, %v5064
      %v5066 = vmul.f32 %v5030, %v5065
      %v5067 = vmul.f32 %v5031, %v5065
      %v5068 = vmul.f32 %v5032, %v5065
      %v5069 = vmul.f32 %v5033, %v5065
      %v5070 = vmul.f32 %v5034, %v5065
      %v5071 = vmul.f32 %v5035, %v5065
      %v5072 = vmul.f32 %v5036, %v5065
      %v5073 = vmul.f32 %v5037, %v5065
      %v5074 = vmul.f32 %v5038, %v5065
      %v5075 = vmul.f32 %v5039, %v5065
      %v5076 = vmul.f32 %v5040, %v5065
      %v5077 = vmul.f32 %v5041, %v5065
      %v5078 = vmul.f32 %v5042, %v5065
      %v5079 = vmul.f32 %v5043, %v5065
      %v5080 = vmul.f32 %v5044, %v5065
      %v5081 = vmul.f32 %v5045, %v5065
      %v5082 = vmul.f32 %v5046, %v5065
      %v5083 = vmul.f32 %v5047, %v5065
      %v5084 = vmul.f32 %v5048, %v5065
      %v5085 = vmul.f32 %v5049, %v5065
      %v5086 = vmul.f32 %v5050, %v5065
      %v5087 = vmul.f32 %v5051, %v5065
      %v5088 = vmul.f32 %v5052, %v5065
      %v5089 = vmul.f32 %v5053, %v5065
      %v5090 = vmul.f32 %v5054, %v5065
      %v5091 = vmul.f32 %v5055, %v5065
      %v5092 = vmul.f32 %v5056, %v5065
      %v5093 = vmul.f32 %v5057, %v5065
      %v5094 = vmul.f32 %v5058, %v5065
      %v5095 = vmul.f32 %v5059, %v5065
      %v5096 = vmul.f32 %v5060, %v5065
      %v5097 = vmul.f32 %v5061, %v5065
      %v5098 = vadd.f32 %v4832, %v5066
      %v5099 = vadd.f32 %v4833, %v5067
      %v5100 = vadd.f32 %v4834, %v5068
      %v5101 = vadd.f32 %v4835, %v5069
      %v5102 = vadd.f32 %v4836, %v5070
      %v5103 = vadd.f32 %v4837, %v5071
      %v5104 = vadd.f32 %v4838, %v5072
      %v5105 = vadd.f32 %v4839, %v5073
      %v5106 = vadd.f32 %v4840, %v5074
      %v5107 = vadd.f32 %v4841, %v5075
      %v5108 = vadd.f32 %v4842, %v5076
      %v5109 = vadd.f32 %v4843, %v5077
      %v5110 = vadd.f32 %v4844, %v5078
      %v5111 = vadd.f32 %v4845, %v5079
      %v5112 = vadd.f32 %v4846, %v5080
      %v5113 = vadd.f32 %v4847, %v5081
      %v5114 = vadd.f32 %v4848, %v5082
      %v5115 = vadd.f32 %v4849, %v5083
      %v5116 = vadd.f32 %v4850, %v5084
      %v5117 = vadd.f32 %v4851, %v5085
      %v5118 = vadd.f32 %v4852, %v5086
      %v5119 = vadd.f32 %v4853, %v5087
      %v5120 = vadd.f32 %v4854, %v5088
      %v5121 = vadd.f32 %v4855, %v5089
      %v5122 = vadd.f32 %v4856, %v5090
      %v5123 = vadd.f32 %v4857, %v5091
      %v5124 = vadd.f32 %v4858, %v5092
      %v5125 = vadd.f32 %v4859, %v5093
      %v5126 = vadd.f32 %v4860, %v5094
      %v5127 = vadd.f32 %v4861, %v5095
      %v5128 = vadd.f32 %v4862, %v5096
      %v5129 = vadd.f32 %v4863, %v5097
      %v5130 = vld [vmem:[%s4864 + $0x8] sm:$0x1]
      %v5131 = vld [vmem:[%s4864 + $0x14] sm:$0x1]
      %v5132 = vld [vmem:[%s4864 + $0x20] sm:$0x1]
      %v5133 = vld [vmem:[%s4864 + $0x2c] sm:$0x1]
      %v5134 = vld [vmem:[%s4864 + $0x38] sm:$0x1]
      %v5135 = vld [vmem:[%s4864 + $0x44] sm:$0x1]
      %v5136 = vld [vmem:[%s4864 + $0x50] sm:$0x1]
      %v5137 = vld [vmem:[%s4864 + $0x5c] sm:$0x1]
      %v5138 = vld [vmem:[%s4864 + $0x68] sm:$0x1]
      %v5139 = vld [vmem:[%s4864 + $0x74] sm:$0x1]
      %v5140 = vld [vmem:[%s4864 + $0x80] sm:$0x1]
      %v5141 = vld [vmem:[%s4864 + $0x8c] sm:$0x1]
      %v5142 = vld [vmem:[%s4864 + $0x98] sm:$0x1]
      %v5143 = vld [vmem:[%s4864 + $0xa4] sm:$0x1]
      %v5144 = vld [vmem:[%s4864 + $0xb0] sm:$0x1]
      %v5145 = vld [vmem:[%s4864 + $0xbc] sm:$0x1]
      %v5146 = vunpack.c.l.bf16 %v5130
      %v5147 = vunpack.c.l.bf16 %v5131
      %v5148 = vunpack.c.l.bf16 %v5132
      %v5149 = vunpack.c.l.bf16 %v5133
      %v5150 = vunpack.c.l.bf16 %v5134
      %v5151 = vunpack.c.l.bf16 %v5135
      %v5152 = vunpack.c.l.bf16 %v5136
      %v5153 = vunpack.c.l.bf16 %v5137
      %v5154 = vunpack.c.l.bf16 %v5138
      %v5155 = vunpack.c.l.bf16 %v5139
      %v5156 = vunpack.c.l.bf16 %v5140
      %v5157 = vunpack.c.l.bf16 %v5141
      %v5158 = vunpack.c.l.bf16 %v5142
      %v5159 = vunpack.c.l.bf16 %v5143
      %v5160 = vunpack.c.l.bf16 %v5144
      %v5161 = vunpack.c.l.bf16 %v5145
      %v5162 = vlaneseq
      %v5163 = vshrl.u32 %v5162, 7
      %v5164 = vsub.s32 1, %v5163
      %v5165 = vrot.slane %v2122, %v5164
      %v5166 = vmul.f32 %v4897, %v5165
      %v5167 = vmul.f32 %v4898, %v5165
      %v5168 = vmul.f32 %v5146, %v5165
      %v5169 = vmul.f32 %v4899, %v5165
      %v5170 = vmul.f32 %v4900, %v5165
      %v5171 = vmul.f32 %v5147, %v5165
      %v5172 = vmul.f32 %v4901, %v5165
      %v5173 = vmul.f32 %v4902, %v5165
      %v5174 = vmul.f32 %v5148, %v5165
      %v5175 = vmul.f32 %v4903, %v5165
      %v5176 = vmul.f32 %v4904, %v5165
      %v5177 = vmul.f32 %v5149, %v5165
      %v5178 = vmul.f32 %v4905, %v5165
      %v5179 = vmul.f32 %v4906, %v5165
      %v5180 = vmul.f32 %v5150, %v5165
      %v5181 = vmul.f32 %v4907, %v5165
      %v5182 = vmul.f32 %v4908, %v5165
      %v5183 = vmul.f32 %v5151, %v5165
      %v5184 = vmul.f32 %v4909, %v5165
      %v5185 = vmul.f32 %v4910, %v5165
      %v5186 = vmul.f32 %v5152, %v5165
      %v5187 = vmul.f32 %v4911, %v5165
      %v5188 = vmul.f32 %v4912, %v5165
      %v5189 = vmul.f32 %v5153, %v5165
      %v5190 = vmul.f32 %v4913, %v5165
      %v5191 = vmul.f32 %v4914, %v5165
      %v5192 = vmul.f32 %v5154, %v5165
      %v5193 = vmul.f32 %v4915, %v5165
      %v5194 = vmul.f32 %v4916, %v5165
      %v5195 = vmul.f32 %v5155, %v5165
      %v5196 = vmul.f32 %v4917, %v5165
      %v5197 = vmul.f32 %v4918, %v5165
      %v5198 = vmul.f32 %v5156, %v5165
      %v5199 = vmul.f32 %v4919, %v5165
      %v5200 = vmul.f32 %v4920, %v5165
      %v5201 = vmul.f32 %v5157, %v5165
      %v5202 = vmul.f32 %v4921, %v5165
      %v5203 = vmul.f32 %v4922, %v5165
      %v5204 = vmul.f32 %v5158, %v5165
      %v5205 = vmul.f32 %v4923, %v5165
      %v5206 = vmul.f32 %v4924, %v5165
      %v5207 = vmul.f32 %v5159, %v5165
      %v5208 = vmul.f32 %v4925, %v5165
      %v5209 = vmul.f32 %v4926, %v5165
      %v5210 = vmul.f32 %v5160, %v5165
      %v5211 = vmul.f32 %v4927, %v5165
      %v5212 = vmul.f32 %v4928, %v5165
      %v5213 = vmul.f32 %v5161, %v5165
      %v5262 = vrot.slane %v5166, 1
      %v5263 = vrot.slane %v5167, 1
      %v5264 = vsel %vm2522, %v5262, %v5263
      %v5265 = vrot.slane %v5168, 1
      %v5266 = vsel %vm2522, %v5263, %v5265
      %v5267 = vrot.slane %v5169, 1
      %v5268 = vrot.slane %v5170, 1
      %v5269 = vsel %vm2522, %v5267, %v5268
      %v5270 = vrot.slane %v5171, 1
      %v5271 = vsel %vm2522, %v5268, %v5270
      %v5272 = vrot.slane %v5172, 1
      %v5273 = vrot.slane %v5173, 1
      %v5274 = vsel %vm2522, %v5272, %v5273
      %v5275 = vrot.slane %v5174, 1
      %v5276 = vsel %vm2522, %v5273, %v5275
      %v5277 = vrot.slane %v5175, 1
      %v5278 = vrot.slane %v5176, 1
      %v5279 = vsel %vm2522, %v5277, %v5278
      %v5280 = vrot.slane %v5177, 1
      %v5281 = vsel %vm2522, %v5278, %v5280
      %v5282 = vrot.slane %v5178, 1
      %v5283 = vrot.slane %v5179, 1
      %v5284 = vsel %vm2522, %v5282, %v5283
      %v5285 = vrot.slane %v5180, 1
      %v5286 = vsel %vm2522, %v5283, %v5285
      %v5287 = vrot.slane %v5181, 1
      %v5288 = vrot.slane %v5182, 1
      %v5289 = vsel %vm2522, %v5287, %v5288
      %v5290 = vrot.slane %v5183, 1
      %v5291 = vsel %vm2522, %v5288, %v5290
      %v5292 = vrot.slane %v5184, 1
      %v5293 = vrot.slane %v5185, 1
      %v5294 = vsel %vm2522, %v5292, %v5293
      %v5295 = vrot.slane %v5186, 1
      %v5296 = vsel %vm2522, %v5293, %v5295
      %v5297 = vrot.slane %v5187, 1
      %v5298 = vrot.slane %v5188, 1
      %v5299 = vsel %vm2522, %v5297, %v5298
      %v5300 = vrot.slane %v5189, 1
      %v5301 = vsel %vm2522, %v5298, %v5300
      %v5302 = vrot.slane %v5190, 1
      %v5303 = vrot.slane %v5191, 1
      %v5304 = vsel %vm2522, %v5302, %v5303
      %v5305 = vrot.slane %v5192, 1
      %v5306 = vsel %vm2522, %v5303, %v5305
      %v5307 = vrot.slane %v5193, 1
      %v5308 = vrot.slane %v5194, 1
      %v5309 = vsel %vm2522, %v5307, %v5308
      %v5310 = vrot.slane %v5195, 1
      %v5311 = vsel %vm2522, %v5308, %v5310
      %v5312 = vrot.slane %v5196, 1
      %v5313 = vrot.slane %v5197, 1
      %v5314 = vsel %vm2522, %v5312, %v5313
      %v5315 = vrot.slane %v5198, 1
      %v5316 = vsel %vm2522, %v5313, %v5315
      %v5317 = vrot.slane %v5199, 1
      %v5318 = vrot.slane %v5200, 1
      %v5319 = vsel %vm2522, %v5317, %v5318
      %v5320 = vrot.slane %v5201, 1
      %v5321 = vsel %vm2522, %v5318, %v5320
      %v5322 = vrot.slane %v5202, 1
      %v5323 = vrot.slane %v5203, 1
      %v5324 = vsel %vm2522, %v5322, %v5323
      %v5325 = vrot.slane %v5204, 1
      %v5326 = vsel %vm2522, %v5323, %v5325
      %v5327 = vrot.slane %v5205, 1
      %v5328 = vrot.slane %v5206, 1
      %v5329 = vsel %vm2522, %v5327, %v5328
      %v5330 = vrot.slane %v5207, 1
      %v5331 = vsel %vm2522, %v5328, %v5330
      %v5332 = vrot.slane %v5208, 1
      %v5333 = vrot.slane %v5209, 1
      %v5334 = vsel %vm2522, %v5332, %v5333
      %v5335 = vrot.slane %v5210, 1
      %v5336 = vsel %vm2522, %v5333, %v5335
      %v5337 = vrot.slane %v5211, 1
      %v5338 = vrot.slane %v5212, 1
      %v5339 = vsel %vm2522, %v5337, %v5338
      %v5340 = vrot.slane %v5213, 1
      %v5341 = vsel %vm2522, %v5338, %v5340
      %v5374 = vadd.f32 %v4965, %v5264
      %v5375 = vadd.f32 %v4966, %v5266
      %v5376 = vadd.f32 %v4967, %v5269
      %v5377 = vadd.f32 %v4968, %v5271
      %v5378 = vadd.f32 %v4969, %v5274
      %v5379 = vadd.f32 %v4970, %v5276
      %v5380 = vadd.f32 %v4971, %v5279
      %v5381 = vadd.f32 %v4972, %v5281
      %v5382 = vadd.f32 %v4973, %v5284
      %v5383 = vadd.f32 %v4974, %v5286
      %v5384 = vadd.f32 %v4975, %v5289
      %v5385 = vadd.f32 %v4976, %v5291
      %v5386 = vadd.f32 %v4977, %v5294
      %v5387 = vadd.f32 %v4978, %v5296
      %v5388 = vadd.f32 %v4979, %v5299
      %v5389 = vadd.f32 %v4980, %v5301
      %v5390 = vadd.f32 %v4981, %v5304
      %v5391 = vadd.f32 %v4982, %v5306
      %v5392 = vadd.f32 %v4983, %v5309
      %v5393 = vadd.f32 %v4984, %v5311
      %v5394 = vadd.f32 %v4985, %v5314
      %v5395 = vadd.f32 %v4986, %v5316
      %v5396 = vadd.f32 %v4987, %v5319
      %v5397 = vadd.f32 %v4988, %v5321
      %v5398 = vadd.f32 %v4989, %v5324
      %v5399 = vadd.f32 %v4990, %v5326
      %v5400 = vadd.f32 %v4991, %v5329
      %v5401 = vadd.f32 %v4992, %v5331
      %v5402 = vadd.f32 %v4993, %v5334
      %v5403 = vadd.f32 %v4994, %v5336
      %v5404 = vadd.f32 %v4995, %v5339
      %v5405 = vadd.f32 %v4996, %v5341
      %v5406 = vld [vmem:[%s4997 + $0x8] sm:$0x1]
      %v5407 = vld [vmem:[%s4997 + $0x14] sm:$0x1]
      %v5408 = vld [vmem:[%s4997 + $0x20] sm:$0x1]
      %v5409 = vld [vmem:[%s4997 + $0x2c] sm:$0x1]
      %v5410 = vld [vmem:[%s4997 + $0x38] sm:$0x1]
      %v5411 = vld [vmem:[%s4997 + $0x44] sm:$0x1]
      %v5412 = vld [vmem:[%s4997 + $0x50] sm:$0x1]
      %v5413 = vld [vmem:[%s4997 + $0x5c] sm:$0x1]
      %v5414 = vld [vmem:[%s4997 + $0x68] sm:$0x1]
      %v5415 = vld [vmem:[%s4997 + $0x74] sm:$0x1]
      %v5416 = vld [vmem:[%s4997 + $0x80] sm:$0x1]
      %v5417 = vld [vmem:[%s4997 + $0x8c] sm:$0x1]
      %v5418 = vld [vmem:[%s4997 + $0x98] sm:$0x1]
      %v5419 = vld [vmem:[%s4997 + $0xa4] sm:$0x1]
      %v5420 = vld [vmem:[%s4997 + $0xb0] sm:$0x1]
      %v5421 = vld [vmem:[%s4997 + $0xbc] sm:$0x1]
      %v5422 = vunpack.c.l.bf16 %v5406
      %v5423 = vunpack.c.l.bf16 %v5407
      %v5424 = vunpack.c.l.bf16 %v5408
      %v5425 = vunpack.c.l.bf16 %v5409
      %v5426 = vunpack.c.l.bf16 %v5410
      %v5427 = vunpack.c.l.bf16 %v5411
      %v5428 = vunpack.c.l.bf16 %v5412
      %v5429 = vunpack.c.l.bf16 %v5413
      %v5430 = vunpack.c.l.bf16 %v5414
      %v5431 = vunpack.c.l.bf16 %v5415
      %v5432 = vunpack.c.l.bf16 %v5416
      %v5433 = vunpack.c.l.bf16 %v5417
      %v5434 = vunpack.c.l.bf16 %v5418
      %v5435 = vunpack.c.l.bf16 %v5419
      %v5436 = vunpack.c.l.bf16 %v5420
      %v5437 = vunpack.c.l.bf16 %v5421
      %v5438 = vlaneseq
      %v5439 = vshrl.u32 %v5438, 7
      %v5440 = vsub.s32 1, %v5439
      %v5441 = vrot.slane %v2125, %v5440
      %v5442 = vmul.f32 %v5030, %v5441
      %v5443 = vmul.f32 %v5031, %v5441
      %v5444 = vmul.f32 %v5422, %v5441
      %v5445 = vmul.f32 %v5032, %v5441
      %v5446 = vmul.f32 %v5033, %v5441
      %v5447 = vmul.f32 %v5423, %v5441
      %v5448 = vmul.f32 %v5034, %v5441
      %v5449 = vmul.f32 %v5035, %v5441
      %v5450 = vmul.f32 %v5424, %v5441
      %v5451 = vmul.f32 %v5036, %v5441
      %v5452 = vmul.f32 %v5037, %v5441
      %v5453 = vmul.f32 %v5425, %v5441
      %v5454 = vmul.f32 %v5038, %v5441
      %v5455 = vmul.f32 %v5039, %v5441
      %v5456 = vmul.f32 %v5426, %v5441
      %v5457 = vmul.f32 %v5040, %v5441
      %v5458 = vmul.f32 %v5041, %v5441
      %v5459 = vmul.f32 %v5427, %v5441
      %v5460 = vmul.f32 %v5042, %v5441
      %v5461 = vmul.f32 %v5043, %v5441
      %v5462 = vmul.f32 %v5428, %v5441
      %v5463 = vmul.f32 %v5044, %v5441
      %v5464 = vmul.f32 %v5045, %v5441
      %v5465 = vmul.f32 %v5429, %v5441
      %v5466 = vmul.f32 %v5046, %v5441
      %v5467 = vmul.f32 %v5047, %v5441
      %v5468 = vmul.f32 %v5430, %v5441
      %v5469 = vmul.f32 %v5048, %v5441
      %v5470 = vmul.f32 %v5049, %v5441
      %v5471 = vmul.f32 %v5431, %v5441
      %v5472 = vmul.f32 %v5050, %v5441
      %v5473 = vmul.f32 %v5051, %v5441
      %v5474 = vmul.f32 %v5432, %v5441
      %v5475 = vmul.f32 %v5052, %v5441
      %v5476 = vmul.f32 %v5053, %v5441
      %v5477 = vmul.f32 %v5433, %v5441
      %v5478 = vmul.f32 %v5054, %v5441
      %v5479 = vmul.f32 %v5055, %v5441
      %v5480 = vmul.f32 %v5434, %v5441
      %v5481 = vmul.f32 %v5056, %v5441
      %v5482 = vmul.f32 %v5057, %v5441
      %v5483 = vmul.f32 %v5435, %v5441
      %v5484 = vmul.f32 %v5058, %v5441
      %v5485 = vmul.f32 %v5059, %v5441
      %v5486 = vmul.f32 %v5436, %v5441
      %v5487 = vmul.f32 %v5060, %v5441
      %v5488 = vmul.f32 %v5061, %v5441
      %v5489 = vmul.f32 %v5437, %v5441
      %v5538 = vrot.slane %v5442, 1
      %v5539 = vrot.slane %v5443, 1
      %v5540 = vsel %vm2522, %v5538, %v5539
      %v5541 = vrot.slane %v5444, 1
      %v5542 = vsel %vm2522, %v5539, %v5541
      %v5543 = vrot.slane %v5445, 1
      %v5544 = vrot.slane %v5446, 1
      %v5545 = vsel %vm2522, %v5543, %v5544
      %v5546 = vrot.slane %v5447, 1
      %v5547 = vsel %vm2522, %v5544, %v5546
      %v5548 = vrot.slane %v5448, 1
      %v5549 = vrot.slane %v5449, 1
      %v5550 = vsel %vm2522, %v5548, %v5549
      %v5551 = vrot.slane %v5450, 1
      %v5552 = vsel %vm2522, %v5549, %v5551
      %v5553 = vrot.slane %v5451, 1
      %v5554 = vrot.slane %v5452, 1
      %v5555 = vsel %vm2522, %v5553, %v5554
      %v5556 = vrot.slane %v5453, 1
      %v5557 = vsel %vm2522, %v5554, %v5556
      %v5558 = vrot.slane %v5454, 1
      %v5559 = vrot.slane %v5455, 1
      %v5560 = vsel %vm2522, %v5558, %v5559
      %v5561 = vrot.slane %v5456, 1
      %v5562 = vsel %vm2522, %v5559, %v5561
      %v5563 = vrot.slane %v5457, 1
      %v5564 = vrot.slane %v5458, 1
      %v5565 = vsel %vm2522, %v5563, %v5564
      %v5566 = vrot.slane %v5459, 1
      %v5567 = vsel %vm2522, %v5564, %v5566
      %v5568 = vrot.slane %v5460, 1
      %v5569 = vrot.slane %v5461, 1
      %v5570 = vsel %vm2522, %v5568, %v5569
      %v5571 = vrot.slane %v5462, 1
      %v5572 = vsel %vm2522, %v5569, %v5571
      %v5573 = vrot.slane %v5463, 1
      %v5574 = vrot.slane %v5464, 1
      %v5575 = vsel %vm2522, %v5573, %v5574
      %v5576 = vrot.slane %v5465, 1
      %v5577 = vsel %vm2522, %v5574, %v5576
      %v5578 = vrot.slane %v5466, 1
      %v5579 = vrot.slane %v5467, 1
      %v5580 = vsel %vm2522, %v5578, %v5579
      %v5581 = vrot.slane %v5468, 1
      %v5582 = vsel %vm2522, %v5579, %v5581
      %v5583 = vrot.slane %v5469, 1
      %v5584 = vrot.slane %v5470, 1
      %v5585 = vsel %vm2522, %v5583, %v5584
      %v5586 = vrot.slane %v5471, 1
      %v5587 = vsel %vm2522, %v5584, %v5586
      %v5588 = vrot.slane %v5472, 1
      %v5589 = vrot.slane %v5473, 1
      %v5590 = vsel %vm2522, %v5588, %v5589
      %v5591 = vrot.slane %v5474, 1
      %v5592 = vsel %vm2522, %v5589, %v5591
      %v5593 = vrot.slane %v5475, 1
      %v5594 = vrot.slane %v5476, 1
      %v5595 = vsel %vm2522, %v5593, %v5594
      %v5596 = vrot.slane %v5477, 1
      %v5597 = vsel %vm2522, %v5594, %v5596
      %v5598 = vrot.slane %v5478, 1
      %v5599 = vrot.slane %v5479, 1
      %v5600 = vsel %vm2522, %v5598, %v5599
      %v5601 = vrot.slane %v5480, 1
      %v5602 = vsel %vm2522, %v5599, %v5601
      %v5603 = vrot.slane %v5481, 1
      %v5604 = vrot.slane %v5482, 1
      %v5605 = vsel %vm2522, %v5603, %v5604
      %v5606 = vrot.slane %v5483, 1
      %v5607 = vsel %vm2522, %v5604, %v5606
      %v5608 = vrot.slane %v5484, 1
      %v5609 = vrot.slane %v5485, 1
      %v5610 = vsel %vm2522, %v5608, %v5609
      %v5611 = vrot.slane %v5486, 1
      %v5612 = vsel %vm2522, %v5609, %v5611
      %v5613 = vrot.slane %v5487, 1
      %v5614 = vrot.slane %v5488, 1
      %v5615 = vsel %vm2522, %v5613, %v5614
      %v5616 = vrot.slane %v5489, 1
      %v5617 = vsel %vm2522, %v5614, %v5616
      %v5650 = vadd.f32 %v5098, %v5540
      %v5651 = vadd.f32 %v5099, %v5542
      %v5652 = vadd.f32 %v5100, %v5545
      %v5653 = vadd.f32 %v5101, %v5547
      %v5654 = vadd.f32 %v5102, %v5550
      %v5655 = vadd.f32 %v5103, %v5552
      %v5656 = vadd.f32 %v5104, %v5555
      %v5657 = vadd.f32 %v5105, %v5557
      %v5658 = vadd.f32 %v5106, %v5560
      %v5659 = vadd.f32 %v5107, %v5562
      %v5660 = vadd.f32 %v5108, %v5565
      %v5661 = vadd.f32 %v5109, %v5567
      %v5662 = vadd.f32 %v5110, %v5570
      %v5663 = vadd.f32 %v5111, %v5572
      %v5664 = vadd.f32 %v5112, %v5575
      %v5665 = vadd.f32 %v5113, %v5577
      %v5666 = vadd.f32 %v5114, %v5580
      %v5667 = vadd.f32 %v5115, %v5582
      %v5668 = vadd.f32 %v5116, %v5585
      %v5669 = vadd.f32 %v5117, %v5587
      %v5670 = vadd.f32 %v5118, %v5590
      %v5671 = vadd.f32 %v5119, %v5592
      %v5672 = vadd.f32 %v5120, %v5595
      %v5673 = vadd.f32 %v5121, %v5597
      %v5674 = vadd.f32 %v5122, %v5600
      %v5675 = vadd.f32 %v5123, %v5602
      %v5676 = vadd.f32 %v5124, %v5605
      %v5677 = vadd.f32 %v5125, %v5607
      %v5678 = vadd.f32 %v5126, %v5610
      %v5679 = vadd.f32 %v5127, %v5612
      %v5680 = vadd.f32 %v5128, %v5615
      %v5681 = vadd.f32 %v5129, %v5617
      %v5682 = vld [vmem:[%s4864] sm:$0xe]
      %v5683 = vld [vmem:[%s4864 + $0xc] sm:$0xe]
      %v5684 = vld [vmem:[%s4864 + $0x18] sm:$0xe]
      %v5685 = vld [vmem:[%s4864 + $0x24] sm:$0xe]
      %v5686 = vld [vmem:[%s4864 + $0x30] sm:$0xe]
      %v5687 = vld [vmem:[%s4864 + $0x3c] sm:$0xe]
      %v5688 = vld [vmem:[%s4864 + $0x48] sm:$0xe]
      %v5689 = vld [vmem:[%s4864 + $0x54] sm:$0xe]
      %v5690 = vld [vmem:[%s4864 + $0x60] sm:$0xe]
      %v5691 = vld [vmem:[%s4864 + $0x6c] sm:$0xe]
      %v5692 = vld [vmem:[%s4864 + $0x78] sm:$0xe]
      %v5693 = vld [vmem:[%s4864 + $0x84] sm:$0xe]
      %v5694 = vld [vmem:[%s4864 + $0x90] sm:$0xe]
      %v5695 = vld [vmem:[%s4864 + $0x9c] sm:$0xe]
      %v5696 = vld [vmem:[%s4864 + $0xa8] sm:$0xe]
      %v5697 = vld [vmem:[%s4864 + $0xb4] sm:$0xe]
      %v5698 = vunpack.c.l.bf16 %v5682
      %v5699 = vunpack.c.l.bf16 %v5683
      %v5700 = vunpack.c.l.bf16 %v5684
      %v5701 = vunpack.c.l.bf16 %v5685
      %v5702 = vunpack.c.l.bf16 %v5686
      %v5703 = vunpack.c.l.bf16 %v5687
      %v5704 = vunpack.c.l.bf16 %v5688
      %v5705 = vunpack.c.l.bf16 %v5689
      %v5706 = vunpack.c.l.bf16 %v5690
      %v5707 = vunpack.c.l.bf16 %v5691
      %v5708 = vunpack.c.l.bf16 %v5692
      %v5709 = vunpack.c.l.bf16 %v5693
      %v5710 = vunpack.c.l.bf16 %v5694
      %v5711 = vunpack.c.l.bf16 %v5695
      %v5712 = vunpack.c.l.bf16 %v5696
      %v5713 = vunpack.c.l.bf16 %v5697
      %v5714 = vlaneseq
      %v5715 = vshrl.u32 %v5714, 7
      %v5716 = vsub.s32 2, %v5715
      %v5717 = vrot.slane %v2122, %v5716
      %v5718 = vmul.f32 %v5698, %v5717
      %v5719 = vmul.f32 %v4898, %v5717
      %v5720 = vmul.f32 %v5146, %v5717
      %v5721 = vmul.f32 %v5699, %v5717
      %v5722 = vmul.f32 %v4900, %v5717
      %v5723 = vmul.f32 %v5147, %v5717
      %v5724 = vmul.f32 %v5700, %v5717
      %v5725 = vmul.f32 %v4902, %v5717
      %v5726 = vmul.f32 %v5148, %v5717
      %v5727 = vmul.f32 %v5701, %v5717
      %v5728 = vmul.f32 %v4904, %v5717
      %v5729 = vmul.f32 %v5149, %v5717
      %v5730 = vmul.f32 %v5702, %v5717
      %v5731 = vmul.f32 %v4906, %v5717
      %v5732 = vmul.f32 %v5150, %v5717
      %v5733 = vmul.f32 %v5703, %v5717
      %v5734 = vmul.f32 %v4908, %v5717
      %v5735 = vmul.f32 %v5151, %v5717
      %v5736 = vmul.f32 %v5704, %v5717
      %v5737 = vmul.f32 %v4910, %v5717
      %v5738 = vmul.f32 %v5152, %v5717
      %v5739 = vmul.f32 %v5705, %v5717
      %v5740 = vmul.f32 %v4912, %v5717
      %v5741 = vmul.f32 %v5153, %v5717
      %v5742 = vmul.f32 %v5706, %v5717
      %v5743 = vmul.f32 %v4914, %v5717
      %v5744 = vmul.f32 %v5154, %v5717
      %v5745 = vmul.f32 %v5707, %v5717
      %v5746 = vmul.f32 %v4916, %v5717
      %v5747 = vmul.f32 %v5155, %v5717
      %v5748 = vmul.f32 %v5708, %v5717
      %v5749 = vmul.f32 %v4918, %v5717
      %v5750 = vmul.f32 %v5156, %v5717
      %v5751 = vmul.f32 %v5709, %v5717
      %v5752 = vmul.f32 %v4920, %v5717
      %v5753 = vmul.f32 %v5157, %v5717
      %v5754 = vmul.f32 %v5710, %v5717
      %v5755 = vmul.f32 %v4922, %v5717
      %v5756 = vmul.f32 %v5158, %v5717
      %v5757 = vmul.f32 %v5711, %v5717
      %v5758 = vmul.f32 %v4924, %v5717
      %v5759 = vmul.f32 %v5159, %v5717
      %v5760 = vmul.f32 %v5712, %v5717
      %v5761 = vmul.f32 %v4926, %v5717
      %v5762 = vmul.f32 %v5160, %v5717
      %v5763 = vmul.f32 %v5713, %v5717
      %v5764 = vmul.f32 %v4928, %v5717
      %v5765 = vmul.f32 %v5161, %v5717
      %v5814 = vrot.slane %v5718, 2
      %v5815 = vrot.slane %v5719, 2
      %v5816 = vsel %vm3075, %v5814, %v5815
      %v5817 = vrot.slane %v5720, 2
      %v5818 = vsel %vm3075, %v5815, %v5817
      %v5819 = vrot.slane %v5721, 2
      %v5820 = vrot.slane %v5722, 2
      %v5821 = vsel %vm3075, %v5819, %v5820
      %v5822 = vrot.slane %v5723, 2
      %v5823 = vsel %vm3075, %v5820, %v5822
      %v5824 = vrot.slane %v5724, 2
      %v5825 = vrot.slane %v5725, 2
      %v5826 = vsel %vm3075, %v5824, %v5825
      %v5827 = vrot.slane %v5726, 2
      %v5828 = vsel %vm3075, %v5825, %v5827
      %v5829 = vrot.slane %v5727, 2
      %v5830 = vrot.slane %v5728, 2
      %v5831 = vsel %vm3075, %v5829, %v5830
      %v5832 = vrot.slane %v5729, 2
      %v5833 = vsel %vm3075, %v5830, %v5832
      %v5834 = vrot.slane %v5730, 2
      %v5835 = vrot.slane %v5731, 2
      %v5836 = vsel %vm3075, %v5834, %v5835
      %v5837 = vrot.slane %v5732, 2
      %v5838 = vsel %vm3075, %v5835, %v5837
      %v5839 = vrot.slane %v5733, 2
      %v5840 = vrot.slane %v5734, 2
      %v5841 = vsel %vm3075, %v5839, %v5840
      %v5842 = vrot.slane %v5735, 2
      %v5843 = vsel %vm3075, %v5840, %v5842
      %v5844 = vrot.slane %v5736, 2
      %v5845 = vrot.slane %v5737, 2
      %v5846 = vsel %vm3075, %v5844, %v5845
      %v5847 = vrot.slane %v5738, 2
      %v5848 = vsel %vm3075, %v5845, %v5847
      %v5849 = vrot.slane %v5739, 2
      %v5850 = vrot.slane %v5740, 2
      %v5851 = vsel %vm3075, %v5849, %v5850
      %v5852 = vrot.slane %v5741, 2
      %v5853 = vsel %vm3075, %v5850, %v5852
      %v5854 = vrot.slane %v5742, 2
      %v5855 = vrot.slane %v5743, 2
      %v5856 = vsel %vm3075, %v5854, %v5855
      %v5857 = vrot.slane %v5744, 2
      %v5858 = vsel %vm3075, %v5855, %v5857
      %v5859 = vrot.slane %v5745, 2
      %v5860 = vrot.slane %v5746, 2
      %v5861 = vsel %vm3075, %v5859, %v5860
      %v5862 = vrot.slane %v5747, 2
      %v5863 = vsel %vm3075, %v5860, %v5862
      %v5864 = vrot.slane %v5748, 2
      %v5865 = vrot.slane %v5749, 2
      %v5866 = vsel %vm3075, %v5864, %v5865
      %v5867 = vrot.slane %v5750, 2
      %v5868 = vsel %vm3075, %v5865, %v5867
      %v5869 = vrot.slane %v5751, 2
      %v5870 = vrot.slane %v5752, 2
      %v5871 = vsel %vm3075, %v5869, %v5870
      %v5872 = vrot.slane %v5753, 2
      %v5873 = vsel %vm3075, %v5870, %v5872
      %v5874 = vrot.slane %v5754, 2
      %v5875 = vrot.slane %v5755, 2
      %v5876 = vsel %vm3075, %v5874, %v5875
      %v5877 = vrot.slane %v5756, 2
      %v5878 = vsel %vm3075, %v5875, %v5877
      %v5879 = vrot.slane %v5757, 2
      %v5880 = vrot.slane %v5758, 2
      %v5881 = vsel %vm3075, %v5879, %v5880
      %v5882 = vrot.slane %v5759, 2
      %v5883 = vsel %vm3075, %v5880, %v5882
      %v5884 = vrot.slane %v5760, 2
      %v5885 = vrot.slane %v5761, 2
      %v5886 = vsel %vm3075, %v5884, %v5885
      %v5887 = vrot.slane %v5762, 2
      %v5888 = vsel %vm3075, %v5885, %v5887
      %v5889 = vrot.slane %v5763, 2
      %v5890 = vrot.slane %v5764, 2
      %v5891 = vsel %vm3075, %v5889, %v5890
      %v5892 = vrot.slane %v5765, 2
      %v5893 = vsel %vm3075, %v5890, %v5892
      %v5926 = vadd.f32 %v5374, %v5816
      %v5927 = vadd.f32 %v5375, %v5818
      %v5928 = vadd.f32 %v5376, %v5821
      %v5929 = vadd.f32 %v5377, %v5823
      %v5930 = vadd.f32 %v5378, %v5826
      %v5931 = vadd.f32 %v5379, %v5828
      %v5932 = vadd.f32 %v5380, %v5831
      %v5933 = vadd.f32 %v5381, %v5833
      %v5934 = vadd.f32 %v5382, %v5836
      %v5935 = vadd.f32 %v5383, %v5838
      %v5936 = vadd.f32 %v5384, %v5841
      %v5937 = vadd.f32 %v5385, %v5843
      %v5938 = vadd.f32 %v5386, %v5846
      %v5939 = vadd.f32 %v5387, %v5848
      %v5940 = vadd.f32 %v5388, %v5851
      %v5941 = vadd.f32 %v5389, %v5853
      %v5942 = vadd.f32 %v5390, %v5856
      %v5943 = vadd.f32 %v5391, %v5858
      %v5944 = vadd.f32 %v5392, %v5861
      %v5945 = vadd.f32 %v5393, %v5863
      %v5946 = vadd.f32 %v5394, %v5866
      %v5947 = vadd.f32 %v5395, %v5868
      %v5948 = vadd.f32 %v5396, %v5871
      %v5949 = vadd.f32 %v5397, %v5873
      %v5950 = vadd.f32 %v5398, %v5876
      %v5951 = vadd.f32 %v5399, %v5878
      %v5952 = vadd.f32 %v5400, %v5881
      %v5953 = vadd.f32 %v5401, %v5883
      %v5954 = vadd.f32 %v5402, %v5886
      %v5955 = vadd.f32 %v5403, %v5888
      %v5956 = vadd.f32 %v5404, %v5891
      %v5957 = vadd.f32 %v5405, %v5893
      %v5958 = vld [vmem:[%s4997] sm:$0xe]
      %v5959 = vld [vmem:[%s4997 + $0xc] sm:$0xe]
      %v5960 = vld [vmem:[%s4997 + $0x18] sm:$0xe]
      %v5961 = vld [vmem:[%s4997 + $0x24] sm:$0xe]
      %v5962 = vld [vmem:[%s4997 + $0x30] sm:$0xe]
      %v5963 = vld [vmem:[%s4997 + $0x3c] sm:$0xe]
      %v5964 = vld [vmem:[%s4997 + $0x48] sm:$0xe]
      %v5965 = vld [vmem:[%s4997 + $0x54] sm:$0xe]
      %v5966 = vld [vmem:[%s4997 + $0x60] sm:$0xe]
      %v5967 = vld [vmem:[%s4997 + $0x6c] sm:$0xe]
      %v5968 = vld [vmem:[%s4997 + $0x78] sm:$0xe]
      %v5969 = vld [vmem:[%s4997 + $0x84] sm:$0xe]
      %v5970 = vld [vmem:[%s4997 + $0x90] sm:$0xe]
      %v5971 = vld [vmem:[%s4997 + $0x9c] sm:$0xe]
      %v5972 = vld [vmem:[%s4997 + $0xa8] sm:$0xe]
      %v5973 = vld [vmem:[%s4997 + $0xb4] sm:$0xe]
      %v5974 = vunpack.c.l.bf16 %v5958
      %v5975 = vunpack.c.l.bf16 %v5959
      %v5976 = vunpack.c.l.bf16 %v5960
      %v5977 = vunpack.c.l.bf16 %v5961
      %v5978 = vunpack.c.l.bf16 %v5962
      %v5979 = vunpack.c.l.bf16 %v5963
      %v5980 = vunpack.c.l.bf16 %v5964
      %v5981 = vunpack.c.l.bf16 %v5965
      %v5982 = vunpack.c.l.bf16 %v5966
      %v5983 = vunpack.c.l.bf16 %v5967
      %v5984 = vunpack.c.l.bf16 %v5968
      %v5985 = vunpack.c.l.bf16 %v5969
      %v5986 = vunpack.c.l.bf16 %v5970
      %v5987 = vunpack.c.l.bf16 %v5971
      %v5988 = vunpack.c.l.bf16 %v5972
      %v5989 = vunpack.c.l.bf16 %v5973
      %v5990 = vlaneseq
      %v5991 = vshrl.u32 %v5990, 7
      %v5992 = vsub.s32 2, %v5991
      %v5993 = vrot.slane %v2125, %v5992
      %v5994 = vmul.f32 %v5974, %v5993
      %v5995 = vmul.f32 %v5031, %v5993
      %v5996 = vmul.f32 %v5422, %v5993
      %v5997 = vmul.f32 %v5975, %v5993
      %v5998 = vmul.f32 %v5033, %v5993
      %v5999 = vmul.f32 %v5423, %v5993
      %v6000 = vmul.f32 %v5976, %v5993
      %v6001 = vmul.f32 %v5035, %v5993
      %v6002 = vmul.f32 %v5424, %v5993
      %v6003 = vmul.f32 %v5977, %v5993
      %v6004 = vmul.f32 %v5037, %v5993
      %v6005 = vmul.f32 %v5425, %v5993
      %v6006 = vmul.f32 %v5978, %v5993
      %v6007 = vmul.f32 %v5039, %v5993
      %v6008 = vmul.f32 %v5426, %v5993
      %v6009 = vmul.f32 %v5979, %v5993
      %v6010 = vmul.f32 %v5041, %v5993
      %v6011 = vmul.f32 %v5427, %v5993
      %v6012 = vmul.f32 %v5980, %v5993
      %v6013 = vmul.f32 %v5043, %v5993
      %v6014 = vmul.f32 %v5428, %v5993
      %v6015 = vmul.f32 %v5981, %v5993
      %v6016 = vmul.f32 %v5045, %v5993
      %v6017 = vmul.f32 %v5429, %v5993
      %v6018 = vmul.f32 %v5982, %v5993
      %v6019 = vmul.f32 %v5047, %v5993
      %v6020 = vmul.f32 %v5430, %v5993
      %v6021 = vmul.f32 %v5983, %v5993
      %v6022 = vmul.f32 %v5049, %v5993
      %v6023 = vmul.f32 %v5431, %v5993
      %v6024 = vmul.f32 %v5984, %v5993
      %v6025 = vmul.f32 %v5051, %v5993
      %v6026 = vmul.f32 %v5432, %v5993
      %v6027 = vmul.f32 %v5985, %v5993
      %v6028 = vmul.f32 %v5053, %v5993
      %v6029 = vmul.f32 %v5433, %v5993
      %v6030 = vmul.f32 %v5986, %v5993
      %v6031 = vmul.f32 %v5055, %v5993
      %v6032 = vmul.f32 %v5434, %v5993
      %v6033 = vmul.f32 %v5987, %v5993
      %v6034 = vmul.f32 %v5057, %v5993
      %v6035 = vmul.f32 %v5435, %v5993
      %v6036 = vmul.f32 %v5988, %v5993
      %v6037 = vmul.f32 %v5059, %v5993
      %v6038 = vmul.f32 %v5436, %v5993
      %v6039 = vmul.f32 %v5989, %v5993
      %v6040 = vmul.f32 %v5061, %v5993
      %v6041 = vmul.f32 %v5437, %v5993
      %v6090 = vrot.slane %v5994, 2
      %v6091 = vrot.slane %v5995, 2
      %v6092 = vsel %vm3075, %v6090, %v6091
      %v6093 = vrot.slane %v5996, 2
      %v6094 = vsel %vm3075, %v6091, %v6093
      %v6095 = vrot.slane %v5997, 2
      %v6096 = vrot.slane %v5998, 2
      %v6097 = vsel %vm3075, %v6095, %v6096
      %v6098 = vrot.slane %v5999, 2
      %v6099 = vsel %vm3075, %v6096, %v6098
      %v6100 = vrot.slane %v6000, 2
      %v6101 = vrot.slane %v6001, 2
      %v6102 = vsel %vm3075, %v6100, %v6101
      %v6103 = vrot.slane %v6002, 2
      %v6104 = vsel %vm3075, %v6101, %v6103
      %v6105 = vrot.slane %v6003, 2
      %v6106 = vrot.slane %v6004, 2
      %v6107 = vsel %vm3075, %v6105, %v6106
      %v6108 = vrot.slane %v6005, 2
      %v6109 = vsel %vm3075, %v6106, %v6108
      %v6110 = vrot.slane %v6006, 2
      %v6111 = vrot.slane %v6007, 2
      %v6112 = vsel %vm3075, %v6110, %v6111
      %v6113 = vrot.slane %v6008, 2
      %v6114 = vsel %vm3075, %v6111, %v6113
      %v6115 = vrot.slane %v6009, 2
      %v6116 = vrot.slane %v6010, 2
      %v6117 = vsel %vm3075, %v6115, %v6116
      %v6118 = vrot.slane %v6011, 2
      %v6119 = vsel %vm3075, %v6116, %v6118
      %v6120 = vrot.slane %v6012, 2
      %v6121 = vrot.slane %v6013, 2
      %v6122 = vsel %vm3075, %v6120, %v6121
      %v6123 = vrot.slane %v6014, 2
      %v6124 = vsel %vm3075, %v6121, %v6123
      %v6125 = vrot.slane %v6015, 2
      %v6126 = vrot.slane %v6016, 2
      %v6127 = vsel %vm3075, %v6125, %v6126
      %v6128 = vrot.slane %v6017, 2
      %v6129 = vsel %vm3075, %v6126, %v6128
      %v6130 = vrot.slane %v6018, 2
      %v6131 = vrot.slane %v6019, 2
      %v6132 = vsel %vm3075, %v6130, %v6131
      %v6133 = vrot.slane %v6020, 2
      %v6134 = vsel %vm3075, %v6131, %v6133
      %v6135 = vrot.slane %v6021, 2
      %v6136 = vrot.slane %v6022, 2
      %v6137 = vsel %vm3075, %v6135, %v6136
      %v6138 = vrot.slane %v6023, 2
      %v6139 = vsel %vm3075, %v6136, %v6138
      %v6140 = vrot.slane %v6024, 2
      %v6141 = vrot.slane %v6025, 2
      %v6142 = vsel %vm3075, %v6140, %v6141
      %v6143 = vrot.slane %v6026, 2
      %v6144 = vsel %vm3075, %v6141, %v6143
      %v6145 = vrot.slane %v6027, 2
      %v6146 = vrot.slane %v6028, 2
      %v6147 = vsel %vm3075, %v6145, %v6146
      %v6148 = vrot.slane %v6029, 2
      %v6149 = vsel %vm3075, %v6146, %v6148
      %v6150 = vrot.slane %v6030, 2
      %v6151 = vrot.slane %v6031, 2
      %v6152 = vsel %vm3075, %v6150, %v6151
      %v6153 = vrot.slane %v6032, 2
      %v6154 = vsel %vm3075, %v6151, %v6153
      %v6155 = vrot.slane %v6033, 2
      %v6156 = vrot.slane %v6034, 2
      %v6157 = vsel %vm3075, %v6155, %v6156
      %v6158 = vrot.slane %v6035, 2
      %v6159 = vsel %vm3075, %v6156, %v6158
      %v6160 = vrot.slane %v6036, 2
      %v6161 = vrot.slane %v6037, 2
      %v6162 = vsel %vm3075, %v6160, %v6161
      %v6163 = vrot.slane %v6038, 2
      %v6164 = vsel %vm3075, %v6161, %v6163
      %v6165 = vrot.slane %v6039, 2
      %v6166 = vrot.slane %v6040, 2
      %v6167 = vsel %vm3075, %v6165, %v6166
      %v6168 = vrot.slane %v6041, 2
      %v6169 = vsel %vm3075, %v6166, %v6168
      %v6202 = vadd.f32 %v5650, %v6092
      %v6203 = vadd.f32 %v5651, %v6094
      %v6204 = vadd.f32 %v5652, %v6097
      %v6205 = vadd.f32 %v5653, %v6099
      %v6206 = vadd.f32 %v5654, %v6102
      %v6207 = vadd.f32 %v5655, %v6104
      %v6208 = vadd.f32 %v5656, %v6107
      %v6209 = vadd.f32 %v5657, %v6109
      %v6210 = vadd.f32 %v5658, %v6112
      %v6211 = vadd.f32 %v5659, %v6114
      %v6212 = vadd.f32 %v5660, %v6117
      %v6213 = vadd.f32 %v5661, %v6119
      %v6214 = vadd.f32 %v5662, %v6122
      %v6215 = vadd.f32 %v5663, %v6124
      %v6216 = vadd.f32 %v5664, %v6127
      %v6217 = vadd.f32 %v5665, %v6129
      %v6218 = vadd.f32 %v5666, %v6132
      %v6219 = vadd.f32 %v5667, %v6134
      %v6220 = vadd.f32 %v5668, %v6137
      %v6221 = vadd.f32 %v5669, %v6139
      %v6222 = vadd.f32 %v5670, %v6142
      %v6223 = vadd.f32 %v5671, %v6144
      %v6224 = vadd.f32 %v5672, %v6147
      %v6225 = vadd.f32 %v5673, %v6149
      %v6226 = vadd.f32 %v5674, %v6152
      %v6227 = vadd.f32 %v5675, %v6154
      %v6228 = vadd.f32 %v5676, %v6157
      %v6229 = vadd.f32 %v5677, %v6159
      %v6230 = vadd.f32 %v5678, %v6162
      %v6231 = vadd.f32 %v5679, %v6164
      %v6232 = vadd.f32 %v5680, %v6167
      %v6233 = vadd.f32 %v5681, %v6169
      %v6234 = vld [vmem:[%s816] sm:$0x1]
      %v6236 = vlaneseq
      %v6237 = vshrl.u32 %v6236, 7
      %v6238 = vsub.s32 0, %v6237
      %v6239 = vrot.slane %v6234, %v6238
      %v6241 = vadd.f32 %v5926, %v6239
      %v6242 = vadd.f32 %v5927, %v6239
      %v6243 = vadd.f32 %v5928, %v6239
      %v6244 = vadd.f32 %v5929, %v6239
      %v6245 = vadd.f32 %v5930, %v6239
      %v6246 = vadd.f32 %v5931, %v6239
      %v6247 = vadd.f32 %v5932, %v6239
      %v6248 = vadd.f32 %v5933, %v6239
      %v6249 = vadd.f32 %v5934, %v6239
      %v6250 = vadd.f32 %v5935, %v6239
      %v6251 = vadd.f32 %v5936, %v6239
      %v6252 = vadd.f32 %v5937, %v6239
      %v6253 = vadd.f32 %v5938, %v6239
      %v6254 = vadd.f32 %v5939, %v6239
      %v6255 = vadd.f32 %v5940, %v6239
      %v6256 = vadd.f32 %v5941, %v6239
      %v6257 = vadd.f32 %v5942, %v6239
      %v6258 = vadd.f32 %v5943, %v6239
      %v6259 = vadd.f32 %v5944, %v6239
      %v6260 = vadd.f32 %v5945, %v6239
      %v6261 = vadd.f32 %v5946, %v6239
      %v6262 = vadd.f32 %v5947, %v6239
      %v6263 = vadd.f32 %v5948, %v6239
      %v6264 = vadd.f32 %v5949, %v6239
      %v6265 = vadd.f32 %v5950, %v6239
      %v6266 = vadd.f32 %v5951, %v6239
      %v6267 = vadd.f32 %v5952, %v6239
      %v6268 = vadd.f32 %v5953, %v6239
      %v6269 = vadd.f32 %v5954, %v6239
      %v6270 = vadd.f32 %v5955, %v6239
      %v6271 = vadd.f32 %v5956, %v6239
      %v6272 = vadd.f32 %v5957, %v6239
      %v6273 = vld [vmem:[%s819] sm:$0x1]
      %v6275 = vlaneseq
      %v6276 = vshrl.u32 %v6275, 7
      %v6277 = vsub.s32 0, %v6276
      %v6278 = vrot.slane %v6273, %v6277
      %v6280 = vadd.f32 %v6202, %v6278
      %v6281 = vadd.f32 %v6203, %v6278
      %v6282 = vadd.f32 %v6204, %v6278
      %v6283 = vadd.f32 %v6205, %v6278
      %v6284 = vadd.f32 %v6206, %v6278
      %v6285 = vadd.f32 %v6207, %v6278
      %v6286 = vadd.f32 %v6208, %v6278
      %v6287 = vadd.f32 %v6209, %v6278
      %v6288 = vadd.f32 %v6210, %v6278
      %v6289 = vadd.f32 %v6211, %v6278
      %v6290 = vadd.f32 %v6212, %v6278
      %v6291 = vadd.f32 %v6213, %v6278
      %v6292 = vadd.f32 %v6214, %v6278
      %v6293 = vadd.f32 %v6215, %v6278
      %v6294 = vadd.f32 %v6216, %v6278
      %v6295 = vadd.f32 %v6217, %v6278
      %v6296 = vadd.f32 %v6218, %v6278
      %v6297 = vadd.f32 %v6219, %v6278
      %v6298 = vadd.f32 %v6220, %v6278
      %v6299 = vadd.f32 %v6221, %v6278
      %v6300 = vadd.f32 %v6222, %v6278
      %v6301 = vadd.f32 %v6223, %v6278
      %v6302 = vadd.f32 %v6224, %v6278
      %v6303 = vadd.f32 %v6225, %v6278
      %v6304 = vadd.f32 %v6226, %v6278
      %v6305 = vadd.f32 %v6227, %v6278
      %v6306 = vadd.f32 %v6228, %v6278
      %v6307 = vadd.f32 %v6229, %v6278
      %v6308 = vadd.f32 %v6230, %v6278
      %v6309 = vadd.f32 %v6231, %v6278
      %v6310 = vadd.f32 %v6232, %v6278
      %v6311 = vadd.f32 %v6233, %v6278
      %v6312 = vmul.f32 %v6241, 0.5
      %v6313 = vmul.f32 %v6242, 0.5
      %v6314 = vmul.f32 %v6243, 0.5
      %v6315 = vmul.f32 %v6244, 0.5
      %v6316 = vmul.f32 %v6245, 0.5
      %v6317 = vmul.f32 %v6246, 0.5
      %v6318 = vmul.f32 %v6247, 0.5
      %v6319 = vmul.f32 %v6248, 0.5
      %v6320 = vmul.f32 %v6249, 0.5
      %v6321 = vmul.f32 %v6250, 0.5
      %v6322 = vmul.f32 %v6251, 0.5
      %v6323 = vmul.f32 %v6252, 0.5
      %v6324 = vmul.f32 %v6253, 0.5
      %v6325 = vmul.f32 %v6254, 0.5
      %v6326 = vmul.f32 %v6255, 0.5
      %v6327 = vmul.f32 %v6256, 0.5
      %v6328 = vmul.f32 %v6257, 0.5
      %v6329 = vmul.f32 %v6258, 0.5
      %v6330 = vmul.f32 %v6259, 0.5
      %v6331 = vmul.f32 %v6260, 0.5
      %v6332 = vmul.f32 %v6261, 0.5
      %v6333 = vmul.f32 %v6262, 0.5
      %v6334 = vmul.f32 %v6263, 0.5
      %v6335 = vmul.f32 %v6264, 0.5
      %v6336 = vmul.f32 %v6265, 0.5
      %v6337 = vmul.f32 %v6266, 0.5
      %v6338 = vmul.f32 %v6267, 0.5
      %v6339 = vmul.f32 %v6268, 0.5
      %v6340 = vmul.f32 %v6269, 0.5
      %v6341 = vmul.f32 %v6270, 0.5
      %v6342 = vmul.f32 %v6271, 0.5
      %v6343 = vmul.f32 %v6272, 0.5
      %v6344 = vmul.f32 %v6241, 0.70710677
      %v6345 = vmul.f32 %v6242, 0.70710677
      %v6346 = vmul.f32 %v6243, 0.70710677
      %v6347 = vmul.f32 %v6244, 0.70710677
      %v6348 = vmul.f32 %v6245, 0.70710677
      %v6349 = vmul.f32 %v6246, 0.70710677
      %v6350 = vmul.f32 %v6247, 0.70710677
      %v6351 = vmul.f32 %v6248, 0.70710677
      %v6352 = vmul.f32 %v6249, 0.70710677
      %v6353 = vmul.f32 %v6250, 0.70710677
      %v6354 = vmul.f32 %v6251, 0.70710677
      %v6355 = vmul.f32 %v6252, 0.70710677
      %v6356 = vmul.f32 %v6253, 0.70710677
      %v6357 = vmul.f32 %v6254, 0.70710677
      %v6358 = vmul.f32 %v6255, 0.70710677
      %v6359 = vmul.f32 %v6256, 0.70710677
      %v6360 = vmul.f32 %v6257, 0.70710677
      %v6361 = vmul.f32 %v6258, 0.70710677
      %v6362 = vmul.f32 %v6259, 0.70710677
      %v6363 = vmul.f32 %v6260, 0.70710677
      %v6364 = vmul.f32 %v6261, 0.70710677
      %v6365 = vmul.f32 %v6262, 0.70710677
      %v6366 = vmul.f32 %v6263, 0.70710677
      %v6367 = vmul.f32 %v6264, 0.70710677
      %v6368 = vmul.f32 %v6265, 0.70710677
      %v6369 = vmul.f32 %v6266, 0.70710677
      %v6370 = vmul.f32 %v6267, 0.70710677
      %v6371 = vmul.f32 %v6268, 0.70710677
      %v6372 = vmul.f32 %v6269, 0.70710677
      %v6373 = vmul.f32 %v6270, 0.70710677
      %v6374 = vmul.f32 %v6271, 0.70710677
      %v6375 = vmul.f32 %v6272, 0.70710677
      %v6376 = verf.f32.pop %v6344
      %v6377 = verf.f32.pop %v6345
      %v6378 = verf.f32.pop %v6346
      %v6379 = verf.f32.pop %v6347
      %v6380 = verf.f32.pop %v6348
      %v6381 = verf.f32.pop %v6349
      %v6382 = verf.f32.pop %v6350
      %v6383 = verf.f32.pop %v6351
      %v6384 = verf.f32.pop %v6352
      %v6385 = verf.f32.pop %v6353
      %v6386 = verf.f32.pop %v6354
      %v6387 = verf.f32.pop %v6355
      %v6388 = verf.f32.pop %v6356
      %v6389 = verf.f32.pop %v6357
      %v6390 = verf.f32.pop %v6358
      %v6391 = verf.f32.pop %v6359
      %v6392 = verf.f32.pop %v6360
      %v6393 = verf.f32.pop %v6361
      %v6394 = verf.f32.pop %v6362
      %v6395 = verf.f32.pop %v6363
      %v6396 = verf.f32.pop %v6364
      %v6397 = verf.f32.pop %v6365
      %v6398 = verf.f32.pop %v6366
      %v6399 = verf.f32.pop %v6367
      %v6400 = verf.f32.pop %v6368
      %v6401 = verf.f32.pop %v6369
      %v6402 = verf.f32.pop %v6370
      %v6403 = verf.f32.pop %v6371
      %v6404 = verf.f32.pop %v6372
      %v6405 = verf.f32.pop %v6373
      %v6406 = verf.f32.pop %v6374
      %v6407 = verf.f32.pop %v6375
      %v6408 = vadd.f32 %v6376, 1.0
      %v6409 = vadd.f32 %v6377, 1.0
      %v6410 = vadd.f32 %v6378, 1.0
      %v6411 = vadd.f32 %v6379, 1.0
      %v6412 = vadd.f32 %v6380, 1.0
      %v6413 = vadd.f32 %v6381, 1.0
      %v6414 = vadd.f32 %v6382, 1.0
      %v6415 = vadd.f32 %v6383, 1.0
      %v6416 = vadd.f32 %v6384, 1.0
      %v6417 = vadd.f32 %v6385, 1.0
      %v6418 = vadd.f32 %v6386, 1.0
      %v6419 = vadd.f32 %v6387, 1.0
      %v6420 = vadd.f32 %v6388, 1.0
      %v6421 = vadd.f32 %v6389, 1.0
      %v6422 = vadd.f32 %v6390, 1.0
      %v6423 = vadd.f32 %v6391, 1.0
      %v6424 = vadd.f32 %v6392, 1.0
      %v6425 = vadd.f32 %v6393, 1.0
      %v6426 = vadd.f32 %v6394, 1.0
      %v6427 = vadd.f32 %v6395, 1.0
      %v6428 = vadd.f32 %v6396, 1.0
      %v6429 = vadd.f32 %v6397, 1.0
      %v6430 = vadd.f32 %v6398, 1.0
      %v6431 = vadd.f32 %v6399, 1.0
      %v6432 = vadd.f32 %v6400, 1.0
      %v6433 = vadd.f32 %v6401, 1.0
      %v6434 = vadd.f32 %v6402, 1.0
      %v6435 = vadd.f32 %v6403, 1.0
      %v6436 = vadd.f32 %v6404, 1.0
      %v6437 = vadd.f32 %v6405, 1.0
      %v6438 = vadd.f32 %v6406, 1.0
      %v6439 = vadd.f32 %v6407, 1.0
      %v6440 = vmul.f32 %v6312, %v6408
      %v6441 = vmul.f32 %v6313, %v6409
      %v6442 = vmul.f32 %v6314, %v6410
      %v6443 = vmul.f32 %v6315, %v6411
      %v6444 = vmul.f32 %v6316, %v6412
      %v6445 = vmul.f32 %v6317, %v6413
      %v6446 = vmul.f32 %v6318, %v6414
      %v6447 = vmul.f32 %v6319, %v6415
      %v6448 = vmul.f32 %v6320, %v6416
      %v6449 = vmul.f32 %v6321, %v6417
      %v6450 = vmul.f32 %v6322, %v6418
      %v6451 = vmul.f32 %v6323, %v6419
      %v6452 = vmul.f32 %v6324, %v6420
      %v6453 = vmul.f32 %v6325, %v6421
      %v6454 = vmul.f32 %v6326, %v6422
      %v6455 = vmul.f32 %v6327, %v6423
      %v6456 = vmul.f32 %v6328, %v6424
      %v6457 = vmul.f32 %v6329, %v6425
      %v6458 = vmul.f32 %v6330, %v6426
      %v6459 = vmul.f32 %v6331, %v6427
      %v6460 = vmul.f32 %v6332, %v6428
      %v6461 = vmul.f32 %v6333, %v6429
      %v6462 = vmul.f32 %v6334, %v6430
      %v6463 = vmul.f32 %v6335, %v6431
      %v6464 = vmul.f32 %v6336, %v6432
      %v6465 = vmul.f32 %v6337, %v6433
      %v6466 = vmul.f32 %v6338, %v6434
      %v6467 = vmul.f32 %v6339, %v6435
      %v6468 = vmul.f32 %v6340, %v6436
      %v6469 = vmul.f32 %v6341, %v6437
      %v6470 = vmul.f32 %v6342, %v6438
      %v6471 = vmul.f32 %v6343, %v6439
      %v6472 = vmul.f32 %v6440, %v6280
      %v6473 = vmul.f32 %v6441, %v6281
      %v6474 = vmul.f32 %v6442, %v6282
      %v6475 = vmul.f32 %v6443, %v6283
      %v6476 = vmul.f32 %v6444, %v6284
      %v6477 = vmul.f32 %v6445, %v6285
      %v6478 = vmul.f32 %v6446, %v6286
      %v6479 = vmul.f32 %v6447, %v6287
      %v6480 = vmul.f32 %v6448, %v6288
      %v6481 = vmul.f32 %v6449, %v6289
      %v6482 = vmul.f32 %v6450, %v6290
      %v6483 = vmul.f32 %v6451, %v6291
      %v6484 = vmul.f32 %v6452, %v6292
      %v6485 = vmul.f32 %v6453, %v6293
      %v6486 = vmul.f32 %v6454, %v6294
      %v6487 = vmul.f32 %v6455, %v6295
      %v6488 = vmul.f32 %v6456, %v6296
      %v6489 = vmul.f32 %v6457, %v6297
      %v6490 = vmul.f32 %v6458, %v6298
      %v6491 = vmul.f32 %v6459, %v6299
      %v6492 = vmul.f32 %v6460, %v6300
      %v6493 = vmul.f32 %v6461, %v6301
      %v6494 = vmul.f32 %v6462, %v6302
      %v6495 = vmul.f32 %v6463, %v6303
      %v6496 = vmul.f32 %v6464, %v6304
      %v6497 = vmul.f32 %v6465, %v6305
      %v6498 = vmul.f32 %v6466, %v6306
      %v6499 = vmul.f32 %v6467, %v6307
      %v6500 = vmul.f32 %v6468, %v6308
      %v6501 = vmul.f32 %v6469, %v6309
      %v6502 = vmul.f32 %v6470, %v6310
      %v6503 = vmul.f32 %v6471, %v6311
      %v6504 = vpack.c.bf16 %v6473, %v6472
      %v6505 = vpack.c.bf16 %v6475, %v6474
      %v6506 = vpack.c.bf16 %v6477, %v6476
      %v6507 = vpack.c.bf16 %v6479, %v6478
      %v6508 = vpack.c.bf16 %v6481, %v6480
      %v6509 = vpack.c.bf16 %v6483, %v6482
      %v6510 = vpack.c.bf16 %v6485, %v6484
      %v6511 = vpack.c.bf16 %v6487, %v6486
      %v6512 = vpack.c.bf16 %v6489, %v6488
      %v6513 = vpack.c.bf16 %v6491, %v6490
      %v6514 = vpack.c.bf16 %v6493, %v6492
      %v6515 = vpack.c.bf16 %v6495, %v6494
      %v6516 = vpack.c.bf16 %v6497, %v6496
      %v6517 = vpack.c.bf16 %v6499, %v6498
      %v6518 = vpack.c.bf16 %v6501, %v6500
      %v6519 = vpack.c.bf16 %v6503, %v6502
      %v6536 = vunpack.c.l.b16 %v6504
      %v6537 = vunpack.c.h.b16 %v6504
      %v6538 = vunpack.c.l.b16 %v6505
      %v6539 = vunpack.c.h.b16 %v6505
      %v6540 = vunpack.c.l.b16 %v6506
      %v6541 = vunpack.c.h.b16 %v6506
      %v6542 = vunpack.c.l.b16 %v6507
      %v6543 = vunpack.c.h.b16 %v6507
      %v6544 = vunpack.c.l.b16 %v6508
      %v6545 = vunpack.c.h.b16 %v6508
      %v6546 = vunpack.c.l.b16 %v6509
      %v6547 = vunpack.c.h.b16 %v6509
      %v6548 = vunpack.c.l.b16 %v6510
      %v6549 = vunpack.c.h.b16 %v6510
      %v6550 = vunpack.c.l.b16 %v6511
      %v6551 = vunpack.c.h.b16 %v6511
      %v6552 = vunpack.c.l.b16 %v6512
      %v6553 = vunpack.c.h.b16 %v6512
      %v6554 = vunpack.c.l.b16 %v6513
      %v6555 = vunpack.c.h.b16 %v6513
      %v6556 = vunpack.c.l.b16 %v6514
      %v6557 = vunpack.c.h.b16 %v6514
      %v6558 = vunpack.c.l.b16 %v6515
      %v6559 = vunpack.c.h.b16 %v6515
      %v6560 = vunpack.c.l.b16 %v6516
      %v6561 = vunpack.c.h.b16 %v6516
      %v6562 = vunpack.c.l.b16 %v6517
      %v6563 = vunpack.c.h.b16 %v6517
      %v6564 = vunpack.c.l.b16 %v6518
      %v6565 = vunpack.c.h.b16 %v6518
      %v6566 = vunpack.c.l.b16 %v6519
      %v6567 = vunpack.c.h.b16 %v6519
      %v6568 = vpack.c.b16 %v6536, %v6536
      %v6569 = vpack.c.b16 %v6537, %v6537
      %v6570 = vpack.c.b16 %v6538, %v6538
      %v6571 = vpack.c.b16 %v6539, %v6539
      %v6572 = vpack.c.b16 %v6540, %v6540
      %v6573 = vpack.c.b16 %v6541, %v6541
      %v6574 = vpack.c.b16 %v6542, %v6542
      %v6575 = vpack.c.b16 %v6543, %v6543
      %v6576 = vpack.c.b16 %v6544, %v6544
      %v6577 = vpack.c.b16 %v6545, %v6545
      %v6578 = vpack.c.b16 %v6546, %v6546
      %v6579 = vpack.c.b16 %v6547, %v6547
      %v6580 = vpack.c.b16 %v6548, %v6548
      %v6581 = vpack.c.b16 %v6549, %v6549
      %v6582 = vpack.c.b16 %v6550, %v6550
      %v6583 = vpack.c.b16 %v6551, %v6551
      %v6584 = vpack.c.b16 %v6552, %v6552
      %v6585 = vpack.c.b16 %v6553, %v6553
      %v6586 = vpack.c.b16 %v6554, %v6554
      %v6587 = vpack.c.b16 %v6555, %v6555
      %v6588 = vpack.c.b16 %v6556, %v6556
      %v6589 = vpack.c.b16 %v6557, %v6557
      %v6590 = vpack.c.b16 %v6558, %v6558
      %v6591 = vpack.c.b16 %v6559, %v6559
      %v6592 = vpack.c.b16 %v6560, %v6560
      %v6593 = vpack.c.b16 %v6561, %v6561
      %v6594 = vpack.c.b16 %v6562, %v6562
      %v6595 = vpack.c.b16 %v6563, %v6563
      %v6596 = vpack.c.b16 %v6564, %v6564
      %v6597 = vpack.c.b16 %v6565, %v6565
      %v6598 = vpack.c.b16 %v6566, %v6566
      %v6599 = vpack.c.b16 %v6567, %v6567
      %6632 = vst.msk [vmem:[%s832] sm:$0xf] %vm1198, %v6568
      %6633 = vst.msk [vmem:[%s832 + $0x4] sm:$0xf] %vm1198, %v6569
      %6634 = vst.msk [vmem:[%s832 + $0x8] sm:$0xf] %vm1198, %v6570
      %6635 = vst.msk [vmem:[%s832 + $0xc] sm:$0xf] %vm1198, %v6571
      %6636 = vst.msk [vmem:[%s832 + $0x10] sm:$0xf] %vm1198, %v6572
      %6637 = vst.msk [vmem:[%s832 + $0x14] sm:$0xf] %vm1198, %v6573
      %6638 = vst.msk [vmem:[%s832 + $0x18] sm:$0xf] %vm1198, %v6574
      %6639 = vst.msk [vmem:[%s832 + $0x1c] sm:$0xf] %vm1198, %v6575
      %6640 = vst.msk [vmem:[%s832 + $0x20] sm:$0xf] %vm1198, %v6576
      %6641 = vst.msk [vmem:[%s832 + $0x24] sm:$0xf] %vm1198, %v6577
      %6642 = vst.msk [vmem:[%s832 + $0x28] sm:$0xf] %vm1198, %v6578
      %6643 = vst.msk [vmem:[%s832 + $0x2c] sm:$0xf] %vm1198, %v6579
      %6644 = vst.msk [vmem:[%s832 + $0x30] sm:$0xf] %vm1198, %v6580
      %6645 = vst.msk [vmem:[%s832 + $0x34] sm:$0xf] %vm1198, %v6581
      %6646 = vst.msk [vmem:[%s832 + $0x38] sm:$0xf] %vm1198, %v6582
      %6647 = vst.msk [vmem:[%s832 + $0x3c] sm:$0xf] %vm1198, %v6583
      %6648 = vst.msk [vmem:[%s832 + $0x40] sm:$0xf] %vm1198, %v6584
      %6649 = vst.msk [vmem:[%s832 + $0x44] sm:$0xf] %vm1198, %v6585
      %6650 = vst.msk [vmem:[%s832 + $0x48] sm:$0xf] %vm1198, %v6586
      %6651 = vst.msk [vmem:[%s832 + $0x4c] sm:$0xf] %vm1198, %v6587
      %6652 = vst.msk [vmem:[%s832 + $0x50] sm:$0xf] %vm1198, %v6588
      %6653 = vst.msk [vmem:[%s832 + $0x54] sm:$0xf] %vm1198, %v6589
      %6654 = vst.msk [vmem:[%s832 + $0x58] sm:$0xf] %vm1198, %v6590
      %6655 = vst.msk [vmem:[%s832 + $0x5c] sm:$0xf] %vm1198, %v6591
      %6656 = vst.msk [vmem:[%s832 + $0x60] sm:$0xf] %vm1198, %v6592
      %6657 = vst.msk [vmem:[%s832 + $0x64] sm:$0xf] %vm1198, %v6593
      %6658 = vst.msk [vmem:[%s832 + $0x68] sm:$0xf] %vm1198, %v6594
      %6659 = vst.msk [vmem:[%s832 + $0x6c] sm:$0xf] %vm1198, %v6595
      %6660 = vst.msk [vmem:[%s832 + $0x70] sm:$0xf] %vm1198, %v6596
      %6661 = vst.msk [vmem:[%s832 + $0x74] sm:$0xf] %vm1198, %v6597
      %6662 = vst.msk [vmem:[%s832 + $0x78] sm:$0xf] %vm1198, %v6598
      %6663 = vst.msk [vmem:[%s832 + $0x7c] sm:$0xf] %vm1198, %v6599
      %s6664 = smul.u32 16, %s28
      %p6665 = scmp.lt.s32.totalorder %s26, 1
      %s6666 = scalar_select %p6665, %s26, 1
      %p6667 = scmp.lt.s32.totalorder %s6664, 15
      %s6668 = scalar_select %p6667, %s6664, 15
      %p6669 = scmp.lt.s32.totalorder %s27, 0
      %s6670 = scalar_select %p6669, %s27, 0
      %s6671 = smul.addr %s6668, 2
      %s6672 = sadd.s32 %s6670, %s6671
      %s6673 = smul.addr %s6666, 32
      %s6674 = sadd.s32 %s6672, %s6673
      %s6675 = smul.addr %s6674, 4
      %s6676 = scalar_lea.vmem %s10, %s6675
      // Predicated region
      $region61: #{feed_forward.4} parent=59 // pred_check
        %p6677 = pneg %p378
      $region62: #{feed_forward.4} parent=59 // pred_check_branch
        %6679 = sbr.rel (%p6677) target = $region64
      $region63: #{feed_forward.4} parent=59 // pred_region
        %s6680 = smul.u32 16, %s28
      $region64: #{feed_forward.4} parent=59 // pred_fallthru
        _
    $region60: #{feed_forward.4} parent=5 // pred_fallthru
      _
    %p6681 = scmp.le.s32.totalorder 2, %s16
    // Predicated region
    $region65: #{feed_forward.4} parent=5 // pred_check
      %p6682 = pneg %p6681
    $region66: #{feed_forward.4} parent=5 // pred_check_branch
      %6684 = sbr.rel (%p6682) target = $region68
    $region67: #{feed_forward.4} parent=5 // pred_region
      %s6685 = ssub.s32 %s16, 2
      // Predicated region
      $region69: #{feed_forward.4} parent=67 // pred_check
        %p6686 = pneg %p384
      $region70: #{feed_forward.4} parent=67 // pred_check_branch
        %6688 = sbr.rel (%p6686) target = $region72
      $region71: #{feed_forward.4} parent=67 // pred_region
        %s6689 = smul.u32 16, %s31
        %p6690 = scmp.lt.s32.totalorder %s29, 1
        %s6691 = scalar_select %p6690, %s29, 1
        %p6692 = scmp.lt.s32.totalorder %s6689, 15
        %s6693 = scalar_select %p6692, %s6689, 15
        %p6694 = scmp.lt.s32.totalorder %s30, 0
        %s6695 = scalar_select %p6694, %s30, 0
        %s6696 = smul.addr %s6693, 2
        %s6697 = sadd.s32 %s6695, %s6696
        %s6698 = smul.addr %s6691, 32
        %s6699 = sadd.s32 %s6697, %s6698
        %s6700 = smul.addr %s6699, 4
        %s6701 = scalar_lea.vmem %s10, %s6700
      $region72: #{feed_forward.4} parent=67 // pred_fallthru
        _
    $region68: #{feed_forward.4} parent=5 // pred_fallthru
      _
  $region6: #{feed_forward.4} parent=0 // loop_footer
    %s20 = sadd.s32 1, %s16
  $region7: #{feed_forward.4} parent=0 // loop_footer_branch
    %15 = sbr.rel target = $region3
  $region8: #{feed_forward.4} parent=0 // loop_exit
    _

</llo_original>
